<compile_context>
chip_gen: v6e
topology: v6e:2x2x1
jax: 0.10.0
libtpu: 0.0.40
codegen_flags: <defaults>
</compile_context>

<pallas_src>
import math

import jax
import jax.numpy as jnp
from jax import lax
from jax.experimental import pallas as pl
from jax.experimental.pallas import tpu as pltpu

SPATIAL = 196
FEAT = 512
HIDDEN = 128
GATES = 4 * HIDDEN          # 512

FB = 8                      # frames per attention-pool block
BB = 8                      # batch rows per LSTM block


# ----------------------------------------------------------------------------
# Kernel 1: spatial attention pooling + fused LSTM input projection
# ----------------------------------------------------------------------------
def atten_pool_kernel(x_ref, wcol_ref, batt_ref, wih_ref, bias_ref,
                      o_ref, pooled_ref):
    # x_ref:    (1, FB, 196, 512)
    # wcol_ref: (512, 1)      batt_ref: (1, 1)
    # wih_ref:  (512, 512)=W_ih^T      bias_ref: (1, 512)=b_ih+b_hh
    # o_ref:    (1, FB, 512)  gates_x block
    # pooled_ref: VMEM scratch (FB, 512)
    wcol = wcol_ref[...]                                     # (512, 1)
    for f in range(FB):                                      # static unroll
        x_f = x_ref[0, f]                                    # (196, 512)
        # attention scores: MXU matmul, contraction over the lane axis of x_f
        s = jnp.dot(x_f, wcol,
                    preferred_element_type=jnp.float32) + batt_ref[...]  # (196,1)
        # softmax over the 196 spatial positions (sublane axis)
        m = jnp.max(s, axis=0, keepdims=True)
        e = jnp.exp(s - m)
        p = e / jnp.sum(e, axis=0, keepdims=True)            # (196, 1)
        # weighted pooling: VPU broadcast-multiply + sublane reduce (no transpose)
        pooled_ref[pl.ds(f, 1), :] = jnp.sum(x_f * p, axis=0, keepdims=True)
    pooled = pooled_ref[...]                                 # (FB, 512)
    # fused LSTM input projection (hoisted out of the recurrence)
    gx = (jnp.dot(pooled, wih_ref[...],
                  preferred_element_type=jnp.float32)
          + bias_ref[...])                                   # (FB, 512)
    o_ref[0] = gx.astype(o_ref.dtype)


def attention_pool_project(x, w_att_col, b_att, wih_t, bias):
    B, T_pad, S, F = x.shape
    assert S == SPATIAL and F == FEAT and T_pad % FB == 0
    return pl.pallas_call(
        atten_pool_kernel,
        out_shape=jax.ShapeDtypeStruct((B, T_pad, GATES), jnp.float32),
        grid_spec=pltpu.PrefetchScalarGridSpec(
            num_scalar_prefetch=0,
            grid=(B, T_pad // FB),
            in_specs=[
                pl.BlockSpec((1, FB, SPATIAL, FEAT), lambda b, t: (b, t, 0, 0)),
                pl.BlockSpec((FEAT, 1), lambda b, t: (0, 0)),
                pl.BlockSpec((1, 1), lambda b, t: (0, 0)),
                pl.BlockSpec((FEAT, GATES), lambda b, t: (0, 0)),
                pl.BlockSpec((1, GATES), lambda b, t: (0, 0)),
            ],
            out_specs=pl.BlockSpec((1, FB, GATES), lambda b, t: (b, t, 0)),
            scratch_shapes=[pltpu.VMEM((FB, FEAT), jnp.float32)],
        ),
        compiler_params=pltpu.CompilerParams(
            dimension_semantics=("parallel", "parallel")),
    )(x, w_att_col, b_att, wih_t, bias)


# ----------------------------------------------------------------------------
# Kernel 2: batched LSTM recurrence + score head + length-masked max over time
# ----------------------------------------------------------------------------
def lstm_score_kernel(gx_ref, whh_ref, ws_ref, bs_ref, len_ref,
                      out_ref, hs_ref):
    # gx_ref:  (T, BB, 512) precomputed gates_x (incl. bias), time-major/aligned
    # whh_ref: (128, 512)=W_hh^T   ws_ref: (1, 128)   bs_ref: (1, 1)
    # len_ref: (1, BB) int32       out_ref: (1, BB)
    # hs_ref:  VMEM scratch (T, BB, 128)
    T = gx_ref.shape[0]
    H = HIDDEN

    def step(t, carry):
        h, c = carry
        gates = gx_ref[t] + jnp.dot(h, whh_ref[...],
                                    preferred_element_type=jnp.float32)  # (BB, 4H)
        i_g = jax.nn.sigmoid(gates[:, 0:H])
        f_g = jax.nn.sigmoid(gates[:, H:2 * H])
        g_g = jnp.tanh(gates[:, 2 * H:3 * H])
        o_g = jax.nn.sigmoid(gates[:, 3 * H:4 * H])
        c_new = f_g * c + i_g * g_g
        h_new = o_g * jnp.tanh(c_new)
        hs_ref[t] = h_new
        return h_new, c_new

    h0 = jnp.zeros((BB, H), jnp.float32)
    c0 = jnp.zeros((BB, H), jnp.float32)
    lax.fori_loop(0, T, step, (h0, c0), unroll=4)

    # score head (Linear(128,1)+sigmoid) on all timesteps at once, then
    # length-masked running max (== pack/pad + per-sample max in PyTorch).
    hs = hs_ref[...]                                         # (T, BB, 128)
    s = jnp.sum(hs * ws_ref[...], axis=-1)                   # (T, BB)
    s = jax.nn.sigmoid(s + bs_ref[...])                      # (T, BB)
    t_idx = lax.broadcasted_iota(jnp.int32, s.shape, 0)
    valid = t_idx < len_ref[...]                             # (T, BB)
    s = jnp.where(valid, s, -1.0)
    out_ref[...] = jnp.max(s, axis=0, keepdims=True)         # (1, BB)


def lstm_score(gx_t, lengths2d, whh_t, w_score, b_score):
    T_pad, B_pad, G = gx_t.shape
    assert G == GATES and B_pad % BB == 0
    nB = B_pad // BB
    return pl.pallas_call(
        lstm_score_kernel,
        out_shape=jax.ShapeDtypeStruct((nB, BB), jnp.float32),
        grid_spec=pltpu.PrefetchScalarGridSpec(
            num_scalar_prefetch=0,
            grid=(nB,),
            in_specs=[
                pl.BlockSpec((T_pad, BB, GATES), lambda i: (0, i, 0)),
                pl.BlockSpec((HIDDEN, GATES), lambda i: (0, 0)),
                pl.BlockSpec((1, HIDDEN), lambda i: (0, 0)),
                pl.BlockSpec((1, 1), lambda i: (0, 0)),
                pl.BlockSpec((1, BB), lambda i: (i, 0)),
            ],
            out_specs=pl.BlockSpec((1, BB), lambda i: (i, 0)),
            scratch_shapes=[pltpu.VMEM((T_pad, BB, HIDDEN), jnp.float32)],
        ),
        compiler_params=pltpu.CompilerParams(
            dimension_semantics=("parallel",)),
    )(gx_t, whh_t, w_score, b_score, lengths2d)


# ----------------------------------------------------------------------------
# Parameter init (deterministic, synthetic — matches shapes of the nn.Module)
# ----------------------------------------------------------------------------
def xavier_normal(key, shape):
    fan_out, fan_in = shape
    std = math.sqrt(2.0 / (fan_in + fan_out))
    return std * jax.random.normal(key, shape, jnp.float32)


def init_params(key):
    ks = jax.random.split(key, 6)
    return dict(
        w_att=xavier_normal(ks[0], (1, FEAT)),            # atten_score.weight
        b_att=0.1 * jax.random.normal(ks[1], (1,), jnp.float32),
        w_score=xavier_normal(ks[2], (1, HIDDEN)),         # score.weight
        b_score=0.1 * jax.random.normal(ks[3], (1,), jnp.float32),
        w_ih=xavier_normal(ks[4], (GATES, FEAT)),          # lstm.weight_ih_l0
        w_hh=xavier_normal(ks[5], (GATES, HIDDEN)),        # lstm.weight_hh_l0
        b_ih=jnp.zeros((GATES,), jnp.float32),             # constant 0.0 init
        b_hh=jnp.zeros((GATES,), jnp.float32),
    )


# ----------------------------------------------------------------------------
# Full forward (glue in plain JAX, hot path in Pallas)
# ----------------------------------------------------------------------------
def spa_atten_lstm_v2_forward(x, lengths, p):
    B, T, S, F = x.shape
    assert S == SPATIAL and F == FEAT
    T_pad = ((T + FB - 1) // FB) * FB
    B_pad = ((B + BB - 1) // BB) * BB
    if T_pad != T:
        x = jnp.pad(x, ((0, 0), (0, T_pad - T), (0, 0), (0, 0)))

    bias = (p['b_ih'] + p['b_hh']).reshape(1, GATES)
    # Kernel 1: attention pooling fused with the LSTM input projection.
    gx = attention_pool_project(x, p['w_att'].T, p['b_att'].reshape(1, 1),
                                p['w_ih'].T, bias)           # (B, T_pad, 512)

    # Time-major layout so the recurrence reads aligned (BB, 512) tiles.
    gx_t = jnp.transpose(gx, (1, 0, 2))                      # (T_pad, B, 512)
    if B_pad != B:
        gx_t = jnp.pad(gx_t, ((0, 0), (0, B_pad - B), (0, 0)))
    # NOTE: pack_padded/pad_packed + per-sample max == full-length recurrence
    # with timesteps >= length masked out inside the kernel (lengths >= 1).
    lengths_p = jnp.pad(lengths.astype(jnp.int32),
                        (0, B_pad - B)).reshape(B_pad // BB, BB)

    best = lstm_score(gx_t, lengths_p, p['w_hh'].T,
                      p['w_score'], p['b_score'].reshape(1, 1))   # (nB, BB)
    return best.reshape(B_pad)[:B].reshape(B, 1)


# ----------------------------------------------------------------------------
# Pure-JAX reference (for correctness check)
# ----------------------------------------------------------------------------
def reference_forward(x, lengths, p):
    B, T, S, F = x.shape
    att = jnp.einsum('btsf,f->bts', x, p['w_att'][0]) + p['b_att'][0]
    w = jax.nn.softmax(att, axis=-1)                       # softmax over 196
    wx = jnp.einsum('btsf,bts->btf', x, w)                 # (B, T, 512)
    H = HIDDEN
    h = jnp.zeros((B, H), jnp.float32)
    c = jnp.zeros((B, H), jnp.float32)
    best = jnp.full((B,), -1.0, jnp.float32)
    for t in range(T):
        gates = (wx[:, t] @ p['w_ih'].T + h @ p['w_hh'].T
                 + p['b_ih'] + p['b_hh'])
        i = jax.nn.sigmoid(gates[:, :H])
        f = jax.nn.sigmoid(gates[:, H:2 * H])
        g = jnp.tanh(gates[:, 2 * H:3 * H])
        o = jax.nn.sigmoid(gates[:, 3 * H:])
        c = f * c + i * g
        h = o * jnp.tanh(c)
        sc = jax.nn.sigmoid(h @ p['w_score'][0] + p['b_score'][0])
        best = jnp.where(t < lengths, jnp.maximum(best, sc), best)
    return best[:, None]


if __name__ == "__main__":
    B, T = 2, 8
    key = jax.random.PRNGKey(0)
    kx, kp = jax.random.split(key)
    x = jax.random.normal(kx, (B, T, SPATIAL, FEAT), jnp.float32)
    # pack_padded_sequence expects lengths sorted descending, each >= 1
    lengths = jnp.array([8, 6], dtype=jnp.int32)
    params = init_params(kp)

    out = jax.block_until_ready(spa_atten_lstm_v2_forward(x, lengths, params))
    ref = jax.block_until_ready(reference_forward(x, lengths, params))

    assert out.shape == (B, 1), out.shape
    assert bool(jnp.allclose(out, ref, atol=1e-3, rtol=1e-3)), (out, ref)
    print("KERNEL_OK")
</pallas_src>

<mosaic_0001>
module attributes {stable_mosaic.version = 11 : i64} {
  func.func @atten_pool_kernel(%arg0: i32, %arg1: i32, %arg2: memref<1x8x196x512xf32, #tpu.memory_space<vmem>>, %arg3: memref<512x1xf32, #tpu.memory_space<vmem>>, %arg4: memref<1x1xf32, #tpu.memory_space<vmem>>, %arg5: memref<512x512xf32, #tpu.memory_space<vmem>>, %arg6: memref<1x512xf32, #tpu.memory_space<vmem>>, %arg7: memref<1x8x512xf32, #tpu.memory_space<vmem>>, %arg8: memref<8x512xf32, #tpu.memory_space<vmem>>) attributes {dimension_semantics = [#tpu.dimension_semantics<parallel>, #tpu.dimension_semantics<parallel>], iteration_bounds = array<i64: 2, 1>, scalar_prefetch = 0 : i64, scratch_operands = 1 : i64, tpu.core_type = #tpu.core_type<tc>, window_params = [{transform_indices = @transform_0, window_bounds = array<i64: 1, 8, 196, 512>}, {pipeline_mode = #tpu.pipeline_mode<synchronous>, transform_indices = @transform_1, window_bounds = array<i64: 512, 1>}, {pipeline_mode = #tpu.pipeline_mode<synchronous>, transform_indices = @transform_2, window_bounds = array<i64: 1, 1>}, {pipeline_mode = #tpu.pipeline_mode<synchronous>, transform_indices = @transform_3, window_bounds = array<i64: 512, 512>}, {pipeline_mode = #tpu.pipeline_mode<synchronous>, transform_indices = @transform_4, window_bounds = array<i64: 1, 512>}, {transform_indices = @transform_5, window_bounds = array<i64: 1, 8, 512>}]} {
    %c0 = arith.constant 0 : index
    %c0_0 = arith.constant 0 : index
    %0 = vector.load %arg3[%c0, %c0_0] : memref<512x1xf32, #tpu.memory_space<vmem>>, vector<512x1xf32>
    %c0_1 = arith.constant 0 : index
    %c0_2 = arith.constant 0 : index
    %c0_3 = arith.constant 0 : index
    %c0_4 = arith.constant 0 : index
    %1 = vector.load %arg2[%c0_1, %c0_2, %c0_3, %c0_4] : memref<1x8x196x512xf32, #tpu.memory_space<vmem>>, vector<1x1x196x512xf32>
    %2 = vector.shape_cast %1 : vector<1x1x196x512xf32> to vector<196x512xf32>
    %cst = arith.constant dense<0.000000e+00> : vector<196x1xf32>
    %3 = tpu.matmul %2, %0, %cst {dimension_numbers = #tpu.dot_dimension_numbers<[1], [0], [0], [1], [0, 0, 1, 1], [], []>} : vector<196x512xf32>, vector<512x1xf32>, vector<196x1xf32> -> vector<196x1xf32>
    %c0_5 = arith.constant 0 : index
    %c0_6 = arith.constant 0 : index
    %4 = vector.load %arg4[%c0_5, %c0_6] : memref<1x1xf32, #tpu.memory_space<vmem>>, vector<1x1xf32>
    %5 = vector.broadcast %4 : vector<1x1xf32> to vector<196x1xf32>
    %6 = arith.addf %3, %5 : vector<196x1xf32>
    %cst_7 = arith.constant dense<0xFF800000> : vector<1xf32>
    %7 = vector.multi_reduction <maximumf>, %6, %cst_7 [0] : vector<196x1xf32> to vector<1xf32>
    %8 = vector.shape_cast %7 : vector<1xf32> to vector<1x1xf32>
    %9 = vector.broadcast %8 : vector<1x1xf32> to vector<196x1xf32>
    %10 = arith.subf %6, %9 : vector<196x1xf32>
    %11 = math.exp %10 : vector<196x1xf32>
    %cst_8 = arith.constant dense<0.000000e+00> : vector<1xf32>
    %12 = vector.multi_reduction <add>, %11, %cst_8 [0] : vector<196x1xf32> to vector<1xf32>
    %13 = vector.shape_cast %12 : vector<1xf32> to vector<1x1xf32>
    %14 = vector.broadcast %13 : vector<1x1xf32> to vector<196x1xf32>
    %15 = arith.divf %11, %14 : vector<196x1xf32>
    %16 = vector.broadcast %15 : vector<196x1xf32> to vector<196x512xf32>
    %17 = arith.mulf %2, %16 : vector<196x512xf32>
    %cst_9 = arith.constant dense<0.000000e+00> : vector<512xf32>
    %18 = vector.multi_reduction <add>, %17, %cst_9 [0] : vector<196x512xf32> to vector<512xf32>
    %19 = vector.shape_cast %18 : vector<512xf32> to vector<1x512xf32>
    %c0_10 = arith.constant 0 : index
    %c0_11 = arith.constant 0 : index
    %20 = vector.load %arg8[%c0_10, %c0_11] : memref<8x512xf32, #tpu.memory_space<vmem>>, vector<1x512xf32>
    tpu.vector_store %arg8[%c0_10, %c0_11], %19 {strides = array<i32>} : memref<8x512xf32, #tpu.memory_space<vmem>>, vector<1x512xf32>,
    %c0_12 = arith.constant 0 : index
    %c1 = arith.constant 1 : index
    %c0_13 = arith.constant 0 : index
    %c0_14 = arith.constant 0 : index
    %21 = vector.load %arg2[%c0_12, %c1, %c0_13, %c0_14] : memref<1x8x196x512xf32, #tpu.memory_space<vmem>>, vector<1x1x196x512xf32>
    %22 = vector.shape_cast %21 : vector<1x1x196x512xf32> to vector<196x512xf32>
    %cst_15 = arith.constant dense<0.000000e+00> : vector<196x1xf32>
    %23 = tpu.matmul %22, %0, %cst_15 {dimension_numbers = #tpu.dot_dimension_numbers<[1], [0], [0], [1], [0, 0, 1, 1], [], []>} : vector<196x512xf32>, vector<512x1xf32>, vector<196x1xf32> -> vector<196x1xf32>
    %c0_16 = arith.constant 0 : index
    %c0_17 = arith.constant 0 : index
    %24 = vector.load %arg4[%c0_16, %c0_17] : memref<1x1xf32, #tpu.memory_space<vmem>>, vector<1x1xf32>
    %25 = vector.broadcast %24 : vector<1x1xf32> to vector<196x1xf32>
    %26 = arith.addf %23, %25 : vector<196x1xf32>
    %cst_18 = arith.constant dense<0xFF800000> : vector<1xf32>
    %27 = vector.multi_reduction <maximumf>, %26, %cst_18 [0] : vector<196x1xf32> to vector<1xf32>
    %28 = vector.shape_cast %27 : vector<1xf32> to vector<1x1xf32>
    %29 = vector.broadcast %28 : vector<1x1xf32> to vector<196x1xf32>
    %30 = arith.subf %26, %29 : vector<196x1xf32>
    %31 = math.exp %30 : vector<196x1xf32>
    %cst_19 = arith.constant dense<0.000000e+00> : vector<1xf32>
    %32 = vector.multi_reduction <add>, %31, %cst_19 [0] : vector<196x1xf32> to vector<1xf32>
    %33 = vector.shape_cast %32 : vector<1xf32> to vector<1x1xf32>
    %34 = vector.broadcast %33 : vector<1x1xf32> to vector<196x1xf32>
    %35 = arith.divf %31, %34 : vector<196x1xf32>
    %36 = vector.broadcast %35 : vector<196x1xf32> to vector<196x512xf32>
    %37 = arith.mulf %22, %36 : vector<196x512xf32>
    %cst_20 = arith.constant dense<0.000000e+00> : vector<512xf32>
    %38 = vector.multi_reduction <add>, %37, %cst_20 [0] : vector<196x512xf32> to vector<512xf32>
    %39 = vector.shape_cast %38 : vector<512xf32> to vector<1x512xf32>
    %c1_21 = arith.constant 1 : index
    %c0_22 = arith.constant 0 : index
    %40 = vector.load %arg8[%c1_21, %c0_22] : memref<8x512xf32, #tpu.memory_space<vmem>>, vector<1x512xf32>
    tpu.vector_store %arg8[%c1_21, %c0_22], %39 {strides = array<i32>} : memref<8x512xf32, #tpu.memory_space<vmem>>, vector<1x512xf32>,
    %c0_23 = arith.constant 0 : index
    %c2 = arith.constant 2 : index
    %c0_24 = arith.constant 0 : index
    %c0_25 = arith.constant 0 : index
    %41 = vector.load %arg2[%c0_23, %c2, %c0_24, %c0_25] : memref<1x8x196x512xf32, #tpu.memory_space<vmem>>, vector<1x1x196x512xf32>
    %42 = vector.shape_cast %41 : vector<1x1x196x512xf32> to vector<196x512xf32>
    %cst_26 = arith.constant dense<0.000000e+00> : vector<196x1xf32>
    %43 = tpu.matmul %42, %0, %cst_26 {dimension_numbers = #tpu.dot_dimension_numbers<[1], [0], [0], [1], [0, 0, 1, 1], [], []>} : vector<196x512xf32>, vector<512x1xf32>, vector<196x1xf32> -> vector<196x1xf32>
    %c0_27 = arith.constant 0 : index
    %c0_28 = arith.constant 0 : index
    %44 = vector.load %arg4[%c0_27, %c0_28] : memref<1x1xf32, #tpu.memory_space<vmem>>, vector<1x1xf32>
    %45 = vector.broadcast %44 : vector<1x1xf32> to vector<196x1xf32>
    %46 = arith.addf %43, %45 : vector<196x1xf32>
    %cst_29 = arith.constant dense<0xFF800000> : vector<1xf32>
    %47 = vector.multi_reduction <maximumf>, %46, %cst_29 [0] : vector<196x1xf32> to vector<1xf32>
    %48 = vector.shape_cast %47 : vector<1xf32> to vector<1x1xf32>
    %49 = vector.broadcast %48 : vector<1x1xf32> to vector<196x1xf32>
    %50 = arith.subf %46, %49 : vector<196x1xf32>
    %51 = math.exp %50 : vector<196x1xf32>
    %cst_30 = arith.constant dense<0.000000e+00> : vector<1xf32>
    %52 = vector.multi_reduction <add>, %51, %cst_30 [0] : vector<196x1xf32> to vector<1xf32>
    %53 = vector.shape_cast %52 : vector<1xf32> to vector<1x1xf32>
    %54 = vector.broadcast %53 : vector<1x1xf32> to vector<196x1xf32>
    %55 = arith.divf %51, %54 : vector<196x1xf32>
    %56 = vector.broadcast %55 : vector<196x1xf32> to vector<196x512xf32>
    %57 = arith.mulf %42, %56 : vector<196x512xf32>
    %cst_31 = arith.constant dense<0.000000e+00> : vector<512xf32>
    %58 = vector.multi_reduction <add>, %57, %cst_31 [0] : vector<196x512xf32> to vector<512xf32>
    %59 = vector.shape_cast %58 : vector<512xf32> to vector<1x512xf32>
    %c2_32 = arith.constant 2 : index
    %c0_33 = arith.constant 0 : index
    %60 = vector.load %arg8[%c2_32, %c0_33] : memref<8x512xf32, #tpu.memory_space<vmem>>, vector<1x512xf32>
    tpu.vector_store %arg8[%c2_32, %c0_33], %59 {strides = array<i32>} : memref<8x512xf32, #tpu.memory_space<vmem>>, vector<1x512xf32>,
    %c0_34 = arith.constant 0 : index
    %c3 = arith.constant 3 : index
    %c0_35 = arith.constant 0 : index
    %c0_36 = arith.constant 0 : index
    %61 = vector.load %arg2[%c0_34, %c3, %c0_35, %c0_36] : memref<1x8x196x512xf32, #tpu.memory_space<vmem>>, vector<1x1x196x512xf32>
    %62 = vector.shape_cast %61 : vector<1x1x196x512xf32> to vector<196x512xf32>
    %cst_37 = arith.constant dense<0.000000e+00> : vector<196x1xf32>
    %63 = tpu.matmul %62, %0, %cst_37 {dimension_numbers = #tpu.dot_dimension_numbers<[1], [0], [0], [1], [0, 0, 1, 1], [], []>} : vector<196x512xf32>, vector<512x1xf32>, vector<196x1xf32> -> vector<196x1xf32>
    %c0_38 = arith.constant 0 : index
    %c0_39 = arith.constant 0 : index
    %64 = vector.load %arg4[%c0_38, %c0_39] : memref<1x1xf32, #tpu.memory_space<vmem>>, vector<1x1xf32>
    %65 = vector.broadcast %64 : vector<1x1xf32> to vector<196x1xf32>
    %66 = arith.addf %63, %65 : vector<196x1xf32>
    %cst_40 = arith.constant dense<0xFF800000> : vector<1xf32>
    %67 = vector.multi_reduction <maximumf>, %66, %cst_40 [0] : vector<196x1xf32> to vector<1xf32>
    %68 = vector.shape_cast %67 : vector<1xf32> to vector<1x1xf32>
    %69 = vector.broadcast %68 : vector<1x1xf32> to vector<196x1xf32>
    %70 = arith.subf %66, %69 : vector<196x1xf32>
    %71 = math.exp %70 : vector<196x1xf32>
    %cst_41 = arith.constant dense<0.000000e+00> : vector<1xf32>
    %72 = vector.multi_reduction <add>, %71, %cst_41 [0] : vector<196x1xf32> to vector<1xf32>
    %73 = vector.shape_cast %72 : vector<1xf32> to vector<1x1xf32>
    %74 = vector.broadcast %73 : vector<1x1xf32> to vector<196x1xf32>
    %75 = arith.divf %71, %74 : vector<196x1xf32>
    %76 = vector.broadcast %75 : vector<196x1xf32> to vector<196x512xf32>
    %77 = arith.mulf %62, %76 : vector<196x512xf32>
    %cst_42 = arith.constant dense<0.000000e+00> : vector<512xf32>
    %78 = vector.multi_reduction <add>, %77, %cst_42 [0] : vector<196x512xf32> to vector<512xf32>
    %79 = vector.shape_cast %78 : vector<512xf32> to vector<1x512xf32>
    %c3_43 = arith.constant 3 : index
    %c0_44 = arith.constant 0 : index
    %80 = vector.load %arg8[%c3_43, %c0_44] : memref<8x512xf32, #tpu.memory_space<vmem>>, vector<1x512xf32>
    tpu.vector_store %arg8[%c3_43, %c0_44], %79 {strides = array<i32>} : memref<8x512xf32, #tpu.memory_space<vmem>>, vector<1x512xf32>,
    %c0_45 = arith.constant 0 : index
    %c4 = arith.constant 4 : index
    %c0_46 = arith.constant 0 : index
    %c0_47 = arith.constant 0 : index
    %81 = vector.load %arg2[%c0_45, %c4, %c0_46, %c0_47] : memref<1x8x196x512xf32, #tpu.memory_space<vmem>>, vector<1x1x196x512xf32>
    %82 = vector.shape_cast %81 : vector<1x1x196x512xf32> to vector<196x512xf32>
    %cst_48 = arith.constant dense<0.000000e+00> : vector<196x1xf32>
    %83 = tpu.matmul %82, %0, %cst_48 {dimension_numbers = #tpu.dot_dimension_numbers<[1], [0], [0], [1], [0, 0, 1, 1], [], []>} : vector<196x512xf32>, vector<512x1xf32>, vector<196x1xf32> -> vector<196x1xf32>
    %c0_49 = arith.constant 0 : index
    %c0_50 = arith.constant 0 : index
    %84 = vector.load %arg4[%c0_49, %c0_50] : memref<1x1xf32, #tpu.memory_space<vmem>>, vector<1x1xf32>
    %85 = vector.broadcast %84 : vector<1x1xf32> to vector<196x1xf32>
    %86 = arith.addf %83, %85 : vector<196x1xf32>
    %cst_51 = arith.constant dense<0xFF800000> : vector<1xf32>
    %87 = vector.multi_reduction <maximumf>, %86, %cst_51 [0] : vector<196x1xf32> to vector<1xf32>
    %88 = vector.shape_cast %87 : vector<1xf32> to vector<1x1xf32>
    %89 = vector.broadcast %88 : vector<1x1xf32> to vector<196x1xf32>
    %90 = arith.subf %86, %89 : vector<196x1xf32>
    %91 = math.exp %90 : vector<196x1xf32>
    %cst_52 = arith.constant dense<0.000000e+00> : vector<1xf32>
    %92 = vector.multi_reduction <add>, %91, %cst_52 [0] : vector<196x1xf32> to vector<1xf32>
    %93 = vector.shape_cast %92 : vector<1xf32> to vector<1x1xf32>
    %94 = vector.broadcast %93 : vector<1x1xf32> to vector<196x1xf32>
    %95 = arith.divf %91, %94 : vector<196x1xf32>
    %96 = vector.broadcast %95 : vector<196x1xf32> to vector<196x512xf32>
    %97 = arith.mulf %82, %96 : vector<196x512xf32>
    %cst_53 = arith.constant dense<0.000000e+00> : vector<512xf32>
    %98 = vector.multi_reduction <add>, %97, %cst_53 [0] : vector<196x512xf32> to vector<512xf32>
    %99 = vector.shape_cast %98 : vector<512xf32> to vector<1x512xf32>
    %c4_54 = arith.constant 4 : index
    %c0_55 = arith.constant 0 : index
    %100 = vector.load %arg8[%c4_54, %c0_55] : memref<8x512xf32, #tpu.memory_space<vmem>>, vector<1x512xf32>
    tpu.vector_store %arg8[%c4_54, %c0_55], %99 {strides = array<i32>} : memref<8x512xf32, #tpu.memory_space<vmem>>, vector<1x512xf32>,
    %c0_56 = arith.constant 0 : index
    %c5 = arith.constant 5 : index
    %c0_57 = arith.constant 0 : index
    %c0_58 = arith.constant 0 : index
    %101 = vector.load %arg2[%c0_56, %c5, %c0_57, %c0_58] : memref<1x8x196x512xf32, #tpu.memory_space<vmem>>, vector<1x1x196x512xf32>
    %102 = vector.shape_cast %101 : vector<1x1x196x512xf32> to vector<196x512xf32>
    %cst_59 = arith.constant dense<0.000000e+00> : vector<196x1xf32>
    %103 = tpu.matmul %102, %0, %cst_59 {dimension_numbers = #tpu.dot_dimension_numbers<[1], [0], [0], [1], [0, 0, 1, 1], [], []>} : vector<196x512xf32>, vector<512x1xf32>, vector<196x1xf32> -> vector<196x1xf32>
    %c0_60 = arith.constant 0 : index
    %c0_61 = arith.constant 0 : index
    %104 = vector.load %arg4[%c0_60, %c0_61] : memref<1x1xf32, #tpu.memory_space<vmem>>, vector<1x1xf32>
    %105 = vector.broadcast %104 : vector<1x1xf32> to vector<196x1xf32>
    %106 = arith.addf %103, %105 : vector<196x1xf32>
    %cst_62 = arith.constant dense<0xFF800000> : vector<1xf32>
    %107 = vector.multi_reduction <maximumf>, %106, %cst_62 [0] : vector<196x1xf32> to vector<1xf32>
    %108 = vector.shape_cast %107 : vector<1xf32> to vector<1x1xf32>
    %109 = vector.broadcast %108 : vector<1x1xf32> to vector<196x1xf32>
    %110 = arith.subf %106, %109 : vector<196x1xf32>
    %111 = math.exp %110 : vector<196x1xf32>
    %cst_63 = arith.constant dense<0.000000e+00> : vector<1xf32>
    %112 = vector.multi_reduction <add>, %111, %cst_63 [0] : vector<196x1xf32> to vector<1xf32>
    %113 = vector.shape_cast %112 : vector<1xf32> to vector<1x1xf32>
    %114 = vector.broadcast %113 : vector<1x1xf32> to vector<196x1xf32>
    %115 = arith.divf %111, %114 : vector<196x1xf32>
    %116 = vector.broadcast %115 : vector<196x1xf32> to vector<196x512xf32>
    %117 = arith.mulf %102, %116 : vector<196x512xf32>
    %cst_64 = arith.constant dense<0.000000e+00> : vector<512xf32>
    %118 = vector.multi_reduction <add>, %117, %cst_64 [0] : vector<196x512xf32> to vector<512xf32>
    %119 = vector.shape_cast %118 : vector<512xf32> to vector<1x512xf32>
    %c5_65 = arith.constant 5 : index
    %c0_66 = arith.constant 0 : index
    %120 = vector.load %arg8[%c5_65, %c0_66] : memref<8x512xf32, #tpu.memory_space<vmem>>, vector<1x512xf32>
    tpu.vector_store %arg8[%c5_65, %c0_66], %119 {strides = array<i32>} : memref<8x512xf32, #tpu.memory_space<vmem>>, vector<1x512xf32>,
    %c0_67 = arith.constant 0 : index
    %c6 = arith.constant 6 : index
    %c0_68 = arith.constant 0 : index
    %c0_69 = arith.constant 0 : index
    %121 = vector.load %arg2[%c0_67, %c6, %c0_68, %c0_69] : memref<1x8x196x512xf32, #tpu.memory_space<vmem>>, vector<1x1x196x512xf32>
    %122 = vector.shape_cast %121 : vector<1x1x196x512xf32> to vector<196x512xf32>
    %cst_70 = arith.constant dense<0.000000e+00> : vector<196x1xf32>
    %123 = tpu.matmul %122, %0, %cst_70 {dimension_numbers = #tpu.dot_dimension_numbers<[1], [0], [0], [1], [0, 0, 1, 1], [], []>} : vector<196x512xf32>, vector<512x1xf32>, vector<196x1xf32> -> vector<196x1xf32>
    %c0_71 = arith.constant 0 : index
    %c0_72 = arith.constant 0 : index
    %124 = vector.load %arg4[%c0_71, %c0_72] : memref<1x1xf32, #tpu.memory_space<vmem>>, vector<1x1xf32>
    %125 = vector.broadcast %124 : vector<1x1xf32> to vector<196x1xf32>
    %126 = arith.addf %123, %125 : vector<196x1xf32>
    %cst_73 = arith.constant dense<0xFF800000> : vector<1xf32>
    %127 = vector.multi_reduction <maximumf>, %126, %cst_73 [0] : vector<196x1xf32> to vector<1xf32>
    %128 = vector.shape_cast %127 : vector<1xf32> to vector<1x1xf32>
    %129 = vector.broadcast %128 : vector<1x1xf32> to vector<196x1xf32>
    %130 = arith.subf %126, %129 : vector<196x1xf32>
    %131 = math.exp %130 : vector<196x1xf32>
    %cst_74 = arith.constant dense<0.000000e+00> : vector<1xf32>
    %132 = vector.multi_reduction <add>, %131, %cst_74 [0] : vector<196x1xf32> to vector<1xf32>
    %133 = vector.shape_cast %132 : vector<1xf32> to vector<1x1xf32>
    %134 = vector.broadcast %133 : vector<1x1xf32> to vector<196x1xf32>
    %135 = arith.divf %131, %134 : vector<196x1xf32>
    %136 = vector.broadcast %135 : vector<196x1xf32> to vector<196x512xf32>
    %137 = arith.mulf %122, %136 : vector<196x512xf32>
    %cst_75 = arith.constant dense<0.000000e+00> : vector<512xf32>
    %138 = vector.multi_reduction <add>, %137, %cst_75 [0] : vector<196x512xf32> to vector<512xf32>
    %139 = vector.shape_cast %138 : vector<512xf32> to vector<1x512xf32>
    %c6_76 = arith.constant 6 : index
    %c0_77 = arith.constant 0 : index
    %140 = vector.load %arg8[%c6_76, %c0_77] : memref<8x512xf32, #tpu.memory_space<vmem>>, vector<1x512xf32>
    tpu.vector_store %arg8[%c6_76, %c0_77], %139 {strides = array<i32>} : memref<8x512xf32, #tpu.memory_space<vmem>>, vector<1x512xf32>,
    %c0_78 = arith.constant 0 : index
    %c7 = arith.constant 7 : index
    %c0_79 = arith.constant 0 : index
    %c0_80 = arith.constant 0 : index
    %141 = vector.load %arg2[%c0_78, %c7, %c0_79, %c0_80] : memref<1x8x196x512xf32, #tpu.memory_space<vmem>>, vector<1x1x196x512xf32>
    %142 = vector.shape_cast %141 : vector<1x1x196x512xf32> to vector<196x512xf32>
    %cst_81 = arith.constant dense<0.000000e+00> : vector<196x1xf32>
    %143 = tpu.matmul %142, %0, %cst_81 {dimension_numbers = #tpu.dot_dimension_numbers<[1], [0], [0], [1], [0, 0, 1, 1], [], []>} : vector<196x512xf32>, vector<512x1xf32>, vector<196x1xf32> -> vector<196x1xf32>
    %c0_82 = arith.constant 0 : index
    %c0_83 = arith.constant 0 : index
    %144 = vector.load %arg4[%c0_82, %c0_83] : memref<1x1xf32, #tpu.memory_space<vmem>>, vector<1x1xf32>
    %145 = vector.broadcast %144 : vector<1x1xf32> to vector<196x1xf32>
    %146 = arith.addf %143, %145 : vector<196x1xf32>
    %cst_84 = arith.constant dense<0xFF800000> : vector<1xf32>
    %147 = vector.multi_reduction <maximumf>, %146, %cst_84 [0] : vector<196x1xf32> to vector<1xf32>
    %148 = vector.shape_cast %147 : vector<1xf32> to vector<1x1xf32>
    %149 = vector.broadcast %148 : vector<1x1xf32> to vector<196x1xf32>
    %150 = arith.subf %146, %149 : vector<196x1xf32>
    %151 = math.exp %150 : vector<196x1xf32>
    %cst_85 = arith.constant dense<0.000000e+00> : vector<1xf32>
    %152 = vector.multi_reduction <add>, %151, %cst_85 [0] : vector<196x1xf32> to vector<1xf32>
    %153 = vector.shape_cast %152 : vector<1xf32> to vector<1x1xf32>
    %154 = vector.broadcast %153 : vector<1x1xf32> to vector<196x1xf32>
    %155 = arith.divf %151, %154 : vector<196x1xf32>
    %156 = vector.broadcast %155 : vector<196x1xf32> to vector<196x512xf32>
    %157 = arith.mulf %142, %156 : vector<196x512xf32>
    %cst_86 = arith.constant dense<0.000000e+00> : vector<512xf32>
    %158 = vector.multi_reduction <add>, %157, %cst_86 [0] : vector<196x512xf32> to vector<512xf32>
    %159 = vector.shape_cast %158 : vector<512xf32> to vector<1x512xf32>
    %c7_87 = arith.constant 7 : index
    %c0_88 = arith.constant 0 : index
    %160 = vector.load %arg8[%c7_87, %c0_88] : memref<8x512xf32, #tpu.memory_space<vmem>>, vector<1x512xf32>
    tpu.vector_store %arg8[%c7_87, %c0_88], %159 {strides = array<i32>} : memref<8x512xf32, #tpu.memory_space<vmem>>, vector<1x512xf32>,
    %c0_89 = arith.constant 0 : index
    %c0_90 = arith.constant 0 : index
    %161 = vector.load %arg8[%c0_89, %c0_90] : memref<8x512xf32, #tpu.memory_space<vmem>>, vector<8x512xf32>
    %c0_91 = arith.constant 0 : index
    %c0_92 = arith.constant 0 : index
    %162 = vector.load %arg5[%c0_91, %c0_92] : memref<512x512xf32, #tpu.memory_space<vmem>>, vector<512x512xf32>
    %cst_93 = arith.constant dense<0.000000e+00> : vector<8x512xf32>
    %163 = tpu.matmul %161, %162, %cst_93 {dimension_numbers = #tpu.dot_dimension_numbers<[1], [0], [0], [1], [0, 0, 1, 1], [], []>} : vector<8x512xf32>, vector<512x512xf32>, vector<8x512xf32> -> vector<8x512xf32>
    %c0_94 = arith.constant 0 : index
    %c0_95 = arith.constant 0 : index
    %164 = vector.load %arg6[%c0_94, %c0_95] : memref<1x512xf32, #tpu.memory_space<vmem>>, vector<1x512xf32>
    %165 = vector.broadcast %164 : vector<1x512xf32> to vector<8x512xf32>
    %166 = arith.addf %163, %165 : vector<8x512xf32>
    %c0_96 = arith.constant 0 : index
    %c0_97 = arith.constant 0 : index
    %c0_98 = arith.constant 0 : index
    %167 = vector.load %arg7[%c0_96, %c0_97, %c0_98] : memref<1x8x512xf32, #tpu.memory_space<vmem>>, vector<1x8x512xf32>
    %168 = vector.shape_cast %167 : vector<1x8x512xf32> to vector<8x512xf32>
    %169 = vector.shape_cast %166 : vector<8x512xf32> to vector<1x8x512xf32>
    tpu.vector_store %arg7[%c0_96, %c0_97, %c0_98], %169 {strides = array<i32>} : memref<1x8x512xf32, #tpu.memory_space<vmem>>, vector<1x8x512xf32>,
    return
  }
  func.func @transform_0(%arg0: i32, %arg1: i32) -> (i32, i32, i32, i32) {
    %c0_i32 = arith.constant 0 : i32
    %c0_i32_0 = arith.constant 0 : i32
    %c0_i32_1 = arith.constant 0 : i32
    return %arg0, %arg1, %c0_i32, %c0_i32_0 : i32, i32, i32, i32
  }
  func.func @transform_1(%arg0: i32, %arg1: i32) -> (i32, i32) {
    %c0_i32 = arith.constant 0 : i32
    %c0_i32_0 = arith.constant 0 : i32
    %c0_i32_1 = arith.constant 0 : i32
    return %c0_i32, %c0_i32_0 : i32, i32
  }
  func.func @transform_2(%arg0: i32, %arg1: i32) -> (i32, i32) {
    %c0_i32 = arith.constant 0 : i32
    %c0_i32_0 = arith.constant 0 : i32
    %c0_i32_1 = arith.constant 0 : i32
    return %c0_i32, %c0_i32_0 : i32, i32
  }
  func.func @transform_3(%arg0: i32, %arg1: i32) -> (i32, i32) {
    %c0_i32 = arith.constant 0 : i32
    %c0_i32_0 = arith.constant 0 : i32
    %c0_i32_1 = arith.constant 0 : i32
    return %c0_i32, %c0_i32_0 : i32, i32
  }
  func.func @transform_4(%arg0: i32, %arg1: i32) -> (i32, i32) {
    %c0_i32 = arith.constant 0 : i32
    %c0_i32_0 = arith.constant 0 : i32
    %c0_i32_1 = arith.constant 0 : i32
    return %c0_i32, %c0_i32_0 : i32, i32
  }
  func.func @transform_5(%arg0: i32, %arg1: i32) -> (i32, i32, i32) {
    %c0_i32 = arith.constant 0 : i32
    %c0_i32_0 = arith.constant 0 : i32
    return %arg0, %arg1, %c0_i32 : i32, i32, i32
  }
}

</mosaic_0001>

<llo_original>
// kernel: tpu_custom_call.1
$region0: #{tpu_custom_call.1}
  #allocation0 [shape = 'u32[]', space=smem, size = 0x4, offset = 0x4, fixed_abs, tag = 'smem constant byte address 0x4 - core index']
  #allocation1 [shape = 'u32[144,128]{1,0:T(1,128)}', space=vmem, size = 0x12000, scoped, tag = 'internal scratch']
  #allocation2 [shape = 'f32[8,512]{1,0:T(8,128)}', space=vmem, size = 0x4000, scoped, tag = 'scratch operand']
  #allocation3 [shape = 'f32[1,1]{1,0:T(1,128)S(1)}', space=vmem, size = 0x200, scoped, tag = 'scoped memory for tpu_custom_call.1']
  %s0 = inlined_call_operand.vmem [shape: f32[2,8,196,512], index: 0, kind: input, shape index: {}]
  %s1 = inlined_call_operand.vmem [shape: f32[512,1], index: 1, kind: input, shape index: {}]
  %s2 = inlined_call_operand.<no memory space> [shape: f32[1,1], index: 2, kind: input, shape index: {}]
  %s3 = inlined_call_operand.vmem [shape: f32[512,512], index: 3, kind: input, shape index: {}]
  %s4 = inlined_call_operand.vmem [shape: f32[1,512], index: 4, kind: input, shape index: {}]
  %s5 = inlined_call_operand.hbm [shape: f32[2,8,512], index: 5, kind: output, shape index: {}]
  %s6 = sld [smem:[#allocation0]]
  $region53: #{tpu_custom_call.1} parent=0
    _
  %s8 = ssub.s32 1, %s6
  %s9 = scalar_select 0, %s8, %s6
  %v10 = vstv %s2
  %11 = vst [vmem:[#allocation3] sm:$0x1] %v10
  $region1: #{tpu_custom_call.1} parent=0
    #allocation4 [shape = 'u8[32768]{0}', space=vmem, size = 0x8000, scoped, tag = 'output window, operand 0']
    #allocation5 [shape = 's32[2]{0}', space=sflag, size = 0x8, scoped, tag = 'scoped memory for tpu_custom_call.1']
    %12 = vsyncpa [#allocation5], 0
    %s13 = scalar_lea.sflag [#allocation5], 1
    %14 = vsyncpa %s13, 0
    loop: start=0, step=1, limit=4
    $region2: #{tpu_custom_call.1} parent=1 // loop_pre_header
      _
    $region3: #{tpu_custom_call.1} parent=1 // loop_header
      %s16 = sphi 0, %s20
      %p17 = scmp.ge.s32.totalorder %s16, 4
      %s23 = sphi 0, %s35
      %s24 = sphi 0, %s31
      %s25 = sphi 0, %s23
      %s26 = sphi 0, %s24
      %s27 = sphi 0, %s25
      %s28 = sphi 0, %s26
      %s40 = sphi 0, %s42
      %s43 = sphi 0, %s40
      %s44 = sphi 0, %s43
      %s60 = sphi 0, %s44
      %s64 = sphi 0, %s64
      %s66 = sphi 0, %s64
      %s67 = sphi 0, %s66
      %s81 = sphi 0, %s67
      %s85 = sphi 0, %s85
      %s87 = sphi 0, %s85
      %s88 = sphi 0, %s87
      %s102 = sphi 0, %s88
      %s106 = sphi 0, %s106
      %s108 = sphi 0, %s106
      %s109 = sphi 0, %s108
      %s123 = sphi 0, %s109
      %s127 = sphi 0, %s127
      %s129 = sphi 0, %s127
      %s130 = sphi 0, %s129
      %s144 = sphi 0, %s130
      %s152 = sphi 0, %s154
      %s155 = sphi 0, %s152
      %s156 = sphi 0, %s155
      %s172 = sphi 0, %s156
    $region4: #{tpu_custom_call.1} parent=1 // loop_header_branch
      %19 = sbr.rel (%p17) target = $region8
    $region5: #{tpu_custom_call.1} parent=1 // loop_body
      %s21 = ssub.s32 %s16, 1
      %s22 = ssub.s32 %s16, 2
      %s29 = sadd.s32 1, %s24
      %p30 = scmp.ge.s32.totalorder %s29, 1
      %s31 = scalar_select %p30, 0, %s29
      %s32 = sadd.s32 1, %s23
      %s33 = scalar_select %p30, %s32, %s23
      %p34 = scmp.ge.s32.totalorder %s33, 2
      %s35 = scalar_select %p34, 0, %s33
      %s36 = ssub.s32 %s23, %s35
      %s37 = ssub.s32 %s24, %s31
      %s38 = sor.u32 %s36, %s37
      %p39 = scmp.eq.s32.totalorder %s38, 0
      %s41 = sadd.s32 %s40, 1
      %s42 = scalar_select %p39, %s40, %s41
      %p45 = pneg %p39
      %p46 = scmp.eq.s32.totalorder %s16, 1
      %p47 = por %p45, %p46
      %p48 = scmp.ne.s32.totalorder %s40, %s43
      %p49 = scmp.eq.s32.totalorder %s16, 0
      %p50 = por %p48, %p49
      %p51 = scmp.ne.s32.totalorder %s40, %s43
      %p52 = scmp.eq.s32.totalorder %s21, 1
      %p53 = por %p51, %p52
      %p54 = scmp.ne.s32.totalorder %s43, %s44
      %p55 = scmp.eq.s32.totalorder %s21, 0
      %p56 = por %p54, %p55
      %p57 = scmp.ne.s32.totalorder %s43, %s44
      %p58 = scmp.eq.s32.totalorder %s22, 1
      %p59 = por %p57, %p58
      %p61 = scmp.ne.s32.totalorder %s44, %s60
      %p62 = scmp.eq.s32.totalorder %s22, 0
      %p63 = por %p61, %p62
      %s65 = sadd.s32 %s64, 1
      %p68 = scmp.eq.s32.totalorder %s16, 1
      %p69 = scmp.ne.s32.totalorder %s64, %s66
      %p70 = scmp.eq.s32.totalorder %s16, 0
      %p71 = por %p69, %p70
      %p72 = scmp.ne.s32.totalorder %s64, %s66
      %p73 = scmp.eq.s32.totalorder %s21, 1
      %p74 = por %p72, %p73
      %p75 = scmp.ne.s32.totalorder %s66, %s67
      %p76 = scmp.eq.s32.totalorder %s21, 0
      %p77 = por %p75, %p76
      %p78 = scmp.ne.s32.totalorder %s66, %s67
      %p79 = scmp.eq.s32.totalorder %s22, 1
      %p80 = por %p78, %p79
      %p82 = scmp.ne.s32.totalorder %s67, %s81
      %p83 = scmp.eq.s32.totalorder %s22, 0
      %p84 = por %p82, %p83
      %s86 = sadd.s32 %s85, 1
      %p89 = scmp.eq.s32.totalorder %s16, 1
      %p90 = scmp.ne.s32.totalorder %s85, %s87
      %p91 = scmp.eq.s32.totalorder %s16, 0
      %p92 = por %p90, %p91
      %p93 = scmp.ne.s32.totalorder %s85, %s87
      %p94 = scmp.eq.s32.totalorder %s21, 1
      %p95 = por %p93, %p94
      %p96 = scmp.ne.s32.totalorder %s87, %s88
      %p97 = scmp.eq.s32.totalorder %s21, 0
      %p98 = por %p96, %p97
      %p99 = scmp.ne.s32.totalorder %s87, %s88
      %p100 = scmp.eq.s32.totalorder %s22, 1
      %p101 = por %p99, %p100
      %p103 = scmp.ne.s32.totalorder %s88, %s102
      %p104 = scmp.eq.s32.totalorder %s22, 0
      %p105 = por %p103, %p104
      %s107 = sadd.s32 %s106, 1
      %p110 = scmp.eq.s32.totalorder %s16, 1
      %p111 = scmp.ne.s32.totalorder %s106, %s108
      %p112 = scmp.eq.s32.totalorder %s16, 0
      %p113 = por %p111, %p112
      %p114 = scmp.ne.s32.totalorder %s106, %s108
      %p115 = scmp.eq.s32.totalorder %s21, 1
      %p116 = por %p114, %p115
      %p117 = scmp.ne.s32.totalorder %s108, %s109
      %p118 = scmp.eq.s32.totalorder %s21, 0
      %p119 = por %p117, %p118
      %p120 = scmp.ne.s32.totalorder %s108, %s109
      %p121 = scmp.eq.s32.totalorder %s22, 1
      %p122 = por %p120, %p121
      %p124 = scmp.ne.s32.totalorder %s109, %s123
      %p125 = scmp.eq.s32.totalorder %s22, 0
      %p126 = por %p124, %p125
      %s128 = sadd.s32 %s127, 1
      %p131 = scmp.eq.s32.totalorder %s16, 1
      %p132 = scmp.ne.s32.totalorder %s127, %s129
      %p133 = scmp.eq.s32.totalorder %s16, 0
      %p134 = por %p132, %p133
      %p135 = scmp.ne.s32.totalorder %s127, %s129
      %p136 = scmp.eq.s32.totalorder %s21, 1
      %p137 = por %p135, %p136
      %p138 = scmp.ne.s32.totalorder %s129, %s130
      %p139 = scmp.eq.s32.totalorder %s21, 0
      %p140 = por %p138, %p139
      %p141 = scmp.ne.s32.totalorder %s129, %s130
      %p142 = scmp.eq.s32.totalorder %s22, 1
      %p143 = por %p141, %p142
      %p145 = scmp.ne.s32.totalorder %s130, %s144
      %p146 = scmp.eq.s32.totalorder %s22, 0
      %p147 = por %p145, %p146
      %s148 = ssub.s32 %s23, %s35
      %s149 = ssub.s32 %s24, %s31
      %s150 = sor.u32 %s148, %s149
      %p151 = scmp.eq.s32.totalorder %s150, 0
      %s153 = sadd.s32 %s152, 1
      %s154 = scalar_select %p151, %s152, %s153
      %p157 = pneg %p151
      %p158 = scmp.eq.s32.totalorder %s16, 1
      %p159 = por %p157, %p158
      %p160 = scmp.ne.s32.totalorder %s152, %s155
      %p161 = scmp.eq.s32.totalorder %s16, 0
      %p162 = por %p160, %p161
      %p163 = scmp.ne.s32.totalorder %s152, %s155
      %p164 = scmp.eq.s32.totalorder %s21, 1
      %p165 = por %p163, %p164
      %p166 = scmp.ne.s32.totalorder %s155, %s156
      %p167 = scmp.eq.s32.totalorder %s21, 0
      %p168 = por %p166, %p167
      %p169 = scmp.ne.s32.totalorder %s155, %s156
      %p170 = scmp.eq.s32.totalorder %s22, 1
      %p171 = por %p169, %p170
      %p173 = scmp.ne.s32.totalorder %s156, %s172
      %p174 = scmp.eq.s32.totalorder %s22, 0
      %p175 = por %p173, %p174
      %p176 = scmp.le.s32.totalorder 1, %s16
      %p177 = scmp.lt.s32.totalorder %s16, 3
      %p178 = pnand %p176, %p177
      %p179 = pneg %p178
      // Predicated region
      $region9: #{tpu_custom_call.1} parent=5 // pred_check
        _
      $region10: #{tpu_custom_call.1} parent=5 // pred_check_branch
        %181 = sbr.rel (%p178) target = $region12
      $region11: #{tpu_custom_call.1} parent=5 // pred_region
        %s182 = ssub.s32 %s16, 1
        // Predicated region
        $region13: #{tpu_custom_call.1} parent=11 // pred_check
          %p183 = pneg %p77
        $region14: #{tpu_custom_call.1} parent=11 // pred_check_branch
          %185 = sbr.rel (%p183) target = $region16
        $region15: #{tpu_custom_call.1} parent=11 // pred_region
          _
        $region16: #{tpu_custom_call.1} parent=11 // pred_fallthru
          _
        // Predicated region
        $region17: #{tpu_custom_call.1} parent=11 // pred_check
          %p186 = pneg %p98
        $region18: #{tpu_custom_call.1} parent=11 // pred_check_branch
          %188 = sbr.rel (%p186) target = $region20
        $region19: #{tpu_custom_call.1} parent=11 // pred_region
          _
        $region20: #{tpu_custom_call.1} parent=11 // pred_fallthru
          _
        // Predicated region
        $region21: #{tpu_custom_call.1} parent=11 // pred_check
          %p189 = pneg %p119
        $region22: #{tpu_custom_call.1} parent=11 // pred_check_branch
          %191 = sbr.rel (%p189) target = $region24
        $region23: #{tpu_custom_call.1} parent=11 // pred_region
          _
        $region24: #{tpu_custom_call.1} parent=11 // pred_fallthru
          _
        // Predicated region
        $region25: #{tpu_custom_call.1} parent=11 // pred_check
          %p192 = pneg %p140
        $region26: #{tpu_custom_call.1} parent=11 // pred_check_branch
          %194 = sbr.rel (%p192) target = $region28
        $region27: #{tpu_custom_call.1} parent=11 // pred_region
          _
        $region28: #{tpu_custom_call.1} parent=11 // pred_fallthru
          _
      $region12: #{tpu_custom_call.1} parent=5 // pred_fallthru
        _
      %p195 = scmp.lt.s32.totalorder %s16, 2
      // Predicated region
      $region29: #{tpu_custom_call.1} parent=5 // pred_check
        %p196 = pneg %p195
      $region30: #{tpu_custom_call.1} parent=5 // pred_check_branch
        %198 = sbr.rel (%p196) target = $region32
      $region31: #{tpu_custom_call.1} parent=5 // pred_region
        // Predicated region
        $region33: #{tpu_custom_call.1} parent=31 // pred_check
          %p199 = pneg %p50
        $region34: #{tpu_custom_call.1} parent=31 // pred_check_branch
          %201 = sbr.rel (%p199) target = $region36
        $region35: #{tpu_custom_call.1} parent=31 // pred_region
          %s202 = smul.u32 8, %s24
          %p203 = scmp.lt.s32.totalorder %s23, 1
          %s204 = scalar_select %p203, %s23, 1
          %p205 = scmp.lt.s32.totalorder %s202, 7
          %s206 = scalar_select %p205, %s202, 7
          %s207 = smul.addr %s206, 100
          %s208 = smul.addr %s204, 800
          %s209 = sadd.s32 %s207, %s208
          %s210 = smul.addr %s209, 8
          %s211 = scalar_lea.vmem %s0, %s210
          %s212 = smul.u32 8, %s24
        $region36: #{tpu_custom_call.1} parent=31 // pred_fallthru
          _
      $region32: #{tpu_custom_call.1} parent=5 // pred_fallthru
        _
      %p213 = scmp.le.s32.totalorder 1, %s16
      %p214 = scmp.lt.s32.totalorder %s16, 3
      %p215 = pnand %p213, %p214
      %p216 = pneg %p215
      // Predicated region
      $region37: #{tpu_custom_call.1} parent=5 // pred_check
        _
      $region38: #{tpu_custom_call.1} parent=5 // pred_check_branch
        %218 = sbr.rel (%p215) target = $region40
      $region39: #{tpu_custom_call.1} parent=5 // pred_region
        %s219 = ssub.s32 %s16, 1
        %s220 = smul.u32 8, %s26
        %p221 = scmp.lt.s32.totalorder %s25, 1
        %s222 = scalar_select %p221, %s25, 1
        %p223 = scmp.lt.s32.totalorder %s220, 7
        %s224 = scalar_select %p223, %s220, 7
        %s225 = smul.addr %s224, 100
        %s226 = smul.addr %s222, 800
        %s227 = sadd.s32 %s225, %s226
        %s228 = smul.addr %s227, 8
        %s229 = scalar_lea.vmem %s0, %s228
        %p230 = pneg %p56
        %p231 = pneg %p53
        %p232 = pneg %p77
        %p233 = pneg %p74
        %p234 = pneg %p98
        %p235 = pneg %p95
        %p236 = pneg %p119
        %p237 = pneg %p116
        %p238 = pneg %p140
        %p239 = pneg %p137
        %p240 = pneg %p168
        %p241 = pneg %p165
        %s242 = sand.u32 %s155, 1
        %s243 = scalar_lea.sflag [#allocation5], %s242
        %s244 = sand.u32 %s155, 1
        %s245 = smul.addr %s244, 32
        %s246 = scalar_lea.vmem [#allocation4], %s245
        %s247 = smul.u32 8, %s26
        %p248 = scmp.lt.s32.totalorder %s25, 1
        %s249 = scalar_select %p248, %s25, 1
        %p250 = scmp.lt.s32.totalorder %s247, 7
        %s251 = scalar_select %p250, %s247, 7
        %s252 = smul.addr %s251, 100
        %s253 = smul.addr %s249, 800
        %s254 = sadd.s32 %s252, %s253
        %s255 = smul.addr %s254, 8
        %s256 = scalar_lea.vmem %s0, %s255
        %s257 = smul.u32 8, %s26
        %v258 = vld [vmem:[%s1] sm:$0xff]
        %v259 = vld [vmem:[%s1 + $0x8] sm:$0xff]
        %v260 = vld [vmem:[%s1 + $0x10] sm:$0xff]
        %v261 = vld [vmem:[%s1 + $0x18] sm:$0xff]
        %v262 = vld [vmem:[%s1 + $0x20] sm:$0xff]
        %v263 = vld [vmem:[%s1 + $0x28] sm:$0xff]
        %v264 = vld [vmem:[%s1 + $0x30] sm:$0xff]
        %v265 = vld [vmem:[%s1 + $0x38] sm:$0xff]
        %v266 = vld [vmem:[%s1 + $0x40] sm:$0xff]
        %v267 = vld [vmem:[%s1 + $0x48] sm:$0xff]
        %v268 = vld [vmem:[%s1 + $0x50] sm:$0xff]
        %v269 = vld [vmem:[%s1 + $0x58] sm:$0xff]
        %v270 = vld [vmem:[%s1 + $0x60] sm:$0xff]
        %v271 = vld [vmem:[%s1 + $0x68] sm:$0xff]
        %v272 = vld [vmem:[%s1 + $0x70] sm:$0xff]
        %v273 = vld [vmem:[%s1 + $0x78] sm:$0xff]
        %v274 = vld [vmem:[%s1 + $0x80] sm:$0xff]
        %v275 = vld [vmem:[%s1 + $0x88] sm:$0xff]
        %v276 = vld [vmem:[%s1 + $0x90] sm:$0xff]
        %v277 = vld [vmem:[%s1 + $0x98] sm:$0xff]
        %v278 = vld [vmem:[%s1 + $0xa0] sm:$0xff]
        %v279 = vld [vmem:[%s1 + $0xa8] sm:$0xff]
        %v280 = vld [vmem:[%s1 + $0xb0] sm:$0xff]
        %v281 = vld [vmem:[%s1 + $0xb8] sm:$0xff]
        %v282 = vld [vmem:[%s1 + $0xc0] sm:$0xff]
        %v283 = vld [vmem:[%s1 + $0xc8] sm:$0xff]
        %v284 = vld [vmem:[%s1 + $0xd0] sm:$0xff]
        %v285 = vld [vmem:[%s1 + $0xd8] sm:$0xff]
        %v286 = vld [vmem:[%s1 + $0xe0] sm:$0xff]
        %v287 = vld [vmem:[%s1 + $0xe8] sm:$0xff]
        %v288 = vld [vmem:[%s1 + $0xf0] sm:$0xff]
        %v289 = vld [vmem:[%s1 + $0xf8] sm:$0xff]
        %v290 = vld [vmem:[%s1 + $0x100] sm:$0xff]
        %v291 = vld [vmem:[%s1 + $0x108] sm:$0xff]
        %v292 = vld [vmem:[%s1 + $0x110] sm:$0xff]
        %v293 = vld [vmem:[%s1 + $0x118] sm:$0xff]
        %v294 = vld [vmem:[%s1 + $0x120] sm:$0xff]
        %v295 = vld [vmem:[%s1 + $0x128] sm:$0xff]
        %v296 = vld [vmem:[%s1 + $0x130] sm:$0xff]
        %v297 = vld [vmem:[%s1 + $0x138] sm:$0xff]
        %v298 = vld [vmem:[%s1 + $0x140] sm:$0xff]
        %v299 = vld [vmem:[%s1 + $0x148] sm:$0xff]
        %v300 = vld [vmem:[%s1 + $0x150] sm:$0xff]
        %v301 = vld [vmem:[%s1 + $0x158] sm:$0xff]
        %v302 = vld [vmem:[%s1 + $0x160] sm:$0xff]
        %v303 = vld [vmem:[%s1 + $0x168] sm:$0xff]
        %v304 = vld [vmem:[%s1 + $0x170] sm:$0xff]
        %v305 = vld [vmem:[%s1 + $0x178] sm:$0xff]
        %v306 = vld [vmem:[%s1 + $0x180] sm:$0xff]
        %v307 = vld [vmem:[%s1 + $0x188] sm:$0xff]
        %v308 = vld [vmem:[%s1 + $0x190] sm:$0xff]
        %v309 = vld [vmem:[%s1 + $0x198] sm:$0xff]
        %v310 = vld [vmem:[%s1 + $0x1a0] sm:$0xff]
        %v311 = vld [vmem:[%s1 + $0x1a8] sm:$0xff]
        %v312 = vld [vmem:[%s1 + $0x1b0] sm:$0xff]
        %v313 = vld [vmem:[%s1 + $0x1b8] sm:$0xff]
        %v314 = vld [vmem:[%s1 + $0x1c0] sm:$0xff]
        %v315 = vld [vmem:[%s1 + $0x1c8] sm:$0xff]
        %v316 = vld [vmem:[%s1 + $0x1d0] sm:$0xff]
        %v317 = vld [vmem:[%s1 + $0x1d8] sm:$0xff]
        %v318 = vld [vmem:[%s1 + $0x1e0] sm:$0xff]
        %v319 = vld [vmem:[%s1 + $0x1e8] sm:$0xff]
        %v320 = vld [vmem:[%s1 + $0x1f0] sm:$0xff]
        %v321 = vld [vmem:[%s1 + $0x1f8] sm:$0xff]
        %v322 = vld [vmem:[%s256] sm:$0xff]
        %v323 = vld [vmem:[%s256 + $0x8] sm:$0xff]
        %v324 = vld [vmem:[%s256 + $0x10] sm:$0xff]
        %v325 = vld [vmem:[%s256 + $0x18] sm:$0xff]
        %v326 = vld [vmem:[%s256 + $0x20] sm:$0xff]
        %v327 = vld [vmem:[%s256 + $0x28] sm:$0xff]
        %v328 = vld [vmem:[%s256 + $0x30] sm:$0xff]
        %v329 = vld [vmem:[%s256 + $0x38] sm:$0xff]
        %v330 = vld [vmem:[%s256 + $0x40] sm:$0xff]
        %v331 = vld [vmem:[%s256 + $0x48] sm:$0xff]
        %v332 = vld [vmem:[%s256 + $0x50] sm:$0xff]
        %v333 = vld [vmem:[%s256 + $0x58] sm:$0xff]
        %v334 = vld [vmem:[%s256 + $0x60] sm:$0xff]
        %v335 = vld [vmem:[%s256 + $0x68] sm:$0xff]
        %v336 = vld [vmem:[%s256 + $0x70] sm:$0xff]
        %v337 = vld [vmem:[%s256 + $0x78] sm:$0xff]
        %v338 = vld [vmem:[%s256 + $0x80] sm:$0xff]
        %v339 = vld [vmem:[%s256 + $0x88] sm:$0xff]
        %v340 = vld [vmem:[%s256 + $0x90] sm:$0xff]
        %v341 = vld [vmem:[%s256 + $0x98] sm:$0xff]
        %v342 = vld [vmem:[%s256 + $0xa0] sm:$0xff]
        %v343 = vld [vmem:[%s256 + $0xa8] sm:$0xff]
        %v344 = vld [vmem:[%s256 + $0xb0] sm:$0xff]
        %v345 = vld [vmem:[%s256 + $0xb8] sm:$0xff]
        %v346 = vld [vmem:[%s256 + $0xc0] sm:$0xff]
        %v347 = vld [vmem:[%s256 + $0xc8] sm:$0xff]
        %v348 = vld [vmem:[%s256 + $0xd0] sm:$0xff]
        %v349 = vld [vmem:[%s256 + $0xd8] sm:$0xff]
        %v350 = vld [vmem:[%s256 + $0xe0] sm:$0xff]
        %v351 = vld [vmem:[%s256 + $0xe8] sm:$0xff]
        %v352 = vld [vmem:[%s256 + $0xf0] sm:$0xff]
        %v353 = vld [vmem:[%s256 + $0xf8] sm:$0xff]
        %v354 = vld [vmem:[%s256 + $0x100] sm:$0xff]
        %v355 = vld [vmem:[%s256 + $0x108] sm:$0xff]
        %v356 = vld [vmem:[%s256 + $0x110] sm:$0xff]
        %v357 = vld [vmem:[%s256 + $0x118] sm:$0xff]
        %v358 = vld [vmem:[%s256 + $0x120] sm:$0xff]
        %v359 = vld [vmem:[%s256 + $0x128] sm:$0xff]
        %v360 = vld [vmem:[%s256 + $0x130] sm:$0xff]
        %v361 = vld [vmem:[%s256 + $0x138] sm:$0xff]
        %v362 = vld [vmem:[%s256 + $0x140] sm:$0xff]
        %v363 = vld [vmem:[%s256 + $0x148] sm:$0xff]
        %v364 = vld [vmem:[%s256 + $0x150] sm:$0xff]
        %v365 = vld [vmem:[%s256 + $0x158] sm:$0xff]
        %v366 = vld [vmem:[%s256 + $0x160] sm:$0xff]
        %v367 = vld [vmem:[%s256 + $0x168] sm:$0xff]
        %v368 = vld [vmem:[%s256 + $0x170] sm:$0xff]
        %v369 = vld [vmem:[%s256 + $0x178] sm:$0xff]
        %v370 = vld [vmem:[%s256 + $0x180] sm:$0xff]
        %v371 = vld [vmem:[%s256 + $0x188] sm:$0xff]
        %v372 = vld [vmem:[%s256 + $0x190] sm:$0xff]
        %v373 = vld [vmem:[%s256 + $0x198] sm:$0xff]
        %v374 = vld [vmem:[%s256 + $0x1a0] sm:$0xff]
        %v375 = vld [vmem:[%s256 + $0x1a8] sm:$0xff]
        %v376 = vld [vmem:[%s256 + $0x1b0] sm:$0xff]
        %v377 = vld [vmem:[%s256 + $0x1b8] sm:$0xff]
        %v378 = vld [vmem:[%s256 + $0x1c0] sm:$0xff]
        %v379 = vld [vmem:[%s256 + $0x1c8] sm:$0xff]
        %v380 = vld [vmem:[%s256 + $0x1d0] sm:$0xff]
        %v381 = vld [vmem:[%s256 + $0x1d8] sm:$0xff]
        %v382 = vld [vmem:[%s256 + $0x1e0] sm:$0xff]
        %v383 = vld [vmem:[%s256 + $0x1e8] sm:$0xff]
        %v384 = vld [vmem:[%s256 + $0x1f0] sm:$0xff]
        %v385 = vld [vmem:[%s256 + $0x1f8] sm:$0xff]
        %v386 = vld [vmem:[%s256 + $0x200] sm:$0xff]
        %v387 = vld [vmem:[%s256 + $0x208] sm:$0xff]
        %v388 = vld [vmem:[%s256 + $0x210] sm:$0xff]
        %v389 = vld [vmem:[%s256 + $0x218] sm:$0xff]
        %v390 = vld [vmem:[%s256 + $0x220] sm:$0xff]
        %v391 = vld [vmem:[%s256 + $0x228] sm:$0xff]
        %v392 = vld [vmem:[%s256 + $0x230] sm:$0xff]
        %v393 = vld [vmem:[%s256 + $0x238] sm:$0xff]
        %v394 = vld [vmem:[%s256 + $0x240] sm:$0xff]
        %v395 = vld [vmem:[%s256 + $0x248] sm:$0xff]
        %v396 = vld [vmem:[%s256 + $0x250] sm:$0xff]
        %v397 = vld [vmem:[%s256 + $0x258] sm:$0xff]
        %v398 = vld [vmem:[%s256 + $0x260] sm:$0xff]
        %v399 = vld [vmem:[%s256 + $0x268] sm:$0xff]
        %v400 = vld [vmem:[%s256 + $0x270] sm:$0xff]
        %v401 = vld [vmem:[%s256 + $0x278] sm:$0xff]
        %v402 = vld [vmem:[%s256 + $0x280] sm:$0xff]
        %v403 = vld [vmem:[%s256 + $0x288] sm:$0xff]
        %v404 = vld [vmem:[%s256 + $0x290] sm:$0xff]
        %v405 = vld [vmem:[%s256 + $0x298] sm:$0xff]
        %v406 = vld [vmem:[%s256 + $0x2a0] sm:$0xff]
        %v407 = vld [vmem:[%s256 + $0x2a8] sm:$0xff]
        %v408 = vld [vmem:[%s256 + $0x2b0] sm:$0xff]
        %v409 = vld [vmem:[%s256 + $0x2b8] sm:$0xff]
        %v410 = vld [vmem:[%s256 + $0x2c0] sm:$0xff]
        %v411 = vld [vmem:[%s256 + $0x2c8] sm:$0xff]
        %v412 = vld [vmem:[%s256 + $0x2d0] sm:$0xff]
        %v413 = vld [vmem:[%s256 + $0x2d8] sm:$0xff]
        %v414 = vld [vmem:[%s256 + $0x2e0] sm:$0xff]
        %v415 = vld [vmem:[%s256 + $0x2e8] sm:$0xff]
        %v416 = vld [vmem:[%s256 + $0x2f0] sm:$0xff]
        %v417 = vld [vmem:[%s256 + $0x2f8] sm:$0xff]
        %v418 = vld [vmem:[%s256 + $0x300] sm:$0xf]
        %v419 = vld [vmem:[%s256 + $0x308] sm:$0xf]
        %v420 = vld [vmem:[%s256 + $0x310] sm:$0xf]
        %v421 = vld [vmem:[%s256 + $0x318] sm:$0xf]
        %v422 = vld [vmem:[#allocation3] sm:$0x1]
        %v424 = vlaneseq
        %v425 = vshrl.u32 %v424, 7
        %v426 = vsub.s32 0, %v425
        %v427 = vrot.slane %v422, %v426
        %429 = vmatprep.subr.mxu0 0.0
        %430 = vmatpush1.msra.mxu0 %v273
        %431 = vmatprep.subr.mxu0 0.0
        %432 = vmatpush1.msra.mxu0 %v272
        %433 = vmatprep.subr.mxu0 0.0
        %434 = vmatpush1.msra.mxu0 %v271
        %435 = vmatprep.subr.mxu0 0.0
        %436 = vmatpush1.msra.mxu0 %v270
        %437 = vmatprep.subr.mxu0 0.0
        %438 = vmatpush1.msra.mxu0 %v269
        %439 = vmatprep.subr.mxu0 0.0
        %440 = vmatpush1.msra.mxu0 %v268
        %441 = vmatprep.subr.mxu0 0.0
        %442 = vmatpush1.msra.mxu0 %v267
        %443 = vmatprep.subr.mxu0 0.0
        %444 = vmatpush1.msra.mxu0 %v266
        %445 = vmatprep.subr.mxu0 0.0
        %446 = vmatpush1.msra.mxu0 %v265
        %447 = vmatprep.subr.mxu0 0.0
        %448 = vmatpush1.msra.mxu0 %v264
        %449 = vmatprep.subr.mxu0 0.0
        %450 = vmatpush1.msra.mxu0 %v263
        %451 = vmatprep.subr.mxu0 0.0
        %452 = vmatpush1.msra.mxu0 %v262
        %453 = vmatprep.subr.mxu0 0.0
        %454 = vmatpush1.msra.mxu0 %v261
        %455 = vmatprep.subr.mxu0 0.0
        %456 = vmatpush1.msra.mxu0 %v260
        %457 = vmatprep.subr.mxu0 0.0
        %458 = vmatpush1.msra.mxu0 %v259
        %459 = vmatprep.subr.mxu0 0.0
        %460 = vmatpush1.msra.mxu0 %v258
        %461 = vmatprep.subr.mxu0 0.0
        %462 = vmatpush2.msra.mxu0 %v289
        %463 = vmatprep.subr.mxu0 0.0
        %464 = vmatpush2.msra.mxu0 %v288
        %465 = vmatprep.subr.mxu0 0.0
        %466 = vmatpush2.msra.mxu0 %v287
        %467 = vmatprep.subr.mxu0 0.0
        %468 = vmatpush2.msra.mxu0 %v286
        %469 = vmatprep.subr.mxu0 0.0
        %470 = vmatpush2.msra.mxu0 %v285
        %471 = vmatprep.subr.mxu0 0.0
        %472 = vmatpush2.msra.mxu0 %v284
        %473 = vmatprep.subr.mxu0 0.0
        %474 = vmatpush2.msra.mxu0 %v283
        %475 = vmatprep.subr.mxu0 0.0
        %476 = vmatpush2.msra.mxu0 %v282
        %477 = vmatprep.subr.mxu0 0.0
        %478 = vmatpush2.msra.mxu0 %v281
        %479 = vmatprep.subr.mxu0 0.0
        %480 = vmatpush2.msra.mxu0 %v280
        %481 = vmatprep.subr.mxu0 0.0
        %482 = vmatpush2.msra.mxu0 %v279
        %483 = vmatprep.subr.mxu0 0.0
        %484 = vmatpush2.msra.mxu0 %v278
        %485 = vmatprep.subr.mxu0 0.0
        %486 = vmatpush2.msra.mxu0 %v277
        %487 = vmatprep.subr.mxu0 0.0
        %488 = vmatpush2.msra.mxu0 %v276
        %489 = vmatprep.subr.mxu0 0.0
        %490 = vmatpush2.msra.mxu0 %v275
        %491 = vmatprep.subr.mxu0 0.0
        %492 = vmatpush2.msra.mxu0 %v274
        %493 = vmatprep.mubr.f32.mxu0 %v323
        %494 = vmatmul.mubr.f32.gmra.mxu0 %v322
        %v495 = vpop.f32.mrf.mxu0
        %v496 = vadd.f32 %v427, %v495
        %v497 = vpop.f32.mrf.mxu0
        %498 = vmatprep.mubr.f32.mxu0 %v327
        %499 = vmatmul.mubr.f32.gmra.mxu0 %v326
        %v500 = vpop.f32.mrf.mxu0
        %v501 = vadd.f32 %v427, %v500
        %v502 = vpop.f32.mrf.mxu0
        %503 = vmatprep.mubr.f32.mxu0 %v331
        %504 = vmatmul.mubr.f32.gmra.mxu0 %v330
        %v505 = vpop.f32.mrf.mxu0
        %v506 = vadd.f32 %v427, %v505
        %v507 = vpop.f32.mrf.mxu0
        %508 = vmatprep.mubr.f32.mxu0 %v335
        %509 = vmatmul.mubr.f32.gmra.mxu0 %v334
        %v510 = vpop.f32.mrf.mxu0
        %v511 = vadd.f32 %v427, %v510
        %v512 = vpop.f32.mrf.mxu0
        %513 = vmatprep.mubr.f32.mxu0 %v339
        %514 = vmatmul.mubr.f32.gmra.mxu0 %v338
        %v515 = vpop.f32.mrf.mxu0
        %v516 = vadd.f32 %v427, %v515
        %v517 = vpop.f32.mrf.mxu0
        %518 = vmatprep.mubr.f32.mxu0 %v343
        %519 = vmatmul.mubr.f32.gmra.mxu0 %v342
        %v520 = vpop.f32.mrf.mxu0
        %v521 = vadd.f32 %v427, %v520
        %v522 = vpop.f32.mrf.mxu0
        %523 = vmatprep.mubr.f32.mxu0 %v347
        %524 = vmatmul.mubr.f32.gmra.mxu0 %v346
        %v525 = vpop.f32.mrf.mxu0
        %v526 = vadd.f32 %v427, %v525
        %v527 = vpop.f32.mrf.mxu0
        %528 = vmatprep.mubr.f32.mxu0 %v351
        %529 = vmatmul.mubr.f32.gmra.mxu0 %v350
        %v530 = vpop.f32.mrf.mxu0
        %v531 = vadd.f32 %v427, %v530
        %v532 = vpop.f32.mrf.mxu0
        %533 = vmatprep.mubr.f32.mxu0 %v355
        %534 = vmatmul.mubr.f32.gmra.mxu0 %v354
        %v535 = vpop.f32.mrf.mxu0
        %v536 = vadd.f32 %v427, %v535
        %v537 = vpop.f32.mrf.mxu0
        %538 = vmatprep.mubr.f32.mxu0 %v359
        %539 = vmatmul.mubr.f32.gmra.mxu0 %v358
        %v540 = vpop.f32.mrf.mxu0
        %v541 = vadd.f32 %v427, %v540
        %v542 = vpop.f32.mrf.mxu0
        %543 = vmatprep.mubr.f32.mxu0 %v363
        %544 = vmatmul.mubr.f32.gmra.mxu0 %v362
        %v545 = vpop.f32.mrf.mxu0
        %v546 = vadd.f32 %v427, %v545
        %v547 = vpop.f32.mrf.mxu0
        %548 = vmatprep.mubr.f32.mxu0 %v367
        %549 = vmatmul.mubr.f32.gmra.mxu0 %v366
        %v550 = vpop.f32.mrf.mxu0
        %v551 = vadd.f32 %v427, %v550
        %v552 = vpop.f32.mrf.mxu0
        %553 = vmatprep.mubr.f32.mxu0 %v371
        %554 = vmatmul.mubr.f32.gmra.mxu0 %v370
        %v555 = vpop.f32.mrf.mxu0
        %v556 = vadd.f32 %v427, %v555
        %v557 = vpop.f32.mrf.mxu0
        %558 = vmatprep.mubr.f32.mxu0 %v375
        %559 = vmatmul.mubr.f32.gmra.mxu0 %v374
        %v560 = vpop.f32.mrf.mxu0
        %v561 = vadd.f32 %v427, %v560
        %v562 = vpop.f32.mrf.mxu0
        %563 = vmatprep.mubr.f32.mxu0 %v379
        %564 = vmatmul.mubr.f32.gmra.mxu0 %v378
        %v565 = vpop.f32.mrf.mxu0
        %v566 = vadd.f32 %v427, %v565
        %v567 = vpop.f32.mrf.mxu0
        %568 = vmatprep.mubr.f32.mxu0 %v383
        %569 = vmatmul.mubr.f32.gmra.mxu0 %v382
        %v570 = vpop.f32.mrf.mxu0
        %v571 = vadd.f32 %v427, %v570
        %v572 = vpop.f32.mrf.mxu0
        %573 = vmatprep.mubr.f32.mxu0 %v387
        %574 = vmatmul.mubr.f32.gmra.mxu0 %v386
        %v575 = vpop.f32.mrf.mxu0
        %v576 = vadd.f32 %v427, %v575
        %v577 = vpop.f32.mrf.mxu0
        %578 = vmatprep.mubr.f32.mxu0 %v391
        %579 = vmatmul.mubr.f32.gmra.mxu0 %v390
        %v580 = vpop.f32.mrf.mxu0
        %v581 = vadd.f32 %v427, %v580
        %v582 = vpop.f32.mrf.mxu0
        %583 = vmatprep.mubr.f32.mxu0 %v395
        %584 = vmatmul.mubr.f32.gmra.mxu0 %v394
        %v585 = vpop.f32.mrf.mxu0
        %v586 = vadd.f32 %v427, %v585
        %v587 = vpop.f32.mrf.mxu0
        %588 = vmatprep.mubr.f32.mxu0 %v399
        %589 = vmatmul.mubr.f32.gmra.mxu0 %v398
        %v590 = vpop.f32.mrf.mxu0
        %v591 = vadd.f32 %v427, %v590
        %v592 = vpop.f32.mrf.mxu0
        %593 = vmatprep.mubr.f32.mxu0 %v403
        %594 = vmatmul.mubr.f32.gmra.mxu0 %v402
        %v595 = vpop.f32.mrf.mxu0
        %v596 = vadd.f32 %v427, %v595
        %v597 = vpop.f32.mrf.mxu0
        %598 = vmatprep.mubr.f32.mxu0 %v407
        %599 = vmatmul.mubr.f32.gmra.mxu0 %v406
        %v600 = vpop.f32.mrf.mxu0
        %v601 = vadd.f32 %v427, %v600
        %v602 = vpop.f32.mrf.mxu0
        %603 = vmatprep.mubr.f32.mxu0 %v411
        %604 = vmatmul.mubr.f32.gmra.mxu0 %v410
        %v605 = vpop.f32.mrf.mxu0
        %v606 = vadd.f32 %v427, %v605
        %v607 = vpop.f32.mrf.mxu0
        %608 = vmatprep.mubr.f32.mxu0 %v415
        %609 = vmatmul.mubr.f32.gmra.mxu0 %v414
        %v610 = vpop.f32.mrf.mxu0
        %v611 = vadd.f32 %v427, %v610
        %v612 = vpop.f32.mrf.mxu0
        %613 = vmatprep.mubr.f32.mxu0 %v419
        %614 = vmatmul.mubr.f32.gmra.mxu0 %v418
        %v615 = vpop.f32.mrf.mxu0
        %v616 = vadd.f32 %v427, %v615
        %v617 = vpop.f32.mrf.mxu0
        %618 = vdwg.mxu0
        %619 = vmatprep.subr.mxu0 0.0
        %620 = vmatpush1.msra.mxu0 %v305
        %621 = vmatprep.subr.mxu0 0.0
        %622 = vmatpush1.msra.mxu0 %v304
        %623 = vmatprep.subr.mxu0 0.0
        %624 = vmatpush1.msra.mxu0 %v303
        %625 = vmatprep.subr.mxu0 0.0
        %626 = vmatpush1.msra.mxu0 %v302
        %627 = vmatprep.subr.mxu0 0.0
        %628 = vmatpush1.msra.mxu0 %v301
        %629 = vmatprep.subr.mxu0 0.0
        %630 = vmatpush1.msra.mxu0 %v300
        %631 = vmatprep.subr.mxu0 0.0
        %632 = vmatpush1.msra.mxu0 %v299
        %633 = vmatprep.subr.mxu0 0.0
        %634 = vmatpush1.msra.mxu0 %v298
        %635 = vmatprep.subr.mxu0 0.0
        %636 = vmatpush1.msra.mxu0 %v297
        %637 = vmatprep.subr.mxu0 0.0
        %638 = vmatpush1.msra.mxu0 %v296
        %639 = vmatprep.subr.mxu0 0.0
        %640 = vmatpush1.msra.mxu0 %v295
        %641 = vmatprep.subr.mxu0 0.0
        %642 = vmatpush1.msra.mxu0 %v294
        %643 = vmatprep.subr.mxu0 0.0
        %644 = vmatpush1.msra.mxu0 %v293
        %645 = vmatprep.subr.mxu0 0.0
        %646 = vmatpush1.msra.mxu0 %v292
        %647 = vmatprep.subr.mxu0 0.0
        %648 = vmatpush1.msra.mxu0 %v291
        %649 = vmatprep.subr.mxu0 0.0
        %650 = vmatpush1.msra.mxu0 %v290
        %651 = vmatprep.subr.mxu0 0.0
        %652 = vmatpush2.msra.mxu0 %v321
        %653 = vmatprep.subr.mxu0 0.0
        %654 = vmatpush2.msra.mxu0 %v320
        %655 = vmatprep.subr.mxu0 0.0
        %656 = vmatpush2.msra.mxu0 %v319
        %657 = vmatprep.subr.mxu0 0.0
        %658 = vmatpush2.msra.mxu0 %v318
        %659 = vmatprep.subr.mxu0 0.0
        %660 = vmatpush2.msra.mxu0 %v317
        %661 = vmatprep.subr.mxu0 0.0
        %662 = vmatpush2.msra.mxu0 %v316
        %663 = vmatprep.subr.mxu0 0.0
        %664 = vmatpush2.msra.mxu0 %v315
        %665 = vmatprep.subr.mxu0 0.0
        %666 = vmatpush2.msra.mxu0 %v314
        %667 = vmatprep.subr.mxu0 0.0
        %668 = vmatpush2.msra.mxu0 %v313
        %669 = vmatprep.subr.mxu0 0.0
        %670 = vmatpush2.msra.mxu0 %v312
        %671 = vmatprep.subr.mxu0 0.0
        %672 = vmatpush2.msra.mxu0 %v311
        %673 = vmatprep.subr.mxu0 0.0
        %674 = vmatpush2.msra.mxu0 %v310
        %675 = vmatprep.subr.mxu0 0.0
        %676 = vmatpush2.msra.mxu0 %v309
        %677 = vmatprep.subr.mxu0 0.0
        %678 = vmatpush2.msra.mxu0 %v308
        %679 = vmatprep.subr.mxu0 0.0
        %680 = vmatpush2.msra.mxu0 %v307
        %681 = vmatprep.subr.mxu0 0.0
        %682 = vmatpush2.msra.mxu0 %v306
        %683 = vmatprep.mubr.f32.mxu0 %v325
        %684 = vmatmul.mubr.f32.gmra.mxu0 %v324
        %v685 = vpop.f32.mrf.mxu0
        %v686 = vadd.f32 %v496, %v685
        %v687 = vpop.f32.mrf.mxu0
        %688 = vmatprep.mubr.f32.mxu0 %v329
        %689 = vmatmul.mubr.f32.gmra.mxu0 %v328
        %v690 = vpop.f32.mrf.mxu0
        %v691 = vadd.f32 %v501, %v690
        %v692 = vpop.f32.mrf.mxu0
        %693 = vmatprep.mubr.f32.mxu0 %v333
        %694 = vmatmul.mubr.f32.gmra.mxu0 %v332
        %v695 = vpop.f32.mrf.mxu0
        %v696 = vadd.f32 %v506, %v695
        %v697 = vpop.f32.mrf.mxu0
        %698 = vmatprep.mubr.f32.mxu0 %v337
        %699 = vmatmul.mubr.f32.gmra.mxu0 %v336
        %v700 = vpop.f32.mrf.mxu0
        %v701 = vadd.f32 %v511, %v700
        %v702 = vpop.f32.mrf.mxu0
        %703 = vmatprep.mubr.f32.mxu0 %v341
        %704 = vmatmul.mubr.f32.gmra.mxu0 %v340
        %v705 = vpop.f32.mrf.mxu0
        %v706 = vadd.f32 %v516, %v705
        %v707 = vpop.f32.mrf.mxu0
        %708 = vmatprep.mubr.f32.mxu0 %v345
        %709 = vmatmul.mubr.f32.gmra.mxu0 %v344
        %v710 = vpop.f32.mrf.mxu0
        %v711 = vadd.f32 %v521, %v710
        %v712 = vpop.f32.mrf.mxu0
        %713 = vmatprep.mubr.f32.mxu0 %v349
        %714 = vmatmul.mubr.f32.gmra.mxu0 %v348
        %v715 = vpop.f32.mrf.mxu0
        %v716 = vadd.f32 %v526, %v715
        %v717 = vpop.f32.mrf.mxu0
        %718 = vmatprep.mubr.f32.mxu0 %v353
        %719 = vmatmul.mubr.f32.gmra.mxu0 %v352
        %v720 = vpop.f32.mrf.mxu0
        %v721 = vadd.f32 %v531, %v720
        %v722 = vpop.f32.mrf.mxu0
        %723 = vmatprep.mubr.f32.mxu0 %v357
        %724 = vmatmul.mubr.f32.gmra.mxu0 %v356
        %v725 = vpop.f32.mrf.mxu0
        %v726 = vadd.f32 %v536, %v725
        %v727 = vpop.f32.mrf.mxu0
        %728 = vmatprep.mubr.f32.mxu0 %v361
        %729 = vmatmul.mubr.f32.gmra.mxu0 %v360
        %v730 = vpop.f32.mrf.mxu0
        %v731 = vadd.f32 %v541, %v730
        %v732 = vpop.f32.mrf.mxu0
        %733 = vmatprep.mubr.f32.mxu0 %v365
        %734 = vmatmul.mubr.f32.gmra.mxu0 %v364
        %v735 = vpop.f32.mrf.mxu0
        %v736 = vadd.f32 %v546, %v735
        %v737 = vpop.f32.mrf.mxu0
        %738 = vmatprep.mubr.f32.mxu0 %v369
        %739 = vmatmul.mubr.f32.gmra.mxu0 %v368
        %v740 = vpop.f32.mrf.mxu0
        %v741 = vadd.f32 %v551, %v740
        %v742 = vpop.f32.mrf.mxu0
        %743 = vmatprep.mubr.f32.mxu0 %v373
        %744 = vmatmul.mubr.f32.gmra.mxu0 %v372
        %v745 = vpop.f32.mrf.mxu0
        %v746 = vadd.f32 %v556, %v745
        %v747 = vpop.f32.mrf.mxu0
        %748 = vmatprep.mubr.f32.mxu0 %v377
        %749 = vmatmul.mubr.f32.gmra.mxu0 %v376
        %v750 = vpop.f32.mrf.mxu0
        %v751 = vadd.f32 %v561, %v750
        %v752 = vpop.f32.mrf.mxu0
        %753 = vmatprep.mubr.f32.mxu0 %v381
        %754 = vmatmul.mubr.f32.gmra.mxu0 %v380
        %v755 = vpop.f32.mrf.mxu0
        %v756 = vadd.f32 %v566, %v755
        %v757 = vpop.f32.mrf.mxu0
        %758 = vmatprep.mubr.f32.mxu0 %v385
        %759 = vmatmul.mubr.f32.gmra.mxu0 %v384
        %v760 = vpop.f32.mrf.mxu0
        %v761 = vadd.f32 %v571, %v760
        %v762 = vpop.f32.mrf.mxu0
        %763 = vmatprep.mubr.f32.mxu0 %v389
        %764 = vmatmul.mubr.f32.gmra.mxu0 %v388
        %v765 = vpop.f32.mrf.mxu0
        %v766 = vadd.f32 %v576, %v765
        %v767 = vpop.f32.mrf.mxu0
        %768 = vmatprep.mubr.f32.mxu0 %v393
        %769 = vmatmul.mubr.f32.gmra.mxu0 %v392
        %v770 = vpop.f32.mrf.mxu0
        %v771 = vadd.f32 %v581, %v770
        %v772 = vpop.f32.mrf.mxu0
        %773 = vmatprep.mubr.f32.mxu0 %v397
        %774 = vmatmul.mubr.f32.gmra.mxu0 %v396
        %v775 = vpop.f32.mrf.mxu0
        %v776 = vadd.f32 %v586, %v775
        %v777 = vpop.f32.mrf.mxu0
        %778 = vmatprep.mubr.f32.mxu0 %v401
        %779 = vmatmul.mubr.f32.gmra.mxu0 %v400
        %v780 = vpop.f32.mrf.mxu0
        %v781 = vadd.f32 %v591, %v780
        %v782 = vpop.f32.mrf.mxu0
        %783 = vmatprep.mubr.f32.mxu0 %v405
        %784 = vmatmul.mubr.f32.gmra.mxu0 %v404
        %v785 = vpop.f32.mrf.mxu0
        %v786 = vadd.f32 %v596, %v785
        %v787 = vpop.f32.mrf.mxu0
        %788 = vmatprep.mubr.f32.mxu0 %v409
        %789 = vmatmul.mubr.f32.gmra.mxu0 %v408
        %v790 = vpop.f32.mrf.mxu0
        %v791 = vadd.f32 %v601, %v790
        %v792 = vpop.f32.mrf.mxu0
        %793 = vmatprep.mubr.f32.mxu0 %v413
        %794 = vmatmul.mubr.f32.gmra.mxu0 %v412
        %v795 = vpop.f32.mrf.mxu0
        %v796 = vadd.f32 %v606, %v795
        %v797 = vpop.f32.mrf.mxu0
        %798 = vmatprep.mubr.f32.mxu0 %v417
        %799 = vmatmul.mubr.f32.gmra.mxu0 %v416
        %v800 = vpop.f32.mrf.mxu0
        %v801 = vadd.f32 %v611, %v800
        %v802 = vpop.f32.mrf.mxu0
        %803 = vmatprep.mubr.f32.mxu0 %v421
        %804 = vmatmul.mubr.f32.gmra.mxu0 %v420
        %v805 = vpop.f32.mrf.mxu0
        %v806 = vadd.f32 %v616, %v805
        %v807 = vpop.f32.mrf.mxu0
        %808 = vdwg.mxu0
        %vm809 = vcmask 7168
        %v810 = vsel %vm809, %v686, -inf
        %v811 = vsel %vm809, %v691, -inf
        %v812 = vsel %vm809, %v696, -inf
        %v813 = vsel %vm809, %v701, -inf
        %v814 = vsel %vm809, %v706, -inf
        %v815 = vmax.f32 %v810, %v814
        %v816 = vsel %vm809, %v711, -inf
        %v817 = vmax.f32 %v811, %v816
        %v818 = vsel %vm809, %v716, -inf
        %v819 = vmax.f32 %v812, %v818
        %v820 = vsel %vm809, %v721, -inf
        %v821 = vmax.f32 %v813, %v820
        %v822 = vsel %vm809, %v726, -inf
        %v823 = vmax.f32 %v815, %v822
        %v824 = vsel %vm809, %v731, -inf
        %v825 = vmax.f32 %v817, %v824
        %v826 = vsel %vm809, %v736, -inf
        %v827 = vmax.f32 %v819, %v826
        %v828 = vsel %vm809, %v741, -inf
        %v829 = vmax.f32 %v821, %v828
        %v830 = vsel %vm809, %v746, -inf
        %v831 = vmax.f32 %v823, %v830
        %v832 = vsel %vm809, %v751, -inf
        %v833 = vmax.f32 %v825, %v832
        %v834 = vsel %vm809, %v756, -inf
        %v835 = vmax.f32 %v827, %v834
        %v836 = vsel %vm809, %v761, -inf
        %v837 = vmax.f32 %v829, %v836
        %v838 = vsel %vm809, %v766, -inf
        %v839 = vmax.f32 %v831, %v838
        %v840 = vsel %vm809, %v771, -inf
        %v841 = vmax.f32 %v833, %v840
        %v842 = vsel %vm809, %v776, -inf
        %v843 = vmax.f32 %v835, %v842
        %v844 = vsel %vm809, %v781, -inf
        %v845 = vmax.f32 %v837, %v844
        %v846 = vsel %vm809, %v786, -inf
        %v847 = vmax.f32 %v839, %v846
        %v848 = vsel %vm809, %v791, -inf
        %v849 = vmax.f32 %v841, %v848
        %v850 = vsel %vm809, %v796, -inf
        %v851 = vmax.f32 %v843, %v850
        %v852 = vsel %vm809, %v801, -inf
        %v853 = vmax.f32 %v845, %v852
        %vm854 = vcmask 3072
        %v855 = vsel %vm854, %v806, -inf
        %v856 = vmax.f32 %v847, %v855
        %v857 = vmax.f32 %v856, %v849
        %v858 = vmax.f32 %v851, %v853
        %v859 = vmax.f32 %v857, %v858
        %v860 = vrot.slane %v859, 4
        %v861 = vmax.f32 %v859, %v860
        %v862 = vrot.slane %v861, 2
        %v863 = vmax.f32 %v861, %v862
        %v864 = vrot.slane %v863, 1
        %v865 = vmax.f32 %v863, %v864
        %v866 = vsub.f32 %v686, %v865
        %v867 = vsub.f32 %v691, %v865
        %v868 = vsub.f32 %v696, %v865
        %v869 = vsub.f32 %v701, %v865
        %v870 = vsub.f32 %v706, %v865
        %v871 = vsub.f32 %v711, %v865
        %v872 = vsub.f32 %v716, %v865
        %v873 = vsub.f32 %v721, %v865
        %v874 = vsub.f32 %v726, %v865
        %v875 = vsub.f32 %v731, %v865
        %v876 = vsub.f32 %v736, %v865
        %v877 = vsub.f32 %v741, %v865
        %v878 = vsub.f32 %v746, %v865
        %v879 = vsub.f32 %v751, %v865
        %v880 = vsub.f32 %v756, %v865
        %v881 = vsub.f32 %v761, %v865
        %v882 = vsub.f32 %v766, %v865
        %v883 = vsub.f32 %v771, %v865
        %v884 = vsub.f32 %v776, %v865
        %v885 = vsub.f32 %v781, %v865
        %v886 = vsub.f32 %v786, %v865
        %v887 = vsub.f32 %v791, %v865
        %v888 = vsub.f32 %v796, %v865
        %v889 = vsub.f32 %v801, %v865
        %v890 = vsub.f32 %v806, %v865
        %v891 = vmul.f32 %v866, 1.442695
        %v892 = vpow.pop %v891
        %v893 = vmul.f32 %v867, 1.442695
        %v894 = vpow.pop %v893
        %v895 = vmul.f32 %v868, 1.442695
        %v896 = vpow.pop %v895
        %v897 = vmul.f32 %v869, 1.442695
        %v898 = vpow.pop %v897
        %v899 = vmul.f32 %v870, 1.442695
        %v900 = vpow.pop %v899
        %v901 = vmul.f32 %v871, 1.442695
        %v902 = vpow.pop %v901
        %v903 = vmul.f32 %v872, 1.442695
        %v904 = vpow.pop %v903
        %v905 = vmul.f32 %v873, 1.442695
        %v906 = vpow.pop %v905
        %v907 = vmul.f32 %v874, 1.442695
        %v908 = vpow.pop %v907
        %v909 = vmul.f32 %v875, 1.442695
        %v910 = vpow.pop %v909
        %v911 = vmul.f32 %v876, 1.442695
        %v912 = vpow.pop %v911
        %v913 = vmul.f32 %v877, 1.442695
        %v914 = vpow.pop %v913
        %v915 = vmul.f32 %v878, 1.442695
        %v916 = vpow.pop %v915
        %v917 = vmul.f32 %v879, 1.442695
        %v918 = vpow.pop %v917
        %v919 = vmul.f32 %v880, 1.442695
        %v920 = vpow.pop %v919
        %v921 = vmul.f32 %v881, 1.442695
        %v922 = vpow.pop %v921
        %v923 = vmul.f32 %v882, 1.442695
        %v924 = vpow.pop %v923
        %v925 = vmul.f32 %v883, 1.442695
        %v926 = vpow.pop %v925
        %v927 = vmul.f32 %v884, 1.442695
        %v928 = vpow.pop %v927
        %v929 = vmul.f32 %v885, 1.442695
        %v930 = vpow.pop %v929
        %v931 = vmul.f32 %v886, 1.442695
        %v932 = vpow.pop %v931
        %v933 = vmul.f32 %v887, 1.442695
        %v934 = vpow.pop %v933
        %v935 = vmul.f32 %v888, 1.442695
        %v936 = vpow.pop %v935
        %v937 = vmul.f32 %v889, 1.442695
        %v938 = vpow.pop %v937
        %v939 = vmul.f32 %v890, 1.442695
        %v940 = vpow.pop %v939
        %v941 = vsel %vm809, %v892, 0.0
        %v942 = vsel %vm809, %v894, 0.0
        %v943 = vadd.f32 %v941, %v942
        %v944 = vsel %vm809, %v896, 0.0
        %v945 = vadd.f32 %v943, %v944
        %v946 = vsel %vm809, %v898, 0.0
        %v947 = vadd.f32 %v945, %v946
        %v948 = vsel %vm809, %v900, 0.0
        %v949 = vadd.f32 %v947, %v948
        %v950 = vsel %vm809, %v902, 0.0
        %v951 = vadd.f32 %v949, %v950
        %v952 = vsel %vm809, %v904, 0.0
        %v953 = vadd.f32 %v951, %v952
        %v954 = vsel %vm809, %v906, 0.0
        %v955 = vadd.f32 %v953, %v954
        %v956 = vsel %vm809, %v908, 0.0
        %v957 = vadd.f32 %v955, %v956
        %v958 = vsel %vm809, %v910, 0.0
        %v959 = vadd.f32 %v957, %v958
        %v960 = vsel %vm809, %v912, 0.0
        %v961 = vadd.f32 %v959, %v960
        %v962 = vsel %vm809, %v914, 0.0
        %v963 = vadd.f32 %v961, %v962
        %v964 = vsel %vm809, %v916, 0.0
        %v965 = vadd.f32 %v963, %v964
        %v966 = vsel %vm809, %v918, 0.0
        %v967 = vadd.f32 %v965, %v966
        %v968 = vsel %vm809, %v920, 0.0
        %v969 = vadd.f32 %v967, %v968
        %v970 = vsel %vm809, %v922, 0.0
        %v971 = vadd.f32 %v969, %v970
        %v972 = vsel %vm809, %v924, 0.0
        %v973 = vadd.f32 %v971, %v972
        %v974 = vsel %vm809, %v926, 0.0
        %v975 = vadd.f32 %v973, %v974
        %v976 = vsel %vm809, %v928, 0.0
        %v977 = vadd.f32 %v975, %v976
        %v978 = vsel %vm809, %v930, 0.0
        %v979 = vadd.f32 %v977, %v978
        %v980 = vsel %vm809, %v932, 0.0
        %v981 = vadd.f32 %v979, %v980
        %v982 = vsel %vm809, %v934, 0.0
        %v983 = vadd.f32 %v981, %v982
        %v984 = vsel %vm809, %v936, 0.0
        %v985 = vadd.f32 %v983, %v984
        %v986 = vsel %vm809, %v938, 0.0
        %v987 = vadd.f32 %v985, %v986
        %v988 = vsel %vm854, %v940, 0.0
        %v989 = vadd.f32 %v987, %v988
        %v990 = vrot.slane %v989, 4
        %v991 = vadd.f32 %v989, %v990
        %v992 = vrot.slane %v991, 2
        %v993 = vadd.f32 %v991, %v992
        %v994 = vrot.slane %v993, 1
        %v995 = vadd.f32 %v993, %v994
        %v996 = vrcp.pop %v995
        %v997 = vmul.f32 %v892, %v996
        %v998 = vmul.f32 %v894, %v996
        %v999 = vmul.f32 %v896, %v996
        %v1000 = vmul.f32 %v898, %v996
        %v1001 = vmul.f32 %v900, %v996
        %v1002 = vmul.f32 %v902, %v996
        %v1003 = vmul.f32 %v904, %v996
        %v1004 = vmul.f32 %v906, %v996
        %v1005 = vmul.f32 %v908, %v996
        %v1006 = vmul.f32 %v910, %v996
        %v1007 = vmul.f32 %v912, %v996
        %v1008 = vmul.f32 %v914, %v996
        %v1009 = vmul.f32 %v916, %v996
        %v1010 = vmul.f32 %v918, %v996
        %v1011 = vmul.f32 %v920, %v996
        %v1012 = vmul.f32 %v922, %v996
        %v1013 = vmul.f32 %v924, %v996
        %v1014 = vmul.f32 %v926, %v996
        %v1015 = vmul.f32 %v928, %v996
        %v1016 = vmul.f32 %v930, %v996
        %v1017 = vmul.f32 %v932, %v996
        %v1018 = vmul.f32 %v934, %v996
        %v1019 = vmul.f32 %v936, %v996
        %v1020 = vmul.f32 %v938, %v996
        %v1021 = vmul.f32 %v940, %v996
        %1023 = vset.pattern.permute.xlu0 0
        %1024 = vperm.xlu0 %1023, %v997
        %v1025 = vpop.permute.xlu0 %1024
        %1028 = vset.pattern.permute.xlu0 0
        %1029 = vperm.xlu0 %1028, %v998
        %v1030 = vpop.permute.xlu0 %1029
        %1033 = vset.pattern.permute.xlu0 0
        %1034 = vperm.xlu0 %1033, %v999
        %v1035 = vpop.permute.xlu0 %1034
        %1038 = vset.pattern.permute.xlu0 0
        %1039 = vperm.xlu0 %1038, %v1000
        %v1040 = vpop.permute.xlu0 %1039
        %1043 = vset.pattern.permute.xlu0 0
        %1044 = vperm.xlu0 %1043, %v1001
        %v1045 = vpop.permute.xlu0 %1044
        %1048 = vset.pattern.permute.xlu0 0
        %1049 = vperm.xlu0 %1048, %v1002
        %v1050 = vpop.permute.xlu0 %1049
        %1053 = vset.pattern.permute.xlu0 0
        %1054 = vperm.xlu0 %1053, %v1003
        %v1055 = vpop.permute.xlu0 %1054
        %1058 = vset.pattern.permute.xlu0 0
        %1059 = vperm.xlu0 %1058, %v1004
        %v1060 = vpop.permute.xlu0 %1059
        %1063 = vset.pattern.permute.xlu0 0
        %1064 = vperm.xlu0 %1063, %v1005
        %v1065 = vpop.permute.xlu0 %1064
        %1068 = vset.pattern.permute.xlu0 0
        %1069 = vperm.xlu0 %1068, %v1006
        %v1070 = vpop.permute.xlu0 %1069
        %1073 = vset.pattern.permute.xlu0 0
        %1074 = vperm.xlu0 %1073, %v1007
        %v1075 = vpop.permute.xlu0 %1074
        %1078 = vset.pattern.permute.xlu0 0
        %1079 = vperm.xlu0 %1078, %v1008
        %v1080 = vpop.permute.xlu0 %1079
        %1083 = vset.pattern.permute.xlu0 0
        %1084 = vperm.xlu0 %1083, %v1009
        %v1085 = vpop.permute.xlu0 %1084
        %1088 = vset.pattern.permute.xlu0 0
        %1089 = vperm.xlu0 %1088, %v1010
        %v1090 = vpop.permute.xlu0 %1089
        %1093 = vset.pattern.permute.xlu0 0
        %1094 = vperm.xlu0 %1093, %v1011
        %v1095 = vpop.permute.xlu0 %1094
        %1098 = vset.pattern.permute.xlu0 0
        %1099 = vperm.xlu0 %1098, %v1012
        %v1100 = vpop.permute.xlu0 %1099
        %1103 = vset.pattern.permute.xlu0 0
        %1104 = vperm.xlu0 %1103, %v1013
        %v1105 = vpop.permute.xlu0 %1104
        %1108 = vset.pattern.permute.xlu0 0
        %1109 = vperm.xlu0 %1108, %v1014
        %v1110 = vpop.permute.xlu0 %1109
        %1113 = vset.pattern.permute.xlu0 0
        %1114 = vperm.xlu0 %1113, %v1015
        %v1115 = vpop.permute.xlu0 %1114
        %1118 = vset.pattern.permute.xlu0 0
        %1119 = vperm.xlu0 %1118, %v1016
        %v1120 = vpop.permute.xlu0 %1119
        %1123 = vset.pattern.permute.xlu0 0
        %1124 = vperm.xlu0 %1123, %v1017
        %v1125 = vpop.permute.xlu0 %1124
        %1128 = vset.pattern.permute.xlu0 0
        %1129 = vperm.xlu0 %1128, %v1018
        %v1130 = vpop.permute.xlu0 %1129
        %1133 = vset.pattern.permute.xlu0 0
        %1134 = vperm.xlu0 %1133, %v1019
        %v1135 = vpop.permute.xlu0 %1134
        %1138 = vset.pattern.permute.xlu0 0
        %1139 = vperm.xlu0 %1138, %v1020
        %v1140 = vpop.permute.xlu0 %1139
        %1143 = vset.pattern.permute.xlu0 0
        %1144 = vperm.xlu0 %1143, %v1021
        %v1145 = vpop.permute.xlu0 %1144
        %v1147 = vmul.f32 %v322, %v1025
        %v1148 = vmul.f32 %v323, %v1025
        %v1149 = vmul.f32 %v324, %v1025
        %v1150 = vmul.f32 %v325, %v1025
        %v1151 = vmul.f32 %v326, %v1030
        %v1152 = vmul.f32 %v327, %v1030
        %v1153 = vmul.f32 %v328, %v1030
        %v1154 = vmul.f32 %v329, %v1030
        %v1155 = vmul.f32 %v330, %v1035
        %v1156 = vmul.f32 %v331, %v1035
        %v1157 = vmul.f32 %v332, %v1035
        %v1158 = vmul.f32 %v333, %v1035
        %v1159 = vmul.f32 %v334, %v1040
        %v1160 = vmul.f32 %v335, %v1040
        %v1161 = vmul.f32 %v336, %v1040
        %v1162 = vmul.f32 %v337, %v1040
        %v1163 = vmul.f32 %v338, %v1045
        %v1164 = vmul.f32 %v339, %v1045
        %v1165 = vmul.f32 %v340, %v1045
        %v1166 = vmul.f32 %v341, %v1045
        %v1167 = vmul.f32 %v342, %v1050
        %v1168 = vmul.f32 %v343, %v1050
        %v1169 = vmul.f32 %v344, %v1050
        %v1170 = vmul.f32 %v345, %v1050
        %v1171 = vmul.f32 %v346, %v1055
        %v1172 = vmul.f32 %v347, %v1055
        %v1173 = vmul.f32 %v348, %v1055
        %v1174 = vmul.f32 %v349, %v1055
        %v1175 = vmul.f32 %v350, %v1060
        %v1176 = vmul.f32 %v351, %v1060
        %v1177 = vmul.f32 %v352, %v1060
        %v1178 = vmul.f32 %v353, %v1060
        %v1179 = vmul.f32 %v354, %v1065
        %v1180 = vmul.f32 %v355, %v1065
        %v1181 = vmul.f32 %v356, %v1065
        %v1182 = vmul.f32 %v357, %v1065
        %v1183 = vmul.f32 %v358, %v1070
        %v1184 = vmul.f32 %v359, %v1070
        %v1185 = vmul.f32 %v360, %v1070
        %v1186 = vmul.f32 %v361, %v1070
        %v1187 = vmul.f32 %v362, %v1075
        %v1188 = vmul.f32 %v363, %v1075
        %v1189 = vmul.f32 %v364, %v1075
        %v1190 = vmul.f32 %v365, %v1075
        %v1191 = vmul.f32 %v366, %v1080
        %v1192 = vmul.f32 %v367, %v1080
        %v1193 = vmul.f32 %v368, %v1080
        %v1194 = vmul.f32 %v369, %v1080
        %v1195 = vmul.f32 %v370, %v1085
        %v1196 = vmul.f32 %v371, %v1085
        %v1197 = vmul.f32 %v372, %v1085
        %v1198 = vmul.f32 %v373, %v1085
        %v1199 = vmul.f32 %v374, %v1090
        %v1200 = vmul.f32 %v375, %v1090
        %v1201 = vmul.f32 %v376, %v1090
        %v1202 = vmul.f32 %v377, %v1090
        %v1203 = vmul.f32 %v378, %v1095
        %v1204 = vmul.f32 %v379, %v1095
        %v1205 = vmul.f32 %v380, %v1095
        %v1206 = vmul.f32 %v381, %v1095
        %v1207 = vmul.f32 %v382, %v1100
        %v1208 = vmul.f32 %v383, %v1100
        %v1209 = vmul.f32 %v384, %v1100
        %v1210 = vmul.f32 %v385, %v1100
        %v1211 = vmul.f32 %v386, %v1105
        %v1212 = vmul.f32 %v387, %v1105
        %v1213 = vmul.f32 %v388, %v1105
        %v1214 = vmul.f32 %v389, %v1105
        %v1215 = vmul.f32 %v390, %v1110
        %v1216 = vmul.f32 %v391, %v1110
        %v1217 = vmul.f32 %v392, %v1110
        %v1218 = vmul.f32 %v393, %v1110
        %v1219 = vmul.f32 %v394, %v1115
        %v1220 = vmul.f32 %v395, %v1115
        %v1221 = vmul.f32 %v396, %v1115
        %v1222 = vmul.f32 %v397, %v1115
        %v1223 = vmul.f32 %v398, %v1120
        %v1224 = vmul.f32 %v399, %v1120
        %v1225 = vmul.f32 %v400, %v1120
        %v1226 = vmul.f32 %v401, %v1120
        %v1227 = vmul.f32 %v402, %v1125
        %v1228 = vmul.f32 %v403, %v1125
        %v1229 = vmul.f32 %v404, %v1125
        %v1230 = vmul.f32 %v405, %v1125
        %v1231 = vmul.f32 %v406, %v1130
        %v1232 = vmul.f32 %v407, %v1130
        %v1233 = vmul.f32 %v408, %v1130
        %v1234 = vmul.f32 %v409, %v1130
        %v1235 = vmul.f32 %v410, %v1135
        %v1236 = vmul.f32 %v411, %v1135
        %v1237 = vmul.f32 %v412, %v1135
        %v1238 = vmul.f32 %v413, %v1135
        %v1239 = vmul.f32 %v414, %v1140
        %v1240 = vmul.f32 %v415, %v1140
        %v1241 = vmul.f32 %v416, %v1140
        %v1242 = vmul.f32 %v417, %v1140
        %v1243 = vmul.f32 %v418, %v1145
        %v1244 = vmul.f32 %v419, %v1145
        %v1245 = vmul.f32 %v420, %v1145
        %v1246 = vmul.f32 %v421, %v1145
        %v1247 = vadd.f32 %v1147, %v1151
        %v1248 = vadd.f32 %v1247, %v1155
        %v1249 = vadd.f32 %v1248, %v1159
        %v1250 = vadd.f32 %v1249, %v1163
        %v1251 = vadd.f32 %v1250, %v1167
        %v1252 = vadd.f32 %v1251, %v1171
        %v1253 = vadd.f32 %v1252, %v1175
        %v1254 = vadd.f32 %v1253, %v1179
        %v1255 = vadd.f32 %v1254, %v1183
        %v1256 = vadd.f32 %v1255, %v1187
        %v1257 = vadd.f32 %v1256, %v1191
        %v1258 = vadd.f32 %v1257, %v1195
        %v1259 = vadd.f32 %v1258, %v1199
        %v1260 = vadd.f32 %v1259, %v1203
        %v1261 = vadd.f32 %v1260, %v1207
        %v1262 = vadd.f32 %v1261, %v1211
        %v1263 = vadd.f32 %v1262, %v1215
        %v1264 = vadd.f32 %v1263, %v1219
        %v1265 = vadd.f32 %v1264, %v1223
        %v1266 = vadd.f32 %v1265, %v1227
        %v1267 = vadd.f32 %v1266, %v1231
        %v1268 = vadd.f32 %v1267, %v1235
        %v1269 = vadd.f32 %v1268, %v1239
        %vm1270 = vcmask 1043456
        %v1271 = vsel %vm1270, %v1243, 0.0
        %v1272 = vadd.f32 %v1269, %v1271
        %v1273 = vrot.slane %v1272, 4
        %v1274 = vadd.f32 %v1272, %v1273
        %v1275 = vrot.slane %v1274, 2
        %v1276 = vadd.f32 %v1274, %v1275
        %v1277 = vrot.slane %v1276, 1
        %v1278 = vadd.f32 %v1276, %v1277
        %v1279 = vadd.f32 %v1148, %v1152
        %v1280 = vadd.f32 %v1279, %v1156
        %v1281 = vadd.f32 %v1280, %v1160
        %v1282 = vadd.f32 %v1281, %v1164
        %v1283 = vadd.f32 %v1282, %v1168
        %v1284 = vadd.f32 %v1283, %v1172
        %v1285 = vadd.f32 %v1284, %v1176
        %v1286 = vadd.f32 %v1285, %v1180
        %v1287 = vadd.f32 %v1286, %v1184
        %v1288 = vadd.f32 %v1287, %v1188
        %v1289 = vadd.f32 %v1288, %v1192
        %v1290 = vadd.f32 %v1289, %v1196
        %v1291 = vadd.f32 %v1290, %v1200
        %v1292 = vadd.f32 %v1291, %v1204
        %v1293 = vadd.f32 %v1292, %v1208
        %v1294 = vadd.f32 %v1293, %v1212
        %v1295 = vadd.f32 %v1294, %v1216
        %v1296 = vadd.f32 %v1295, %v1220
        %v1297 = vadd.f32 %v1296, %v1224
        %v1298 = vadd.f32 %v1297, %v1228
        %v1299 = vadd.f32 %v1298, %v1232
        %v1300 = vadd.f32 %v1299, %v1236
        %v1301 = vadd.f32 %v1300, %v1240
        %v1302 = vsel %vm1270, %v1244, 0.0
        %v1303 = vadd.f32 %v1301, %v1302
        %v1304 = vrot.slane %v1303, 4
        %v1305 = vadd.f32 %v1303, %v1304
        %v1306 = vrot.slane %v1305, 2
        %v1307 = vadd.f32 %v1305, %v1306
        %v1308 = vrot.slane %v1307, 1
        %v1309 = vadd.f32 %v1307, %v1308
        %v1310 = vadd.f32 %v1149, %v1153
        %v1311 = vadd.f32 %v1310, %v1157
        %v1312 = vadd.f32 %v1311, %v1161
        %v1313 = vadd.f32 %v1312, %v1165
        %v1314 = vadd.f32 %v1313, %v1169
        %v1315 = vadd.f32 %v1314, %v1173
        %v1316 = vadd.f32 %v1315, %v1177
        %v1317 = vadd.f32 %v1316, %v1181
        %v1318 = vadd.f32 %v1317, %v1185
        %v1319 = vadd.f32 %v1318, %v1189
        %v1320 = vadd.f32 %v1319, %v1193
        %v1321 = vadd.f32 %v1320, %v1197
        %v1322 = vadd.f32 %v1321, %v1201
        %v1323 = vadd.f32 %v1322, %v1205
        %v1324 = vadd.f32 %v1323, %v1209
        %v1325 = vadd.f32 %v1324, %v1213
        %v1326 = vadd.f32 %v1325, %v1217
        %v1327 = vadd.f32 %v1326, %v1221
        %v1328 = vadd.f32 %v1327, %v1225
        %v1329 = vadd.f32 %v1328, %v1229
        %v1330 = vadd.f32 %v1329, %v1233
        %v1331 = vadd.f32 %v1330, %v1237
        %v1332 = vadd.f32 %v1331, %v1241
        %v1333 = vsel %vm1270, %v1245, 0.0
        %v1334 = vadd.f32 %v1332, %v1333
        %v1335 = vrot.slane %v1334, 4
        %v1336 = vadd.f32 %v1334, %v1335
        %v1337 = vrot.slane %v1336, 2
        %v1338 = vadd.f32 %v1336, %v1337
        %v1339 = vrot.slane %v1338, 1
        %v1340 = vadd.f32 %v1338, %v1339
        %v1341 = vadd.f32 %v1150, %v1154
        %v1342 = vadd.f32 %v1341, %v1158
        %v1343 = vadd.f32 %v1342, %v1162
        %v1344 = vadd.f32 %v1343, %v1166
        %v1345 = vadd.f32 %v1344, %v1170
        %v1346 = vadd.f32 %v1345, %v1174
        %v1347 = vadd.f32 %v1346, %v1178
        %v1348 = vadd.f32 %v1347, %v1182
        %v1349 = vadd.f32 %v1348, %v1186
        %v1350 = vadd.f32 %v1349, %v1190
        %v1351 = vadd.f32 %v1350, %v1194
        %v1352 = vadd.f32 %v1351, %v1198
        %v1353 = vadd.f32 %v1352, %v1202
        %v1354 = vadd.f32 %v1353, %v1206
        %v1355 = vadd.f32 %v1354, %v1210
        %v1356 = vadd.f32 %v1355, %v1214
        %v1357 = vadd.f32 %v1356, %v1218
        %v1358 = vadd.f32 %v1357, %v1222
        %v1359 = vadd.f32 %v1358, %v1226
        %v1360 = vadd.f32 %v1359, %v1230
        %v1361 = vadd.f32 %v1360, %v1234
        %v1362 = vadd.f32 %v1361, %v1238
        %v1363 = vadd.f32 %v1362, %v1242
        %v1364 = vsel %vm1270, %v1246, 0.0
        %v1365 = vadd.f32 %v1363, %v1364
        %v1366 = vrot.slane %v1365, 4
        %v1367 = vadd.f32 %v1365, %v1366
        %v1368 = vrot.slane %v1367, 2
        %v1369 = vadd.f32 %v1367, %v1368
        %v1370 = vrot.slane %v1369, 1
        %v1371 = vadd.f32 %v1369, %v1370
        %v1376 = vcombine.low %v1278, %v1309
        %v1377 = vcombine.low %v1340, %v1371
        %v1379 = vunpack.c.l.s4 1966171168
        %v1380 = vunpack.c.0.s8 %v1379
        %v1381 = vlaneseq
        %v1382 = vshrl.u32 %v1381, 7
        %v1383 = vsub.s32 %v1380, %v1382
        %v1384 = vrot.slane %v1376, %v1383
        %v1386 = vunpack.c.l.s4 1966171168
        %v1387 = vunpack.c.0.s8 %v1386
        %v1388 = vlaneseq
        %v1389 = vshrl.u32 %v1388, 7
        %v1390 = vsub.s32 %v1387, %v1389
        %v1391 = vrot.slane %v1377, %v1390
        %v1392 = vcombine.low %v1384, %v1391
        %v1394 = vunpack.c.l.s4 1966171168
        %v1395 = vunpack.c.0.s8 %v1394
        %v1396 = vlaneseq
        %v1397 = vshrl.u32 %v1396, 7
        %v1398 = vsub.s32 %v1395, %v1397
        %v1399 = vrot.slane %v1392, %v1398
        %v1401 = vlaneseq
        %vm1402 = vcmp.ge.s32.totalorder %v1401, 0
        %vm1403 = vcmp.lt.s32.totalorder %v1401, 512
        %vm1404 = vmand %vm1402, %vm1403
        %1405 = vst.msk [vmem:[#allocation2] ss:$8 sm:$0xf] %vm1404, %v1399
        %1406 = vst.msk [vmem:[#allocation2] ss:$8 sm:$0x0] %vm1404, %v1399
        %s1407 = scalar_lea.vmem %s256, 800
        %v1408 = vld [vmem:[%s1407] sm:$0xff]
        %v1409 = vld [vmem:[%s1407 + $0x8] sm:$0xff]
        %v1410 = vld [vmem:[%s1407 + $0x10] sm:$0xff]
        %v1411 = vld [vmem:[%s1407 + $0x18] sm:$0xff]
        %v1412 = vld [vmem:[%s1407 + $0x20] sm:$0xff]
        %v1413 = vld [vmem:[%s1407 + $0x28] sm:$0xff]
        %v1414 = vld [vmem:[%s1407 + $0x30] sm:$0xff]
        %v1415 = vld [vmem:[%s1407 + $0x38] sm:$0xff]
        %v1416 = vld [vmem:[%s1407 + $0x40] sm:$0xff]
        %v1417 = vld [vmem:[%s1407 + $0x48] sm:$0xff]
        %v1418 = vld [vmem:[%s1407 + $0x50] sm:$0xff]
        %v1419 = vld [vmem:[%s1407 + $0x58] sm:$0xff]
        %v1420 = vld [vmem:[%s1407 + $0x60] sm:$0xff]
        %v1421 = vld [vmem:[%s1407 + $0x68] sm:$0xff]
        %v1422 = vld [vmem:[%s1407 + $0x70] sm:$0xff]
        %v1423 = vld [vmem:[%s1407 + $0x78] sm:$0xff]
        %v1424 = vld [vmem:[%s1407 + $0x80] sm:$0xff]
        %v1425 = vld [vmem:[%s1407 + $0x88] sm:$0xff]
        %v1426 = vld [vmem:[%s1407 + $0x90] sm:$0xff]
        %v1427 = vld [vmem:[%s1407 + $0x98] sm:$0xff]
        %v1428 = vld [vmem:[%s1407 + $0xa0] sm:$0xff]
        %v1429 = vld [vmem:[%s1407 + $0xa8] sm:$0xff]
        %v1430 = vld [vmem:[%s1407 + $0xb0] sm:$0xff]
        %v1431 = vld [vmem:[%s1407 + $0xb8] sm:$0xff]
        %v1432 = vld [vmem:[%s1407 + $0xc0] sm:$0xff]
        %v1433 = vld [vmem:[%s1407 + $0xc8] sm:$0xff]
        %v1434 = vld [vmem:[%s1407 + $0xd0] sm:$0xff]
        %v1435 = vld [vmem:[%s1407 + $0xd8] sm:$0xff]
        %v1436 = vld [vmem:[%s1407 + $0xe0] sm:$0xff]
        %v1437 = vld [vmem:[%s1407 + $0xe8] sm:$0xff]
        %v1438 = vld [vmem:[%s1407 + $0xf0] sm:$0xff]
        %v1439 = vld [vmem:[%s1407 + $0xf8] sm:$0xff]
        %v1440 = vld [vmem:[%s1407 + $0x100] sm:$0xff]
        %v1441 = vld [vmem:[%s1407 + $0x108] sm:$0xff]
        %v1442 = vld [vmem:[%s1407 + $0x110] sm:$0xff]
        %v1443 = vld [vmem:[%s1407 + $0x118] sm:$0xff]
        %v1444 = vld [vmem:[%s1407 + $0x120] sm:$0xff]
        %v1445 = vld [vmem:[%s1407 + $0x128] sm:$0xff]
        %v1446 = vld [vmem:[%s1407 + $0x130] sm:$0xff]
        %v1447 = vld [vmem:[%s1407 + $0x138] sm:$0xff]
        %v1448 = vld [vmem:[%s1407 + $0x140] sm:$0xff]
        %v1449 = vld [vmem:[%s1407 + $0x148] sm:$0xff]
        %v1450 = vld [vmem:[%s1407 + $0x150] sm:$0xff]
        %v1451 = vld [vmem:[%s1407 + $0x158] sm:$0xff]
        %v1452 = vld [vmem:[%s1407 + $0x160] sm:$0xff]
        %v1453 = vld [vmem:[%s1407 + $0x168] sm:$0xff]
        %v1454 = vld [vmem:[%s1407 + $0x170] sm:$0xff]
        %v1455 = vld [vmem:[%s1407 + $0x178] sm:$0xff]
        %v1456 = vld [vmem:[%s1407 + $0x180] sm:$0xff]
        %v1457 = vld [vmem:[%s1407 + $0x188] sm:$0xff]
        %v1458 = vld [vmem:[%s1407 + $0x190] sm:$0xff]
        %v1459 = vld [vmem:[%s1407 + $0x198] sm:$0xff]
        %v1460 = vld [vmem:[%s1407 + $0x1a0] sm:$0xff]
        %v1461 = vld [vmem:[%s1407 + $0x1a8] sm:$0xff]
        %v1462 = vld [vmem:[%s1407 + $0x1b0] sm:$0xff]
        %v1463 = vld [vmem:[%s1407 + $0x1b8] sm:$0xff]
        %v1464 = vld [vmem:[%s1407 + $0x1c0] sm:$0xff]
        %v1465 = vld [vmem:[%s1407 + $0x1c8] sm:$0xff]
        %v1466 = vld [vmem:[%s1407 + $0x1d0] sm:$0xff]
        %v1467 = vld [vmem:[%s1407 + $0x1d8] sm:$0xff]
        %v1468 = vld [vmem:[%s1407 + $0x1e0] sm:$0xff]
        %v1469 = vld [vmem:[%s1407 + $0x1e8] sm:$0xff]
        %v1470 = vld [vmem:[%s1407 + $0x1f0] sm:$0xff]
        %v1471 = vld [vmem:[%s1407 + $0x1f8] sm:$0xff]
        %v1472 = vld [vmem:[%s1407 + $0x200] sm:$0xff]
        %v1473 = vld [vmem:[%s1407 + $0x208] sm:$0xff]
        %v1474 = vld [vmem:[%s1407 + $0x210] sm:$0xff]
        %v1475 = vld [vmem:[%s1407 + $0x218] sm:$0xff]
        %v1476 = vld [vmem:[%s1407 + $0x220] sm:$0xff]
        %v1477 = vld [vmem:[%s1407 + $0x228] sm:$0xff]
        %v1478 = vld [vmem:[%s1407 + $0x230] sm:$0xff]
        %v1479 = vld [vmem:[%s1407 + $0x238] sm:$0xff]
        %v1480 = vld [vmem:[%s1407 + $0x240] sm:$0xff]
        %v1481 = vld [vmem:[%s1407 + $0x248] sm:$0xff]
        %v1482 = vld [vmem:[%s1407 + $0x250] sm:$0xff]
        %v1483 = vld [vmem:[%s1407 + $0x258] sm:$0xff]
        %v1484 = vld [vmem:[%s1407 + $0x260] sm:$0xff]
        %v1485 = vld [vmem:[%s1407 + $0x268] sm:$0xff]
        %v1486 = vld [vmem:[%s1407 + $0x270] sm:$0xff]
        %v1487 = vld [vmem:[%s1407 + $0x278] sm:$0xff]
        %v1488 = vld [vmem:[%s1407 + $0x280] sm:$0xff]
        %v1489 = vld [vmem:[%s1407 + $0x288] sm:$0xff]
        %v1490 = vld [vmem:[%s1407 + $0x290] sm:$0xff]
        %v1491 = vld [vmem:[%s1407 + $0x298] sm:$0xff]
        %v1492 = vld [vmem:[%s1407 + $0x2a0] sm:$0xff]
        %v1493 = vld [vmem:[%s1407 + $0x2a8] sm:$0xff]
        %v1494 = vld [vmem:[%s1407 + $0x2b0] sm:$0xff]
        %v1495 = vld [vmem:[%s1407 + $0x2b8] sm:$0xff]
        %v1496 = vld [vmem:[%s1407 + $0x2c0] sm:$0xff]
        %v1497 = vld [vmem:[%s1407 + $0x2c8] sm:$0xff]
        %v1498 = vld [vmem:[%s1407 + $0x2d0] sm:$0xff]
        %v1499 = vld [vmem:[%s1407 + $0x2d8] sm:$0xff]
        %v1500 = vld [vmem:[%s1407 + $0x2e0] sm:$0xff]
        %v1501 = vld [vmem:[%s1407 + $0x2e8] sm:$0xff]
        %v1502 = vld [vmem:[%s1407 + $0x2f0] sm:$0xff]
        %v1503 = vld [vmem:[%s1407 + $0x2f8] sm:$0xff]
        %v1504 = vld [vmem:[%s1407 + $0x300] sm:$0xf]
        %v1505 = vld [vmem:[%s1407 + $0x308] sm:$0xf]
        %v1506 = vld [vmem:[%s1407 + $0x310] sm:$0xf]
        %v1507 = vld [vmem:[%s1407 + $0x318] sm:$0xf]
        %v1508 = vld [vmem:[#allocation3] sm:$0x1]
        %v1510 = vlaneseq
        %v1511 = vshrl.u32 %v1510, 7
        %v1512 = vsub.s32 0, %v1511
        %v1513 = vrot.slane %v1508, %v1512
        %1515 = vmatprep.subr.mxu0 0.0
        %1516 = vmatpush1.msra.mxu0 %v273
        %1517 = vmatprep.subr.mxu0 0.0
        %1518 = vmatpush1.msra.mxu0 %v272
        %1519 = vmatprep.subr.mxu0 0.0
        %1520 = vmatpush1.msra.mxu0 %v271
        %1521 = vmatprep.subr.mxu0 0.0
        %1522 = vmatpush1.msra.mxu0 %v270
        %1523 = vmatprep.subr.mxu0 0.0
        %1524 = vmatpush1.msra.mxu0 %v269
        %1525 = vmatprep.subr.mxu0 0.0
        %1526 = vmatpush1.msra.mxu0 %v268
        %1527 = vmatprep.subr.mxu0 0.0
        %1528 = vmatpush1.msra.mxu0 %v267
        %1529 = vmatprep.subr.mxu0 0.0
        %1530 = vmatpush1.msra.mxu0 %v266
        %1531 = vmatprep.subr.mxu0 0.0
        %1532 = vmatpush1.msra.mxu0 %v265
        %1533 = vmatprep.subr.mxu0 0.0
        %1534 = vmatpush1.msra.mxu0 %v264
        %1535 = vmatprep.subr.mxu0 0.0
        %1536 = vmatpush1.msra.mxu0 %v263
        %1537 = vmatprep.subr.mxu0 0.0
        %1538 = vmatpush1.msra.mxu0 %v262
        %1539 = vmatprep.subr.mxu0 0.0
        %1540 = vmatpush1.msra.mxu0 %v261
        %1541 = vmatprep.subr.mxu0 0.0
        %1542 = vmatpush1.msra.mxu0 %v260
        %1543 = vmatprep.subr.mxu0 0.0
        %1544 = vmatpush1.msra.mxu0 %v259
        %1545 = vmatprep.subr.mxu0 0.0
        %1546 = vmatpush1.msra.mxu0 %v258
        %1547 = vmatprep.subr.mxu0 0.0
        %1548 = vmatpush2.msra.mxu0 %v289
        %1549 = vmatprep.subr.mxu0 0.0
        %1550 = vmatpush2.msra.mxu0 %v288
        %1551 = vmatprep.subr.mxu0 0.0
        %1552 = vmatpush2.msra.mxu0 %v287
        %1553 = vmatprep.subr.mxu0 0.0
        %1554 = vmatpush2.msra.mxu0 %v286
        %1555 = vmatprep.subr.mxu0 0.0
        %1556 = vmatpush2.msra.mxu0 %v285
        %1557 = vmatprep.subr.mxu0 0.0
        %1558 = vmatpush2.msra.mxu0 %v284
        %1559 = vmatprep.subr.mxu0 0.0
        %1560 = vmatpush2.msra.mxu0 %v283
        %1561 = vmatprep.subr.mxu0 0.0
        %1562 = vmatpush2.msra.mxu0 %v282
        %1563 = vmatprep.subr.mxu0 0.0
        %1564 = vmatpush2.msra.mxu0 %v281
        %1565 = vmatprep.subr.mxu0 0.0
        %1566 = vmatpush2.msra.mxu0 %v280
        %1567 = vmatprep.subr.mxu0 0.0
        %1568 = vmatpush2.msra.mxu0 %v279
        %1569 = vmatprep.subr.mxu0 0.0
        %1570 = vmatpush2.msra.mxu0 %v278
        %1571 = vmatprep.subr.mxu0 0.0
        %1572 = vmatpush2.msra.mxu0 %v277
        %1573 = vmatprep.subr.mxu0 0.0
        %1574 = vmatpush2.msra.mxu0 %v276
        %1575 = vmatprep.subr.mxu0 0.0
        %1576 = vmatpush2.msra.mxu0 %v275
        %1577 = vmatprep.subr.mxu0 0.0
        %1578 = vmatpush2.msra.mxu0 %v274
        %1579 = vmatprep.mubr.f32.mxu0 %v1409
        %1580 = vmatmul.mubr.f32.gmra.mxu0 %v1408
        %v1581 = vpop.f32.mrf.mxu0
        %v1582 = vadd.f32 %v1513, %v1581
        %v1583 = vpop.f32.mrf.mxu0
        %1584 = vmatprep.mubr.f32.mxu0 %v1413
        %1585 = vmatmul.mubr.f32.gmra.mxu0 %v1412
        %v1586 = vpop.f32.mrf.mxu0
        %v1587 = vadd.f32 %v1513, %v1586
        %v1588 = vpop.f32.mrf.mxu0
        %1589 = vmatprep.mubr.f32.mxu0 %v1417
        %1590 = vmatmul.mubr.f32.gmra.mxu0 %v1416
        %v1591 = vpop.f32.mrf.mxu0
        %v1592 = vadd.f32 %v1513, %v1591
        %v1593 = vpop.f32.mrf.mxu0
        %1594 = vmatprep.mubr.f32.mxu0 %v1421
        %1595 = vmatmul.mubr.f32.gmra.mxu0 %v1420
        %v1596 = vpop.f32.mrf.mxu0
        %v1597 = vadd.f32 %v1513, %v1596
        %v1598 = vpop.f32.mrf.mxu0
        %1599 = vmatprep.mubr.f32.mxu0 %v1425
        %1600 = vmatmul.mubr.f32.gmra.mxu0 %v1424
        %v1601 = vpop.f32.mrf.mxu0
        %v1602 = vadd.f32 %v1513, %v1601
        %v1603 = vpop.f32.mrf.mxu0
        %1604 = vmatprep.mubr.f32.mxu0 %v1429
        %1605 = vmatmul.mubr.f32.gmra.mxu0 %v1428
        %v1606 = vpop.f32.mrf.mxu0
        %v1607 = vadd.f32 %v1513, %v1606
        %v1608 = vpop.f32.mrf.mxu0
        %1609 = vmatprep.mubr.f32.mxu0 %v1433
        %1610 = vmatmul.mubr.f32.gmra.mxu0 %v1432
        %v1611 = vpop.f32.mrf.mxu0
        %v1612 = vadd.f32 %v1513, %v1611
        %v1613 = vpop.f32.mrf.mxu0
        %1614 = vmatprep.mubr.f32.mxu0 %v1437
        %1615 = vmatmul.mubr.f32.gmra.mxu0 %v1436
        %v1616 = vpop.f32.mrf.mxu0
        %v1617 = vadd.f32 %v1513, %v1616
        %v1618 = vpop.f32.mrf.mxu0
        %1619 = vmatprep.mubr.f32.mxu0 %v1441
        %1620 = vmatmul.mubr.f32.gmra.mxu0 %v1440
        %v1621 = vpop.f32.mrf.mxu0
        %v1622 = vadd.f32 %v1513, %v1621
        %v1623 = vpop.f32.mrf.mxu0
        %1624 = vmatprep.mubr.f32.mxu0 %v1445
        %1625 = vmatmul.mubr.f32.gmra.mxu0 %v1444
        %v1626 = vpop.f32.mrf.mxu0
        %v1627 = vadd.f32 %v1513, %v1626
        %v1628 = vpop.f32.mrf.mxu0
        %1629 = vmatprep.mubr.f32.mxu0 %v1449
        %1630 = vmatmul.mubr.f32.gmra.mxu0 %v1448
        %v1631 = vpop.f32.mrf.mxu0
        %v1632 = vadd.f32 %v1513, %v1631
        %v1633 = vpop.f32.mrf.mxu0
        %1634 = vmatprep.mubr.f32.mxu0 %v1453
        %1635 = vmatmul.mubr.f32.gmra.mxu0 %v1452
        %v1636 = vpop.f32.mrf.mxu0
        %v1637 = vadd.f32 %v1513, %v1636
        %v1638 = vpop.f32.mrf.mxu0
        %1639 = vmatprep.mubr.f32.mxu0 %v1457
        %1640 = vmatmul.mubr.f32.gmra.mxu0 %v1456
        %v1641 = vpop.f32.mrf.mxu0
        %v1642 = vadd.f32 %v1513, %v1641
        %v1643 = vpop.f32.mrf.mxu0
        %1644 = vmatprep.mubr.f32.mxu0 %v1461
        %1645 = vmatmul.mubr.f32.gmra.mxu0 %v1460
        %v1646 = vpop.f32.mrf.mxu0
        %v1647 = vadd.f32 %v1513, %v1646
        %v1648 = vpop.f32.mrf.mxu0
        %1649 = vmatprep.mubr.f32.mxu0 %v1465
        %1650 = vmatmul.mubr.f32.gmra.mxu0 %v1464
        %v1651 = vpop.f32.mrf.mxu0
        %v1652 = vadd.f32 %v1513, %v1651
        %v1653 = vpop.f32.mrf.mxu0
        %1654 = vmatprep.mubr.f32.mxu0 %v1469
        %1655 = vmatmul.mubr.f32.gmra.mxu0 %v1468
        %v1656 = vpop.f32.mrf.mxu0
        %v1657 = vadd.f32 %v1513, %v1656
        %v1658 = vpop.f32.mrf.mxu0
        %1659 = vmatprep.mubr.f32.mxu0 %v1473
        %1660 = vmatmul.mubr.f32.gmra.mxu0 %v1472
        %v1661 = vpop.f32.mrf.mxu0
        %v1662 = vadd.f32 %v1513, %v1661
        %v1663 = vpop.f32.mrf.mxu0
        %1664 = vmatprep.mubr.f32.mxu0 %v1477
        %1665 = vmatmul.mubr.f32.gmra.mxu0 %v1476
        %v1666 = vpop.f32.mrf.mxu0
        %v1667 = vadd.f32 %v1513, %v1666
        %v1668 = vpop.f32.mrf.mxu0
        %1669 = vmatprep.mubr.f32.mxu0 %v1481
        %1670 = vmatmul.mubr.f32.gmra.mxu0 %v1480
        %v1671 = vpop.f32.mrf.mxu0
        %v1672 = vadd.f32 %v1513, %v1671
        %v1673 = vpop.f32.mrf.mxu0
        %1674 = vmatprep.mubr.f32.mxu0 %v1485
        %1675 = vmatmul.mubr.f32.gmra.mxu0 %v1484
        %v1676 = vpop.f32.mrf.mxu0
        %v1677 = vadd.f32 %v1513, %v1676
        %v1678 = vpop.f32.mrf.mxu0
        %1679 = vmatprep.mubr.f32.mxu0 %v1489
        %1680 = vmatmul.mubr.f32.gmra.mxu0 %v1488
        %v1681 = vpop.f32.mrf.mxu0
        %v1682 = vadd.f32 %v1513, %v1681
        %v1683 = vpop.f32.mrf.mxu0
        %1684 = vmatprep.mubr.f32.mxu0 %v1493
        %1685 = vmatmul.mubr.f32.gmra.mxu0 %v1492
        %v1686 = vpop.f32.mrf.mxu0
        %v1687 = vadd.f32 %v1513, %v1686
        %v1688 = vpop.f32.mrf.mxu0
        %1689 = vmatprep.mubr.f32.mxu0 %v1497
        %1690 = vmatmul.mubr.f32.gmra.mxu0 %v1496
        %v1691 = vpop.f32.mrf.mxu0
        %v1692 = vadd.f32 %v1513, %v1691
        %v1693 = vpop.f32.mrf.mxu0
        %1694 = vmatprep.mubr.f32.mxu0 %v1501
        %1695 = vmatmul.mubr.f32.gmra.mxu0 %v1500
        %v1696 = vpop.f32.mrf.mxu0
        %v1697 = vadd.f32 %v1513, %v1696
        %v1698 = vpop.f32.mrf.mxu0
        %1699 = vmatprep.mubr.f32.mxu0 %v1505
        %1700 = vmatmul.mubr.f32.gmra.mxu0 %v1504
        %v1701 = vpop.f32.mrf.mxu0
        %v1702 = vadd.f32 %v1513, %v1701
        %v1703 = vpop.f32.mrf.mxu0
        %1704 = vdwg.mxu0
        %1705 = vmatprep.subr.mxu0 0.0
        %1706 = vmatpush1.msra.mxu0 %v305
        %1707 = vmatprep.subr.mxu0 0.0
        %1708 = vmatpush1.msra.mxu0 %v304
        %1709 = vmatprep.subr.mxu0 0.0
        %1710 = vmatpush1.msra.mxu0 %v303
        %1711 = vmatprep.subr.mxu0 0.0
        %1712 = vmatpush1.msra.mxu0 %v302
        %1713 = vmatprep.subr.mxu0 0.0
        %1714 = vmatpush1.msra.mxu0 %v301
        %1715 = vmatprep.subr.mxu0 0.0
        %1716 = vmatpush1.msra.mxu0 %v300
        %1717 = vmatprep.subr.mxu0 0.0
        %1718 = vmatpush1.msra.mxu0 %v299
        %1719 = vmatprep.subr.mxu0 0.0
        %1720 = vmatpush1.msra.mxu0 %v298
        %1721 = vmatprep.subr.mxu0 0.0
        %1722 = vmatpush1.msra.mxu0 %v297
        %1723 = vmatprep.subr.mxu0 0.0
        %1724 = vmatpush1.msra.mxu0 %v296
        %1725 = vmatprep.subr.mxu0 0.0
        %1726 = vmatpush1.msra.mxu0 %v295
        %1727 = vmatprep.subr.mxu0 0.0
        %1728 = vmatpush1.msra.mxu0 %v294
        %1729 = vmatprep.subr.mxu0 0.0
        %1730 = vmatpush1.msra.mxu0 %v293
        %1731 = vmatprep.subr.mxu0 0.0
        %1732 = vmatpush1.msra.mxu0 %v292
        %1733 = vmatprep.subr.mxu0 0.0
        %1734 = vmatpush1.msra.mxu0 %v291
        %1735 = vmatprep.subr.mxu0 0.0
        %1736 = vmatpush1.msra.mxu0 %v290
        %1737 = vmatprep.subr.mxu0 0.0
        %1738 = vmatpush2.msra.mxu0 %v321
        %1739 = vmatprep.subr.mxu0 0.0
        %1740 = vmatpush2.msra.mxu0 %v320
        %1741 = vmatprep.subr.mxu0 0.0
        %1742 = vmatpush2.msra.mxu0 %v319
        %1743 = vmatprep.subr.mxu0 0.0
        %1744 = vmatpush2.msra.mxu0 %v318
        %1745 = vmatprep.subr.mxu0 0.0
        %1746 = vmatpush2.msra.mxu0 %v317
        %1747 = vmatprep.subr.mxu0 0.0
        %1748 = vmatpush2.msra.mxu0 %v316
        %1749 = vmatprep.subr.mxu0 0.0
        %1750 = vmatpush2.msra.mxu0 %v315
        %1751 = vmatprep.subr.mxu0 0.0
        %1752 = vmatpush2.msra.mxu0 %v314
        %1753 = vmatprep.subr.mxu0 0.0
        %1754 = vmatpush2.msra.mxu0 %v313
        %1755 = vmatprep.subr.mxu0 0.0
        %1756 = vmatpush2.msra.mxu0 %v312
        %1757 = vmatprep.subr.mxu0 0.0
        %1758 = vmatpush2.msra.mxu0 %v311
        %1759 = vmatprep.subr.mxu0 0.0
        %1760 = vmatpush2.msra.mxu0 %v310
        %1761 = vmatprep.subr.mxu0 0.0
        %1762 = vmatpush2.msra.mxu0 %v309
        %1763 = vmatprep.subr.mxu0 0.0
        %1764 = vmatpush2.msra.mxu0 %v308
        %1765 = vmatprep.subr.mxu0 0.0
        %1766 = vmatpush2.msra.mxu0 %v307
        %1767 = vmatprep.subr.mxu0 0.0
        %1768 = vmatpush2.msra.mxu0 %v306
        %1769 = vmatprep.mubr.f32.mxu0 %v1411
        %1770 = vmatmul.mubr.f32.gmra.mxu0 %v1410
        %v1771 = vpop.f32.mrf.mxu0
        %v1772 = vadd.f32 %v1582, %v1771
        %v1773 = vpop.f32.mrf.mxu0
        %1774 = vmatprep.mubr.f32.mxu0 %v1415
        %1775 = vmatmul.mubr.f32.gmra.mxu0 %v1414
        %v1776 = vpop.f32.mrf.mxu0
        %v1777 = vadd.f32 %v1587, %v1776
        %v1778 = vpop.f32.mrf.mxu0
        %1779 = vmatprep.mubr.f32.mxu0 %v1419
        %1780 = vmatmul.mubr.f32.gmra.mxu0 %v1418
        %v1781 = vpop.f32.mrf.mxu0
        %v1782 = vadd.f32 %v1592, %v1781
        %v1783 = vpop.f32.mrf.mxu0
        %1784 = vmatprep.mubr.f32.mxu0 %v1423
        %1785 = vmatmul.mubr.f32.gmra.mxu0 %v1422
        %v1786 = vpop.f32.mrf.mxu0
        %v1787 = vadd.f32 %v1597, %v1786
        %v1788 = vpop.f32.mrf.mxu0
        %1789 = vmatprep.mubr.f32.mxu0 %v1427
        %1790 = vmatmul.mubr.f32.gmra.mxu0 %v1426
        %v1791 = vpop.f32.mrf.mxu0
        %v1792 = vadd.f32 %v1602, %v1791
        %v1793 = vpop.f32.mrf.mxu0
        %1794 = vmatprep.mubr.f32.mxu0 %v1431
        %1795 = vmatmul.mubr.f32.gmra.mxu0 %v1430
        %v1796 = vpop.f32.mrf.mxu0
        %v1797 = vadd.f32 %v1607, %v1796
        %v1798 = vpop.f32.mrf.mxu0
        %1799 = vmatprep.mubr.f32.mxu0 %v1435
        %1800 = vmatmul.mubr.f32.gmra.mxu0 %v1434
        %v1801 = vpop.f32.mrf.mxu0
        %v1802 = vadd.f32 %v1612, %v1801
        %v1803 = vpop.f32.mrf.mxu0
        %1804 = vmatprep.mubr.f32.mxu0 %v1439
        %1805 = vmatmul.mubr.f32.gmra.mxu0 %v1438
        %v1806 = vpop.f32.mrf.mxu0
        %v1807 = vadd.f32 %v1617, %v1806
        %v1808 = vpop.f32.mrf.mxu0
        %1809 = vmatprep.mubr.f32.mxu0 %v1443
        %1810 = vmatmul.mubr.f32.gmra.mxu0 %v1442
        %v1811 = vpop.f32.mrf.mxu0
        %v1812 = vadd.f32 %v1622, %v1811
        %v1813 = vpop.f32.mrf.mxu0
        %1814 = vmatprep.mubr.f32.mxu0 %v1447
        %1815 = vmatmul.mubr.f32.gmra.mxu0 %v1446
        %v1816 = vpop.f32.mrf.mxu0
        %v1817 = vadd.f32 %v1627, %v1816
        %v1818 = vpop.f32.mrf.mxu0
        %1819 = vmatprep.mubr.f32.mxu0 %v1451
        %1820 = vmatmul.mubr.f32.gmra.mxu0 %v1450
        %v1821 = vpop.f32.mrf.mxu0
        %v1822 = vadd.f32 %v1632, %v1821
        %v1823 = vpop.f32.mrf.mxu0
        %1824 = vmatprep.mubr.f32.mxu0 %v1455
        %1825 = vmatmul.mubr.f32.gmra.mxu0 %v1454
        %v1826 = vpop.f32.mrf.mxu0
        %v1827 = vadd.f32 %v1637, %v1826
        %v1828 = vpop.f32.mrf.mxu0
        %1829 = vmatprep.mubr.f32.mxu0 %v1459
        %1830 = vmatmul.mubr.f32.gmra.mxu0 %v1458
        %v1831 = vpop.f32.mrf.mxu0
        %v1832 = vadd.f32 %v1642, %v1831
        %v1833 = vpop.f32.mrf.mxu0
        %1834 = vmatprep.mubr.f32.mxu0 %v1463
        %1835 = vmatmul.mubr.f32.gmra.mxu0 %v1462
        %v1836 = vpop.f32.mrf.mxu0
        %v1837 = vadd.f32 %v1647, %v1836
        %v1838 = vpop.f32.mrf.mxu0
        %1839 = vmatprep.mubr.f32.mxu0 %v1467
        %1840 = vmatmul.mubr.f32.gmra.mxu0 %v1466
        %v1841 = vpop.f32.mrf.mxu0
        %v1842 = vadd.f32 %v1652, %v1841
        %v1843 = vpop.f32.mrf.mxu0
        %1844 = vmatprep.mubr.f32.mxu0 %v1471
        %1845 = vmatmul.mubr.f32.gmra.mxu0 %v1470
        %v1846 = vpop.f32.mrf.mxu0
        %v1847 = vadd.f32 %v1657, %v1846
        %v1848 = vpop.f32.mrf.mxu0
        %1849 = vmatprep.mubr.f32.mxu0 %v1475
        %1850 = vmatmul.mubr.f32.gmra.mxu0 %v1474
        %v1851 = vpop.f32.mrf.mxu0
        %v1852 = vadd.f32 %v1662, %v1851
        %v1853 = vpop.f32.mrf.mxu0
        %1854 = vmatprep.mubr.f32.mxu0 %v1479
        %1855 = vmatmul.mubr.f32.gmra.mxu0 %v1478
        %v1856 = vpop.f32.mrf.mxu0
        %v1857 = vadd.f32 %v1667, %v1856
        %v1858 = vpop.f32.mrf.mxu0
        %1859 = vmatprep.mubr.f32.mxu0 %v1483
        %1860 = vmatmul.mubr.f32.gmra.mxu0 %v1482
        %v1861 = vpop.f32.mrf.mxu0
        %v1862 = vadd.f32 %v1672, %v1861
        %v1863 = vpop.f32.mrf.mxu0
        %1864 = vmatprep.mubr.f32.mxu0 %v1487
        %1865 = vmatmul.mubr.f32.gmra.mxu0 %v1486
        %v1866 = vpop.f32.mrf.mxu0
        %v1867 = vadd.f32 %v1677, %v1866
        %v1868 = vpop.f32.mrf.mxu0
        %1869 = vmatprep.mubr.f32.mxu0 %v1491
        %1870 = vmatmul.mubr.f32.gmra.mxu0 %v1490
        %v1871 = vpop.f32.mrf.mxu0
        %v1872 = vadd.f32 %v1682, %v1871
        %v1873 = vpop.f32.mrf.mxu0
        %1874 = vmatprep.mubr.f32.mxu0 %v1495
        %1875 = vmatmul.mubr.f32.gmra.mxu0 %v1494
        %v1876 = vpop.f32.mrf.mxu0
        %v1877 = vadd.f32 %v1687, %v1876
        %v1878 = vpop.f32.mrf.mxu0
        %1879 = vmatprep.mubr.f32.mxu0 %v1499
        %1880 = vmatmul.mubr.f32.gmra.mxu0 %v1498
        %v1881 = vpop.f32.mrf.mxu0
        %v1882 = vadd.f32 %v1692, %v1881
        %v1883 = vpop.f32.mrf.mxu0
        %1884 = vmatprep.mubr.f32.mxu0 %v1503
        %1885 = vmatmul.mubr.f32.gmra.mxu0 %v1502
        %v1886 = vpop.f32.mrf.mxu0
        %v1887 = vadd.f32 %v1697, %v1886
        %v1888 = vpop.f32.mrf.mxu0
        %1889 = vmatprep.mubr.f32.mxu0 %v1507
        %1890 = vmatmul.mubr.f32.gmra.mxu0 %v1506
        %v1891 = vpop.f32.mrf.mxu0
        %v1892 = vadd.f32 %v1702, %v1891
        %v1893 = vpop.f32.mrf.mxu0
        %1894 = vdwg.mxu0
        %v1895 = vsel %vm809, %v1772, -inf
        %v1896 = vsel %vm809, %v1777, -inf
        %v1897 = vsel %vm809, %v1782, -inf
        %v1898 = vsel %vm809, %v1787, -inf
        %v1899 = vsel %vm809, %v1792, -inf
        %v1900 = vmax.f32 %v1895, %v1899
        %v1901 = vsel %vm809, %v1797, -inf
        %v1902 = vmax.f32 %v1896, %v1901
        %v1903 = vsel %vm809, %v1802, -inf
        %v1904 = vmax.f32 %v1897, %v1903
        %v1905 = vsel %vm809, %v1807, -inf
        %v1906 = vmax.f32 %v1898, %v1905
        %v1907 = vsel %vm809, %v1812, -inf
        %v1908 = vmax.f32 %v1900, %v1907
        %v1909 = vsel %vm809, %v1817, -inf
        %v1910 = vmax.f32 %v1902, %v1909
        %v1911 = vsel %vm809, %v1822, -inf
        %v1912 = vmax.f32 %v1904, %v1911
        %v1913 = vsel %vm809, %v1827, -inf
        %v1914 = vmax.f32 %v1906, %v1913
        %v1915 = vsel %vm809, %v1832, -inf
        %v1916 = vmax.f32 %v1908, %v1915
        %v1917 = vsel %vm809, %v1837, -inf
        %v1918 = vmax.f32 %v1910, %v1917
        %v1919 = vsel %vm809, %v1842, -inf
        %v1920 = vmax.f32 %v1912, %v1919
        %v1921 = vsel %vm809, %v1847, -inf
        %v1922 = vmax.f32 %v1914, %v1921
        %v1923 = vsel %vm809, %v1852, -inf
        %v1924 = vmax.f32 %v1916, %v1923
        %v1925 = vsel %vm809, %v1857, -inf
        %v1926 = vmax.f32 %v1918, %v1925
        %v1927 = vsel %vm809, %v1862, -inf
        %v1928 = vmax.f32 %v1920, %v1927
        %v1929 = vsel %vm809, %v1867, -inf
        %v1930 = vmax.f32 %v1922, %v1929
        %v1931 = vsel %vm809, %v1872, -inf
        %v1932 = vmax.f32 %v1924, %v1931
        %v1933 = vsel %vm809, %v1877, -inf
        %v1934 = vmax.f32 %v1926, %v1933
        %v1935 = vsel %vm809, %v1882, -inf
        %v1936 = vmax.f32 %v1928, %v1935
        %v1937 = vsel %vm809, %v1887, -inf
        %v1938 = vmax.f32 %v1930, %v1937
        %v1939 = vsel %vm854, %v1892, -inf
        %v1940 = vmax.f32 %v1932, %v1939
        %v1941 = vmax.f32 %v1940, %v1934
        %v1942 = vmax.f32 %v1936, %v1938
        %v1943 = vmax.f32 %v1941, %v1942
        %v1944 = vrot.slane %v1943, 4
        %v1945 = vmax.f32 %v1943, %v1944
        %v1946 = vrot.slane %v1945, 2
        %v1947 = vmax.f32 %v1945, %v1946
        %v1948 = vrot.slane %v1947, 1
        %v1949 = vmax.f32 %v1947, %v1948
        %v1950 = vsub.f32 %v1772, %v1949
        %v1951 = vsub.f32 %v1777, %v1949
        %v1952 = vsub.f32 %v1782, %v1949
        %v1953 = vsub.f32 %v1787, %v1949
        %v1954 = vsub.f32 %v1792, %v1949
        %v1955 = vsub.f32 %v1797, %v1949
        %v1956 = vsub.f32 %v1802, %v1949
        %v1957 = vsub.f32 %v1807, %v1949
        %v1958 = vsub.f32 %v1812, %v1949
        %v1959 = vsub.f32 %v1817, %v1949
        %v1960 = vsub.f32 %v1822, %v1949
        %v1961 = vsub.f32 %v1827, %v1949
        %v1962 = vsub.f32 %v1832, %v1949
        %v1963 = vsub.f32 %v1837, %v1949
        %v1964 = vsub.f32 %v1842, %v1949
        %v1965 = vsub.f32 %v1847, %v1949
        %v1966 = vsub.f32 %v1852, %v1949
        %v1967 = vsub.f32 %v1857, %v1949
        %v1968 = vsub.f32 %v1862, %v1949
        %v1969 = vsub.f32 %v1867, %v1949
        %v1970 = vsub.f32 %v1872, %v1949
        %v1971 = vsub.f32 %v1877, %v1949
        %v1972 = vsub.f32 %v1882, %v1949
        %v1973 = vsub.f32 %v1887, %v1949
        %v1974 = vsub.f32 %v1892, %v1949
        %v1975 = vmul.f32 %v1950, 1.442695
        %v1976 = vpow.pop %v1975
        %v1977 = vmul.f32 %v1951, 1.442695
        %v1978 = vpow.pop %v1977
        %v1979 = vmul.f32 %v1952, 1.442695
        %v1980 = vpow.pop %v1979
        %v1981 = vmul.f32 %v1953, 1.442695
        %v1982 = vpow.pop %v1981
        %v1983 = vmul.f32 %v1954, 1.442695
        %v1984 = vpow.pop %v1983
        %v1985 = vmul.f32 %v1955, 1.442695
        %v1986 = vpow.pop %v1985
        %v1987 = vmul.f32 %v1956, 1.442695
        %v1988 = vpow.pop %v1987
        %v1989 = vmul.f32 %v1957, 1.442695
        %v1990 = vpow.pop %v1989
        %v1991 = vmul.f32 %v1958, 1.442695
        %v1992 = vpow.pop %v1991
        %v1993 = vmul.f32 %v1959, 1.442695
        %v1994 = vpow.pop %v1993
        %v1995 = vmul.f32 %v1960, 1.442695
        %v1996 = vpow.pop %v1995
        %v1997 = vmul.f32 %v1961, 1.442695
        %v1998 = vpow.pop %v1997
        %v1999 = vmul.f32 %v1962, 1.442695
        %v2000 = vpow.pop %v1999
        %v2001 = vmul.f32 %v1963, 1.442695
        %v2002 = vpow.pop %v2001
        %v2003 = vmul.f32 %v1964, 1.442695
        %v2004 = vpow.pop %v2003
        %v2005 = vmul.f32 %v1965, 1.442695
        %v2006 = vpow.pop %v2005
        %v2007 = vmul.f32 %v1966, 1.442695
        %v2008 = vpow.pop %v2007
        %v2009 = vmul.f32 %v1967, 1.442695
        %v2010 = vpow.pop %v2009
        %v2011 = vmul.f32 %v1968, 1.442695
        %v2012 = vpow.pop %v2011
        %v2013 = vmul.f32 %v1969, 1.442695
        %v2014 = vpow.pop %v2013
        %v2015 = vmul.f32 %v1970, 1.442695
        %v2016 = vpow.pop %v2015
        %v2017 = vmul.f32 %v1971, 1.442695
        %v2018 = vpow.pop %v2017
        %v2019 = vmul.f32 %v1972, 1.442695
        %v2020 = vpow.pop %v2019
        %v2021 = vmul.f32 %v1973, 1.442695
        %v2022 = vpow.pop %v2021
        %v2023 = vmul.f32 %v1974, 1.442695
        %v2024 = vpow.pop %v2023
        %v2025 = vsel %vm809, %v1976, 0.0
        %v2026 = vsel %vm809, %v1978, 0.0
        %v2027 = vadd.f32 %v2025, %v2026
        %v2028 = vsel %vm809, %v1980, 0.0
        %v2029 = vadd.f32 %v2027, %v2028
        %v2030 = vsel %vm809, %v1982, 0.0
        %v2031 = vadd.f32 %v2029, %v2030
        %v2032 = vsel %vm809, %v1984, 0.0
        %v2033 = vadd.f32 %v2031, %v2032
        %v2034 = vsel %vm809, %v1986, 0.0
        %v2035 = vadd.f32 %v2033, %v2034
        %v2036 = vsel %vm809, %v1988, 0.0
        %v2037 = vadd.f32 %v2035, %v2036
        %v2038 = vsel %vm809, %v1990, 0.0
        %v2039 = vadd.f32 %v2037, %v2038
        %v2040 = vsel %vm809, %v1992, 0.0
        %v2041 = vadd.f32 %v2039, %v2040
        %v2042 = vsel %vm809, %v1994, 0.0
        %v2043 = vadd.f32 %v2041, %v2042
        %v2044 = vsel %vm809, %v1996, 0.0
        %v2045 = vadd.f32 %v2043, %v2044
        %v2046 = vsel %vm809, %v1998, 0.0
        %v2047 = vadd.f32 %v2045, %v2046
        %v2048 = vsel %vm809, %v2000, 0.0
        %v2049 = vadd.f32 %v2047, %v2048
        %v2050 = vsel %vm809, %v2002, 0.0
        %v2051 = vadd.f32 %v2049, %v2050
        %v2052 = vsel %vm809, %v2004, 0.0
        %v2053 = vadd.f32 %v2051, %v2052
        %v2054 = vsel %vm809, %v2006, 0.0
        %v2055 = vadd.f32 %v2053, %v2054
        %v2056 = vsel %vm809, %v2008, 0.0
        %v2057 = vadd.f32 %v2055, %v2056
        %v2058 = vsel %vm809, %v2010, 0.0
        %v2059 = vadd.f32 %v2057, %v2058
        %v2060 = vsel %vm809, %v2012, 0.0
        %v2061 = vadd.f32 %v2059, %v2060
        %v2062 = vsel %vm809, %v2014, 0.0
        %v2063 = vadd.f32 %v2061, %v2062
        %v2064 = vsel %vm809, %v2016, 0.0
        %v2065 = vadd.f32 %v2063, %v2064
        %v2066 = vsel %vm809, %v2018, 0.0
        %v2067 = vadd.f32 %v2065, %v2066
        %v2068 = vsel %vm809, %v2020, 0.0
        %v2069 = vadd.f32 %v2067, %v2068
        %v2070 = vsel %vm809, %v2022, 0.0
        %v2071 = vadd.f32 %v2069, %v2070
        %v2072 = vsel %vm854, %v2024, 0.0
        %v2073 = vadd.f32 %v2071, %v2072
        %v2074 = vrot.slane %v2073, 4
        %v2075 = vadd.f32 %v2073, %v2074
        %v2076 = vrot.slane %v2075, 2
        %v2077 = vadd.f32 %v2075, %v2076
        %v2078 = vrot.slane %v2077, 1
        %v2079 = vadd.f32 %v2077, %v2078
        %v2080 = vrcp.pop %v2079
        %v2081 = vmul.f32 %v1976, %v2080
        %v2082 = vmul.f32 %v1978, %v2080
        %v2083 = vmul.f32 %v1980, %v2080
        %v2084 = vmul.f32 %v1982, %v2080
        %v2085 = vmul.f32 %v1984, %v2080
        %v2086 = vmul.f32 %v1986, %v2080
        %v2087 = vmul.f32 %v1988, %v2080
        %v2088 = vmul.f32 %v1990, %v2080
        %v2089 = vmul.f32 %v1992, %v2080
        %v2090 = vmul.f32 %v1994, %v2080
        %v2091 = vmul.f32 %v1996, %v2080
        %v2092 = vmul.f32 %v1998, %v2080
        %v2093 = vmul.f32 %v2000, %v2080
        %v2094 = vmul.f32 %v2002, %v2080
        %v2095 = vmul.f32 %v2004, %v2080
        %v2096 = vmul.f32 %v2006, %v2080
        %v2097 = vmul.f32 %v2008, %v2080
        %v2098 = vmul.f32 %v2010, %v2080
        %v2099 = vmul.f32 %v2012, %v2080
        %v2100 = vmul.f32 %v2014, %v2080
        %v2101 = vmul.f32 %v2016, %v2080
        %v2102 = vmul.f32 %v2018, %v2080
        %v2103 = vmul.f32 %v2020, %v2080
        %v2104 = vmul.f32 %v2022, %v2080
        %v2105 = vmul.f32 %v2024, %v2080
        %2107 = vset.pattern.permute.xlu0 0
        %2108 = vperm.xlu0 %2107, %v2081
        %v2109 = vpop.permute.xlu0 %2108
        %2112 = vset.pattern.permute.xlu0 0
        %2113 = vperm.xlu0 %2112, %v2082
        %v2114 = vpop.permute.xlu0 %2113
        %2117 = vset.pattern.permute.xlu0 0
        %2118 = vperm.xlu0 %2117, %v2083
        %v2119 = vpop.permute.xlu0 %2118
        %2122 = vset.pattern.permute.xlu0 0
        %2123 = vperm.xlu0 %2122, %v2084
        %v2124 = vpop.permute.xlu0 %2123
        %2127 = vset.pattern.permute.xlu0 0
        %2128 = vperm.xlu0 %2127, %v2085
        %v2129 = vpop.permute.xlu0 %2128
        %2132 = vset.pattern.permute.xlu0 0
        %2133 = vperm.xlu0 %2132, %v2086
        %v2134 = vpop.permute.xlu0 %2133
        %2137 = vset.pattern.permute.xlu0 0
        %2138 = vperm.xlu0 %2137, %v2087
        %v2139 = vpop.permute.xlu0 %2138
        %2142 = vset.pattern.permute.xlu0 0
        %2143 = vperm.xlu0 %2142, %v2088
        %v2144 = vpop.permute.xlu0 %2143
        %2147 = vset.pattern.permute.xlu0 0
        %2148 = vperm.xlu0 %2147, %v2089
        %v2149 = vpop.permute.xlu0 %2148
        %2152 = vset.pattern.permute.xlu0 0
        %2153 = vperm.xlu0 %2152, %v2090
        %v2154 = vpop.permute.xlu0 %2153
        %2157 = vset.pattern.permute.xlu0 0
        %2158 = vperm.xlu0 %2157, %v2091
        %v2159 = vpop.permute.xlu0 %2158
        %2162 = vset.pattern.permute.xlu0 0
        %2163 = vperm.xlu0 %2162, %v2092
        %v2164 = vpop.permute.xlu0 %2163
        %2167 = vset.pattern.permute.xlu0 0
        %2168 = vperm.xlu0 %2167, %v2093
        %v2169 = vpop.permute.xlu0 %2168
        %2172 = vset.pattern.permute.xlu0 0
        %2173 = vperm.xlu0 %2172, %v2094
        %v2174 = vpop.permute.xlu0 %2173
        %2177 = vset.pattern.permute.xlu0 0
        %2178 = vperm.xlu0 %2177, %v2095
        %v2179 = vpop.permute.xlu0 %2178
        %2182 = vset.pattern.permute.xlu0 0
        %2183 = vperm.xlu0 %2182, %v2096
        %v2184 = vpop.permute.xlu0 %2183
        %2187 = vset.pattern.permute.xlu0 0
        %2188 = vperm.xlu0 %2187, %v2097
        %v2189 = vpop.permute.xlu0 %2188
        %2192 = vset.pattern.permute.xlu0 0
        %2193 = vperm.xlu0 %2192, %v2098
        %v2194 = vpop.permute.xlu0 %2193
        %2197 = vset.pattern.permute.xlu0 0
        %2198 = vperm.xlu0 %2197, %v2099
        %v2199 = vpop.permute.xlu0 %2198
        %2202 = vset.pattern.permute.xlu0 0
        %2203 = vperm.xlu0 %2202, %v2100
        %v2204 = vpop.permute.xlu0 %2203
        %2207 = vset.pattern.permute.xlu0 0
        %2208 = vperm.xlu0 %2207, %v2101
        %v2209 = vpop.permute.xlu0 %2208
        %2212 = vset.pattern.permute.xlu0 0
        %2213 = vperm.xlu0 %2212, %v2102
        %v2214 = vpop.permute.xlu0 %2213
        %2217 = vset.pattern.permute.xlu0 0
        %2218 = vperm.xlu0 %2217, %v2103
        %v2219 = vpop.permute.xlu0 %2218
        %2222 = vset.pattern.permute.xlu0 0
        %2223 = vperm.xlu0 %2222, %v2104
        %v2224 = vpop.permute.xlu0 %2223
        %2227 = vset.pattern.permute.xlu0 0
        %2228 = vperm.xlu0 %2227, %v2105
        %v2229 = vpop.permute.xlu0 %2228
        %v2231 = vmul.f32 %v1408, %v2109
        %v2232 = vmul.f32 %v1409, %v2109
        %v2233 = vmul.f32 %v1410, %v2109
        %v2234 = vmul.f32 %v1411, %v2109
        %v2235 = vmul.f32 %v1412, %v2114
        %v2236 = vmul.f32 %v1413, %v2114
        %v2237 = vmul.f32 %v1414, %v2114
        %v2238 = vmul.f32 %v1415, %v2114
        %v2239 = vmul.f32 %v1416, %v2119
        %v2240 = vmul.f32 %v1417, %v2119
        %v2241 = vmul.f32 %v1418, %v2119
        %v2242 = vmul.f32 %v1419, %v2119
        %v2243 = vmul.f32 %v1420, %v2124
        %v2244 = vmul.f32 %v1421, %v2124
        %v2245 = vmul.f32 %v1422, %v2124
        %v2246 = vmul.f32 %v1423, %v2124
        %v2247 = vmul.f32 %v1424, %v2129
        %v2248 = vmul.f32 %v1425, %v2129
        %v2249 = vmul.f32 %v1426, %v2129
        %v2250 = vmul.f32 %v1427, %v2129
        %v2251 = vmul.f32 %v1428, %v2134
        %v2252 = vmul.f32 %v1429, %v2134
        %v2253 = vmul.f32 %v1430, %v2134
        %v2254 = vmul.f32 %v1431, %v2134
        %v2255 = vmul.f32 %v1432, %v2139
        %v2256 = vmul.f32 %v1433, %v2139
        %v2257 = vmul.f32 %v1434, %v2139
        %v2258 = vmul.f32 %v1435, %v2139
        %v2259 = vmul.f32 %v1436, %v2144
        %v2260 = vmul.f32 %v1437, %v2144
        %v2261 = vmul.f32 %v1438, %v2144
        %v2262 = vmul.f32 %v1439, %v2144
        %v2263 = vmul.f32 %v1440, %v2149
        %v2264 = vmul.f32 %v1441, %v2149
        %v2265 = vmul.f32 %v1442, %v2149
        %v2266 = vmul.f32 %v1443, %v2149
        %v2267 = vmul.f32 %v1444, %v2154
        %v2268 = vmul.f32 %v1445, %v2154
        %v2269 = vmul.f32 %v1446, %v2154
        %v2270 = vmul.f32 %v1447, %v2154
        %v2271 = vmul.f32 %v1448, %v2159
        %v2272 = vmul.f32 %v1449, %v2159
        %v2273 = vmul.f32 %v1450, %v2159
        %v2274 = vmul.f32 %v1451, %v2159
        %v2275 = vmul.f32 %v1452, %v2164
        %v2276 = vmul.f32 %v1453, %v2164
        %v2277 = vmul.f32 %v1454, %v2164
        %v2278 = vmul.f32 %v1455, %v2164
        %v2279 = vmul.f32 %v1456, %v2169
        %v2280 = vmul.f32 %v1457, %v2169
        %v2281 = vmul.f32 %v1458, %v2169
        %v2282 = vmul.f32 %v1459, %v2169
        %v2283 = vmul.f32 %v1460, %v2174
        %v2284 = vmul.f32 %v1461, %v2174
        %v2285 = vmul.f32 %v1462, %v2174
        %v2286 = vmul.f32 %v1463, %v2174
        %v2287 = vmul.f32 %v1464, %v2179
        %v2288 = vmul.f32 %v1465, %v2179
        %v2289 = vmul.f32 %v1466, %v2179
        %v2290 = vmul.f32 %v1467, %v2179
        %v2291 = vmul.f32 %v1468, %v2184
        %v2292 = vmul.f32 %v1469, %v2184
        %v2293 = vmul.f32 %v1470, %v2184
        %v2294 = vmul.f32 %v1471, %v2184
        %v2295 = vmul.f32 %v1472, %v2189
        %v2296 = vmul.f32 %v1473, %v2189
        %v2297 = vmul.f32 %v1474, %v2189
        %v2298 = vmul.f32 %v1475, %v2189
        %v2299 = vmul.f32 %v1476, %v2194
        %v2300 = vmul.f32 %v1477, %v2194
        %v2301 = vmul.f32 %v1478, %v2194
        %v2302 = vmul.f32 %v1479, %v2194
        %v2303 = vmul.f32 %v1480, %v2199
        %v2304 = vmul.f32 %v1481, %v2199
        %v2305 = vmul.f32 %v1482, %v2199
        %v2306 = vmul.f32 %v1483, %v2199
        %v2307 = vmul.f32 %v1484, %v2204
        %v2308 = vmul.f32 %v1485, %v2204
        %v2309 = vmul.f32 %v1486, %v2204
        %v2310 = vmul.f32 %v1487, %v2204
        %v2311 = vmul.f32 %v1488, %v2209
        %v2312 = vmul.f32 %v1489, %v2209
        %v2313 = vmul.f32 %v1490, %v2209
        %v2314 = vmul.f32 %v1491, %v2209
        %v2315 = vmul.f32 %v1492, %v2214
        %v2316 = vmul.f32 %v1493, %v2214
        %v2317 = vmul.f32 %v1494, %v2214
        %v2318 = vmul.f32 %v1495, %v2214
        %v2319 = vmul.f32 %v1496, %v2219
        %v2320 = vmul.f32 %v1497, %v2219
        %v2321 = vmul.f32 %v1498, %v2219
        %v2322 = vmul.f32 %v1499, %v2219
        %v2323 = vmul.f32 %v1500, %v2224
        %v2324 = vmul.f32 %v1501, %v2224
        %v2325 = vmul.f32 %v1502, %v2224
        %v2326 = vmul.f32 %v1503, %v2224
        %v2327 = vmul.f32 %v1504, %v2229
        %v2328 = vmul.f32 %v1505, %v2229
        %v2329 = vmul.f32 %v1506, %v2229
        %v2330 = vmul.f32 %v1507, %v2229
        %v2331 = vadd.f32 %v2231, %v2235
        %v2332 = vadd.f32 %v2331, %v2239
        %v2333 = vadd.f32 %v2332, %v2243
        %v2334 = vadd.f32 %v2333, %v2247
        %v2335 = vadd.f32 %v2334, %v2251
        %v2336 = vadd.f32 %v2335, %v2255
        %v2337 = vadd.f32 %v2336, %v2259
        %v2338 = vadd.f32 %v2337, %v2263
        %v2339 = vadd.f32 %v2338, %v2267
        %v2340 = vadd.f32 %v2339, %v2271
        %v2341 = vadd.f32 %v2340, %v2275
        %v2342 = vadd.f32 %v2341, %v2279
        %v2343 = vadd.f32 %v2342, %v2283
        %v2344 = vadd.f32 %v2343, %v2287
        %v2345 = vadd.f32 %v2344, %v2291
        %v2346 = vadd.f32 %v2345, %v2295
        %v2347 = vadd.f32 %v2346, %v2299
        %v2348 = vadd.f32 %v2347, %v2303
        %v2349 = vadd.f32 %v2348, %v2307
        %v2350 = vadd.f32 %v2349, %v2311
        %v2351 = vadd.f32 %v2350, %v2315
        %v2352 = vadd.f32 %v2351, %v2319
        %v2353 = vadd.f32 %v2352, %v2323
        %v2354 = vsel %vm1270, %v2327, 0.0
        %v2355 = vadd.f32 %v2353, %v2354
        %v2356 = vrot.slane %v2355, 4
        %v2357 = vadd.f32 %v2355, %v2356
        %v2358 = vrot.slane %v2357, 2
        %v2359 = vadd.f32 %v2357, %v2358
        %v2360 = vrot.slane %v2359, 1
        %v2361 = vadd.f32 %v2359, %v2360
        %v2362 = vadd.f32 %v2232, %v2236
        %v2363 = vadd.f32 %v2362, %v2240
        %v2364 = vadd.f32 %v2363, %v2244
        %v2365 = vadd.f32 %v2364, %v2248
        %v2366 = vadd.f32 %v2365, %v2252
        %v2367 = vadd.f32 %v2366, %v2256
        %v2368 = vadd.f32 %v2367, %v2260
        %v2369 = vadd.f32 %v2368, %v2264
        %v2370 = vadd.f32 %v2369, %v2268
        %v2371 = vadd.f32 %v2370, %v2272
        %v2372 = vadd.f32 %v2371, %v2276
        %v2373 = vadd.f32 %v2372, %v2280
        %v2374 = vadd.f32 %v2373, %v2284
        %v2375 = vadd.f32 %v2374, %v2288
        %v2376 = vadd.f32 %v2375, %v2292
        %v2377 = vadd.f32 %v2376, %v2296
        %v2378 = vadd.f32 %v2377, %v2300
        %v2379 = vadd.f32 %v2378, %v2304
        %v2380 = vadd.f32 %v2379, %v2308
        %v2381 = vadd.f32 %v2380, %v2312
        %v2382 = vadd.f32 %v2381, %v2316
        %v2383 = vadd.f32 %v2382, %v2320
        %v2384 = vadd.f32 %v2383, %v2324
        %v2385 = vsel %vm1270, %v2328, 0.0
        %v2386 = vadd.f32 %v2384, %v2385
        %v2387 = vrot.slane %v2386, 4
        %v2388 = vadd.f32 %v2386, %v2387
        %v2389 = vrot.slane %v2388, 2
        %v2390 = vadd.f32 %v2388, %v2389
        %v2391 = vrot.slane %v2390, 1
        %v2392 = vadd.f32 %v2390, %v2391
        %v2393 = vadd.f32 %v2233, %v2237
        %v2394 = vadd.f32 %v2393, %v2241
        %v2395 = vadd.f32 %v2394, %v2245
        %v2396 = vadd.f32 %v2395, %v2249
        %v2397 = vadd.f32 %v2396, %v2253
        %v2398 = vadd.f32 %v2397, %v2257
        %v2399 = vadd.f32 %v2398, %v2261
        %v2400 = vadd.f32 %v2399, %v2265
        %v2401 = vadd.f32 %v2400, %v2269
        %v2402 = vadd.f32 %v2401, %v2273
        %v2403 = vadd.f32 %v2402, %v2277
        %v2404 = vadd.f32 %v2403, %v2281
        %v2405 = vadd.f32 %v2404, %v2285
        %v2406 = vadd.f32 %v2405, %v2289
        %v2407 = vadd.f32 %v2406, %v2293
        %v2408 = vadd.f32 %v2407, %v2297
        %v2409 = vadd.f32 %v2408, %v2301
        %v2410 = vadd.f32 %v2409, %v2305
        %v2411 = vadd.f32 %v2410, %v2309
        %v2412 = vadd.f32 %v2411, %v2313
        %v2413 = vadd.f32 %v2412, %v2317
        %v2414 = vadd.f32 %v2413, %v2321
        %v2415 = vadd.f32 %v2414, %v2325
        %v2416 = vsel %vm1270, %v2329, 0.0
        %v2417 = vadd.f32 %v2415, %v2416
        %v2418 = vrot.slane %v2417, 4
        %v2419 = vadd.f32 %v2417, %v2418
        %v2420 = vrot.slane %v2419, 2
        %v2421 = vadd.f32 %v2419, %v2420
        %v2422 = vrot.slane %v2421, 1
        %v2423 = vadd.f32 %v2421, %v2422
        %v2424 = vadd.f32 %v2234, %v2238
        %v2425 = vadd.f32 %v2424, %v2242
        %v2426 = vadd.f32 %v2425, %v2246
        %v2427 = vadd.f32 %v2426, %v2250
        %v2428 = vadd.f32 %v2427, %v2254
        %v2429 = vadd.f32 %v2428, %v2258
        %v2430 = vadd.f32 %v2429, %v2262
        %v2431 = vadd.f32 %v2430, %v2266
        %v2432 = vadd.f32 %v2431, %v2270
        %v2433 = vadd.f32 %v2432, %v2274
        %v2434 = vadd.f32 %v2433, %v2278
        %v2435 = vadd.f32 %v2434, %v2282
        %v2436 = vadd.f32 %v2435, %v2286
        %v2437 = vadd.f32 %v2436, %v2290
        %v2438 = vadd.f32 %v2437, %v2294
        %v2439 = vadd.f32 %v2438, %v2298
        %v2440 = vadd.f32 %v2439, %v2302
        %v2441 = vadd.f32 %v2440, %v2306
        %v2442 = vadd.f32 %v2441, %v2310
        %v2443 = vadd.f32 %v2442, %v2314
        %v2444 = vadd.f32 %v2443, %v2318
        %v2445 = vadd.f32 %v2444, %v2322
        %v2446 = vadd.f32 %v2445, %v2326
        %v2447 = vsel %vm1270, %v2330, 0.0
        %v2448 = vadd.f32 %v2446, %v2447
        %v2449 = vrot.slane %v2448, 4
        %v2450 = vadd.f32 %v2448, %v2449
        %v2451 = vrot.slane %v2450, 2
        %v2452 = vadd.f32 %v2450, %v2451
        %v2453 = vrot.slane %v2452, 1
        %v2454 = vadd.f32 %v2452, %v2453
        %v2459 = vcombine.low %v2361, %v2392
        %v2460 = vcombine.low %v2423, %v2454
        %v2462 = vunpack.c.l.s4 1966171168
        %v2463 = vunpack.c.0.s8 %v2462
        %v2464 = vlaneseq
        %v2465 = vshrl.u32 %v2464, 7
        %v2466 = vsub.s32 %v2463, %v2465
        %v2467 = vrot.slane %v2459, %v2466
        %v2469 = vunpack.c.l.s4 1966171168
        %v2470 = vunpack.c.0.s8 %v2469
        %v2471 = vlaneseq
        %v2472 = vshrl.u32 %v2471, 7
        %v2473 = vsub.s32 %v2470, %v2472
        %v2474 = vrot.slane %v2460, %v2473
        %v2475 = vcombine.low %v2467, %v2474
        %v2477 = vunpack.c.l.s4 1966171168
        %v2478 = vunpack.c.0.s8 %v2477
        %v2479 = vlaneseq
        %v2480 = vshrl.u32 %v2479, 7
        %v2481 = vsub.s32 %v2478, %v2480
        %v2482 = vrot.slane %v2475, %v2481
        %s2484 = scalar_lea.vmem [#allocation2], 1
        %2485 = vst.msk [vmem:[%s2484] ss:$8 sm:$0xf] %vm1404, %v2482
        %2486 = vst.msk [vmem:[%s2484] ss:$8 sm:$0x0] %vm1404, %v2482
        %s2487 = scalar_lea.vmem %s256, 1600
        %v2488 = vld [vmem:[%s2487] sm:$0xff]
        %v2489 = vld [vmem:[%s2487 + $0x8] sm:$0xff]
        %v2490 = vld [vmem:[%s2487 + $0x10] sm:$0xff]
        %v2491 = vld [vmem:[%s2487 + $0x18] sm:$0xff]
        %v2492 = vld [vmem:[%s2487 + $0x20] sm:$0xff]
        %v2493 = vld [vmem:[%s2487 + $0x28] sm:$0xff]
        %v2494 = vld [vmem:[%s2487 + $0x30] sm:$0xff]
        %v2495 = vld [vmem:[%s2487 + $0x38] sm:$0xff]
        %v2496 = vld [vmem:[%s2487 + $0x40] sm:$0xff]
        %v2497 = vld [vmem:[%s2487 + $0x48] sm:$0xff]
        %v2498 = vld [vmem:[%s2487 + $0x50] sm:$0xff]
        %v2499 = vld [vmem:[%s2487 + $0x58] sm:$0xff]
        %v2500 = vld [vmem:[%s2487 + $0x60] sm:$0xff]
        %v2501 = vld [vmem:[%s2487 + $0x68] sm:$0xff]
        %v2502 = vld [vmem:[%s2487 + $0x70] sm:$0xff]
        %v2503 = vld [vmem:[%s2487 + $0x78] sm:$0xff]
        %v2504 = vld [vmem:[%s2487 + $0x80] sm:$0xff]
        %v2505 = vld [vmem:[%s2487 + $0x88] sm:$0xff]
        %v2506 = vld [vmem:[%s2487 + $0x90] sm:$0xff]
        %v2507 = vld [vmem:[%s2487 + $0x98] sm:$0xff]
        %v2508 = vld [vmem:[%s2487 + $0xa0] sm:$0xff]
        %v2509 = vld [vmem:[%s2487 + $0xa8] sm:$0xff]
        %v2510 = vld [vmem:[%s2487 + $0xb0] sm:$0xff]
        %v2511 = vld [vmem:[%s2487 + $0xb8] sm:$0xff]
        %v2512 = vld [vmem:[%s2487 + $0xc0] sm:$0xff]
        %v2513 = vld [vmem:[%s2487 + $0xc8] sm:$0xff]
        %v2514 = vld [vmem:[%s2487 + $0xd0] sm:$0xff]
        %v2515 = vld [vmem:[%s2487 + $0xd8] sm:$0xff]
        %v2516 = vld [vmem:[%s2487 + $0xe0] sm:$0xff]
        %v2517 = vld [vmem:[%s2487 + $0xe8] sm:$0xff]
        %v2518 = vld [vmem:[%s2487 + $0xf0] sm:$0xff]
        %v2519 = vld [vmem:[%s2487 + $0xf8] sm:$0xff]
        %v2520 = vld [vmem:[%s2487 + $0x100] sm:$0xff]
        %v2521 = vld [vmem:[%s2487 + $0x108] sm:$0xff]
        %v2522 = vld [vmem:[%s2487 + $0x110] sm:$0xff]
        %v2523 = vld [vmem:[%s2487 + $0x118] sm:$0xff]
        %v2524 = vld [vmem:[%s2487 + $0x120] sm:$0xff]
        %v2525 = vld [vmem:[%s2487 + $0x128] sm:$0xff]
        %v2526 = vld [vmem:[%s2487 + $0x130] sm:$0xff]
        %v2527 = vld [vmem:[%s2487 + $0x138] sm:$0xff]
        %v2528 = vld [vmem:[%s2487 + $0x140] sm:$0xff]
        %v2529 = vld [vmem:[%s2487 + $0x148] sm:$0xff]
        %v2530 = vld [vmem:[%s2487 + $0x150] sm:$0xff]
        %v2531 = vld [vmem:[%s2487 + $0x158] sm:$0xff]
        %v2532 = vld [vmem:[%s2487 + $0x160] sm:$0xff]
        %v2533 = vld [vmem:[%s2487 + $0x168] sm:$0xff]
        %v2534 = vld [vmem:[%s2487 + $0x170] sm:$0xff]
        %v2535 = vld [vmem:[%s2487 + $0x178] sm:$0xff]
        %v2536 = vld [vmem:[%s2487 + $0x180] sm:$0xff]
        %v2537 = vld [vmem:[%s2487 + $0x188] sm:$0xff]
        %v2538 = vld [vmem:[%s2487 + $0x190] sm:$0xff]
        %v2539 = vld [vmem:[%s2487 + $0x198] sm:$0xff]
        %v2540 = vld [vmem:[%s2487 + $0x1a0] sm:$0xff]
        %v2541 = vld [vmem:[%s2487 + $0x1a8] sm:$0xff]
        %v2542 = vld [vmem:[%s2487 + $0x1b0] sm:$0xff]
        %v2543 = vld [vmem:[%s2487 + $0x1b8] sm:$0xff]
        %v2544 = vld [vmem:[%s2487 + $0x1c0] sm:$0xff]
        %v2545 = vld [vmem:[%s2487 + $0x1c8] sm:$0xff]
        %v2546 = vld [vmem:[%s2487 + $0x1d0] sm:$0xff]
        %v2547 = vld [vmem:[%s2487 + $0x1d8] sm:$0xff]
        %v2548 = vld [vmem:[%s2487 + $0x1e0] sm:$0xff]
        %v2549 = vld [vmem:[%s2487 + $0x1e8] sm:$0xff]
        %v2550 = vld [vmem:[%s2487 + $0x1f0] sm:$0xff]
        %v2551 = vld [vmem:[%s2487 + $0x1f8] sm:$0xff]
        %v2552 = vld [vmem:[%s2487 + $0x200] sm:$0xff]
        %v2553 = vld [vmem:[%s2487 + $0x208] sm:$0xff]
        %v2554 = vld [vmem:[%s2487 + $0x210] sm:$0xff]
        %v2555 = vld [vmem:[%s2487 + $0x218] sm:$0xff]
        %v2556 = vld [vmem:[%s2487 + $0x220] sm:$0xff]
        %v2557 = vld [vmem:[%s2487 + $0x228] sm:$0xff]
        %v2558 = vld [vmem:[%s2487 + $0x230] sm:$0xff]
        %v2559 = vld [vmem:[%s2487 + $0x238] sm:$0xff]
        %v2560 = vld [vmem:[%s2487 + $0x240] sm:$0xff]
        %v2561 = vld [vmem:[%s2487 + $0x248] sm:$0xff]
        %v2562 = vld [vmem:[%s2487 + $0x250] sm:$0xff]
        %v2563 = vld [vmem:[%s2487 + $0x258] sm:$0xff]
        %v2564 = vld [vmem:[%s2487 + $0x260] sm:$0xff]
        %v2565 = vld [vmem:[%s2487 + $0x268] sm:$0xff]
        %v2566 = vld [vmem:[%s2487 + $0x270] sm:$0xff]
        %v2567 = vld [vmem:[%s2487 + $0x278] sm:$0xff]
        %v2568 = vld [vmem:[%s2487 + $0x280] sm:$0xff]
        %v2569 = vld [vmem:[%s2487 + $0x288] sm:$0xff]
        %v2570 = vld [vmem:[%s2487 + $0x290] sm:$0xff]
        %v2571 = vld [vmem:[%s2487 + $0x298] sm:$0xff]
        %v2572 = vld [vmem:[%s2487 + $0x2a0] sm:$0xff]
        %v2573 = vld [vmem:[%s2487 + $0x2a8] sm:$0xff]
        %v2574 = vld [vmem:[%s2487 + $0x2b0] sm:$0xff]
        %v2575 = vld [vmem:[%s2487 + $0x2b8] sm:$0xff]
        %v2576 = vld [vmem:[%s2487 + $0x2c0] sm:$0xff]
        %v2577 = vld [vmem:[%s2487 + $0x2c8] sm:$0xff]
        %v2578 = vld [vmem:[%s2487 + $0x2d0] sm:$0xff]
        %v2579 = vld [vmem:[%s2487 + $0x2d8] sm:$0xff]
        %v2580 = vld [vmem:[%s2487 + $0x2e0] sm:$0xff]
        %v2581 = vld [vmem:[%s2487 + $0x2e8] sm:$0xff]
        %v2582 = vld [vmem:[%s2487 + $0x2f0] sm:$0xff]
        %v2583 = vld [vmem:[%s2487 + $0x2f8] sm:$0xff]
        %v2584 = vld [vmem:[%s2487 + $0x300] sm:$0xf]
        %v2585 = vld [vmem:[%s2487 + $0x308] sm:$0xf]
        %v2586 = vld [vmem:[%s2487 + $0x310] sm:$0xf]
        %v2587 = vld [vmem:[%s2487 + $0x318] sm:$0xf]
        %v2588 = vld [vmem:[#allocation3] sm:$0x1]
        %v2590 = vlaneseq
        %v2591 = vshrl.u32 %v2590, 7
        %v2592 = vsub.s32 0, %v2591
        %v2593 = vrot.slane %v2588, %v2592
        %2595 = vmatprep.subr.mxu0 0.0
        %2596 = vmatpush1.msra.mxu0 %v273
        %2597 = vmatprep.subr.mxu0 0.0
        %2598 = vmatpush1.msra.mxu0 %v272
        %2599 = vmatprep.subr.mxu0 0.0
        %2600 = vmatpush1.msra.mxu0 %v271
        %2601 = vmatprep.subr.mxu0 0.0
        %2602 = vmatpush1.msra.mxu0 %v270
        %2603 = vmatprep.subr.mxu0 0.0
        %2604 = vmatpush1.msra.mxu0 %v269
        %2605 = vmatprep.subr.mxu0 0.0
        %2606 = vmatpush1.msra.mxu0 %v268
        %2607 = vmatprep.subr.mxu0 0.0
        %2608 = vmatpush1.msra.mxu0 %v267
        %2609 = vmatprep.subr.mxu0 0.0
        %2610 = vmatpush1.msra.mxu0 %v266
        %2611 = vmatprep.subr.mxu0 0.0
        %2612 = vmatpush1.msra.mxu0 %v265
        %2613 = vmatprep.subr.mxu0 0.0
        %2614 = vmatpush1.msra.mxu0 %v264
        %2615 = vmatprep.subr.mxu0 0.0
        %2616 = vmatpush1.msra.mxu0 %v263
        %2617 = vmatprep.subr.mxu0 0.0
        %2618 = vmatpush1.msra.mxu0 %v262
        %2619 = vmatprep.subr.mxu0 0.0
        %2620 = vmatpush1.msra.mxu0 %v261
        %2621 = vmatprep.subr.mxu0 0.0
        %2622 = vmatpush1.msra.mxu0 %v260
        %2623 = vmatprep.subr.mxu0 0.0
        %2624 = vmatpush1.msra.mxu0 %v259
        %2625 = vmatprep.subr.mxu0 0.0
        %2626 = vmatpush1.msra.mxu0 %v258
        %2627 = vmatprep.subr.mxu0 0.0
        %2628 = vmatpush2.msra.mxu0 %v289
        %2629 = vmatprep.subr.mxu0 0.0
        %2630 = vmatpush2.msra.mxu0 %v288
        %2631 = vmatprep.subr.mxu0 0.0
        %2632 = vmatpush2.msra.mxu0 %v287
        %2633 = vmatprep.subr.mxu0 0.0
        %2634 = vmatpush2.msra.mxu0 %v286
        %2635 = vmatprep.subr.mxu0 0.0
        %2636 = vmatpush2.msra.mxu0 %v285
        %2637 = vmatprep.subr.mxu0 0.0
        %2638 = vmatpush2.msra.mxu0 %v284
        %2639 = vmatprep.subr.mxu0 0.0
        %2640 = vmatpush2.msra.mxu0 %v283
        %2641 = vmatprep.subr.mxu0 0.0
        %2642 = vmatpush2.msra.mxu0 %v282
        %2643 = vmatprep.subr.mxu0 0.0
        %2644 = vmatpush2.msra.mxu0 %v281
        %2645 = vmatprep.subr.mxu0 0.0
        %2646 = vmatpush2.msra.mxu0 %v280
        %2647 = vmatprep.subr.mxu0 0.0
        %2648 = vmatpush2.msra.mxu0 %v279
        %2649 = vmatprep.subr.mxu0 0.0
        %2650 = vmatpush2.msra.mxu0 %v278
        %2651 = vmatprep.subr.mxu0 0.0
        %2652 = vmatpush2.msra.mxu0 %v277
        %2653 = vmatprep.subr.mxu0 0.0
        %2654 = vmatpush2.msra.mxu0 %v276
        %2655 = vmatprep.subr.mxu0 0.0
        %2656 = vmatpush2.msra.mxu0 %v275
        %2657 = vmatprep.subr.mxu0 0.0
        %2658 = vmatpush2.msra.mxu0 %v274
        %2659 = vmatprep.mubr.f32.mxu0 %v2489
        %2660 = vmatmul.mubr.f32.gmra.mxu0 %v2488
        %v2661 = vpop.f32.mrf.mxu0
        %v2662 = vadd.f32 %v2593, %v2661
        %v2663 = vpop.f32.mrf.mxu0
        %2664 = vmatprep.mubr.f32.mxu0 %v2493
        %2665 = vmatmul.mubr.f32.gmra.mxu0 %v2492
        %v2666 = vpop.f32.mrf.mxu0
        %v2667 = vadd.f32 %v2593, %v2666
        %v2668 = vpop.f32.mrf.mxu0
        %2669 = vmatprep.mubr.f32.mxu0 %v2497
        %2670 = vmatmul.mubr.f32.gmra.mxu0 %v2496
        %v2671 = vpop.f32.mrf.mxu0
        %v2672 = vadd.f32 %v2593, %v2671
        %v2673 = vpop.f32.mrf.mxu0
        %2674 = vmatprep.mubr.f32.mxu0 %v2501
        %2675 = vmatmul.mubr.f32.gmra.mxu0 %v2500
        %v2676 = vpop.f32.mrf.mxu0
        %v2677 = vadd.f32 %v2593, %v2676
        %v2678 = vpop.f32.mrf.mxu0
        %2679 = vmatprep.mubr.f32.mxu0 %v2505
        %2680 = vmatmul.mubr.f32.gmra.mxu0 %v2504
        %v2681 = vpop.f32.mrf.mxu0
        %v2682 = vadd.f32 %v2593, %v2681
        %v2683 = vpop.f32.mrf.mxu0
        %2684 = vmatprep.mubr.f32.mxu0 %v2509
        %2685 = vmatmul.mubr.f32.gmra.mxu0 %v2508
        %v2686 = vpop.f32.mrf.mxu0
        %v2687 = vadd.f32 %v2593, %v2686
        %v2688 = vpop.f32.mrf.mxu0
        %2689 = vmatprep.mubr.f32.mxu0 %v2513
        %2690 = vmatmul.mubr.f32.gmra.mxu0 %v2512
        %v2691 = vpop.f32.mrf.mxu0
        %v2692 = vadd.f32 %v2593, %v2691
        %v2693 = vpop.f32.mrf.mxu0
        %2694 = vmatprep.mubr.f32.mxu0 %v2517
        %2695 = vmatmul.mubr.f32.gmra.mxu0 %v2516
        %v2696 = vpop.f32.mrf.mxu0
        %v2697 = vadd.f32 %v2593, %v2696
        %v2698 = vpop.f32.mrf.mxu0
        %2699 = vmatprep.mubr.f32.mxu0 %v2521
        %2700 = vmatmul.mubr.f32.gmra.mxu0 %v2520
        %v2701 = vpop.f32.mrf.mxu0
        %v2702 = vadd.f32 %v2593, %v2701
        %v2703 = vpop.f32.mrf.mxu0
        %2704 = vmatprep.mubr.f32.mxu0 %v2525
        %2705 = vmatmul.mubr.f32.gmra.mxu0 %v2524
        %v2706 = vpop.f32.mrf.mxu0
        %v2707 = vadd.f32 %v2593, %v2706
        %v2708 = vpop.f32.mrf.mxu0
        %2709 = vmatprep.mubr.f32.mxu0 %v2529
        %2710 = vmatmul.mubr.f32.gmra.mxu0 %v2528
        %v2711 = vpop.f32.mrf.mxu0
        %v2712 = vadd.f32 %v2593, %v2711
        %v2713 = vpop.f32.mrf.mxu0
        %2714 = vmatprep.mubr.f32.mxu0 %v2533
        %2715 = vmatmul.mubr.f32.gmra.mxu0 %v2532
        %v2716 = vpop.f32.mrf.mxu0
        %v2717 = vadd.f32 %v2593, %v2716
        %v2718 = vpop.f32.mrf.mxu0
        %2719 = vmatprep.mubr.f32.mxu0 %v2537
        %2720 = vmatmul.mubr.f32.gmra.mxu0 %v2536
        %v2721 = vpop.f32.mrf.mxu0
        %v2722 = vadd.f32 %v2593, %v2721
        %v2723 = vpop.f32.mrf.mxu0
        %2724 = vmatprep.mubr.f32.mxu0 %v2541
        %2725 = vmatmul.mubr.f32.gmra.mxu0 %v2540
        %v2726 = vpop.f32.mrf.mxu0
        %v2727 = vadd.f32 %v2593, %v2726
        %v2728 = vpop.f32.mrf.mxu0
        %2729 = vmatprep.mubr.f32.mxu0 %v2545
        %2730 = vmatmul.mubr.f32.gmra.mxu0 %v2544
        %v2731 = vpop.f32.mrf.mxu0
        %v2732 = vadd.f32 %v2593, %v2731
        %v2733 = vpop.f32.mrf.mxu0
        %2734 = vmatprep.mubr.f32.mxu0 %v2549
        %2735 = vmatmul.mubr.f32.gmra.mxu0 %v2548
        %v2736 = vpop.f32.mrf.mxu0
        %v2737 = vadd.f32 %v2593, %v2736
        %v2738 = vpop.f32.mrf.mxu0
        %2739 = vmatprep.mubr.f32.mxu0 %v2553
        %2740 = vmatmul.mubr.f32.gmra.mxu0 %v2552
        %v2741 = vpop.f32.mrf.mxu0
        %v2742 = vadd.f32 %v2593, %v2741
        %v2743 = vpop.f32.mrf.mxu0
        %2744 = vmatprep.mubr.f32.mxu0 %v2557
        %2745 = vmatmul.mubr.f32.gmra.mxu0 %v2556
        %v2746 = vpop.f32.mrf.mxu0
        %v2747 = vadd.f32 %v2593, %v2746
        %v2748 = vpop.f32.mrf.mxu0
        %2749 = vmatprep.mubr.f32.mxu0 %v2561
        %2750 = vmatmul.mubr.f32.gmra.mxu0 %v2560
        %v2751 = vpop.f32.mrf.mxu0
        %v2752 = vadd.f32 %v2593, %v2751
        %v2753 = vpop.f32.mrf.mxu0
        %2754 = vmatprep.mubr.f32.mxu0 %v2565
        %2755 = vmatmul.mubr.f32.gmra.mxu0 %v2564
        %v2756 = vpop.f32.mrf.mxu0
        %v2757 = vadd.f32 %v2593, %v2756
        %v2758 = vpop.f32.mrf.mxu0
        %2759 = vmatprep.mubr.f32.mxu0 %v2569
        %2760 = vmatmul.mubr.f32.gmra.mxu0 %v2568
        %v2761 = vpop.f32.mrf.mxu0
        %v2762 = vadd.f32 %v2593, %v2761
        %v2763 = vpop.f32.mrf.mxu0
        %2764 = vmatprep.mubr.f32.mxu0 %v2573
        %2765 = vmatmul.mubr.f32.gmra.mxu0 %v2572
        %v2766 = vpop.f32.mrf.mxu0
        %v2767 = vadd.f32 %v2593, %v2766
        %v2768 = vpop.f32.mrf.mxu0
        %2769 = vmatprep.mubr.f32.mxu0 %v2577
        %2770 = vmatmul.mubr.f32.gmra.mxu0 %v2576
        %v2771 = vpop.f32.mrf.mxu0
        %v2772 = vadd.f32 %v2593, %v2771
        %v2773 = vpop.f32.mrf.mxu0
        %2774 = vmatprep.mubr.f32.mxu0 %v2581
        %2775 = vmatmul.mubr.f32.gmra.mxu0 %v2580
        %v2776 = vpop.f32.mrf.mxu0
        %v2777 = vadd.f32 %v2593, %v2776
        %v2778 = vpop.f32.mrf.mxu0
        %2779 = vmatprep.mubr.f32.mxu0 %v2585
        %2780 = vmatmul.mubr.f32.gmra.mxu0 %v2584
        %v2781 = vpop.f32.mrf.mxu0
        %v2782 = vadd.f32 %v2593, %v2781
        %v2783 = vpop.f32.mrf.mxu0
        %2784 = vdwg.mxu0
        %2785 = vmatprep.subr.mxu0 0.0
        %2786 = vmatpush1.msra.mxu0 %v305
        %2787 = vmatprep.subr.mxu0 0.0
        %2788 = vmatpush1.msra.mxu0 %v304
        %2789 = vmatprep.subr.mxu0 0.0
        %2790 = vmatpush1.msra.mxu0 %v303
        %2791 = vmatprep.subr.mxu0 0.0
        %2792 = vmatpush1.msra.mxu0 %v302
        %2793 = vmatprep.subr.mxu0 0.0
        %2794 = vmatpush1.msra.mxu0 %v301
        %2795 = vmatprep.subr.mxu0 0.0
        %2796 = vmatpush1.msra.mxu0 %v300
        %2797 = vmatprep.subr.mxu0 0.0
        %2798 = vmatpush1.msra.mxu0 %v299
        %2799 = vmatprep.subr.mxu0 0.0
        %2800 = vmatpush1.msra.mxu0 %v298
        %2801 = vmatprep.subr.mxu0 0.0
        %2802 = vmatpush1.msra.mxu0 %v297
        %2803 = vmatprep.subr.mxu0 0.0
        %2804 = vmatpush1.msra.mxu0 %v296
        %2805 = vmatprep.subr.mxu0 0.0
        %2806 = vmatpush1.msra.mxu0 %v295
        %2807 = vmatprep.subr.mxu0 0.0
        %2808 = vmatpush1.msra.mxu0 %v294
        %2809 = vmatprep.subr.mxu0 0.0
        %2810 = vmatpush1.msra.mxu0 %v293
        %2811 = vmatprep.subr.mxu0 0.0
        %2812 = vmatpush1.msra.mxu0 %v292
        %2813 = vmatprep.subr.mxu0 0.0
        %2814 = vmatpush1.msra.mxu0 %v291
        %2815 = vmatprep.subr.mxu0 0.0
        %2816 = vmatpush1.msra.mxu0 %v290
        %2817 = vmatprep.subr.mxu0 0.0
        %2818 = vmatpush2.msra.mxu0 %v321
        %2819 = vmatprep.subr.mxu0 0.0
        %2820 = vmatpush2.msra.mxu0 %v320
        %2821 = vmatprep.subr.mxu0 0.0
        %2822 = vmatpush2.msra.mxu0 %v319
        %2823 = vmatprep.subr.mxu0 0.0
        %2824 = vmatpush2.msra.mxu0 %v318
        %2825 = vmatprep.subr.mxu0 0.0
        %2826 = vmatpush2.msra.mxu0 %v317
        %2827 = vmatprep.subr.mxu0 0.0
        %2828 = vmatpush2.msra.mxu0 %v316
        %2829 = vmatprep.subr.mxu0 0.0
        %2830 = vmatpush2.msra.mxu0 %v315
        %2831 = vmatprep.subr.mxu0 0.0
        %2832 = vmatpush2.msra.mxu0 %v314
        %2833 = vmatprep.subr.mxu0 0.0
        %2834 = vmatpush2.msra.mxu0 %v313
        %2835 = vmatprep.subr.mxu0 0.0
        %2836 = vmatpush2.msra.mxu0 %v312
        %2837 = vmatprep.subr.mxu0 0.0
        %2838 = vmatpush2.msra.mxu0 %v311
        %2839 = vmatprep.subr.mxu0 0.0
        %2840 = vmatpush2.msra.mxu0 %v310
        %2841 = vmatprep.subr.mxu0 0.0
        %2842 = vmatpush2.msra.mxu0 %v309
        %2843 = vmatprep.subr.mxu0 0.0
        %2844 = vmatpush2.msra.mxu0 %v308
        %2845 = vmatprep.subr.mxu0 0.0
        %2846 = vmatpush2.msra.mxu0 %v307
        %2847 = vmatprep.subr.mxu0 0.0
        %2848 = vmatpush2.msra.mxu0 %v306
        %2849 = vmatprep.mubr.f32.mxu0 %v2491
        %2850 = vmatmul.mubr.f32.gmra.mxu0 %v2490
        %v2851 = vpop.f32.mrf.mxu0
        %v2852 = vadd.f32 %v2662, %v2851
        %v2853 = vpop.f32.mrf.mxu0
        %2854 = vmatprep.mubr.f32.mxu0 %v2495
        %2855 = vmatmul.mubr.f32.gmra.mxu0 %v2494
        %v2856 = vpop.f32.mrf.mxu0
        %v2857 = vadd.f32 %v2667, %v2856
        %v2858 = vpop.f32.mrf.mxu0
        %2859 = vmatprep.mubr.f32.mxu0 %v2499
        %2860 = vmatmul.mubr.f32.gmra.mxu0 %v2498
        %v2861 = vpop.f32.mrf.mxu0
        %v2862 = vadd.f32 %v2672, %v2861
        %v2863 = vpop.f32.mrf.mxu0
        %2864 = vmatprep.mubr.f32.mxu0 %v2503
        %2865 = vmatmul.mubr.f32.gmra.mxu0 %v2502
        %v2866 = vpop.f32.mrf.mxu0
        %v2867 = vadd.f32 %v2677, %v2866
        %v2868 = vpop.f32.mrf.mxu0
        %2869 = vmatprep.mubr.f32.mxu0 %v2507
        %2870 = vmatmul.mubr.f32.gmra.mxu0 %v2506
        %v2871 = vpop.f32.mrf.mxu0
        %v2872 = vadd.f32 %v2682, %v2871
        %v2873 = vpop.f32.mrf.mxu0
        %2874 = vmatprep.mubr.f32.mxu0 %v2511
        %2875 = vmatmul.mubr.f32.gmra.mxu0 %v2510
        %v2876 = vpop.f32.mrf.mxu0
        %v2877 = vadd.f32 %v2687, %v2876
        %v2878 = vpop.f32.mrf.mxu0
        %2879 = vmatprep.mubr.f32.mxu0 %v2515
        %2880 = vmatmul.mubr.f32.gmra.mxu0 %v2514
        %v2881 = vpop.f32.mrf.mxu0
        %v2882 = vadd.f32 %v2692, %v2881
        %v2883 = vpop.f32.mrf.mxu0
        %2884 = vmatprep.mubr.f32.mxu0 %v2519
        %2885 = vmatmul.mubr.f32.gmra.mxu0 %v2518
        %v2886 = vpop.f32.mrf.mxu0
        %v2887 = vadd.f32 %v2697, %v2886
        %v2888 = vpop.f32.mrf.mxu0
        %2889 = vmatprep.mubr.f32.mxu0 %v2523
        %2890 = vmatmul.mubr.f32.gmra.mxu0 %v2522
        %v2891 = vpop.f32.mrf.mxu0
        %v2892 = vadd.f32 %v2702, %v2891
        %v2893 = vpop.f32.mrf.mxu0
        %2894 = vmatprep.mubr.f32.mxu0 %v2527
        %2895 = vmatmul.mubr.f32.gmra.mxu0 %v2526
        %v2896 = vpop.f32.mrf.mxu0
        %v2897 = vadd.f32 %v2707, %v2896
        %v2898 = vpop.f32.mrf.mxu0
        %2899 = vmatprep.mubr.f32.mxu0 %v2531
        %2900 = vmatmul.mubr.f32.gmra.mxu0 %v2530
        %v2901 = vpop.f32.mrf.mxu0
        %v2902 = vadd.f32 %v2712, %v2901
        %v2903 = vpop.f32.mrf.mxu0
        %2904 = vmatprep.mubr.f32.mxu0 %v2535
        %2905 = vmatmul.mubr.f32.gmra.mxu0 %v2534
        %v2906 = vpop.f32.mrf.mxu0
        %v2907 = vadd.f32 %v2717, %v2906
        %v2908 = vpop.f32.mrf.mxu0
        %2909 = vmatprep.mubr.f32.mxu0 %v2539
        %2910 = vmatmul.mubr.f32.gmra.mxu0 %v2538
        %v2911 = vpop.f32.mrf.mxu0
        %v2912 = vadd.f32 %v2722, %v2911
        %v2913 = vpop.f32.mrf.mxu0
        %2914 = vmatprep.mubr.f32.mxu0 %v2543
        %2915 = vmatmul.mubr.f32.gmra.mxu0 %v2542
        %v2916 = vpop.f32.mrf.mxu0
        %v2917 = vadd.f32 %v2727, %v2916
        %v2918 = vpop.f32.mrf.mxu0
        %2919 = vmatprep.mubr.f32.mxu0 %v2547
        %2920 = vmatmul.mubr.f32.gmra.mxu0 %v2546
        %v2921 = vpop.f32.mrf.mxu0
        %v2922 = vadd.f32 %v2732, %v2921
        %v2923 = vpop.f32.mrf.mxu0
        %2924 = vmatprep.mubr.f32.mxu0 %v2551
        %2925 = vmatmul.mubr.f32.gmra.mxu0 %v2550
        %v2926 = vpop.f32.mrf.mxu0
        %v2927 = vadd.f32 %v2737, %v2926
        %v2928 = vpop.f32.mrf.mxu0
        %2929 = vmatprep.mubr.f32.mxu0 %v2555
        %2930 = vmatmul.mubr.f32.gmra.mxu0 %v2554
        %v2931 = vpop.f32.mrf.mxu0
        %v2932 = vadd.f32 %v2742, %v2931
        %v2933 = vpop.f32.mrf.mxu0
        %2934 = vmatprep.mubr.f32.mxu0 %v2559
        %2935 = vmatmul.mubr.f32.gmra.mxu0 %v2558
        %v2936 = vpop.f32.mrf.mxu0
        %v2937 = vadd.f32 %v2747, %v2936
        %v2938 = vpop.f32.mrf.mxu0
        %2939 = vmatprep.mubr.f32.mxu0 %v2563
        %2940 = vmatmul.mubr.f32.gmra.mxu0 %v2562
        %v2941 = vpop.f32.mrf.mxu0
        %v2942 = vadd.f32 %v2752, %v2941
        %v2943 = vpop.f32.mrf.mxu0
        %2944 = vmatprep.mubr.f32.mxu0 %v2567
        %2945 = vmatmul.mubr.f32.gmra.mxu0 %v2566
        %v2946 = vpop.f32.mrf.mxu0
        %v2947 = vadd.f32 %v2757, %v2946
        %v2948 = vpop.f32.mrf.mxu0
        %2949 = vmatprep.mubr.f32.mxu0 %v2571
        %2950 = vmatmul.mubr.f32.gmra.mxu0 %v2570
        %v2951 = vpop.f32.mrf.mxu0
        %v2952 = vadd.f32 %v2762, %v2951
        %v2953 = vpop.f32.mrf.mxu0
        %2954 = vmatprep.mubr.f32.mxu0 %v2575
        %2955 = vmatmul.mubr.f32.gmra.mxu0 %v2574
        %v2956 = vpop.f32.mrf.mxu0
        %v2957 = vadd.f32 %v2767, %v2956
        %v2958 = vpop.f32.mrf.mxu0
        %2959 = vmatprep.mubr.f32.mxu0 %v2579
        %2960 = vmatmul.mubr.f32.gmra.mxu0 %v2578
        %v2961 = vpop.f32.mrf.mxu0
        %v2962 = vadd.f32 %v2772, %v2961
        %v2963 = vpop.f32.mrf.mxu0
        %2964 = vmatprep.mubr.f32.mxu0 %v2583
        %2965 = vmatmul.mubr.f32.gmra.mxu0 %v2582
        %v2966 = vpop.f32.mrf.mxu0
        %v2967 = vadd.f32 %v2777, %v2966
        %v2968 = vpop.f32.mrf.mxu0
        %2969 = vmatprep.mubr.f32.mxu0 %v2587
        %2970 = vmatmul.mubr.f32.gmra.mxu0 %v2586
        %v2971 = vpop.f32.mrf.mxu0
        %v2972 = vadd.f32 %v2782, %v2971
        %v2973 = vpop.f32.mrf.mxu0
        %2974 = vdwg.mxu0
        %v2975 = vsel %vm809, %v2852, -inf
        %v2976 = vsel %vm809, %v2857, -inf
        %v2977 = vsel %vm809, %v2862, -inf
        %v2978 = vsel %vm809, %v2867, -inf
        %v2979 = vsel %vm809, %v2872, -inf
        %v2980 = vmax.f32 %v2975, %v2979
        %v2981 = vsel %vm809, %v2877, -inf
        %v2982 = vmax.f32 %v2976, %v2981
        %v2983 = vsel %vm809, %v2882, -inf
        %v2984 = vmax.f32 %v2977, %v2983
        %v2985 = vsel %vm809, %v2887, -inf
        %v2986 = vmax.f32 %v2978, %v2985
        %v2987 = vsel %vm809, %v2892, -inf
        %v2988 = vmax.f32 %v2980, %v2987
        %v2989 = vsel %vm809, %v2897, -inf
        %v2990 = vmax.f32 %v2982, %v2989
        %v2991 = vsel %vm809, %v2902, -inf
        %v2992 = vmax.f32 %v2984, %v2991
        %v2993 = vsel %vm809, %v2907, -inf
        %v2994 = vmax.f32 %v2986, %v2993
        %v2995 = vsel %vm809, %v2912, -inf
        %v2996 = vmax.f32 %v2988, %v2995
        %v2997 = vsel %vm809, %v2917, -inf
        %v2998 = vmax.f32 %v2990, %v2997
        %v2999 = vsel %vm809, %v2922, -inf
        %v3000 = vmax.f32 %v2992, %v2999
        %v3001 = vsel %vm809, %v2927, -inf
        %v3002 = vmax.f32 %v2994, %v3001
        %v3003 = vsel %vm809, %v2932, -inf
        %v3004 = vmax.f32 %v2996, %v3003
        %v3005 = vsel %vm809, %v2937, -inf
        %v3006 = vmax.f32 %v2998, %v3005
        %v3007 = vsel %vm809, %v2942, -inf
        %v3008 = vmax.f32 %v3000, %v3007
        %v3009 = vsel %vm809, %v2947, -inf
        %v3010 = vmax.f32 %v3002, %v3009
        %v3011 = vsel %vm809, %v2952, -inf
        %v3012 = vmax.f32 %v3004, %v3011
        %v3013 = vsel %vm809, %v2957, -inf
        %v3014 = vmax.f32 %v3006, %v3013
        %v3015 = vsel %vm809, %v2962, -inf
        %v3016 = vmax.f32 %v3008, %v3015
        %v3017 = vsel %vm809, %v2967, -inf
        %v3018 = vmax.f32 %v3010, %v3017
        %v3019 = vsel %vm854, %v2972, -inf
        %v3020 = vmax.f32 %v3012, %v3019
        %v3021 = vmax.f32 %v3020, %v3014
        %v3022 = vmax.f32 %v3016, %v3018
        %v3023 = vmax.f32 %v3021, %v3022
        %v3024 = vrot.slane %v3023, 4
        %v3025 = vmax.f32 %v3023, %v3024
        %v3026 = vrot.slane %v3025, 2
        %v3027 = vmax.f32 %v3025, %v3026
        %v3028 = vrot.slane %v3027, 1
        %v3029 = vmax.f32 %v3027, %v3028
        %v3030 = vsub.f32 %v2852, %v3029
        %v3031 = vsub.f32 %v2857, %v3029
        %v3032 = vsub.f32 %v2862, %v3029
        %v3033 = vsub.f32 %v2867, %v3029
        %v3034 = vsub.f32 %v2872, %v3029
        %v3035 = vsub.f32 %v2877, %v3029
        %v3036 = vsub.f32 %v2882, %v3029
        %v3037 = vsub.f32 %v2887, %v3029
        %v3038 = vsub.f32 %v2892, %v3029
        %v3039 = vsub.f32 %v2897, %v3029
        %v3040 = vsub.f32 %v2902, %v3029
        %v3041 = vsub.f32 %v2907, %v3029
        %v3042 = vsub.f32 %v2912, %v3029
        %v3043 = vsub.f32 %v2917, %v3029
        %v3044 = vsub.f32 %v2922, %v3029
        %v3045 = vsub.f32 %v2927, %v3029
        %v3046 = vsub.f32 %v2932, %v3029
        %v3047 = vsub.f32 %v2937, %v3029
        %v3048 = vsub.f32 %v2942, %v3029
        %v3049 = vsub.f32 %v2947, %v3029
        %v3050 = vsub.f32 %v2952, %v3029
        %v3051 = vsub.f32 %v2957, %v3029
        %v3052 = vsub.f32 %v2962, %v3029
        %v3053 = vsub.f32 %v2967, %v3029
        %v3054 = vsub.f32 %v2972, %v3029
        %v3055 = vmul.f32 %v3030, 1.442695
        %v3056 = vpow.pop %v3055
        %v3057 = vmul.f32 %v3031, 1.442695
        %v3058 = vpow.pop %v3057
        %v3059 = vmul.f32 %v3032, 1.442695
        %v3060 = vpow.pop %v3059
        %v3061 = vmul.f32 %v3033, 1.442695
        %v3062 = vpow.pop %v3061
        %v3063 = vmul.f32 %v3034, 1.442695
        %v3064 = vpow.pop %v3063
        %v3065 = vmul.f32 %v3035, 1.442695
        %v3066 = vpow.pop %v3065
        %v3067 = vmul.f32 %v3036, 1.442695
        %v3068 = vpow.pop %v3067
        %v3069 = vmul.f32 %v3037, 1.442695
        %v3070 = vpow.pop %v3069
        %v3071 = vmul.f32 %v3038, 1.442695
        %v3072 = vpow.pop %v3071
        %v3073 = vmul.f32 %v3039, 1.442695
        %v3074 = vpow.pop %v3073
        %v3075 = vmul.f32 %v3040, 1.442695
        %v3076 = vpow.pop %v3075
        %v3077 = vmul.f32 %v3041, 1.442695
        %v3078 = vpow.pop %v3077
        %v3079 = vmul.f32 %v3042, 1.442695
        %v3080 = vpow.pop %v3079
        %v3081 = vmul.f32 %v3043, 1.442695
        %v3082 = vpow.pop %v3081
        %v3083 = vmul.f32 %v3044, 1.442695
        %v3084 = vpow.pop %v3083
        %v3085 = vmul.f32 %v3045, 1.442695
        %v3086 = vpow.pop %v3085
        %v3087 = vmul.f32 %v3046, 1.442695
        %v3088 = vpow.pop %v3087
        %v3089 = vmul.f32 %v3047, 1.442695
        %v3090 = vpow.pop %v3089
        %v3091 = vmul.f32 %v3048, 1.442695
        %v3092 = vpow.pop %v3091
        %v3093 = vmul.f32 %v3049, 1.442695
        %v3094 = vpow.pop %v3093
        %v3095 = vmul.f32 %v3050, 1.442695
        %v3096 = vpow.pop %v3095
        %v3097 = vmul.f32 %v3051, 1.442695
        %v3098 = vpow.pop %v3097
        %v3099 = vmul.f32 %v3052, 1.442695
        %v3100 = vpow.pop %v3099
        %v3101 = vmul.f32 %v3053, 1.442695
        %v3102 = vpow.pop %v3101
        %v3103 = vmul.f32 %v3054, 1.442695
        %v3104 = vpow.pop %v3103
        %v3105 = vsel %vm809, %v3056, 0.0
        %v3106 = vsel %vm809, %v3058, 0.0
        %v3107 = vadd.f32 %v3105, %v3106
        %v3108 = vsel %vm809, %v3060, 0.0
        %v3109 = vadd.f32 %v3107, %v3108
        %v3110 = vsel %vm809, %v3062, 0.0
        %v3111 = vadd.f32 %v3109, %v3110
        %v3112 = vsel %vm809, %v3064, 0.0
        %v3113 = vadd.f32 %v3111, %v3112
        %v3114 = vsel %vm809, %v3066, 0.0
        %v3115 = vadd.f32 %v3113, %v3114
        %v3116 = vsel %vm809, %v3068, 0.0
        %v3117 = vadd.f32 %v3115, %v3116
        %v3118 = vsel %vm809, %v3070, 0.0
        %v3119 = vadd.f32 %v3117, %v3118
        %v3120 = vsel %vm809, %v3072, 0.0
        %v3121 = vadd.f32 %v3119, %v3120
        %v3122 = vsel %vm809, %v3074, 0.0
        %v3123 = vadd.f32 %v3121, %v3122
        %v3124 = vsel %vm809, %v3076, 0.0
        %v3125 = vadd.f32 %v3123, %v3124
        %v3126 = vsel %vm809, %v3078, 0.0
        %v3127 = vadd.f32 %v3125, %v3126
        %v3128 = vsel %vm809, %v3080, 0.0
        %v3129 = vadd.f32 %v3127, %v3128
        %v3130 = vsel %vm809, %v3082, 0.0
        %v3131 = vadd.f32 %v3129, %v3130
        %v3132 = vsel %vm809, %v3084, 0.0
        %v3133 = vadd.f32 %v3131, %v3132
        %v3134 = vsel %vm809, %v3086, 0.0
        %v3135 = vadd.f32 %v3133, %v3134
        %v3136 = vsel %vm809, %v3088, 0.0
        %v3137 = vadd.f32 %v3135, %v3136
        %v3138 = vsel %vm809, %v3090, 0.0
        %v3139 = vadd.f32 %v3137, %v3138
        %v3140 = vsel %vm809, %v3092, 0.0
        %v3141 = vadd.f32 %v3139, %v3140
        %v3142 = vsel %vm809, %v3094, 0.0
        %v3143 = vadd.f32 %v3141, %v3142
        %v3144 = vsel %vm809, %v3096, 0.0
        %v3145 = vadd.f32 %v3143, %v3144
        %v3146 = vsel %vm809, %v3098, 0.0
        %v3147 = vadd.f32 %v3145, %v3146
        %v3148 = vsel %vm809, %v3100, 0.0
        %v3149 = vadd.f32 %v3147, %v3148
        %v3150 = vsel %vm809, %v3102, 0.0
        %v3151 = vadd.f32 %v3149, %v3150
        %v3152 = vsel %vm854, %v3104, 0.0
        %v3153 = vadd.f32 %v3151, %v3152
        %v3154 = vrot.slane %v3153, 4
        %v3155 = vadd.f32 %v3153, %v3154
        %v3156 = vrot.slane %v3155, 2
        %v3157 = vadd.f32 %v3155, %v3156
        %v3158 = vrot.slane %v3157, 1
        %v3159 = vadd.f32 %v3157, %v3158
        %v3160 = vrcp.pop %v3159
        %v3161 = vmul.f32 %v3056, %v3160
        %v3162 = vmul.f32 %v3058, %v3160
        %v3163 = vmul.f32 %v3060, %v3160
        %v3164 = vmul.f32 %v3062, %v3160
        %v3165 = vmul.f32 %v3064, %v3160
        %v3166 = vmul.f32 %v3066, %v3160
        %v3167 = vmul.f32 %v3068, %v3160
        %v3168 = vmul.f32 %v3070, %v3160
        %v3169 = vmul.f32 %v3072, %v3160
        %v3170 = vmul.f32 %v3074, %v3160
        %v3171 = vmul.f32 %v3076, %v3160
        %v3172 = vmul.f32 %v3078, %v3160
        %v3173 = vmul.f32 %v3080, %v3160
        %v3174 = vmul.f32 %v3082, %v3160
        %v3175 = vmul.f32 %v3084, %v3160
        %v3176 = vmul.f32 %v3086, %v3160
        %v3177 = vmul.f32 %v3088, %v3160
        %v3178 = vmul.f32 %v3090, %v3160
        %v3179 = vmul.f32 %v3092, %v3160
        %v3180 = vmul.f32 %v3094, %v3160
        %v3181 = vmul.f32 %v3096, %v3160
        %v3182 = vmul.f32 %v3098, %v3160
        %v3183 = vmul.f32 %v3100, %v3160
        %v3184 = vmul.f32 %v3102, %v3160
        %v3185 = vmul.f32 %v3104, %v3160
        %3187 = vset.pattern.permute.xlu0 0
        %3188 = vperm.xlu0 %3187, %v3161
        %v3189 = vpop.permute.xlu0 %3188
        %3192 = vset.pattern.permute.xlu0 0
        %3193 = vperm.xlu0 %3192, %v3162
        %v3194 = vpop.permute.xlu0 %3193
        %3197 = vset.pattern.permute.xlu0 0
        %3198 = vperm.xlu0 %3197, %v3163
        %v3199 = vpop.permute.xlu0 %3198
        %3202 = vset.pattern.permute.xlu0 0
        %3203 = vperm.xlu0 %3202, %v3164
        %v3204 = vpop.permute.xlu0 %3203
        %3207 = vset.pattern.permute.xlu0 0
        %3208 = vperm.xlu0 %3207, %v3165
        %v3209 = vpop.permute.xlu0 %3208
        %3212 = vset.pattern.permute.xlu0 0
        %3213 = vperm.xlu0 %3212, %v3166
        %v3214 = vpop.permute.xlu0 %3213
        %3217 = vset.pattern.permute.xlu0 0
        %3218 = vperm.xlu0 %3217, %v3167
        %v3219 = vpop.permute.xlu0 %3218
        %3222 = vset.pattern.permute.xlu0 0
        %3223 = vperm.xlu0 %3222, %v3168
        %v3224 = vpop.permute.xlu0 %3223
        %3227 = vset.pattern.permute.xlu0 0
        %3228 = vperm.xlu0 %3227, %v3169
        %v3229 = vpop.permute.xlu0 %3228
        %3232 = vset.pattern.permute.xlu0 0
        %3233 = vperm.xlu0 %3232, %v3170
        %v3234 = vpop.permute.xlu0 %3233
        %3237 = vset.pattern.permute.xlu0 0
        %3238 = vperm.xlu0 %3237, %v3171
        %v3239 = vpop.permute.xlu0 %3238
        %3242 = vset.pattern.permute.xlu0 0
        %3243 = vperm.xlu0 %3242, %v3172
        %v3244 = vpop.permute.xlu0 %3243
        %3247 = vset.pattern.permute.xlu0 0
        %3248 = vperm.xlu0 %3247, %v3173
        %v3249 = vpop.permute.xlu0 %3248
        %3252 = vset.pattern.permute.xlu0 0
        %3253 = vperm.xlu0 %3252, %v3174
        %v3254 = vpop.permute.xlu0 %3253
        %3257 = vset.pattern.permute.xlu0 0
        %3258 = vperm.xlu0 %3257, %v3175
        %v3259 = vpop.permute.xlu0 %3258
        %3262 = vset.pattern.permute.xlu0 0
        %3263 = vperm.xlu0 %3262, %v3176
        %v3264 = vpop.permute.xlu0 %3263
        %3267 = vset.pattern.permute.xlu0 0
        %3268 = vperm.xlu0 %3267, %v3177
        %v3269 = vpop.permute.xlu0 %3268
        %3272 = vset.pattern.permute.xlu0 0
        %3273 = vperm.xlu0 %3272, %v3178
        %v3274 = vpop.permute.xlu0 %3273
        %3277 = vset.pattern.permute.xlu0 0
        %3278 = vperm.xlu0 %3277, %v3179
        %v3279 = vpop.permute.xlu0 %3278
        %3282 = vset.pattern.permute.xlu0 0
        %3283 = vperm.xlu0 %3282, %v3180
        %v3284 = vpop.permute.xlu0 %3283
        %3287 = vset.pattern.permute.xlu0 0
        %3288 = vperm.xlu0 %3287, %v3181
        %v3289 = vpop.permute.xlu0 %3288
        %3292 = vset.pattern.permute.xlu0 0
        %3293 = vperm.xlu0 %3292, %v3182
        %v3294 = vpop.permute.xlu0 %3293
        %3297 = vset.pattern.permute.xlu0 0
        %3298 = vperm.xlu0 %3297, %v3183
        %v3299 = vpop.permute.xlu0 %3298
        %3302 = vset.pattern.permute.xlu0 0
        %3303 = vperm.xlu0 %3302, %v3184
        %v3304 = vpop.permute.xlu0 %3303
        %3307 = vset.pattern.permute.xlu0 0
        %3308 = vperm.xlu0 %3307, %v3185
        %v3309 = vpop.permute.xlu0 %3308
        %v3311 = vmul.f32 %v2488, %v3189
        %v3312 = vmul.f32 %v2489, %v3189
        %v3313 = vmul.f32 %v2490, %v3189
        %v3314 = vmul.f32 %v2491, %v3189
        %v3315 = vmul.f32 %v2492, %v3194
        %v3316 = vmul.f32 %v2493, %v3194
        %v3317 = vmul.f32 %v2494, %v3194
        %v3318 = vmul.f32 %v2495, %v3194
        %v3319 = vmul.f32 %v2496, %v3199
        %v3320 = vmul.f32 %v2497, %v3199
        %v3321 = vmul.f32 %v2498, %v3199
        %v3322 = vmul.f32 %v2499, %v3199
        %v3323 = vmul.f32 %v2500, %v3204
        %v3324 = vmul.f32 %v2501, %v3204
        %v3325 = vmul.f32 %v2502, %v3204
        %v3326 = vmul.f32 %v2503, %v3204
        %v3327 = vmul.f32 %v2504, %v3209
        %v3328 = vmul.f32 %v2505, %v3209
        %v3329 = vmul.f32 %v2506, %v3209
        %v3330 = vmul.f32 %v2507, %v3209
        %v3331 = vmul.f32 %v2508, %v3214
        %v3332 = vmul.f32 %v2509, %v3214
        %v3333 = vmul.f32 %v2510, %v3214
        %v3334 = vmul.f32 %v2511, %v3214
        %v3335 = vmul.f32 %v2512, %v3219
        %v3336 = vmul.f32 %v2513, %v3219
        %v3337 = vmul.f32 %v2514, %v3219
        %v3338 = vmul.f32 %v2515, %v3219
        %v3339 = vmul.f32 %v2516, %v3224
        %v3340 = vmul.f32 %v2517, %v3224
        %v3341 = vmul.f32 %v2518, %v3224
        %v3342 = vmul.f32 %v2519, %v3224
        %v3343 = vmul.f32 %v2520, %v3229
        %v3344 = vmul.f32 %v2521, %v3229
        %v3345 = vmul.f32 %v2522, %v3229
        %v3346 = vmul.f32 %v2523, %v3229
        %v3347 = vmul.f32 %v2524, %v3234
        %v3348 = vmul.f32 %v2525, %v3234
        %v3349 = vmul.f32 %v2526, %v3234
        %v3350 = vmul.f32 %v2527, %v3234
        %v3351 = vmul.f32 %v2528, %v3239
        %v3352 = vmul.f32 %v2529, %v3239
        %v3353 = vmul.f32 %v2530, %v3239
        %v3354 = vmul.f32 %v2531, %v3239
        %v3355 = vmul.f32 %v2532, %v3244
        %v3356 = vmul.f32 %v2533, %v3244
        %v3357 = vmul.f32 %v2534, %v3244
        %v3358 = vmul.f32 %v2535, %v3244
        %v3359 = vmul.f32 %v2536, %v3249
        %v3360 = vmul.f32 %v2537, %v3249
        %v3361 = vmul.f32 %v2538, %v3249
        %v3362 = vmul.f32 %v2539, %v3249
        %v3363 = vmul.f32 %v2540, %v3254
        %v3364 = vmul.f32 %v2541, %v3254
        %v3365 = vmul.f32 %v2542, %v3254
        %v3366 = vmul.f32 %v2543, %v3254
        %v3367 = vmul.f32 %v2544, %v3259
        %v3368 = vmul.f32 %v2545, %v3259
        %v3369 = vmul.f32 %v2546, %v3259
        %v3370 = vmul.f32 %v2547, %v3259
        %v3371 = vmul.f32 %v2548, %v3264
        %v3372 = vmul.f32 %v2549, %v3264
        %v3373 = vmul.f32 %v2550, %v3264
        %v3374 = vmul.f32 %v2551, %v3264
        %v3375 = vmul.f32 %v2552, %v3269
        %v3376 = vmul.f32 %v2553, %v3269
        %v3377 = vmul.f32 %v2554, %v3269
        %v3378 = vmul.f32 %v2555, %v3269
        %v3379 = vmul.f32 %v2556, %v3274
        %v3380 = vmul.f32 %v2557, %v3274
        %v3381 = vmul.f32 %v2558, %v3274
        %v3382 = vmul.f32 %v2559, %v3274
        %v3383 = vmul.f32 %v2560, %v3279
        %v3384 = vmul.f32 %v2561, %v3279
        %v3385 = vmul.f32 %v2562, %v3279
        %v3386 = vmul.f32 %v2563, %v3279
        %v3387 = vmul.f32 %v2564, %v3284
        %v3388 = vmul.f32 %v2565, %v3284
        %v3389 = vmul.f32 %v2566, %v3284
        %v3390 = vmul.f32 %v2567, %v3284
        %v3391 = vmul.f32 %v2568, %v3289
        %v3392 = vmul.f32 %v2569, %v3289
        %v3393 = vmul.f32 %v2570, %v3289
        %v3394 = vmul.f32 %v2571, %v3289
        %v3395 = vmul.f32 %v2572, %v3294
        %v3396 = vmul.f32 %v2573, %v3294
        %v3397 = vmul.f32 %v2574, %v3294
        %v3398 = vmul.f32 %v2575, %v3294
        %v3399 = vmul.f32 %v2576, %v3299
        %v3400 = vmul.f32 %v2577, %v3299
        %v3401 = vmul.f32 %v2578, %v3299
        %v3402 = vmul.f32 %v2579, %v3299
        %v3403 = vmul.f32 %v2580, %v3304
        %v3404 = vmul.f32 %v2581, %v3304
        %v3405 = vmul.f32 %v2582, %v3304
        %v3406 = vmul.f32 %v2583, %v3304
        %v3407 = vmul.f32 %v2584, %v3309
        %v3408 = vmul.f32 %v2585, %v3309
        %v3409 = vmul.f32 %v2586, %v3309
        %v3410 = vmul.f32 %v2587, %v3309
        %v3411 = vadd.f32 %v3311, %v3315
        %v3412 = vadd.f32 %v3411, %v3319
        %v3413 = vadd.f32 %v3412, %v3323
        %v3414 = vadd.f32 %v3413, %v3327
        %v3415 = vadd.f32 %v3414, %v3331
        %v3416 = vadd.f32 %v3415, %v3335
        %v3417 = vadd.f32 %v3416, %v3339
        %v3418 = vadd.f32 %v3417, %v3343
        %v3419 = vadd.f32 %v3418, %v3347
        %v3420 = vadd.f32 %v3419, %v3351
        %v3421 = vadd.f32 %v3420, %v3355
        %v3422 = vadd.f32 %v3421, %v3359
        %v3423 = vadd.f32 %v3422, %v3363
        %v3424 = vadd.f32 %v3423, %v3367
        %v3425 = vadd.f32 %v3424, %v3371
        %v3426 = vadd.f32 %v3425, %v3375
        %v3427 = vadd.f32 %v3426, %v3379
        %v3428 = vadd.f32 %v3427, %v3383
        %v3429 = vadd.f32 %v3428, %v3387
        %v3430 = vadd.f32 %v3429, %v3391
        %v3431 = vadd.f32 %v3430, %v3395
        %v3432 = vadd.f32 %v3431, %v3399
        %v3433 = vadd.f32 %v3432, %v3403
        %v3434 = vsel %vm1270, %v3407, 0.0
        %v3435 = vadd.f32 %v3433, %v3434
        %v3436 = vrot.slane %v3435, 4
        %v3437 = vadd.f32 %v3435, %v3436
        %v3438 = vrot.slane %v3437, 2
        %v3439 = vadd.f32 %v3437, %v3438
        %v3440 = vrot.slane %v3439, 1
        %v3441 = vadd.f32 %v3439, %v3440
        %v3442 = vadd.f32 %v3312, %v3316
        %v3443 = vadd.f32 %v3442, %v3320
        %v3444 = vadd.f32 %v3443, %v3324
        %v3445 = vadd.f32 %v3444, %v3328
        %v3446 = vadd.f32 %v3445, %v3332
        %v3447 = vadd.f32 %v3446, %v3336
        %v3448 = vadd.f32 %v3447, %v3340
        %v3449 = vadd.f32 %v3448, %v3344
        %v3450 = vadd.f32 %v3449, %v3348
        %v3451 = vadd.f32 %v3450, %v3352
        %v3452 = vadd.f32 %v3451, %v3356
        %v3453 = vadd.f32 %v3452, %v3360
        %v3454 = vadd.f32 %v3453, %v3364
        %v3455 = vadd.f32 %v3454, %v3368
        %v3456 = vadd.f32 %v3455, %v3372
        %v3457 = vadd.f32 %v3456, %v3376
        %v3458 = vadd.f32 %v3457, %v3380
        %v3459 = vadd.f32 %v3458, %v3384
        %v3460 = vadd.f32 %v3459, %v3388
        %v3461 = vadd.f32 %v3460, %v3392
        %v3462 = vadd.f32 %v3461, %v3396
        %v3463 = vadd.f32 %v3462, %v3400
        %v3464 = vadd.f32 %v3463, %v3404
        %v3465 = vsel %vm1270, %v3408, 0.0
        %v3466 = vadd.f32 %v3464, %v3465
        %v3467 = vrot.slane %v3466, 4
        %v3468 = vadd.f32 %v3466, %v3467
        %v3469 = vrot.slane %v3468, 2
        %v3470 = vadd.f32 %v3468, %v3469
        %v3471 = vrot.slane %v3470, 1
        %v3472 = vadd.f32 %v3470, %v3471
        %v3473 = vadd.f32 %v3313, %v3317
        %v3474 = vadd.f32 %v3473, %v3321
        %v3475 = vadd.f32 %v3474, %v3325
        %v3476 = vadd.f32 %v3475, %v3329
        %v3477 = vadd.f32 %v3476, %v3333
        %v3478 = vadd.f32 %v3477, %v3337
        %v3479 = vadd.f32 %v3478, %v3341
        %v3480 = vadd.f32 %v3479, %v3345
        %v3481 = vadd.f32 %v3480, %v3349
        %v3482 = vadd.f32 %v3481, %v3353
        %v3483 = vadd.f32 %v3482, %v3357
        %v3484 = vadd.f32 %v3483, %v3361
        %v3485 = vadd.f32 %v3484, %v3365
        %v3486 = vadd.f32 %v3485, %v3369
        %v3487 = vadd.f32 %v3486, %v3373
        %v3488 = vadd.f32 %v3487, %v3377
        %v3489 = vadd.f32 %v3488, %v3381
        %v3490 = vadd.f32 %v3489, %v3385
        %v3491 = vadd.f32 %v3490, %v3389
        %v3492 = vadd.f32 %v3491, %v3393
        %v3493 = vadd.f32 %v3492, %v3397
        %v3494 = vadd.f32 %v3493, %v3401
        %v3495 = vadd.f32 %v3494, %v3405
        %v3496 = vsel %vm1270, %v3409, 0.0
        %v3497 = vadd.f32 %v3495, %v3496
        %v3498 = vrot.slane %v3497, 4
        %v3499 = vadd.f32 %v3497, %v3498
        %v3500 = vrot.slane %v3499, 2
        %v3501 = vadd.f32 %v3499, %v3500
        %v3502 = vrot.slane %v3501, 1
        %v3503 = vadd.f32 %v3501, %v3502
        %v3504 = vadd.f32 %v3314, %v3318
        %v3505 = vadd.f32 %v3504, %v3322
        %v3506 = vadd.f32 %v3505, %v3326
        %v3507 = vadd.f32 %v3506, %v3330
        %v3508 = vadd.f32 %v3507, %v3334
        %v3509 = vadd.f32 %v3508, %v3338
        %v3510 = vadd.f32 %v3509, %v3342
        %v3511 = vadd.f32 %v3510, %v3346
        %v3512 = vadd.f32 %v3511, %v3350
        %v3513 = vadd.f32 %v3512, %v3354
        %v3514 = vadd.f32 %v3513, %v3358
        %v3515 = vadd.f32 %v3514, %v3362
        %v3516 = vadd.f32 %v3515, %v3366
        %v3517 = vadd.f32 %v3516, %v3370
        %v3518 = vadd.f32 %v3517, %v3374
        %v3519 = vadd.f32 %v3518, %v3378
        %v3520 = vadd.f32 %v3519, %v3382
        %v3521 = vadd.f32 %v3520, %v3386
        %v3522 = vadd.f32 %v3521, %v3390
        %v3523 = vadd.f32 %v3522, %v3394
        %v3524 = vadd.f32 %v3523, %v3398
        %v3525 = vadd.f32 %v3524, %v3402
        %v3526 = vadd.f32 %v3525, %v3406
        %v3527 = vsel %vm1270, %v3410, 0.0
        %v3528 = vadd.f32 %v3526, %v3527
        %v3529 = vrot.slane %v3528, 4
        %v3530 = vadd.f32 %v3528, %v3529
        %v3531 = vrot.slane %v3530, 2
        %v3532 = vadd.f32 %v3530, %v3531
        %v3533 = vrot.slane %v3532, 1
        %v3534 = vadd.f32 %v3532, %v3533
        %v3539 = vcombine.low %v3441, %v3472
        %v3540 = vcombine.low %v3503, %v3534
        %v3542 = vunpack.c.l.s4 1966171168
        %v3543 = vunpack.c.0.s8 %v3542
        %v3544 = vlaneseq
        %v3545 = vshrl.u32 %v3544, 7
        %v3546 = vsub.s32 %v3543, %v3545
        %v3547 = vrot.slane %v3539, %v3546
        %v3549 = vunpack.c.l.s4 1966171168
        %v3550 = vunpack.c.0.s8 %v3549
        %v3551 = vlaneseq
        %v3552 = vshrl.u32 %v3551, 7
        %v3553 = vsub.s32 %v3550, %v3552
        %v3554 = vrot.slane %v3540, %v3553
        %v3555 = vcombine.low %v3547, %v3554
        %v3557 = vunpack.c.l.s4 1966171168
        %v3558 = vunpack.c.0.s8 %v3557
        %v3559 = vlaneseq
        %v3560 = vshrl.u32 %v3559, 7
        %v3561 = vsub.s32 %v3558, %v3560
        %v3562 = vrot.slane %v3555, %v3561
        %s3564 = scalar_lea.vmem [#allocation2], 2
        %3565 = vst.msk [vmem:[%s3564] ss:$8 sm:$0xf] %vm1404, %v3562
        %3566 = vst.msk [vmem:[%s3564] ss:$8 sm:$0x0] %vm1404, %v3562
        %s3567 = scalar_lea.vmem %s256, 2400
        %v3568 = vld [vmem:[%s3567] sm:$0xff]
        %v3569 = vld [vmem:[%s3567 + $0x8] sm:$0xff]
        %v3570 = vld [vmem:[%s3567 + $0x10] sm:$0xff]
        %v3571 = vld [vmem:[%s3567 + $0x18] sm:$0xff]
        %v3572 = vld [vmem:[%s3567 + $0x20] sm:$0xff]
        %v3573 = vld [vmem:[%s3567 + $0x28] sm:$0xff]
        %v3574 = vld [vmem:[%s3567 + $0x30] sm:$0xff]
        %v3575 = vld [vmem:[%s3567 + $0x38] sm:$0xff]
        %v3576 = vld [vmem:[%s3567 + $0x40] sm:$0xff]
        %v3577 = vld [vmem:[%s3567 + $0x48] sm:$0xff]
        %v3578 = vld [vmem:[%s3567 + $0x50] sm:$0xff]
        %v3579 = vld [vmem:[%s3567 + $0x58] sm:$0xff]
        %v3580 = vld [vmem:[%s3567 + $0x60] sm:$0xff]
        %v3581 = vld [vmem:[%s3567 + $0x68] sm:$0xff]
        %v3582 = vld [vmem:[%s3567 + $0x70] sm:$0xff]
        %v3583 = vld [vmem:[%s3567 + $0x78] sm:$0xff]
        %v3584 = vld [vmem:[%s3567 + $0x80] sm:$0xff]
        %v3585 = vld [vmem:[%s3567 + $0x88] sm:$0xff]
        %v3586 = vld [vmem:[%s3567 + $0x90] sm:$0xff]
        %v3587 = vld [vmem:[%s3567 + $0x98] sm:$0xff]
        %v3588 = vld [vmem:[%s3567 + $0xa0] sm:$0xff]
        %v3589 = vld [vmem:[%s3567 + $0xa8] sm:$0xff]
        %v3590 = vld [vmem:[%s3567 + $0xb0] sm:$0xff]
        %v3591 = vld [vmem:[%s3567 + $0xb8] sm:$0xff]
        %v3592 = vld [vmem:[%s3567 + $0xc0] sm:$0xff]
        %v3593 = vld [vmem:[%s3567 + $0xc8] sm:$0xff]
        %v3594 = vld [vmem:[%s3567 + $0xd0] sm:$0xff]
        %v3595 = vld [vmem:[%s3567 + $0xd8] sm:$0xff]
        %v3596 = vld [vmem:[%s3567 + $0xe0] sm:$0xff]
        %v3597 = vld [vmem:[%s3567 + $0xe8] sm:$0xff]
        %v3598 = vld [vmem:[%s3567 + $0xf0] sm:$0xff]
        %v3599 = vld [vmem:[%s3567 + $0xf8] sm:$0xff]
        %v3600 = vld [vmem:[%s3567 + $0x100] sm:$0xff]
        %v3601 = vld [vmem:[%s3567 + $0x108] sm:$0xff]
        %v3602 = vld [vmem:[%s3567 + $0x110] sm:$0xff]
        %v3603 = vld [vmem:[%s3567 + $0x118] sm:$0xff]
        %v3604 = vld [vmem:[%s3567 + $0x120] sm:$0xff]
        %v3605 = vld [vmem:[%s3567 + $0x128] sm:$0xff]
        %v3606 = vld [vmem:[%s3567 + $0x130] sm:$0xff]
        %v3607 = vld [vmem:[%s3567 + $0x138] sm:$0xff]
        %v3608 = vld [vmem:[%s3567 + $0x140] sm:$0xff]
        %v3609 = vld [vmem:[%s3567 + $0x148] sm:$0xff]
        %v3610 = vld [vmem:[%s3567 + $0x150] sm:$0xff]
        %v3611 = vld [vmem:[%s3567 + $0x158] sm:$0xff]
        %v3612 = vld [vmem:[%s3567 + $0x160] sm:$0xff]
        %v3613 = vld [vmem:[%s3567 + $0x168] sm:$0xff]
        %v3614 = vld [vmem:[%s3567 + $0x170] sm:$0xff]
        %v3615 = vld [vmem:[%s3567 + $0x178] sm:$0xff]
        %v3616 = vld [vmem:[%s3567 + $0x180] sm:$0xff]
        %v3617 = vld [vmem:[%s3567 + $0x188] sm:$0xff]
        %v3618 = vld [vmem:[%s3567 + $0x190] sm:$0xff]
        %v3619 = vld [vmem:[%s3567 + $0x198] sm:$0xff]
        %v3620 = vld [vmem:[%s3567 + $0x1a0] sm:$0xff]
        %v3621 = vld [vmem:[%s3567 + $0x1a8] sm:$0xff]
        %v3622 = vld [vmem:[%s3567 + $0x1b0] sm:$0xff]
        %v3623 = vld [vmem:[%s3567 + $0x1b8] sm:$0xff]
        %v3624 = vld [vmem:[%s3567 + $0x1c0] sm:$0xff]
        %v3625 = vld [vmem:[%s3567 + $0x1c8] sm:$0xff]
        %v3626 = vld [vmem:[%s3567 + $0x1d0] sm:$0xff]
        %v3627 = vld [vmem:[%s3567 + $0x1d8] sm:$0xff]
        %v3628 = vld [vmem:[%s3567 + $0x1e0] sm:$0xff]
        %v3629 = vld [vmem:[%s3567 + $0x1e8] sm:$0xff]
        %v3630 = vld [vmem:[%s3567 + $0x1f0] sm:$0xff]
        %v3631 = vld [vmem:[%s3567 + $0x1f8] sm:$0xff]
        %v3632 = vld [vmem:[%s3567 + $0x200] sm:$0xff]
        %v3633 = vld [vmem:[%s3567 + $0x208] sm:$0xff]
        %v3634 = vld [vmem:[%s3567 + $0x210] sm:$0xff]
        %v3635 = vld [vmem:[%s3567 + $0x218] sm:$0xff]
        %v3636 = vld [vmem:[%s3567 + $0x220] sm:$0xff]
        %v3637 = vld [vmem:[%s3567 + $0x228] sm:$0xff]
        %v3638 = vld [vmem:[%s3567 + $0x230] sm:$0xff]
        %v3639 = vld [vmem:[%s3567 + $0x238] sm:$0xff]
        %v3640 = vld [vmem:[%s3567 + $0x240] sm:$0xff]
        %v3641 = vld [vmem:[%s3567 + $0x248] sm:$0xff]
        %v3642 = vld [vmem:[%s3567 + $0x250] sm:$0xff]
        %v3643 = vld [vmem:[%s3567 + $0x258] sm:$0xff]
        %v3644 = vld [vmem:[%s3567 + $0x260] sm:$0xff]
        %v3645 = vld [vmem:[%s3567 + $0x268] sm:$0xff]
        %v3646 = vld [vmem:[%s3567 + $0x270] sm:$0xff]
        %v3647 = vld [vmem:[%s3567 + $0x278] sm:$0xff]
        %v3648 = vld [vmem:[%s3567 + $0x280] sm:$0xff]
        %v3649 = vld [vmem:[%s3567 + $0x288] sm:$0xff]
        %v3650 = vld [vmem:[%s3567 + $0x290] sm:$0xff]
        %v3651 = vld [vmem:[%s3567 + $0x298] sm:$0xff]
        %v3652 = vld [vmem:[%s3567 + $0x2a0] sm:$0xff]
        %v3653 = vld [vmem:[%s3567 + $0x2a8] sm:$0xff]
        %v3654 = vld [vmem:[%s3567 + $0x2b0] sm:$0xff]
        %v3655 = vld [vmem:[%s3567 + $0x2b8] sm:$0xff]
        %v3656 = vld [vmem:[%s3567 + $0x2c0] sm:$0xff]
        %v3657 = vld [vmem:[%s3567 + $0x2c8] sm:$0xff]
        %v3658 = vld [vmem:[%s3567 + $0x2d0] sm:$0xff]
        %v3659 = vld [vmem:[%s3567 + $0x2d8] sm:$0xff]
        %v3660 = vld [vmem:[%s3567 + $0x2e0] sm:$0xff]
        %v3661 = vld [vmem:[%s3567 + $0x2e8] sm:$0xff]
        %v3662 = vld [vmem:[%s3567 + $0x2f0] sm:$0xff]
        %v3663 = vld [vmem:[%s3567 + $0x2f8] sm:$0xff]
        %v3664 = vld [vmem:[%s3567 + $0x300] sm:$0xf]
        %v3665 = vld [vmem:[%s3567 + $0x308] sm:$0xf]
        %v3666 = vld [vmem:[%s3567 + $0x310] sm:$0xf]
        %v3667 = vld [vmem:[%s3567 + $0x318] sm:$0xf]
        %v3668 = vld [vmem:[#allocation3] sm:$0x1]
        %v3670 = vlaneseq
        %v3671 = vshrl.u32 %v3670, 7
        %v3672 = vsub.s32 0, %v3671
        %v3673 = vrot.slane %v3668, %v3672
        %3675 = vmatprep.subr.mxu0 0.0
        %3676 = vmatpush1.msra.mxu0 %v273
        %3677 = vmatprep.subr.mxu0 0.0
        %3678 = vmatpush1.msra.mxu0 %v272
        %3679 = vmatprep.subr.mxu0 0.0
        %3680 = vmatpush1.msra.mxu0 %v271
        %3681 = vmatprep.subr.mxu0 0.0
        %3682 = vmatpush1.msra.mxu0 %v270
        %3683 = vmatprep.subr.mxu0 0.0
        %3684 = vmatpush1.msra.mxu0 %v269
        %3685 = vmatprep.subr.mxu0 0.0
        %3686 = vmatpush1.msra.mxu0 %v268
        %3687 = vmatprep.subr.mxu0 0.0
        %3688 = vmatpush1.msra.mxu0 %v267
        %3689 = vmatprep.subr.mxu0 0.0
        %3690 = vmatpush1.msra.mxu0 %v266
        %3691 = vmatprep.subr.mxu0 0.0
        %3692 = vmatpush1.msra.mxu0 %v265
        %3693 = vmatprep.subr.mxu0 0.0
        %3694 = vmatpush1.msra.mxu0 %v264
        %3695 = vmatprep.subr.mxu0 0.0
        %3696 = vmatpush1.msra.mxu0 %v263
        %3697 = vmatprep.subr.mxu0 0.0
        %3698 = vmatpush1.msra.mxu0 %v262
        %3699 = vmatprep.subr.mxu0 0.0
        %3700 = vmatpush1.msra.mxu0 %v261
        %3701 = vmatprep.subr.mxu0 0.0
        %3702 = vmatpush1.msra.mxu0 %v260
        %3703 = vmatprep.subr.mxu0 0.0
        %3704 = vmatpush1.msra.mxu0 %v259
        %3705 = vmatprep.subr.mxu0 0.0
        %3706 = vmatpush1.msra.mxu0 %v258
        %3707 = vmatprep.subr.mxu0 0.0
        %3708 = vmatpush2.msra.mxu0 %v289
        %3709 = vmatprep.subr.mxu0 0.0
        %3710 = vmatpush2.msra.mxu0 %v288
        %3711 = vmatprep.subr.mxu0 0.0
        %3712 = vmatpush2.msra.mxu0 %v287
        %3713 = vmatprep.subr.mxu0 0.0
        %3714 = vmatpush2.msra.mxu0 %v286
        %3715 = vmatprep.subr.mxu0 0.0
        %3716 = vmatpush2.msra.mxu0 %v285
        %3717 = vmatprep.subr.mxu0 0.0
        %3718 = vmatpush2.msra.mxu0 %v284
        %3719 = vmatprep.subr.mxu0 0.0
        %3720 = vmatpush2.msra.mxu0 %v283
        %3721 = vmatprep.subr.mxu0 0.0
        %3722 = vmatpush2.msra.mxu0 %v282
        %3723 = vmatprep.subr.mxu0 0.0
        %3724 = vmatpush2.msra.mxu0 %v281
        %3725 = vmatprep.subr.mxu0 0.0
        %3726 = vmatpush2.msra.mxu0 %v280
        %3727 = vmatprep.subr.mxu0 0.0
        %3728 = vmatpush2.msra.mxu0 %v279
        %3729 = vmatprep.subr.mxu0 0.0
        %3730 = vmatpush2.msra.mxu0 %v278
        %3731 = vmatprep.subr.mxu0 0.0
        %3732 = vmatpush2.msra.mxu0 %v277
        %3733 = vmatprep.subr.mxu0 0.0
        %3734 = vmatpush2.msra.mxu0 %v276
        %3735 = vmatprep.subr.mxu0 0.0
        %3736 = vmatpush2.msra.mxu0 %v275
        %3737 = vmatprep.subr.mxu0 0.0
        %3738 = vmatpush2.msra.mxu0 %v274
        %3739 = vmatprep.mubr.f32.mxu0 %v3569
        %3740 = vmatmul.mubr.f32.gmra.mxu0 %v3568
        %v3741 = vpop.f32.mrf.mxu0
        %v3742 = vadd.f32 %v3673, %v3741
        %v3743 = vpop.f32.mrf.mxu0
        %3744 = vmatprep.mubr.f32.mxu0 %v3573
        %3745 = vmatmul.mubr.f32.gmra.mxu0 %v3572
        %v3746 = vpop.f32.mrf.mxu0
        %v3747 = vadd.f32 %v3673, %v3746
        %v3748 = vpop.f32.mrf.mxu0
        %3749 = vmatprep.mubr.f32.mxu0 %v3577
        %3750 = vmatmul.mubr.f32.gmra.mxu0 %v3576
        %v3751 = vpop.f32.mrf.mxu0
        %v3752 = vadd.f32 %v3673, %v3751
        %v3753 = vpop.f32.mrf.mxu0
        %3754 = vmatprep.mubr.f32.mxu0 %v3581
        %3755 = vmatmul.mubr.f32.gmra.mxu0 %v3580
        %v3756 = vpop.f32.mrf.mxu0
        %v3757 = vadd.f32 %v3673, %v3756
        %v3758 = vpop.f32.mrf.mxu0
        %3759 = vmatprep.mubr.f32.mxu0 %v3585
        %3760 = vmatmul.mubr.f32.gmra.mxu0 %v3584
        %v3761 = vpop.f32.mrf.mxu0
        %v3762 = vadd.f32 %v3673, %v3761
        %v3763 = vpop.f32.mrf.mxu0
        %3764 = vmatprep.mubr.f32.mxu0 %v3589
        %3765 = vmatmul.mubr.f32.gmra.mxu0 %v3588
        %v3766 = vpop.f32.mrf.mxu0
        %v3767 = vadd.f32 %v3673, %v3766
        %v3768 = vpop.f32.mrf.mxu0
        %3769 = vmatprep.mubr.f32.mxu0 %v3593
        %3770 = vmatmul.mubr.f32.gmra.mxu0 %v3592
        %v3771 = vpop.f32.mrf.mxu0
        %v3772 = vadd.f32 %v3673, %v3771
        %v3773 = vpop.f32.mrf.mxu0
        %3774 = vmatprep.mubr.f32.mxu0 %v3597
        %3775 = vmatmul.mubr.f32.gmra.mxu0 %v3596
        %v3776 = vpop.f32.mrf.mxu0
        %v3777 = vadd.f32 %v3673, %v3776
        %v3778 = vpop.f32.mrf.mxu0
        %3779 = vmatprep.mubr.f32.mxu0 %v3601
        %3780 = vmatmul.mubr.f32.gmra.mxu0 %v3600
        %v3781 = vpop.f32.mrf.mxu0
        %v3782 = vadd.f32 %v3673, %v3781
        %v3783 = vpop.f32.mrf.mxu0
        %3784 = vmatprep.mubr.f32.mxu0 %v3605
        %3785 = vmatmul.mubr.f32.gmra.mxu0 %v3604
        %v3786 = vpop.f32.mrf.mxu0
        %v3787 = vadd.f32 %v3673, %v3786
        %v3788 = vpop.f32.mrf.mxu0
        %3789 = vmatprep.mubr.f32.mxu0 %v3609
        %3790 = vmatmul.mubr.f32.gmra.mxu0 %v3608
        %v3791 = vpop.f32.mrf.mxu0
        %v3792 = vadd.f32 %v3673, %v3791
        %v3793 = vpop.f32.mrf.mxu0
        %3794 = vmatprep.mubr.f32.mxu0 %v3613
        %3795 = vmatmul.mubr.f32.gmra.mxu0 %v3612
        %v3796 = vpop.f32.mrf.mxu0
        %v3797 = vadd.f32 %v3673, %v3796
        %v3798 = vpop.f32.mrf.mxu0
        %3799 = vmatprep.mubr.f32.mxu0 %v3617
        %3800 = vmatmul.mubr.f32.gmra.mxu0 %v3616
        %v3801 = vpop.f32.mrf.mxu0
        %v3802 = vadd.f32 %v3673, %v3801
        %v3803 = vpop.f32.mrf.mxu0
        %3804 = vmatprep.mubr.f32.mxu0 %v3621
        %3805 = vmatmul.mubr.f32.gmra.mxu0 %v3620
        %v3806 = vpop.f32.mrf.mxu0
        %v3807 = vadd.f32 %v3673, %v3806
        %v3808 = vpop.f32.mrf.mxu0
        %3809 = vmatprep.mubr.f32.mxu0 %v3625
        %3810 = vmatmul.mubr.f32.gmra.mxu0 %v3624
        %v3811 = vpop.f32.mrf.mxu0
        %v3812 = vadd.f32 %v3673, %v3811
        %v3813 = vpop.f32.mrf.mxu0
        %3814 = vmatprep.mubr.f32.mxu0 %v3629
        %3815 = vmatmul.mubr.f32.gmra.mxu0 %v3628
        %v3816 = vpop.f32.mrf.mxu0
        %v3817 = vadd.f32 %v3673, %v3816
        %v3818 = vpop.f32.mrf.mxu0
        %3819 = vmatprep.mubr.f32.mxu0 %v3633
        %3820 = vmatmul.mubr.f32.gmra.mxu0 %v3632
        %v3821 = vpop.f32.mrf.mxu0
        %v3822 = vadd.f32 %v3673, %v3821
        %v3823 = vpop.f32.mrf.mxu0
        %3824 = vmatprep.mubr.f32.mxu0 %v3637
        %3825 = vmatmul.mubr.f32.gmra.mxu0 %v3636
        %v3826 = vpop.f32.mrf.mxu0
        %v3827 = vadd.f32 %v3673, %v3826
        %v3828 = vpop.f32.mrf.mxu0
        %3829 = vmatprep.mubr.f32.mxu0 %v3641
        %3830 = vmatmul.mubr.f32.gmra.mxu0 %v3640
        %v3831 = vpop.f32.mrf.mxu0
        %v3832 = vadd.f32 %v3673, %v3831
        %v3833 = vpop.f32.mrf.mxu0
        %3834 = vmatprep.mubr.f32.mxu0 %v3645
        %3835 = vmatmul.mubr.f32.gmra.mxu0 %v3644
        %v3836 = vpop.f32.mrf.mxu0
        %v3837 = vadd.f32 %v3673, %v3836
        %v3838 = vpop.f32.mrf.mxu0
        %3839 = vmatprep.mubr.f32.mxu0 %v3649
        %3840 = vmatmul.mubr.f32.gmra.mxu0 %v3648
        %v3841 = vpop.f32.mrf.mxu0
        %v3842 = vadd.f32 %v3673, %v3841
        %v3843 = vpop.f32.mrf.mxu0
        %3844 = vmatprep.mubr.f32.mxu0 %v3653
        %3845 = vmatmul.mubr.f32.gmra.mxu0 %v3652
        %v3846 = vpop.f32.mrf.mxu0
        %v3847 = vadd.f32 %v3673, %v3846
        %v3848 = vpop.f32.mrf.mxu0
        %3849 = vmatprep.mubr.f32.mxu0 %v3657
        %3850 = vmatmul.mubr.f32.gmra.mxu0 %v3656
        %v3851 = vpop.f32.mrf.mxu0
        %v3852 = vadd.f32 %v3673, %v3851
        %v3853 = vpop.f32.mrf.mxu0
        %3854 = vmatprep.mubr.f32.mxu0 %v3661
        %3855 = vmatmul.mubr.f32.gmra.mxu0 %v3660
        %v3856 = vpop.f32.mrf.mxu0
        %v3857 = vadd.f32 %v3673, %v3856
        %v3858 = vpop.f32.mrf.mxu0
        %3859 = vmatprep.mubr.f32.mxu0 %v3665
        %3860 = vmatmul.mubr.f32.gmra.mxu0 %v3664
        %v3861 = vpop.f32.mrf.mxu0
        %v3862 = vadd.f32 %v3673, %v3861
        %v3863 = vpop.f32.mrf.mxu0
        %3864 = vdwg.mxu0
        %3865 = vmatprep.subr.mxu0 0.0
        %3866 = vmatpush1.msra.mxu0 %v305
        %3867 = vmatprep.subr.mxu0 0.0
        %3868 = vmatpush1.msra.mxu0 %v304
        %3869 = vmatprep.subr.mxu0 0.0
        %3870 = vmatpush1.msra.mxu0 %v303
        %3871 = vmatprep.subr.mxu0 0.0
        %3872 = vmatpush1.msra.mxu0 %v302
        %3873 = vmatprep.subr.mxu0 0.0
        %3874 = vmatpush1.msra.mxu0 %v301
        %3875 = vmatprep.subr.mxu0 0.0
        %3876 = vmatpush1.msra.mxu0 %v300
        %3877 = vmatprep.subr.mxu0 0.0
        %3878 = vmatpush1.msra.mxu0 %v299
        %3879 = vmatprep.subr.mxu0 0.0
        %3880 = vmatpush1.msra.mxu0 %v298
        %3881 = vmatprep.subr.mxu0 0.0
        %3882 = vmatpush1.msra.mxu0 %v297
        %3883 = vmatprep.subr.mxu0 0.0
        %3884 = vmatpush1.msra.mxu0 %v296
        %3885 = vmatprep.subr.mxu0 0.0
        %3886 = vmatpush1.msra.mxu0 %v295
        %3887 = vmatprep.subr.mxu0 0.0
        %3888 = vmatpush1.msra.mxu0 %v294
        %3889 = vmatprep.subr.mxu0 0.0
        %3890 = vmatpush1.msra.mxu0 %v293
        %3891 = vmatprep.subr.mxu0 0.0
        %3892 = vmatpush1.msra.mxu0 %v292
        %3893 = vmatprep.subr.mxu0 0.0
        %3894 = vmatpush1.msra.mxu0 %v291
        %3895 = vmatprep.subr.mxu0 0.0
        %3896 = vmatpush1.msra.mxu0 %v290
        %3897 = vmatprep.subr.mxu0 0.0
        %3898 = vmatpush2.msra.mxu0 %v321
        %3899 = vmatprep.subr.mxu0 0.0
        %3900 = vmatpush2.msra.mxu0 %v320
        %3901 = vmatprep.subr.mxu0 0.0
        %3902 = vmatpush2.msra.mxu0 %v319
        %3903 = vmatprep.subr.mxu0 0.0
        %3904 = vmatpush2.msra.mxu0 %v318
        %3905 = vmatprep.subr.mxu0 0.0
        %3906 = vmatpush2.msra.mxu0 %v317
        %3907 = vmatprep.subr.mxu0 0.0
        %3908 = vmatpush2.msra.mxu0 %v316
        %3909 = vmatprep.subr.mxu0 0.0
        %3910 = vmatpush2.msra.mxu0 %v315
        %3911 = vmatprep.subr.mxu0 0.0
        %3912 = vmatpush2.msra.mxu0 %v314
        %3913 = vmatprep.subr.mxu0 0.0
        %3914 = vmatpush2.msra.mxu0 %v313
        %3915 = vmatprep.subr.mxu0 0.0
        %3916 = vmatpush2.msra.mxu0 %v312
        %3917 = vmatprep.subr.mxu0 0.0
        %3918 = vmatpush2.msra.mxu0 %v311
        %3919 = vmatprep.subr.mxu0 0.0
        %3920 = vmatpush2.msra.mxu0 %v310
        %3921 = vmatprep.subr.mxu0 0.0
        %3922 = vmatpush2.msra.mxu0 %v309
        %3923 = vmatprep.subr.mxu0 0.0
        %3924 = vmatpush2.msra.mxu0 %v308
        %3925 = vmatprep.subr.mxu0 0.0
        %3926 = vmatpush2.msra.mxu0 %v307
        %3927 = vmatprep.subr.mxu0 0.0
        %3928 = vmatpush2.msra.mxu0 %v306
        %3929 = vmatprep.mubr.f32.mxu0 %v3571
        %3930 = vmatmul.mubr.f32.gmra.mxu0 %v3570
        %v3931 = vpop.f32.mrf.mxu0
        %v3932 = vadd.f32 %v3742, %v3931
        %v3933 = vpop.f32.mrf.mxu0
        %3934 = vmatprep.mubr.f32.mxu0 %v3575
        %3935 = vmatmul.mubr.f32.gmra.mxu0 %v3574
        %v3936 = vpop.f32.mrf.mxu0
        %v3937 = vadd.f32 %v3747, %v3936
        %v3938 = vpop.f32.mrf.mxu0
        %3939 = vmatprep.mubr.f32.mxu0 %v3579
        %3940 = vmatmul.mubr.f32.gmra.mxu0 %v3578
        %v3941 = vpop.f32.mrf.mxu0
        %v3942 = vadd.f32 %v3752, %v3941
        %v3943 = vpop.f32.mrf.mxu0
        %3944 = vmatprep.mubr.f32.mxu0 %v3583
        %3945 = vmatmul.mubr.f32.gmra.mxu0 %v3582
        %v3946 = vpop.f32.mrf.mxu0
        %v3947 = vadd.f32 %v3757, %v3946
        %v3948 = vpop.f32.mrf.mxu0
        %3949 = vmatprep.mubr.f32.mxu0 %v3587
        %3950 = vmatmul.mubr.f32.gmra.mxu0 %v3586
        %v3951 = vpop.f32.mrf.mxu0
        %v3952 = vadd.f32 %v3762, %v3951
        %v3953 = vpop.f32.mrf.mxu0
        %3954 = vmatprep.mubr.f32.mxu0 %v3591
        %3955 = vmatmul.mubr.f32.gmra.mxu0 %v3590
        %v3956 = vpop.f32.mrf.mxu0
        %v3957 = vadd.f32 %v3767, %v3956
        %v3958 = vpop.f32.mrf.mxu0
        %3959 = vmatprep.mubr.f32.mxu0 %v3595
        %3960 = vmatmul.mubr.f32.gmra.mxu0 %v3594
        %v3961 = vpop.f32.mrf.mxu0
        %v3962 = vadd.f32 %v3772, %v3961
        %v3963 = vpop.f32.mrf.mxu0
        %3964 = vmatprep.mubr.f32.mxu0 %v3599
        %3965 = vmatmul.mubr.f32.gmra.mxu0 %v3598
        %v3966 = vpop.f32.mrf.mxu0
        %v3967 = vadd.f32 %v3777, %v3966
        %v3968 = vpop.f32.mrf.mxu0
        %3969 = vmatprep.mubr.f32.mxu0 %v3603
        %3970 = vmatmul.mubr.f32.gmra.mxu0 %v3602
        %v3971 = vpop.f32.mrf.mxu0
        %v3972 = vadd.f32 %v3782, %v3971
        %v3973 = vpop.f32.mrf.mxu0
        %3974 = vmatprep.mubr.f32.mxu0 %v3607
        %3975 = vmatmul.mubr.f32.gmra.mxu0 %v3606
        %v3976 = vpop.f32.mrf.mxu0
        %v3977 = vadd.f32 %v3787, %v3976
        %v3978 = vpop.f32.mrf.mxu0
        %3979 = vmatprep.mubr.f32.mxu0 %v3611
        %3980 = vmatmul.mubr.f32.gmra.mxu0 %v3610
        %v3981 = vpop.f32.mrf.mxu0
        %v3982 = vadd.f32 %v3792, %v3981
        %v3983 = vpop.f32.mrf.mxu0
        %3984 = vmatprep.mubr.f32.mxu0 %v3615
        %3985 = vmatmul.mubr.f32.gmra.mxu0 %v3614
        %v3986 = vpop.f32.mrf.mxu0
        %v3987 = vadd.f32 %v3797, %v3986
        %v3988 = vpop.f32.mrf.mxu0
        %3989 = vmatprep.mubr.f32.mxu0 %v3619
        %3990 = vmatmul.mubr.f32.gmra.mxu0 %v3618
        %v3991 = vpop.f32.mrf.mxu0
        %v3992 = vadd.f32 %v3802, %v3991
        %v3993 = vpop.f32.mrf.mxu0
        %3994 = vmatprep.mubr.f32.mxu0 %v3623
        %3995 = vmatmul.mubr.f32.gmra.mxu0 %v3622
        %v3996 = vpop.f32.mrf.mxu0
        %v3997 = vadd.f32 %v3807, %v3996
        %v3998 = vpop.f32.mrf.mxu0
        %3999 = vmatprep.mubr.f32.mxu0 %v3627
        %4000 = vmatmul.mubr.f32.gmra.mxu0 %v3626
        %v4001 = vpop.f32.mrf.mxu0
        %v4002 = vadd.f32 %v3812, %v4001
        %v4003 = vpop.f32.mrf.mxu0
        %4004 = vmatprep.mubr.f32.mxu0 %v3631
        %4005 = vmatmul.mubr.f32.gmra.mxu0 %v3630
        %v4006 = vpop.f32.mrf.mxu0
        %v4007 = vadd.f32 %v3817, %v4006
        %v4008 = vpop.f32.mrf.mxu0
        %4009 = vmatprep.mubr.f32.mxu0 %v3635
        %4010 = vmatmul.mubr.f32.gmra.mxu0 %v3634
        %v4011 = vpop.f32.mrf.mxu0
        %v4012 = vadd.f32 %v3822, %v4011
        %v4013 = vpop.f32.mrf.mxu0
        %4014 = vmatprep.mubr.f32.mxu0 %v3639
        %4015 = vmatmul.mubr.f32.gmra.mxu0 %v3638
        %v4016 = vpop.f32.mrf.mxu0
        %v4017 = vadd.f32 %v3827, %v4016
        %v4018 = vpop.f32.mrf.mxu0
        %4019 = vmatprep.mubr.f32.mxu0 %v3643
        %4020 = vmatmul.mubr.f32.gmra.mxu0 %v3642
        %v4021 = vpop.f32.mrf.mxu0
        %v4022 = vadd.f32 %v3832, %v4021
        %v4023 = vpop.f32.mrf.mxu0
        %4024 = vmatprep.mubr.f32.mxu0 %v3647
        %4025 = vmatmul.mubr.f32.gmra.mxu0 %v3646
        %v4026 = vpop.f32.mrf.mxu0
        %v4027 = vadd.f32 %v3837, %v4026
        %v4028 = vpop.f32.mrf.mxu0
        %4029 = vmatprep.mubr.f32.mxu0 %v3651
        %4030 = vmatmul.mubr.f32.gmra.mxu0 %v3650
        %v4031 = vpop.f32.mrf.mxu0
        %v4032 = vadd.f32 %v3842, %v4031
        %v4033 = vpop.f32.mrf.mxu0
        %4034 = vmatprep.mubr.f32.mxu0 %v3655
        %4035 = vmatmul.mubr.f32.gmra.mxu0 %v3654
        %v4036 = vpop.f32.mrf.mxu0
        %v4037 = vadd.f32 %v3847, %v4036
        %v4038 = vpop.f32.mrf.mxu0
        %4039 = vmatprep.mubr.f32.mxu0 %v3659
        %4040 = vmatmul.mubr.f32.gmra.mxu0 %v3658
        %v4041 = vpop.f32.mrf.mxu0
        %v4042 = vadd.f32 %v3852, %v4041
        %v4043 = vpop.f32.mrf.mxu0
        %4044 = vmatprep.mubr.f32.mxu0 %v3663
        %4045 = vmatmul.mubr.f32.gmra.mxu0 %v3662
        %v4046 = vpop.f32.mrf.mxu0
        %v4047 = vadd.f32 %v3857, %v4046
        %v4048 = vpop.f32.mrf.mxu0
        %4049 = vmatprep.mubr.f32.mxu0 %v3667
        %4050 = vmatmul.mubr.f32.gmra.mxu0 %v3666
        %v4051 = vpop.f32.mrf.mxu0
        %v4052 = vadd.f32 %v3862, %v4051
        %v4053 = vpop.f32.mrf.mxu0
        %4054 = vdwg.mxu0
        %v4055 = vsel %vm809, %v3932, -inf
        %v4056 = vsel %vm809, %v3937, -inf
        %v4057 = vsel %vm809, %v3942, -inf
        %v4058 = vsel %vm809, %v3947, -inf
        %v4059 = vsel %vm809, %v3952, -inf
        %v4060 = vmax.f32 %v4055, %v4059
        %v4061 = vsel %vm809, %v3957, -inf
        %v4062 = vmax.f32 %v4056, %v4061
        %v4063 = vsel %vm809, %v3962, -inf
        %v4064 = vmax.f32 %v4057, %v4063
        %v4065 = vsel %vm809, %v3967, -inf
        %v4066 = vmax.f32 %v4058, %v4065
        %v4067 = vsel %vm809, %v3972, -inf
        %v4068 = vmax.f32 %v4060, %v4067
        %v4069 = vsel %vm809, %v3977, -inf
        %v4070 = vmax.f32 %v4062, %v4069
        %v4071 = vsel %vm809, %v3982, -inf
        %v4072 = vmax.f32 %v4064, %v4071
        %v4073 = vsel %vm809, %v3987, -inf
        %v4074 = vmax.f32 %v4066, %v4073
        %v4075 = vsel %vm809, %v3992, -inf
        %v4076 = vmax.f32 %v4068, %v4075
        %v4077 = vsel %vm809, %v3997, -inf
        %v4078 = vmax.f32 %v4070, %v4077
        %v4079 = vsel %vm809, %v4002, -inf
        %v4080 = vmax.f32 %v4072, %v4079
        %v4081 = vsel %vm809, %v4007, -inf
        %v4082 = vmax.f32 %v4074, %v4081
        %v4083 = vsel %vm809, %v4012, -inf
        %v4084 = vmax.f32 %v4076, %v4083
        %v4085 = vsel %vm809, %v4017, -inf
        %v4086 = vmax.f32 %v4078, %v4085
        %v4087 = vsel %vm809, %v4022, -inf
        %v4088 = vmax.f32 %v4080, %v4087
        %v4089 = vsel %vm809, %v4027, -inf
        %v4090 = vmax.f32 %v4082, %v4089
        %v4091 = vsel %vm809, %v4032, -inf
        %v4092 = vmax.f32 %v4084, %v4091
        %v4093 = vsel %vm809, %v4037, -inf
        %v4094 = vmax.f32 %v4086, %v4093
        %v4095 = vsel %vm809, %v4042, -inf
        %v4096 = vmax.f32 %v4088, %v4095
        %v4097 = vsel %vm809, %v4047, -inf
        %v4098 = vmax.f32 %v4090, %v4097
        %v4099 = vsel %vm854, %v4052, -inf
        %v4100 = vmax.f32 %v4092, %v4099
        %v4101 = vmax.f32 %v4100, %v4094
        %v4102 = vmax.f32 %v4096, %v4098
        %v4103 = vmax.f32 %v4101, %v4102
        %v4104 = vrot.slane %v4103, 4
        %v4105 = vmax.f32 %v4103, %v4104
        %v4106 = vrot.slane %v4105, 2
        %v4107 = vmax.f32 %v4105, %v4106
        %v4108 = vrot.slane %v4107, 1
        %v4109 = vmax.f32 %v4107, %v4108
        %v4110 = vsub.f32 %v3932, %v4109
        %v4111 = vsub.f32 %v3937, %v4109
        %v4112 = vsub.f32 %v3942, %v4109
        %v4113 = vsub.f32 %v3947, %v4109
        %v4114 = vsub.f32 %v3952, %v4109
        %v4115 = vsub.f32 %v3957, %v4109
        %v4116 = vsub.f32 %v3962, %v4109
        %v4117 = vsub.f32 %v3967, %v4109
        %v4118 = vsub.f32 %v3972, %v4109
        %v4119 = vsub.f32 %v3977, %v4109
        %v4120 = vsub.f32 %v3982, %v4109
        %v4121 = vsub.f32 %v3987, %v4109
        %v4122 = vsub.f32 %v3992, %v4109
        %v4123 = vsub.f32 %v3997, %v4109
        %v4124 = vsub.f32 %v4002, %v4109
        %v4125 = vsub.f32 %v4007, %v4109
        %v4126 = vsub.f32 %v4012, %v4109
        %v4127 = vsub.f32 %v4017, %v4109
        %v4128 = vsub.f32 %v4022, %v4109
        %v4129 = vsub.f32 %v4027, %v4109
        %v4130 = vsub.f32 %v4032, %v4109
        %v4131 = vsub.f32 %v4037, %v4109
        %v4132 = vsub.f32 %v4042, %v4109
        %v4133 = vsub.f32 %v4047, %v4109
        %v4134 = vsub.f32 %v4052, %v4109
        %v4135 = vmul.f32 %v4110, 1.442695
        %v4136 = vpow.pop %v4135
        %v4137 = vmul.f32 %v4111, 1.442695
        %v4138 = vpow.pop %v4137
        %v4139 = vmul.f32 %v4112, 1.442695
        %v4140 = vpow.pop %v4139
        %v4141 = vmul.f32 %v4113, 1.442695
        %v4142 = vpow.pop %v4141
        %v4143 = vmul.f32 %v4114, 1.442695
        %v4144 = vpow.pop %v4143
        %v4145 = vmul.f32 %v4115, 1.442695
        %v4146 = vpow.pop %v4145
        %v4147 = vmul.f32 %v4116, 1.442695
        %v4148 = vpow.pop %v4147
        %v4149 = vmul.f32 %v4117, 1.442695
        %v4150 = vpow.pop %v4149
        %v4151 = vmul.f32 %v4118, 1.442695
        %v4152 = vpow.pop %v4151
        %v4153 = vmul.f32 %v4119, 1.442695
        %v4154 = vpow.pop %v4153
        %v4155 = vmul.f32 %v4120, 1.442695
        %v4156 = vpow.pop %v4155
        %v4157 = vmul.f32 %v4121, 1.442695
        %v4158 = vpow.pop %v4157
        %v4159 = vmul.f32 %v4122, 1.442695
        %v4160 = vpow.pop %v4159
        %v4161 = vmul.f32 %v4123, 1.442695
        %v4162 = vpow.pop %v4161
        %v4163 = vmul.f32 %v4124, 1.442695
        %v4164 = vpow.pop %v4163
        %v4165 = vmul.f32 %v4125, 1.442695
        %v4166 = vpow.pop %v4165
        %v4167 = vmul.f32 %v4126, 1.442695
        %v4168 = vpow.pop %v4167
        %v4169 = vmul.f32 %v4127, 1.442695
        %v4170 = vpow.pop %v4169
        %v4171 = vmul.f32 %v4128, 1.442695
        %v4172 = vpow.pop %v4171
        %v4173 = vmul.f32 %v4129, 1.442695
        %v4174 = vpow.pop %v4173
        %v4175 = vmul.f32 %v4130, 1.442695
        %v4176 = vpow.pop %v4175
        %v4177 = vmul.f32 %v4131, 1.442695
        %v4178 = vpow.pop %v4177
        %v4179 = vmul.f32 %v4132, 1.442695
        %v4180 = vpow.pop %v4179
        %v4181 = vmul.f32 %v4133, 1.442695
        %v4182 = vpow.pop %v4181
        %v4183 = vmul.f32 %v4134, 1.442695
        %v4184 = vpow.pop %v4183
        %v4185 = vsel %vm809, %v4136, 0.0
        %v4186 = vsel %vm809, %v4138, 0.0
        %v4187 = vadd.f32 %v4185, %v4186
        %v4188 = vsel %vm809, %v4140, 0.0
        %v4189 = vadd.f32 %v4187, %v4188
        %v4190 = vsel %vm809, %v4142, 0.0
        %v4191 = vadd.f32 %v4189, %v4190
        %v4192 = vsel %vm809, %v4144, 0.0
        %v4193 = vadd.f32 %v4191, %v4192
        %v4194 = vsel %vm809, %v4146, 0.0
        %v4195 = vadd.f32 %v4193, %v4194
        %v4196 = vsel %vm809, %v4148, 0.0
        %v4197 = vadd.f32 %v4195, %v4196
        %v4198 = vsel %vm809, %v4150, 0.0
        %v4199 = vadd.f32 %v4197, %v4198
        %v4200 = vsel %vm809, %v4152, 0.0
        %v4201 = vadd.f32 %v4199, %v4200
        %v4202 = vsel %vm809, %v4154, 0.0
        %v4203 = vadd.f32 %v4201, %v4202
        %v4204 = vsel %vm809, %v4156, 0.0
        %v4205 = vadd.f32 %v4203, %v4204
        %v4206 = vsel %vm809, %v4158, 0.0
        %v4207 = vadd.f32 %v4205, %v4206
        %v4208 = vsel %vm809, %v4160, 0.0
        %v4209 = vadd.f32 %v4207, %v4208
        %v4210 = vsel %vm809, %v4162, 0.0
        %v4211 = vadd.f32 %v4209, %v4210
        %v4212 = vsel %vm809, %v4164, 0.0
        %v4213 = vadd.f32 %v4211, %v4212
        %v4214 = vsel %vm809, %v4166, 0.0
        %v4215 = vadd.f32 %v4213, %v4214
        %v4216 = vsel %vm809, %v4168, 0.0
        %v4217 = vadd.f32 %v4215, %v4216
        %v4218 = vsel %vm809, %v4170, 0.0
        %v4219 = vadd.f32 %v4217, %v4218
        %v4220 = vsel %vm809, %v4172, 0.0
        %v4221 = vadd.f32 %v4219, %v4220
        %v4222 = vsel %vm809, %v4174, 0.0
        %v4223 = vadd.f32 %v4221, %v4222
        %v4224 = vsel %vm809, %v4176, 0.0
        %v4225 = vadd.f32 %v4223, %v4224
        %v4226 = vsel %vm809, %v4178, 0.0
        %v4227 = vadd.f32 %v4225, %v4226
        %v4228 = vsel %vm809, %v4180, 0.0
        %v4229 = vadd.f32 %v4227, %v4228
        %v4230 = vsel %vm809, %v4182, 0.0
        %v4231 = vadd.f32 %v4229, %v4230
        %v4232 = vsel %vm854, %v4184, 0.0
        %v4233 = vadd.f32 %v4231, %v4232
        %v4234 = vrot.slane %v4233, 4
        %v4235 = vadd.f32 %v4233, %v4234
        %v4236 = vrot.slane %v4235, 2
        %v4237 = vadd.f32 %v4235, %v4236
        %v4238 = vrot.slane %v4237, 1
        %v4239 = vadd.f32 %v4237, %v4238
        %v4240 = vrcp.pop %v4239
        %v4241 = vmul.f32 %v4136, %v4240
        %v4242 = vmul.f32 %v4138, %v4240
        %v4243 = vmul.f32 %v4140, %v4240
        %v4244 = vmul.f32 %v4142, %v4240
        %v4245 = vmul.f32 %v4144, %v4240
        %v4246 = vmul.f32 %v4146, %v4240
        %v4247 = vmul.f32 %v4148, %v4240
        %v4248 = vmul.f32 %v4150, %v4240
        %v4249 = vmul.f32 %v4152, %v4240
        %v4250 = vmul.f32 %v4154, %v4240
        %v4251 = vmul.f32 %v4156, %v4240
        %v4252 = vmul.f32 %v4158, %v4240
        %v4253 = vmul.f32 %v4160, %v4240
        %v4254 = vmul.f32 %v4162, %v4240
        %v4255 = vmul.f32 %v4164, %v4240
        %v4256 = vmul.f32 %v4166, %v4240
        %v4257 = vmul.f32 %v4168, %v4240
        %v4258 = vmul.f32 %v4170, %v4240
        %v4259 = vmul.f32 %v4172, %v4240
        %v4260 = vmul.f32 %v4174, %v4240
        %v4261 = vmul.f32 %v4176, %v4240
        %v4262 = vmul.f32 %v4178, %v4240
        %v4263 = vmul.f32 %v4180, %v4240
        %v4264 = vmul.f32 %v4182, %v4240
        %v4265 = vmul.f32 %v4184, %v4240
        %4267 = vset.pattern.permute.xlu0 0
        %4268 = vperm.xlu0 %4267, %v4241
        %v4269 = vpop.permute.xlu0 %4268
        %4272 = vset.pattern.permute.xlu0 0
        %4273 = vperm.xlu0 %4272, %v4242
        %v4274 = vpop.permute.xlu0 %4273
        %4277 = vset.pattern.permute.xlu0 0
        %4278 = vperm.xlu0 %4277, %v4243
        %v4279 = vpop.permute.xlu0 %4278
        %4282 = vset.pattern.permute.xlu0 0
        %4283 = vperm.xlu0 %4282, %v4244
        %v4284 = vpop.permute.xlu0 %4283
        %4287 = vset.pattern.permute.xlu0 0
        %4288 = vperm.xlu0 %4287, %v4245
        %v4289 = vpop.permute.xlu0 %4288
        %4292 = vset.pattern.permute.xlu0 0
        %4293 = vperm.xlu0 %4292, %v4246
        %v4294 = vpop.permute.xlu0 %4293
        %4297 = vset.pattern.permute.xlu0 0
        %4298 = vperm.xlu0 %4297, %v4247
        %v4299 = vpop.permute.xlu0 %4298
        %4302 = vset.pattern.permute.xlu0 0
        %4303 = vperm.xlu0 %4302, %v4248
        %v4304 = vpop.permute.xlu0 %4303
        %4307 = vset.pattern.permute.xlu0 0
        %4308 = vperm.xlu0 %4307, %v4249
        %v4309 = vpop.permute.xlu0 %4308
        %4312 = vset.pattern.permute.xlu0 0
        %4313 = vperm.xlu0 %4312, %v4250
        %v4314 = vpop.permute.xlu0 %4313
        %4317 = vset.pattern.permute.xlu0 0
        %4318 = vperm.xlu0 %4317, %v4251
        %v4319 = vpop.permute.xlu0 %4318
        %4322 = vset.pattern.permute.xlu0 0
        %4323 = vperm.xlu0 %4322, %v4252
        %v4324 = vpop.permute.xlu0 %4323
        %4327 = vset.pattern.permute.xlu0 0
        %4328 = vperm.xlu0 %4327, %v4253
        %v4329 = vpop.permute.xlu0 %4328
        %4332 = vset.pattern.permute.xlu0 0
        %4333 = vperm.xlu0 %4332, %v4254
        %v4334 = vpop.permute.xlu0 %4333
        %4337 = vset.pattern.permute.xlu0 0
        %4338 = vperm.xlu0 %4337, %v4255
        %v4339 = vpop.permute.xlu0 %4338
        %4342 = vset.pattern.permute.xlu0 0
        %4343 = vperm.xlu0 %4342, %v4256
        %v4344 = vpop.permute.xlu0 %4343
        %4347 = vset.pattern.permute.xlu0 0
        %4348 = vperm.xlu0 %4347, %v4257
        %v4349 = vpop.permute.xlu0 %4348
        %4352 = vset.pattern.permute.xlu0 0
        %4353 = vperm.xlu0 %4352, %v4258
        %v4354 = vpop.permute.xlu0 %4353
        %4357 = vset.pattern.permute.xlu0 0
        %4358 = vperm.xlu0 %4357, %v4259
        %v4359 = vpop.permute.xlu0 %4358
        %4362 = vset.pattern.permute.xlu0 0
        %4363 = vperm.xlu0 %4362, %v4260
        %v4364 = vpop.permute.xlu0 %4363
        %4367 = vset.pattern.permute.xlu0 0
        %4368 = vperm.xlu0 %4367, %v4261
        %v4369 = vpop.permute.xlu0 %4368
        %4372 = vset.pattern.permute.xlu0 0
        %4373 = vperm.xlu0 %4372, %v4262
        %v4374 = vpop.permute.xlu0 %4373
        %4377 = vset.pattern.permute.xlu0 0
        %4378 = vperm.xlu0 %4377, %v4263
        %v4379 = vpop.permute.xlu0 %4378
        %4382 = vset.pattern.permute.xlu0 0
        %4383 = vperm.xlu0 %4382, %v4264
        %v4384 = vpop.permute.xlu0 %4383
        %4387 = vset.pattern.permute.xlu0 0
        %4388 = vperm.xlu0 %4387, %v4265
        %v4389 = vpop.permute.xlu0 %4388
        %v4391 = vmul.f32 %v3568, %v4269
        %v4392 = vmul.f32 %v3569, %v4269
        %v4393 = vmul.f32 %v3570, %v4269
        %v4394 = vmul.f32 %v3571, %v4269
        %v4395 = vmul.f32 %v3572, %v4274
        %v4396 = vmul.f32 %v3573, %v4274
        %v4397 = vmul.f32 %v3574, %v4274
        %v4398 = vmul.f32 %v3575, %v4274
        %v4399 = vmul.f32 %v3576, %v4279
        %v4400 = vmul.f32 %v3577, %v4279
        %v4401 = vmul.f32 %v3578, %v4279
        %v4402 = vmul.f32 %v3579, %v4279
        %v4403 = vmul.f32 %v3580, %v4284
        %v4404 = vmul.f32 %v3581, %v4284
        %v4405 = vmul.f32 %v3582, %v4284
        %v4406 = vmul.f32 %v3583, %v4284
        %v4407 = vmul.f32 %v3584, %v4289
        %v4408 = vmul.f32 %v3585, %v4289
        %v4409 = vmul.f32 %v3586, %v4289
        %v4410 = vmul.f32 %v3587, %v4289
        %v4411 = vmul.f32 %v3588, %v4294
        %v4412 = vmul.f32 %v3589, %v4294
        %v4413 = vmul.f32 %v3590, %v4294
        %v4414 = vmul.f32 %v3591, %v4294
        %v4415 = vmul.f32 %v3592, %v4299
        %v4416 = vmul.f32 %v3593, %v4299
        %v4417 = vmul.f32 %v3594, %v4299
        %v4418 = vmul.f32 %v3595, %v4299
        %v4419 = vmul.f32 %v3596, %v4304
        %v4420 = vmul.f32 %v3597, %v4304
        %v4421 = vmul.f32 %v3598, %v4304
        %v4422 = vmul.f32 %v3599, %v4304
        %v4423 = vmul.f32 %v3600, %v4309
        %v4424 = vmul.f32 %v3601, %v4309
        %v4425 = vmul.f32 %v3602, %v4309
        %v4426 = vmul.f32 %v3603, %v4309
        %v4427 = vmul.f32 %v3604, %v4314
        %v4428 = vmul.f32 %v3605, %v4314
        %v4429 = vmul.f32 %v3606, %v4314
        %v4430 = vmul.f32 %v3607, %v4314
        %v4431 = vmul.f32 %v3608, %v4319
        %v4432 = vmul.f32 %v3609, %v4319
        %v4433 = vmul.f32 %v3610, %v4319
        %v4434 = vmul.f32 %v3611, %v4319
        %v4435 = vmul.f32 %v3612, %v4324
        %v4436 = vmul.f32 %v3613, %v4324
        %v4437 = vmul.f32 %v3614, %v4324
        %v4438 = vmul.f32 %v3615, %v4324
        %v4439 = vmul.f32 %v3616, %v4329
        %v4440 = vmul.f32 %v3617, %v4329
        %v4441 = vmul.f32 %v3618, %v4329
        %v4442 = vmul.f32 %v3619, %v4329
        %v4443 = vmul.f32 %v3620, %v4334
        %v4444 = vmul.f32 %v3621, %v4334
        %v4445 = vmul.f32 %v3622, %v4334
        %v4446 = vmul.f32 %v3623, %v4334
        %v4447 = vmul.f32 %v3624, %v4339
        %v4448 = vmul.f32 %v3625, %v4339
        %v4449 = vmul.f32 %v3626, %v4339
        %v4450 = vmul.f32 %v3627, %v4339
        %v4451 = vmul.f32 %v3628, %v4344
        %v4452 = vmul.f32 %v3629, %v4344
        %v4453 = vmul.f32 %v3630, %v4344
        %v4454 = vmul.f32 %v3631, %v4344
        %v4455 = vmul.f32 %v3632, %v4349
        %v4456 = vmul.f32 %v3633, %v4349
        %v4457 = vmul.f32 %v3634, %v4349
        %v4458 = vmul.f32 %v3635, %v4349
        %v4459 = vmul.f32 %v3636, %v4354
        %v4460 = vmul.f32 %v3637, %v4354
        %v4461 = vmul.f32 %v3638, %v4354
        %v4462 = vmul.f32 %v3639, %v4354
        %v4463 = vmul.f32 %v3640, %v4359
        %v4464 = vmul.f32 %v3641, %v4359
        %v4465 = vmul.f32 %v3642, %v4359
        %v4466 = vmul.f32 %v3643, %v4359
        %v4467 = vmul.f32 %v3644, %v4364
        %v4468 = vmul.f32 %v3645, %v4364
        %v4469 = vmul.f32 %v3646, %v4364
        %v4470 = vmul.f32 %v3647, %v4364
        %v4471 = vmul.f32 %v3648, %v4369
        %v4472 = vmul.f32 %v3649, %v4369
        %v4473 = vmul.f32 %v3650, %v4369
        %v4474 = vmul.f32 %v3651, %v4369
        %v4475 = vmul.f32 %v3652, %v4374
        %v4476 = vmul.f32 %v3653, %v4374
        %v4477 = vmul.f32 %v3654, %v4374
        %v4478 = vmul.f32 %v3655, %v4374
        %v4479 = vmul.f32 %v3656, %v4379
        %v4480 = vmul.f32 %v3657, %v4379
        %v4481 = vmul.f32 %v3658, %v4379
        %v4482 = vmul.f32 %v3659, %v4379
        %v4483 = vmul.f32 %v3660, %v4384
        %v4484 = vmul.f32 %v3661, %v4384
        %v4485 = vmul.f32 %v3662, %v4384
        %v4486 = vmul.f32 %v3663, %v4384
        %v4487 = vmul.f32 %v3664, %v4389
        %v4488 = vmul.f32 %v3665, %v4389
        %v4489 = vmul.f32 %v3666, %v4389
        %v4490 = vmul.f32 %v3667, %v4389
        %v4491 = vadd.f32 %v4391, %v4395
        %v4492 = vadd.f32 %v4491, %v4399
        %v4493 = vadd.f32 %v4492, %v4403
        %v4494 = vadd.f32 %v4493, %v4407
        %v4495 = vadd.f32 %v4494, %v4411
        %v4496 = vadd.f32 %v4495, %v4415
        %v4497 = vadd.f32 %v4496, %v4419
        %v4498 = vadd.f32 %v4497, %v4423
        %v4499 = vadd.f32 %v4498, %v4427
        %v4500 = vadd.f32 %v4499, %v4431
        %v4501 = vadd.f32 %v4500, %v4435
        %v4502 = vadd.f32 %v4501, %v4439
        %v4503 = vadd.f32 %v4502, %v4443
        %v4504 = vadd.f32 %v4503, %v4447
        %v4505 = vadd.f32 %v4504, %v4451
        %v4506 = vadd.f32 %v4505, %v4455
        %v4507 = vadd.f32 %v4506, %v4459
        %v4508 = vadd.f32 %v4507, %v4463
        %v4509 = vadd.f32 %v4508, %v4467
        %v4510 = vadd.f32 %v4509, %v4471
        %v4511 = vadd.f32 %v4510, %v4475
        %v4512 = vadd.f32 %v4511, %v4479
        %v4513 = vadd.f32 %v4512, %v4483
        %v4514 = vsel %vm1270, %v4487, 0.0
        %v4515 = vadd.f32 %v4513, %v4514
        %v4516 = vrot.slane %v4515, 4
        %v4517 = vadd.f32 %v4515, %v4516
        %v4518 = vrot.slane %v4517, 2
        %v4519 = vadd.f32 %v4517, %v4518
        %v4520 = vrot.slane %v4519, 1
        %v4521 = vadd.f32 %v4519, %v4520
        %v4522 = vadd.f32 %v4392, %v4396
        %v4523 = vadd.f32 %v4522, %v4400
        %v4524 = vadd.f32 %v4523, %v4404
        %v4525 = vadd.f32 %v4524, %v4408
        %v4526 = vadd.f32 %v4525, %v4412
        %v4527 = vadd.f32 %v4526, %v4416
        %v4528 = vadd.f32 %v4527, %v4420
        %v4529 = vadd.f32 %v4528, %v4424
        %v4530 = vadd.f32 %v4529, %v4428
        %v4531 = vadd.f32 %v4530, %v4432
        %v4532 = vadd.f32 %v4531, %v4436
        %v4533 = vadd.f32 %v4532, %v4440
        %v4534 = vadd.f32 %v4533, %v4444
        %v4535 = vadd.f32 %v4534, %v4448
        %v4536 = vadd.f32 %v4535, %v4452
        %v4537 = vadd.f32 %v4536, %v4456
        %v4538 = vadd.f32 %v4537, %v4460
        %v4539 = vadd.f32 %v4538, %v4464
        %v4540 = vadd.f32 %v4539, %v4468
        %v4541 = vadd.f32 %v4540, %v4472
        %v4542 = vadd.f32 %v4541, %v4476
        %v4543 = vadd.f32 %v4542, %v4480
        %v4544 = vadd.f32 %v4543, %v4484
        %v4545 = vsel %vm1270, %v4488, 0.0
        %v4546 = vadd.f32 %v4544, %v4545
        %v4547 = vrot.slane %v4546, 4
        %v4548 = vadd.f32 %v4546, %v4547
        %v4549 = vrot.slane %v4548, 2
        %v4550 = vadd.f32 %v4548, %v4549
        %v4551 = vrot.slane %v4550, 1
        %v4552 = vadd.f32 %v4550, %v4551
        %v4553 = vadd.f32 %v4393, %v4397
        %v4554 = vadd.f32 %v4553, %v4401
        %v4555 = vadd.f32 %v4554, %v4405
        %v4556 = vadd.f32 %v4555, %v4409
        %v4557 = vadd.f32 %v4556, %v4413
        %v4558 = vadd.f32 %v4557, %v4417
        %v4559 = vadd.f32 %v4558, %v4421
        %v4560 = vadd.f32 %v4559, %v4425
        %v4561 = vadd.f32 %v4560, %v4429
        %v4562 = vadd.f32 %v4561, %v4433
        %v4563 = vadd.f32 %v4562, %v4437
        %v4564 = vadd.f32 %v4563, %v4441
        %v4565 = vadd.f32 %v4564, %v4445
        %v4566 = vadd.f32 %v4565, %v4449
        %v4567 = vadd.f32 %v4566, %v4453
        %v4568 = vadd.f32 %v4567, %v4457
        %v4569 = vadd.f32 %v4568, %v4461
        %v4570 = vadd.f32 %v4569, %v4465
        %v4571 = vadd.f32 %v4570, %v4469
        %v4572 = vadd.f32 %v4571, %v4473
        %v4573 = vadd.f32 %v4572, %v4477
        %v4574 = vadd.f32 %v4573, %v4481
        %v4575 = vadd.f32 %v4574, %v4485
        %v4576 = vsel %vm1270, %v4489, 0.0
        %v4577 = vadd.f32 %v4575, %v4576
        %v4578 = vrot.slane %v4577, 4
        %v4579 = vadd.f32 %v4577, %v4578
        %v4580 = vrot.slane %v4579, 2
        %v4581 = vadd.f32 %v4579, %v4580
        %v4582 = vrot.slane %v4581, 1
        %v4583 = vadd.f32 %v4581, %v4582
        %v4584 = vadd.f32 %v4394, %v4398
        %v4585 = vadd.f32 %v4584, %v4402
        %v4586 = vadd.f32 %v4585, %v4406
        %v4587 = vadd.f32 %v4586, %v4410
        %v4588 = vadd.f32 %v4587, %v4414
        %v4589 = vadd.f32 %v4588, %v4418
        %v4590 = vadd.f32 %v4589, %v4422
        %v4591 = vadd.f32 %v4590, %v4426
        %v4592 = vadd.f32 %v4591, %v4430
        %v4593 = vadd.f32 %v4592, %v4434
        %v4594 = vadd.f32 %v4593, %v4438
        %v4595 = vadd.f32 %v4594, %v4442
        %v4596 = vadd.f32 %v4595, %v4446
        %v4597 = vadd.f32 %v4596, %v4450
        %v4598 = vadd.f32 %v4597, %v4454
        %v4599 = vadd.f32 %v4598, %v4458
        %v4600 = vadd.f32 %v4599, %v4462
        %v4601 = vadd.f32 %v4600, %v4466
        %v4602 = vadd.f32 %v4601, %v4470
        %v4603 = vadd.f32 %v4602, %v4474
        %v4604 = vadd.f32 %v4603, %v4478
        %v4605 = vadd.f32 %v4604, %v4482
        %v4606 = vadd.f32 %v4605, %v4486
        %v4607 = vsel %vm1270, %v4490, 0.0
        %v4608 = vadd.f32 %v4606, %v4607
        %v4609 = vrot.slane %v4608, 4
        %v4610 = vadd.f32 %v4608, %v4609
        %v4611 = vrot.slane %v4610, 2
        %v4612 = vadd.f32 %v4610, %v4611
        %v4613 = vrot.slane %v4612, 1
        %v4614 = vadd.f32 %v4612, %v4613
        %v4619 = vcombine.low %v4521, %v4552
        %v4620 = vcombine.low %v4583, %v4614
        %v4622 = vunpack.c.l.s4 1966171168
        %v4623 = vunpack.c.0.s8 %v4622
        %v4624 = vlaneseq
        %v4625 = vshrl.u32 %v4624, 7
        %v4626 = vsub.s32 %v4623, %v4625
        %v4627 = vrot.slane %v4619, %v4626
        %v4629 = vunpack.c.l.s4 1966171168
        %v4630 = vunpack.c.0.s8 %v4629
        %v4631 = vlaneseq
        %v4632 = vshrl.u32 %v4631, 7
        %v4633 = vsub.s32 %v4630, %v4632
        %v4634 = vrot.slane %v4620, %v4633
        %v4635 = vcombine.low %v4627, %v4634
        %v4637 = vunpack.c.l.s4 1966171168
        %v4638 = vunpack.c.0.s8 %v4637
        %v4639 = vlaneseq
        %v4640 = vshrl.u32 %v4639, 7
        %v4641 = vsub.s32 %v4638, %v4640
        %v4642 = vrot.slane %v4635, %v4641
        %s4644 = scalar_lea.vmem [#allocation2], 3
        %4645 = vst.msk [vmem:[%s4644] ss:$8 sm:$0xf] %vm1404, %v4642
        %4646 = vst.msk [vmem:[%s4644] ss:$8 sm:$0x0] %vm1404, %v4642
        %s4647 = scalar_lea.vmem %s256, 3200
        %v4648 = vld [vmem:[%s4647] sm:$0xff]
        %v4649 = vld [vmem:[%s4647 + $0x8] sm:$0xff]
        %v4650 = vld [vmem:[%s4647 + $0x10] sm:$0xff]
        %v4651 = vld [vmem:[%s4647 + $0x18] sm:$0xff]
        %v4652 = vld [vmem:[%s4647 + $0x20] sm:$0xff]
        %v4653 = vld [vmem:[%s4647 + $0x28] sm:$0xff]
        %v4654 = vld [vmem:[%s4647 + $0x30] sm:$0xff]
        %v4655 = vld [vmem:[%s4647 + $0x38] sm:$0xff]
        %v4656 = vld [vmem:[%s4647 + $0x40] sm:$0xff]
        %v4657 = vld [vmem:[%s4647 + $0x48] sm:$0xff]
        %v4658 = vld [vmem:[%s4647 + $0x50] sm:$0xff]
        %v4659 = vld [vmem:[%s4647 + $0x58] sm:$0xff]
        %v4660 = vld [vmem:[%s4647 + $0x60] sm:$0xff]
        %v4661 = vld [vmem:[%s4647 + $0x68] sm:$0xff]
        %v4662 = vld [vmem:[%s4647 + $0x70] sm:$0xff]
        %v4663 = vld [vmem:[%s4647 + $0x78] sm:$0xff]
        %v4664 = vld [vmem:[%s4647 + $0x80] sm:$0xff]
        %v4665 = vld [vmem:[%s4647 + $0x88] sm:$0xff]
        %v4666 = vld [vmem:[%s4647 + $0x90] sm:$0xff]
        %v4667 = vld [vmem:[%s4647 + $0x98] sm:$0xff]
        %v4668 = vld [vmem:[%s4647 + $0xa0] sm:$0xff]
        %v4669 = vld [vmem:[%s4647 + $0xa8] sm:$0xff]
        %v4670 = vld [vmem:[%s4647 + $0xb0] sm:$0xff]
        %v4671 = vld [vmem:[%s4647 + $0xb8] sm:$0xff]
        %v4672 = vld [vmem:[%s4647 + $0xc0] sm:$0xff]
        %v4673 = vld [vmem:[%s4647 + $0xc8] sm:$0xff]
        %v4674 = vld [vmem:[%s4647 + $0xd0] sm:$0xff]
        %v4675 = vld [vmem:[%s4647 + $0xd8] sm:$0xff]
        %v4676 = vld [vmem:[%s4647 + $0xe0] sm:$0xff]
        %v4677 = vld [vmem:[%s4647 + $0xe8] sm:$0xff]
        %v4678 = vld [vmem:[%s4647 + $0xf0] sm:$0xff]
        %v4679 = vld [vmem:[%s4647 + $0xf8] sm:$0xff]
        %v4680 = vld [vmem:[%s4647 + $0x100] sm:$0xff]
        %v4681 = vld [vmem:[%s4647 + $0x108] sm:$0xff]
        %v4682 = vld [vmem:[%s4647 + $0x110] sm:$0xff]
        %v4683 = vld [vmem:[%s4647 + $0x118] sm:$0xff]
        %v4684 = vld [vmem:[%s4647 + $0x120] sm:$0xff]
        %v4685 = vld [vmem:[%s4647 + $0x128] sm:$0xff]
        %v4686 = vld [vmem:[%s4647 + $0x130] sm:$0xff]
        %v4687 = vld [vmem:[%s4647 + $0x138] sm:$0xff]
        %v4688 = vld [vmem:[%s4647 + $0x140] sm:$0xff]
        %v4689 = vld [vmem:[%s4647 + $0x148] sm:$0xff]
        %v4690 = vld [vmem:[%s4647 + $0x150] sm:$0xff]
        %v4691 = vld [vmem:[%s4647 + $0x158] sm:$0xff]
        %v4692 = vld [vmem:[%s4647 + $0x160] sm:$0xff]
        %v4693 = vld [vmem:[%s4647 + $0x168] sm:$0xff]
        %v4694 = vld [vmem:[%s4647 + $0x170] sm:$0xff]
        %v4695 = vld [vmem:[%s4647 + $0x178] sm:$0xff]
        %v4696 = vld [vmem:[%s4647 + $0x180] sm:$0xff]
        %v4697 = vld [vmem:[%s4647 + $0x188] sm:$0xff]
        %v4698 = vld [vmem:[%s4647 + $0x190] sm:$0xff]
        %v4699 = vld [vmem:[%s4647 + $0x198] sm:$0xff]
        %v4700 = vld [vmem:[%s4647 + $0x1a0] sm:$0xff]
        %v4701 = vld [vmem:[%s4647 + $0x1a8] sm:$0xff]
        %v4702 = vld [vmem:[%s4647 + $0x1b0] sm:$0xff]
        %v4703 = vld [vmem:[%s4647 + $0x1b8] sm:$0xff]
        %v4704 = vld [vmem:[%s4647 + $0x1c0] sm:$0xff]
        %v4705 = vld [vmem:[%s4647 + $0x1c8] sm:$0xff]
        %v4706 = vld [vmem:[%s4647 + $0x1d0] sm:$0xff]
        %v4707 = vld [vmem:[%s4647 + $0x1d8] sm:$0xff]
        %v4708 = vld [vmem:[%s4647 + $0x1e0] sm:$0xff]
        %v4709 = vld [vmem:[%s4647 + $0x1e8] sm:$0xff]
        %v4710 = vld [vmem:[%s4647 + $0x1f0] sm:$0xff]
        %v4711 = vld [vmem:[%s4647 + $0x1f8] sm:$0xff]
        %v4712 = vld [vmem:[%s4647 + $0x200] sm:$0xff]
        %v4713 = vld [vmem:[%s4647 + $0x208] sm:$0xff]
        %v4714 = vld [vmem:[%s4647 + $0x210] sm:$0xff]
        %v4715 = vld [vmem:[%s4647 + $0x218] sm:$0xff]
        %v4716 = vld [vmem:[%s4647 + $0x220] sm:$0xff]
        %v4717 = vld [vmem:[%s4647 + $0x228] sm:$0xff]
        %v4718 = vld [vmem:[%s4647 + $0x230] sm:$0xff]
        %v4719 = vld [vmem:[%s4647 + $0x238] sm:$0xff]
        %v4720 = vld [vmem:[%s4647 + $0x240] sm:$0xff]
        %v4721 = vld [vmem:[%s4647 + $0x248] sm:$0xff]
        %v4722 = vld [vmem:[%s4647 + $0x250] sm:$0xff]
        %v4723 = vld [vmem:[%s4647 + $0x258] sm:$0xff]
        %v4724 = vld [vmem:[%s4647 + $0x260] sm:$0xff]
        %v4725 = vld [vmem:[%s4647 + $0x268] sm:$0xff]
        %v4726 = vld [vmem:[%s4647 + $0x270] sm:$0xff]
        %v4727 = vld [vmem:[%s4647 + $0x278] sm:$0xff]
        %v4728 = vld [vmem:[%s4647 + $0x280] sm:$0xff]
        %v4729 = vld [vmem:[%s4647 + $0x288] sm:$0xff]
        %v4730 = vld [vmem:[%s4647 + $0x290] sm:$0xff]
        %v4731 = vld [vmem:[%s4647 + $0x298] sm:$0xff]
        %v4732 = vld [vmem:[%s4647 + $0x2a0] sm:$0xff]
        %v4733 = vld [vmem:[%s4647 + $0x2a8] sm:$0xff]
        %v4734 = vld [vmem:[%s4647 + $0x2b0] sm:$0xff]
        %v4735 = vld [vmem:[%s4647 + $0x2b8] sm:$0xff]
        %v4736 = vld [vmem:[%s4647 + $0x2c0] sm:$0xff]
        %v4737 = vld [vmem:[%s4647 + $0x2c8] sm:$0xff]
        %v4738 = vld [vmem:[%s4647 + $0x2d0] sm:$0xff]
        %v4739 = vld [vmem:[%s4647 + $0x2d8] sm:$0xff]
        %v4740 = vld [vmem:[%s4647 + $0x2e0] sm:$0xff]
        %v4741 = vld [vmem:[%s4647 + $0x2e8] sm:$0xff]
        %v4742 = vld [vmem:[%s4647 + $0x2f0] sm:$0xff]
        %v4743 = vld [vmem:[%s4647 + $0x2f8] sm:$0xff]
        %v4744 = vld [vmem:[%s4647 + $0x300] sm:$0xf]
        %v4745 = vld [vmem:[%s4647 + $0x308] sm:$0xf]
        %v4746 = vld [vmem:[%s4647 + $0x310] sm:$0xf]
        %v4747 = vld [vmem:[%s4647 + $0x318] sm:$0xf]
        %v4748 = vld [vmem:[#allocation3] sm:$0x1]
        %v4750 = vlaneseq
        %v4751 = vshrl.u32 %v4750, 7
        %v4752 = vsub.s32 0, %v4751
        %v4753 = vrot.slane %v4748, %v4752
        %4755 = vmatprep.subr.mxu0 0.0
        %4756 = vmatpush1.msra.mxu0 %v273
        %4757 = vmatprep.subr.mxu0 0.0
        %4758 = vmatpush1.msra.mxu0 %v272
        %4759 = vmatprep.subr.mxu0 0.0
        %4760 = vmatpush1.msra.mxu0 %v271
        %4761 = vmatprep.subr.mxu0 0.0
        %4762 = vmatpush1.msra.mxu0 %v270
        %4763 = vmatprep.subr.mxu0 0.0
        %4764 = vmatpush1.msra.mxu0 %v269
        %4765 = vmatprep.subr.mxu0 0.0
        %4766 = vmatpush1.msra.mxu0 %v268
        %4767 = vmatprep.subr.mxu0 0.0
        %4768 = vmatpush1.msra.mxu0 %v267
        %4769 = vmatprep.subr.mxu0 0.0
        %4770 = vmatpush1.msra.mxu0 %v266
        %4771 = vmatprep.subr.mxu0 0.0
        %4772 = vmatpush1.msra.mxu0 %v265
        %4773 = vmatprep.subr.mxu0 0.0
        %4774 = vmatpush1.msra.mxu0 %v264
        %4775 = vmatprep.subr.mxu0 0.0
        %4776 = vmatpush1.msra.mxu0 %v263
        %4777 = vmatprep.subr.mxu0 0.0
        %4778 = vmatpush1.msra.mxu0 %v262
        %4779 = vmatprep.subr.mxu0 0.0
        %4780 = vmatpush1.msra.mxu0 %v261
        %4781 = vmatprep.subr.mxu0 0.0
        %4782 = vmatpush1.msra.mxu0 %v260
        %4783 = vmatprep.subr.mxu0 0.0
        %4784 = vmatpush1.msra.mxu0 %v259
        %4785 = vmatprep.subr.mxu0 0.0
        %4786 = vmatpush1.msra.mxu0 %v258
        %4787 = vmatprep.subr.mxu0 0.0
        %4788 = vmatpush2.msra.mxu0 %v289
        %4789 = vmatprep.subr.mxu0 0.0
        %4790 = vmatpush2.msra.mxu0 %v288
        %4791 = vmatprep.subr.mxu0 0.0
        %4792 = vmatpush2.msra.mxu0 %v287
        %4793 = vmatprep.subr.mxu0 0.0
        %4794 = vmatpush2.msra.mxu0 %v286
        %4795 = vmatprep.subr.mxu0 0.0
        %4796 = vmatpush2.msra.mxu0 %v285
        %4797 = vmatprep.subr.mxu0 0.0
        %4798 = vmatpush2.msra.mxu0 %v284
        %4799 = vmatprep.subr.mxu0 0.0
        %4800 = vmatpush2.msra.mxu0 %v283
        %4801 = vmatprep.subr.mxu0 0.0
        %4802 = vmatpush2.msra.mxu0 %v282
        %4803 = vmatprep.subr.mxu0 0.0
        %4804 = vmatpush2.msra.mxu0 %v281
        %4805 = vmatprep.subr.mxu0 0.0
        %4806 = vmatpush2.msra.mxu0 %v280
        %4807 = vmatprep.subr.mxu0 0.0
        %4808 = vmatpush2.msra.mxu0 %v279
        %4809 = vmatprep.subr.mxu0 0.0
        %4810 = vmatpush2.msra.mxu0 %v278
        %4811 = vmatprep.subr.mxu0 0.0
        %4812 = vmatpush2.msra.mxu0 %v277
        %4813 = vmatprep.subr.mxu0 0.0
        %4814 = vmatpush2.msra.mxu0 %v276
        %4815 = vmatprep.subr.mxu0 0.0
        %4816 = vmatpush2.msra.mxu0 %v275
        %4817 = vmatprep.subr.mxu0 0.0
        %4818 = vmatpush2.msra.mxu0 %v274
        %4819 = vmatprep.mubr.f32.mxu0 %v4649
        %4820 = vmatmul.mubr.f32.gmra.mxu0 %v4648
        %v4821 = vpop.f32.mrf.mxu0
        %v4822 = vadd.f32 %v4753, %v4821
        %v4823 = vpop.f32.mrf.mxu0
        %4824 = vmatprep.mubr.f32.mxu0 %v4653
        %4825 = vmatmul.mubr.f32.gmra.mxu0 %v4652
        %v4826 = vpop.f32.mrf.mxu0
        %v4827 = vadd.f32 %v4753, %v4826
        %v4828 = vpop.f32.mrf.mxu0
        %4829 = vmatprep.mubr.f32.mxu0 %v4657
        %4830 = vmatmul.mubr.f32.gmra.mxu0 %v4656
        %v4831 = vpop.f32.mrf.mxu0
        %v4832 = vadd.f32 %v4753, %v4831
        %v4833 = vpop.f32.mrf.mxu0
        %4834 = vmatprep.mubr.f32.mxu0 %v4661
        %4835 = vmatmul.mubr.f32.gmra.mxu0 %v4660
        %v4836 = vpop.f32.mrf.mxu0
        %v4837 = vadd.f32 %v4753, %v4836
        %v4838 = vpop.f32.mrf.mxu0
        %4839 = vmatprep.mubr.f32.mxu0 %v4665
        %4840 = vmatmul.mubr.f32.gmra.mxu0 %v4664
        %v4841 = vpop.f32.mrf.mxu0
        %v4842 = vadd.f32 %v4753, %v4841
        %v4843 = vpop.f32.mrf.mxu0
        %4844 = vmatprep.mubr.f32.mxu0 %v4669
        %4845 = vmatmul.mubr.f32.gmra.mxu0 %v4668
        %v4846 = vpop.f32.mrf.mxu0
        %v4847 = vadd.f32 %v4753, %v4846
        %v4848 = vpop.f32.mrf.mxu0
        %4849 = vmatprep.mubr.f32.mxu0 %v4673
        %4850 = vmatmul.mubr.f32.gmra.mxu0 %v4672
        %v4851 = vpop.f32.mrf.mxu0
        %v4852 = vadd.f32 %v4753, %v4851
        %v4853 = vpop.f32.mrf.mxu0
        %4854 = vmatprep.mubr.f32.mxu0 %v4677
        %4855 = vmatmul.mubr.f32.gmra.mxu0 %v4676
        %v4856 = vpop.f32.mrf.mxu0
        %v4857 = vadd.f32 %v4753, %v4856
        %v4858 = vpop.f32.mrf.mxu0
        %4859 = vmatprep.mubr.f32.mxu0 %v4681
        %4860 = vmatmul.mubr.f32.gmra.mxu0 %v4680
        %v4861 = vpop.f32.mrf.mxu0
        %v4862 = vadd.f32 %v4753, %v4861
        %v4863 = vpop.f32.mrf.mxu0
        %4864 = vmatprep.mubr.f32.mxu0 %v4685
        %4865 = vmatmul.mubr.f32.gmra.mxu0 %v4684
        %v4866 = vpop.f32.mrf.mxu0
        %v4867 = vadd.f32 %v4753, %v4866
        %v4868 = vpop.f32.mrf.mxu0
        %4869 = vmatprep.mubr.f32.mxu0 %v4689
        %4870 = vmatmul.mubr.f32.gmra.mxu0 %v4688
        %v4871 = vpop.f32.mrf.mxu0
        %v4872 = vadd.f32 %v4753, %v4871
        %v4873 = vpop.f32.mrf.mxu0
        %4874 = vmatprep.mubr.f32.mxu0 %v4693
        %4875 = vmatmul.mubr.f32.gmra.mxu0 %v4692
        %v4876 = vpop.f32.mrf.mxu0
        %v4877 = vadd.f32 %v4753, %v4876
        %v4878 = vpop.f32.mrf.mxu0
        %4879 = vmatprep.mubr.f32.mxu0 %v4697
        %4880 = vmatmul.mubr.f32.gmra.mxu0 %v4696
        %v4881 = vpop.f32.mrf.mxu0
        %v4882 = vadd.f32 %v4753, %v4881
        %v4883 = vpop.f32.mrf.mxu0
        %4884 = vmatprep.mubr.f32.mxu0 %v4701
        %4885 = vmatmul.mubr.f32.gmra.mxu0 %v4700
        %v4886 = vpop.f32.mrf.mxu0
        %v4887 = vadd.f32 %v4753, %v4886
        %v4888 = vpop.f32.mrf.mxu0
        %4889 = vmatprep.mubr.f32.mxu0 %v4705
        %4890 = vmatmul.mubr.f32.gmra.mxu0 %v4704
        %v4891 = vpop.f32.mrf.mxu0
        %v4892 = vadd.f32 %v4753, %v4891
        %v4893 = vpop.f32.mrf.mxu0
        %4894 = vmatprep.mubr.f32.mxu0 %v4709
        %4895 = vmatmul.mubr.f32.gmra.mxu0 %v4708
        %v4896 = vpop.f32.mrf.mxu0
        %v4897 = vadd.f32 %v4753, %v4896
        %v4898 = vpop.f32.mrf.mxu0
        %4899 = vmatprep.mubr.f32.mxu0 %v4713
        %4900 = vmatmul.mubr.f32.gmra.mxu0 %v4712
        %v4901 = vpop.f32.mrf.mxu0
        %v4902 = vadd.f32 %v4753, %v4901
        %v4903 = vpop.f32.mrf.mxu0
        %4904 = vmatprep.mubr.f32.mxu0 %v4717
        %4905 = vmatmul.mubr.f32.gmra.mxu0 %v4716
        %v4906 = vpop.f32.mrf.mxu0
        %v4907 = vadd.f32 %v4753, %v4906
        %v4908 = vpop.f32.mrf.mxu0
        %4909 = vmatprep.mubr.f32.mxu0 %v4721
        %4910 = vmatmul.mubr.f32.gmra.mxu0 %v4720
        %v4911 = vpop.f32.mrf.mxu0
        %v4912 = vadd.f32 %v4753, %v4911
        %v4913 = vpop.f32.mrf.mxu0
        %4914 = vmatprep.mubr.f32.mxu0 %v4725
        %4915 = vmatmul.mubr.f32.gmra.mxu0 %v4724
        %v4916 = vpop.f32.mrf.mxu0
        %v4917 = vadd.f32 %v4753, %v4916
        %v4918 = vpop.f32.mrf.mxu0
        %4919 = vmatprep.mubr.f32.mxu0 %v4729
        %4920 = vmatmul.mubr.f32.gmra.mxu0 %v4728
        %v4921 = vpop.f32.mrf.mxu0
        %v4922 = vadd.f32 %v4753, %v4921
        %v4923 = vpop.f32.mrf.mxu0
        %4924 = vmatprep.mubr.f32.mxu0 %v4733
        %4925 = vmatmul.mubr.f32.gmra.mxu0 %v4732
        %v4926 = vpop.f32.mrf.mxu0
        %v4927 = vadd.f32 %v4753, %v4926
        %v4928 = vpop.f32.mrf.mxu0
        %4929 = vmatprep.mubr.f32.mxu0 %v4737
        %4930 = vmatmul.mubr.f32.gmra.mxu0 %v4736
        %v4931 = vpop.f32.mrf.mxu0
        %v4932 = vadd.f32 %v4753, %v4931
        %v4933 = vpop.f32.mrf.mxu0
        %4934 = vmatprep.mubr.f32.mxu0 %v4741
        %4935 = vmatmul.mubr.f32.gmra.mxu0 %v4740
        %v4936 = vpop.f32.mrf.mxu0
        %v4937 = vadd.f32 %v4753, %v4936
        %v4938 = vpop.f32.mrf.mxu0
        %4939 = vmatprep.mubr.f32.mxu0 %v4745
        %4940 = vmatmul.mubr.f32.gmra.mxu0 %v4744
        %v4941 = vpop.f32.mrf.mxu0
        %v4942 = vadd.f32 %v4753, %v4941
        %v4943 = vpop.f32.mrf.mxu0
        %4944 = vdwg.mxu0
        %4945 = vmatprep.subr.mxu0 0.0
        %4946 = vmatpush1.msra.mxu0 %v305
        %4947 = vmatprep.subr.mxu0 0.0
        %4948 = vmatpush1.msra.mxu0 %v304
        %4949 = vmatprep.subr.mxu0 0.0
        %4950 = vmatpush1.msra.mxu0 %v303
        %4951 = vmatprep.subr.mxu0 0.0
        %4952 = vmatpush1.msra.mxu0 %v302
        %4953 = vmatprep.subr.mxu0 0.0
        %4954 = vmatpush1.msra.mxu0 %v301
        %4955 = vmatprep.subr.mxu0 0.0
        %4956 = vmatpush1.msra.mxu0 %v300
        %4957 = vmatprep.subr.mxu0 0.0
        %4958 = vmatpush1.msra.mxu0 %v299
        %4959 = vmatprep.subr.mxu0 0.0
        %4960 = vmatpush1.msra.mxu0 %v298
        %4961 = vmatprep.subr.mxu0 0.0
        %4962 = vmatpush1.msra.mxu0 %v297
        %4963 = vmatprep.subr.mxu0 0.0
        %4964 = vmatpush1.msra.mxu0 %v296
        %4965 = vmatprep.subr.mxu0 0.0
        %4966 = vmatpush1.msra.mxu0 %v295
        %4967 = vmatprep.subr.mxu0 0.0
        %4968 = vmatpush1.msra.mxu0 %v294
        %4969 = vmatprep.subr.mxu0 0.0
        %4970 = vmatpush1.msra.mxu0 %v293
        %4971 = vmatprep.subr.mxu0 0.0
        %4972 = vmatpush1.msra.mxu0 %v292
        %4973 = vmatprep.subr.mxu0 0.0
        %4974 = vmatpush1.msra.mxu0 %v291
        %4975 = vmatprep.subr.mxu0 0.0
        %4976 = vmatpush1.msra.mxu0 %v290
        %4977 = vmatprep.subr.mxu0 0.0
        %4978 = vmatpush2.msra.mxu0 %v321
        %4979 = vmatprep.subr.mxu0 0.0
        %4980 = vmatpush2.msra.mxu0 %v320
        %4981 = vmatprep.subr.mxu0 0.0
        %4982 = vmatpush2.msra.mxu0 %v319
        %4983 = vmatprep.subr.mxu0 0.0
        %4984 = vmatpush2.msra.mxu0 %v318
        %4985 = vmatprep.subr.mxu0 0.0
        %4986 = vmatpush2.msra.mxu0 %v317
        %4987 = vmatprep.subr.mxu0 0.0
        %4988 = vmatpush2.msra.mxu0 %v316
        %4989 = vmatprep.subr.mxu0 0.0
        %4990 = vmatpush2.msra.mxu0 %v315
        %4991 = vmatprep.subr.mxu0 0.0
        %4992 = vmatpush2.msra.mxu0 %v314
        %4993 = vmatprep.subr.mxu0 0.0
        %4994 = vmatpush2.msra.mxu0 %v313
        %4995 = vmatprep.subr.mxu0 0.0
        %4996 = vmatpush2.msra.mxu0 %v312
        %4997 = vmatprep.subr.mxu0 0.0
        %4998 = vmatpush2.msra.mxu0 %v311
        %4999 = vmatprep.subr.mxu0 0.0
        %5000 = vmatpush2.msra.mxu0 %v310
        %5001 = vmatprep.subr.mxu0 0.0
        %5002 = vmatpush2.msra.mxu0 %v309
        %5003 = vmatprep.subr.mxu0 0.0
        %5004 = vmatpush2.msra.mxu0 %v308
        %5005 = vmatprep.subr.mxu0 0.0
        %5006 = vmatpush2.msra.mxu0 %v307
        %5007 = vmatprep.subr.mxu0 0.0
        %5008 = vmatpush2.msra.mxu0 %v306
        %5009 = vmatprep.mubr.f32.mxu0 %v4651
        %5010 = vmatmul.mubr.f32.gmra.mxu0 %v4650
        %v5011 = vpop.f32.mrf.mxu0
        %v5012 = vadd.f32 %v4822, %v5011
        %v5013 = vpop.f32.mrf.mxu0
        %5014 = vmatprep.mubr.f32.mxu0 %v4655
        %5015 = vmatmul.mubr.f32.gmra.mxu0 %v4654
        %v5016 = vpop.f32.mrf.mxu0
        %v5017 = vadd.f32 %v4827, %v5016
        %v5018 = vpop.f32.mrf.mxu0
        %5019 = vmatprep.mubr.f32.mxu0 %v4659
        %5020 = vmatmul.mubr.f32.gmra.mxu0 %v4658
        %v5021 = vpop.f32.mrf.mxu0
        %v5022 = vadd.f32 %v4832, %v5021
        %v5023 = vpop.f32.mrf.mxu0
        %5024 = vmatprep.mubr.f32.mxu0 %v4663
        %5025 = vmatmul.mubr.f32.gmra.mxu0 %v4662
        %v5026 = vpop.f32.mrf.mxu0
        %v5027 = vadd.f32 %v4837, %v5026
        %v5028 = vpop.f32.mrf.mxu0
        %5029 = vmatprep.mubr.f32.mxu0 %v4667
        %5030 = vmatmul.mubr.f32.gmra.mxu0 %v4666
        %v5031 = vpop.f32.mrf.mxu0
        %v5032 = vadd.f32 %v4842, %v5031
        %v5033 = vpop.f32.mrf.mxu0
        %5034 = vmatprep.mubr.f32.mxu0 %v4671
        %5035 = vmatmul.mubr.f32.gmra.mxu0 %v4670
        %v5036 = vpop.f32.mrf.mxu0
        %v5037 = vadd.f32 %v4847, %v5036
        %v5038 = vpop.f32.mrf.mxu0
        %5039 = vmatprep.mubr.f32.mxu0 %v4675
        %5040 = vmatmul.mubr.f32.gmra.mxu0 %v4674
        %v5041 = vpop.f32.mrf.mxu0
        %v5042 = vadd.f32 %v4852, %v5041
        %v5043 = vpop.f32.mrf.mxu0
        %5044 = vmatprep.mubr.f32.mxu0 %v4679
        %5045 = vmatmul.mubr.f32.gmra.mxu0 %v4678
        %v5046 = vpop.f32.mrf.mxu0
        %v5047 = vadd.f32 %v4857, %v5046
        %v5048 = vpop.f32.mrf.mxu0
        %5049 = vmatprep.mubr.f32.mxu0 %v4683
        %5050 = vmatmul.mubr.f32.gmra.mxu0 %v4682
        %v5051 = vpop.f32.mrf.mxu0
        %v5052 = vadd.f32 %v4862, %v5051
        %v5053 = vpop.f32.mrf.mxu0
        %5054 = vmatprep.mubr.f32.mxu0 %v4687
        %5055 = vmatmul.mubr.f32.gmra.mxu0 %v4686
        %v5056 = vpop.f32.mrf.mxu0
        %v5057 = vadd.f32 %v4867, %v5056
        %v5058 = vpop.f32.mrf.mxu0
        %5059 = vmatprep.mubr.f32.mxu0 %v4691
        %5060 = vmatmul.mubr.f32.gmra.mxu0 %v4690
        %v5061 = vpop.f32.mrf.mxu0
        %v5062 = vadd.f32 %v4872, %v5061
        %v5063 = vpop.f32.mrf.mxu0
        %5064 = vmatprep.mubr.f32.mxu0 %v4695
        %5065 = vmatmul.mubr.f32.gmra.mxu0 %v4694
        %v5066 = vpop.f32.mrf.mxu0
        %v5067 = vadd.f32 %v4877, %v5066
        %v5068 = vpop.f32.mrf.mxu0
        %5069 = vmatprep.mubr.f32.mxu0 %v4699
        %5070 = vmatmul.mubr.f32.gmra.mxu0 %v4698
        %v5071 = vpop.f32.mrf.mxu0
        %v5072 = vadd.f32 %v4882, %v5071
        %v5073 = vpop.f32.mrf.mxu0
        %5074 = vmatprep.mubr.f32.mxu0 %v4703
        %5075 = vmatmul.mubr.f32.gmra.mxu0 %v4702
        %v5076 = vpop.f32.mrf.mxu0
        %v5077 = vadd.f32 %v4887, %v5076
        %v5078 = vpop.f32.mrf.mxu0
        %5079 = vmatprep.mubr.f32.mxu0 %v4707
        %5080 = vmatmul.mubr.f32.gmra.mxu0 %v4706
        %v5081 = vpop.f32.mrf.mxu0
        %v5082 = vadd.f32 %v4892, %v5081
        %v5083 = vpop.f32.mrf.mxu0
        %5084 = vmatprep.mubr.f32.mxu0 %v4711
        %5085 = vmatmul.mubr.f32.gmra.mxu0 %v4710
        %v5086 = vpop.f32.mrf.mxu0
        %v5087 = vadd.f32 %v4897, %v5086
        %v5088 = vpop.f32.mrf.mxu0
        %5089 = vmatprep.mubr.f32.mxu0 %v4715
        %5090 = vmatmul.mubr.f32.gmra.mxu0 %v4714
        %v5091 = vpop.f32.mrf.mxu0
        %v5092 = vadd.f32 %v4902, %v5091
        %v5093 = vpop.f32.mrf.mxu0
        %5094 = vmatprep.mubr.f32.mxu0 %v4719
        %5095 = vmatmul.mubr.f32.gmra.mxu0 %v4718
        %v5096 = vpop.f32.mrf.mxu0
        %v5097 = vadd.f32 %v4907, %v5096
        %v5098 = vpop.f32.mrf.mxu0
        %5099 = vmatprep.mubr.f32.mxu0 %v4723
        %5100 = vmatmul.mubr.f32.gmra.mxu0 %v4722
        %v5101 = vpop.f32.mrf.mxu0
        %v5102 = vadd.f32 %v4912, %v5101
        %v5103 = vpop.f32.mrf.mxu0
        %5104 = vmatprep.mubr.f32.mxu0 %v4727
        %5105 = vmatmul.mubr.f32.gmra.mxu0 %v4726
        %v5106 = vpop.f32.mrf.mxu0
        %v5107 = vadd.f32 %v4917, %v5106
        %v5108 = vpop.f32.mrf.mxu0
        %5109 = vmatprep.mubr.f32.mxu0 %v4731
        %5110 = vmatmul.mubr.f32.gmra.mxu0 %v4730
        %v5111 = vpop.f32.mrf.mxu0
        %v5112 = vadd.f32 %v4922, %v5111
        %v5113 = vpop.f32.mrf.mxu0
        %5114 = vmatprep.mubr.f32.mxu0 %v4735
        %5115 = vmatmul.mubr.f32.gmra.mxu0 %v4734
        %v5116 = vpop.f32.mrf.mxu0
        %v5117 = vadd.f32 %v4927, %v5116
        %v5118 = vpop.f32.mrf.mxu0
        %5119 = vmatprep.mubr.f32.mxu0 %v4739
        %5120 = vmatmul.mubr.f32.gmra.mxu0 %v4738
        %v5121 = vpop.f32.mrf.mxu0
        %v5122 = vadd.f32 %v4932, %v5121
        %v5123 = vpop.f32.mrf.mxu0
        %5124 = vmatprep.mubr.f32.mxu0 %v4743
        %5125 = vmatmul.mubr.f32.gmra.mxu0 %v4742
        %v5126 = vpop.f32.mrf.mxu0
        %v5127 = vadd.f32 %v4937, %v5126
        %v5128 = vpop.f32.mrf.mxu0
        %5129 = vmatprep.mubr.f32.mxu0 %v4747
        %5130 = vmatmul.mubr.f32.gmra.mxu0 %v4746
        %v5131 = vpop.f32.mrf.mxu0
        %v5132 = vadd.f32 %v4942, %v5131
        %v5133 = vpop.f32.mrf.mxu0
        %5134 = vdwg.mxu0
        %v5135 = vsel %vm809, %v5012, -inf
        %v5136 = vsel %vm809, %v5017, -inf
        %v5137 = vsel %vm809, %v5022, -inf
        %v5138 = vsel %vm809, %v5027, -inf
        %v5139 = vsel %vm809, %v5032, -inf
        %v5140 = vmax.f32 %v5135, %v5139
        %v5141 = vsel %vm809, %v5037, -inf
        %v5142 = vmax.f32 %v5136, %v5141
        %v5143 = vsel %vm809, %v5042, -inf
        %v5144 = vmax.f32 %v5137, %v5143
        %v5145 = vsel %vm809, %v5047, -inf
        %v5146 = vmax.f32 %v5138, %v5145
        %v5147 = vsel %vm809, %v5052, -inf
        %v5148 = vmax.f32 %v5140, %v5147
        %v5149 = vsel %vm809, %v5057, -inf
        %v5150 = vmax.f32 %v5142, %v5149
        %v5151 = vsel %vm809, %v5062, -inf
        %v5152 = vmax.f32 %v5144, %v5151
        %v5153 = vsel %vm809, %v5067, -inf
        %v5154 = vmax.f32 %v5146, %v5153
        %v5155 = vsel %vm809, %v5072, -inf
        %v5156 = vmax.f32 %v5148, %v5155
        %v5157 = vsel %vm809, %v5077, -inf
        %v5158 = vmax.f32 %v5150, %v5157
        %v5159 = vsel %vm809, %v5082, -inf
        %v5160 = vmax.f32 %v5152, %v5159
        %v5161 = vsel %vm809, %v5087, -inf
        %v5162 = vmax.f32 %v5154, %v5161
        %v5163 = vsel %vm809, %v5092, -inf
        %v5164 = vmax.f32 %v5156, %v5163
        %v5165 = vsel %vm809, %v5097, -inf
        %v5166 = vmax.f32 %v5158, %v5165
        %v5167 = vsel %vm809, %v5102, -inf
        %v5168 = vmax.f32 %v5160, %v5167
        %v5169 = vsel %vm809, %v5107, -inf
        %v5170 = vmax.f32 %v5162, %v5169
        %v5171 = vsel %vm809, %v5112, -inf
        %v5172 = vmax.f32 %v5164, %v5171
        %v5173 = vsel %vm809, %v5117, -inf
        %v5174 = vmax.f32 %v5166, %v5173
        %v5175 = vsel %vm809, %v5122, -inf
        %v5176 = vmax.f32 %v5168, %v5175
        %v5177 = vsel %vm809, %v5127, -inf
        %v5178 = vmax.f32 %v5170, %v5177
        %v5179 = vsel %vm854, %v5132, -inf
        %v5180 = vmax.f32 %v5172, %v5179
        %v5181 = vmax.f32 %v5180, %v5174
        %v5182 = vmax.f32 %v5176, %v5178
        %v5183 = vmax.f32 %v5181, %v5182
        %v5184 = vrot.slane %v5183, 4
        %v5185 = vmax.f32 %v5183, %v5184
        %v5186 = vrot.slane %v5185, 2
        %v5187 = vmax.f32 %v5185, %v5186
        %v5188 = vrot.slane %v5187, 1
        %v5189 = vmax.f32 %v5187, %v5188
        %v5190 = vsub.f32 %v5012, %v5189
        %v5191 = vsub.f32 %v5017, %v5189
        %v5192 = vsub.f32 %v5022, %v5189
        %v5193 = vsub.f32 %v5027, %v5189
        %v5194 = vsub.f32 %v5032, %v5189
        %v5195 = vsub.f32 %v5037, %v5189
        %v5196 = vsub.f32 %v5042, %v5189
        %v5197 = vsub.f32 %v5047, %v5189
        %v5198 = vsub.f32 %v5052, %v5189
        %v5199 = vsub.f32 %v5057, %v5189
        %v5200 = vsub.f32 %v5062, %v5189
        %v5201 = vsub.f32 %v5067, %v5189
        %v5202 = vsub.f32 %v5072, %v5189
        %v5203 = vsub.f32 %v5077, %v5189
        %v5204 = vsub.f32 %v5082, %v5189
        %v5205 = vsub.f32 %v5087, %v5189
        %v5206 = vsub.f32 %v5092, %v5189
        %v5207 = vsub.f32 %v5097, %v5189
        %v5208 = vsub.f32 %v5102, %v5189
        %v5209 = vsub.f32 %v5107, %v5189
        %v5210 = vsub.f32 %v5112, %v5189
        %v5211 = vsub.f32 %v5117, %v5189
        %v5212 = vsub.f32 %v5122, %v5189
        %v5213 = vsub.f32 %v5127, %v5189
        %v5214 = vsub.f32 %v5132, %v5189
        %v5215 = vmul.f32 %v5190, 1.442695
        %v5216 = vpow.pop %v5215
        %v5217 = vmul.f32 %v5191, 1.442695
        %v5218 = vpow.pop %v5217
        %v5219 = vmul.f32 %v5192, 1.442695
        %v5220 = vpow.pop %v5219
        %v5221 = vmul.f32 %v5193, 1.442695
        %v5222 = vpow.pop %v5221
        %v5223 = vmul.f32 %v5194, 1.442695
        %v5224 = vpow.pop %v5223
        %v5225 = vmul.f32 %v5195, 1.442695
        %v5226 = vpow.pop %v5225
        %v5227 = vmul.f32 %v5196, 1.442695
        %v5228 = vpow.pop %v5227
        %v5229 = vmul.f32 %v5197, 1.442695
        %v5230 = vpow.pop %v5229
        %v5231 = vmul.f32 %v5198, 1.442695
        %v5232 = vpow.pop %v5231
        %v5233 = vmul.f32 %v5199, 1.442695
        %v5234 = vpow.pop %v5233
        %v5235 = vmul.f32 %v5200, 1.442695
        %v5236 = vpow.pop %v5235
        %v5237 = vmul.f32 %v5201, 1.442695
        %v5238 = vpow.pop %v5237
        %v5239 = vmul.f32 %v5202, 1.442695
        %v5240 = vpow.pop %v5239
        %v5241 = vmul.f32 %v5203, 1.442695
        %v5242 = vpow.pop %v5241
        %v5243 = vmul.f32 %v5204, 1.442695
        %v5244 = vpow.pop %v5243
        %v5245 = vmul.f32 %v5205, 1.442695
        %v5246 = vpow.pop %v5245
        %v5247 = vmul.f32 %v5206, 1.442695
        %v5248 = vpow.pop %v5247
        %v5249 = vmul.f32 %v5207, 1.442695
        %v5250 = vpow.pop %v5249
        %v5251 = vmul.f32 %v5208, 1.442695
        %v5252 = vpow.pop %v5251
        %v5253 = vmul.f32 %v5209, 1.442695
        %v5254 = vpow.pop %v5253
        %v5255 = vmul.f32 %v5210, 1.442695
        %v5256 = vpow.pop %v5255
        %v5257 = vmul.f32 %v5211, 1.442695
        %v5258 = vpow.pop %v5257
        %v5259 = vmul.f32 %v5212, 1.442695
        %v5260 = vpow.pop %v5259
        %v5261 = vmul.f32 %v5213, 1.442695
        %v5262 = vpow.pop %v5261
        %v5263 = vmul.f32 %v5214, 1.442695
        %v5264 = vpow.pop %v5263
        %v5265 = vsel %vm809, %v5216, 0.0
        %v5266 = vsel %vm809, %v5218, 0.0
        %v5267 = vadd.f32 %v5265, %v5266
        %v5268 = vsel %vm809, %v5220, 0.0
        %v5269 = vadd.f32 %v5267, %v5268
        %v5270 = vsel %vm809, %v5222, 0.0
        %v5271 = vadd.f32 %v5269, %v5270
        %v5272 = vsel %vm809, %v5224, 0.0
        %v5273 = vadd.f32 %v5271, %v5272
        %v5274 = vsel %vm809, %v5226, 0.0
        %v5275 = vadd.f32 %v5273, %v5274
        %v5276 = vsel %vm809, %v5228, 0.0
        %v5277 = vadd.f32 %v5275, %v5276
        %v5278 = vsel %vm809, %v5230, 0.0
        %v5279 = vadd.f32 %v5277, %v5278
        %v5280 = vsel %vm809, %v5232, 0.0
        %v5281 = vadd.f32 %v5279, %v5280
        %v5282 = vsel %vm809, %v5234, 0.0
        %v5283 = vadd.f32 %v5281, %v5282
        %v5284 = vsel %vm809, %v5236, 0.0
        %v5285 = vadd.f32 %v5283, %v5284
        %v5286 = vsel %vm809, %v5238, 0.0
        %v5287 = vadd.f32 %v5285, %v5286
        %v5288 = vsel %vm809, %v5240, 0.0
        %v5289 = vadd.f32 %v5287, %v5288
        %v5290 = vsel %vm809, %v5242, 0.0
        %v5291 = vadd.f32 %v5289, %v5290
        %v5292 = vsel %vm809, %v5244, 0.0
        %v5293 = vadd.f32 %v5291, %v5292
        %v5294 = vsel %vm809, %v5246, 0.0
        %v5295 = vadd.f32 %v5293, %v5294
        %v5296 = vsel %vm809, %v5248, 0.0
        %v5297 = vadd.f32 %v5295, %v5296
        %v5298 = vsel %vm809, %v5250, 0.0
        %v5299 = vadd.f32 %v5297, %v5298
        %v5300 = vsel %vm809, %v5252, 0.0
        %v5301 = vadd.f32 %v5299, %v5300
        %v5302 = vsel %vm809, %v5254, 0.0
        %v5303 = vadd.f32 %v5301, %v5302
        %v5304 = vsel %vm809, %v5256, 0.0
        %v5305 = vadd.f32 %v5303, %v5304
        %v5306 = vsel %vm809, %v5258, 0.0
        %v5307 = vadd.f32 %v5305, %v5306
        %v5308 = vsel %vm809, %v5260, 0.0
        %v5309 = vadd.f32 %v5307, %v5308
        %v5310 = vsel %vm809, %v5262, 0.0
        %v5311 = vadd.f32 %v5309, %v5310
        %v5312 = vsel %vm854, %v5264, 0.0
        %v5313 = vadd.f32 %v5311, %v5312
        %v5314 = vrot.slane %v5313, 4
        %v5315 = vadd.f32 %v5313, %v5314
        %v5316 = vrot.slane %v5315, 2
        %v5317 = vadd.f32 %v5315, %v5316
        %v5318 = vrot.slane %v5317, 1
        %v5319 = vadd.f32 %v5317, %v5318
        %v5320 = vrcp.pop %v5319
        %v5321 = vmul.f32 %v5216, %v5320
        %v5322 = vmul.f32 %v5218, %v5320
        %v5323 = vmul.f32 %v5220, %v5320
        %v5324 = vmul.f32 %v5222, %v5320
        %v5325 = vmul.f32 %v5224, %v5320
        %v5326 = vmul.f32 %v5226, %v5320
        %v5327 = vmul.f32 %v5228, %v5320
        %v5328 = vmul.f32 %v5230, %v5320
        %v5329 = vmul.f32 %v5232, %v5320
        %v5330 = vmul.f32 %v5234, %v5320
        %v5331 = vmul.f32 %v5236, %v5320
        %v5332 = vmul.f32 %v5238, %v5320
        %v5333 = vmul.f32 %v5240, %v5320
        %v5334 = vmul.f32 %v5242, %v5320
        %v5335 = vmul.f32 %v5244, %v5320
        %v5336 = vmul.f32 %v5246, %v5320
        %v5337 = vmul.f32 %v5248, %v5320
        %v5338 = vmul.f32 %v5250, %v5320
        %v5339 = vmul.f32 %v5252, %v5320
        %v5340 = vmul.f32 %v5254, %v5320
        %v5341 = vmul.f32 %v5256, %v5320
        %v5342 = vmul.f32 %v5258, %v5320
        %v5343 = vmul.f32 %v5260, %v5320
        %v5344 = vmul.f32 %v5262, %v5320
        %v5345 = vmul.f32 %v5264, %v5320
        %5347 = vset.pattern.permute.xlu0 0
        %5348 = vperm.xlu0 %5347, %v5321
        %v5349 = vpop.permute.xlu0 %5348
        %5352 = vset.pattern.permute.xlu0 0
        %5353 = vperm.xlu0 %5352, %v5322
        %v5354 = vpop.permute.xlu0 %5353
        %5357 = vset.pattern.permute.xlu0 0
        %5358 = vperm.xlu0 %5357, %v5323
        %v5359 = vpop.permute.xlu0 %5358
        %5362 = vset.pattern.permute.xlu0 0
        %5363 = vperm.xlu0 %5362, %v5324
        %v5364 = vpop.permute.xlu0 %5363
        %5367 = vset.pattern.permute.xlu0 0
        %5368 = vperm.xlu0 %5367, %v5325
        %v5369 = vpop.permute.xlu0 %5368
        %5372 = vset.pattern.permute.xlu0 0
        %5373 = vperm.xlu0 %5372, %v5326
        %v5374 = vpop.permute.xlu0 %5373
        %5377 = vset.pattern.permute.xlu0 0
        %5378 = vperm.xlu0 %5377, %v5327
        %v5379 = vpop.permute.xlu0 %5378
        %5382 = vset.pattern.permute.xlu0 0
        %5383 = vperm.xlu0 %5382, %v5328
        %v5384 = vpop.permute.xlu0 %5383
        %5387 = vset.pattern.permute.xlu0 0
        %5388 = vperm.xlu0 %5387, %v5329
        %v5389 = vpop.permute.xlu0 %5388
        %5392 = vset.pattern.permute.xlu0 0
        %5393 = vperm.xlu0 %5392, %v5330
        %v5394 = vpop.permute.xlu0 %5393
        %5397 = vset.pattern.permute.xlu0 0
        %5398 = vperm.xlu0 %5397, %v5331
        %v5399 = vpop.permute.xlu0 %5398
        %5402 = vset.pattern.permute.xlu0 0
        %5403 = vperm.xlu0 %5402, %v5332
        %v5404 = vpop.permute.xlu0 %5403
        %5407 = vset.pattern.permute.xlu0 0
        %5408 = vperm.xlu0 %5407, %v5333
        %v5409 = vpop.permute.xlu0 %5408
        %5412 = vset.pattern.permute.xlu0 0
        %5413 = vperm.xlu0 %5412, %v5334
        %v5414 = vpop.permute.xlu0 %5413
        %5417 = vset.pattern.permute.xlu0 0
        %5418 = vperm.xlu0 %5417, %v5335
        %v5419 = vpop.permute.xlu0 %5418
        %5422 = vset.pattern.permute.xlu0 0
        %5423 = vperm.xlu0 %5422, %v5336
        %v5424 = vpop.permute.xlu0 %5423
        %5427 = vset.pattern.permute.xlu0 0
        %5428 = vperm.xlu0 %5427, %v5337
        %v5429 = vpop.permute.xlu0 %5428
        %5432 = vset.pattern.permute.xlu0 0
        %5433 = vperm.xlu0 %5432, %v5338
        %v5434 = vpop.permute.xlu0 %5433
        %5437 = vset.pattern.permute.xlu0 0
        %5438 = vperm.xlu0 %5437, %v5339
        %v5439 = vpop.permute.xlu0 %5438
        %5442 = vset.pattern.permute.xlu0 0
        %5443 = vperm.xlu0 %5442, %v5340
        %v5444 = vpop.permute.xlu0 %5443
        %5447 = vset.pattern.permute.xlu0 0
        %5448 = vperm.xlu0 %5447, %v5341
        %v5449 = vpop.permute.xlu0 %5448
        %5452 = vset.pattern.permute.xlu0 0
        %5453 = vperm.xlu0 %5452, %v5342
        %v5454 = vpop.permute.xlu0 %5453
        %5457 = vset.pattern.permute.xlu0 0
        %5458 = vperm.xlu0 %5457, %v5343
        %v5459 = vpop.permute.xlu0 %5458
        %5462 = vset.pattern.permute.xlu0 0
        %5463 = vperm.xlu0 %5462, %v5344
        %v5464 = vpop.permute.xlu0 %5463
        %5467 = vset.pattern.permute.xlu0 0
        %5468 = vperm.xlu0 %5467, %v5345
        %v5469 = vpop.permute.xlu0 %5468
        %v5471 = vmul.f32 %v4648, %v5349
        %v5472 = vmul.f32 %v4649, %v5349
        %v5473 = vmul.f32 %v4650, %v5349
        %v5474 = vmul.f32 %v4651, %v5349
        %v5475 = vmul.f32 %v4652, %v5354
        %v5476 = vmul.f32 %v4653, %v5354
        %v5477 = vmul.f32 %v4654, %v5354
        %v5478 = vmul.f32 %v4655, %v5354
        %v5479 = vmul.f32 %v4656, %v5359
        %v5480 = vmul.f32 %v4657, %v5359
        %v5481 = vmul.f32 %v4658, %v5359
        %v5482 = vmul.f32 %v4659, %v5359
        %v5483 = vmul.f32 %v4660, %v5364
        %v5484 = vmul.f32 %v4661, %v5364
        %v5485 = vmul.f32 %v4662, %v5364
        %v5486 = vmul.f32 %v4663, %v5364
        %v5487 = vmul.f32 %v4664, %v5369
        %v5488 = vmul.f32 %v4665, %v5369
        %v5489 = vmul.f32 %v4666, %v5369
        %v5490 = vmul.f32 %v4667, %v5369
        %v5491 = vmul.f32 %v4668, %v5374
        %v5492 = vmul.f32 %v4669, %v5374
        %v5493 = vmul.f32 %v4670, %v5374
        %v5494 = vmul.f32 %v4671, %v5374
        %v5495 = vmul.f32 %v4672, %v5379
        %v5496 = vmul.f32 %v4673, %v5379
        %v5497 = vmul.f32 %v4674, %v5379
        %v5498 = vmul.f32 %v4675, %v5379
        %v5499 = vmul.f32 %v4676, %v5384
        %v5500 = vmul.f32 %v4677, %v5384
        %v5501 = vmul.f32 %v4678, %v5384
        %v5502 = vmul.f32 %v4679, %v5384
        %v5503 = vmul.f32 %v4680, %v5389
        %v5504 = vmul.f32 %v4681, %v5389
        %v5505 = vmul.f32 %v4682, %v5389
        %v5506 = vmul.f32 %v4683, %v5389
        %v5507 = vmul.f32 %v4684, %v5394
        %v5508 = vmul.f32 %v4685, %v5394
        %v5509 = vmul.f32 %v4686, %v5394
        %v5510 = vmul.f32 %v4687, %v5394
        %v5511 = vmul.f32 %v4688, %v5399
        %v5512 = vmul.f32 %v4689, %v5399
        %v5513 = vmul.f32 %v4690, %v5399
        %v5514 = vmul.f32 %v4691, %v5399
        %v5515 = vmul.f32 %v4692, %v5404
        %v5516 = vmul.f32 %v4693, %v5404
        %v5517 = vmul.f32 %v4694, %v5404
        %v5518 = vmul.f32 %v4695, %v5404
        %v5519 = vmul.f32 %v4696, %v5409
        %v5520 = vmul.f32 %v4697, %v5409
        %v5521 = vmul.f32 %v4698, %v5409
        %v5522 = vmul.f32 %v4699, %v5409
        %v5523 = vmul.f32 %v4700, %v5414
        %v5524 = vmul.f32 %v4701, %v5414
        %v5525 = vmul.f32 %v4702, %v5414
        %v5526 = vmul.f32 %v4703, %v5414
        %v5527 = vmul.f32 %v4704, %v5419
        %v5528 = vmul.f32 %v4705, %v5419
        %v5529 = vmul.f32 %v4706, %v5419
        %v5530 = vmul.f32 %v4707, %v5419
        %v5531 = vmul.f32 %v4708, %v5424
        %v5532 = vmul.f32 %v4709, %v5424
        %v5533 = vmul.f32 %v4710, %v5424
        %v5534 = vmul.f32 %v4711, %v5424
        %v5535 = vmul.f32 %v4712, %v5429
        %v5536 = vmul.f32 %v4713, %v5429
        %v5537 = vmul.f32 %v4714, %v5429
        %v5538 = vmul.f32 %v4715, %v5429
        %v5539 = vmul.f32 %v4716, %v5434
        %v5540 = vmul.f32 %v4717, %v5434
        %v5541 = vmul.f32 %v4718, %v5434
        %v5542 = vmul.f32 %v4719, %v5434
        %v5543 = vmul.f32 %v4720, %v5439
        %v5544 = vmul.f32 %v4721, %v5439
        %v5545 = vmul.f32 %v4722, %v5439
        %v5546 = vmul.f32 %v4723, %v5439
        %v5547 = vmul.f32 %v4724, %v5444
        %v5548 = vmul.f32 %v4725, %v5444
        %v5549 = vmul.f32 %v4726, %v5444
        %v5550 = vmul.f32 %v4727, %v5444
        %v5551 = vmul.f32 %v4728, %v5449
        %v5552 = vmul.f32 %v4729, %v5449
        %v5553 = vmul.f32 %v4730, %v5449
        %v5554 = vmul.f32 %v4731, %v5449
        %v5555 = vmul.f32 %v4732, %v5454
        %v5556 = vmul.f32 %v4733, %v5454
        %v5557 = vmul.f32 %v4734, %v5454
        %v5558 = vmul.f32 %v4735, %v5454
        %v5559 = vmul.f32 %v4736, %v5459
        %v5560 = vmul.f32 %v4737, %v5459
        %v5561 = vmul.f32 %v4738, %v5459
        %v5562 = vmul.f32 %v4739, %v5459
        %v5563 = vmul.f32 %v4740, %v5464
        %v5564 = vmul.f32 %v4741, %v5464
        %v5565 = vmul.f32 %v4742, %v5464
        %v5566 = vmul.f32 %v4743, %v5464
        %v5567 = vmul.f32 %v4744, %v5469
        %v5568 = vmul.f32 %v4745, %v5469
        %v5569 = vmul.f32 %v4746, %v5469
        %v5570 = vmul.f32 %v4747, %v5469
        %v5571 = vadd.f32 %v5471, %v5475
        %v5572 = vadd.f32 %v5571, %v5479
        %v5573 = vadd.f32 %v5572, %v5483
        %v5574 = vadd.f32 %v5573, %v5487
        %v5575 = vadd.f32 %v5574, %v5491
        %v5576 = vadd.f32 %v5575, %v5495
        %v5577 = vadd.f32 %v5576, %v5499
        %v5578 = vadd.f32 %v5577, %v5503
        %v5579 = vadd.f32 %v5578, %v5507
        %v5580 = vadd.f32 %v5579, %v5511
        %v5581 = vadd.f32 %v5580, %v5515
        %v5582 = vadd.f32 %v5581, %v5519
        %v5583 = vadd.f32 %v5582, %v5523
        %v5584 = vadd.f32 %v5583, %v5527
        %v5585 = vadd.f32 %v5584, %v5531
        %v5586 = vadd.f32 %v5585, %v5535
        %v5587 = vadd.f32 %v5586, %v5539
        %v5588 = vadd.f32 %v5587, %v5543
        %v5589 = vadd.f32 %v5588, %v5547
        %v5590 = vadd.f32 %v5589, %v5551
        %v5591 = vadd.f32 %v5590, %v5555
        %v5592 = vadd.f32 %v5591, %v5559
        %v5593 = vadd.f32 %v5592, %v5563
        %v5594 = vsel %vm1270, %v5567, 0.0
        %v5595 = vadd.f32 %v5593, %v5594
        %v5596 = vrot.slane %v5595, 4
        %v5597 = vadd.f32 %v5595, %v5596
        %v5598 = vrot.slane %v5597, 2
        %v5599 = vadd.f32 %v5597, %v5598
        %v5600 = vrot.slane %v5599, 1
        %v5601 = vadd.f32 %v5599, %v5600
        %v5602 = vadd.f32 %v5472, %v5476
        %v5603 = vadd.f32 %v5602, %v5480
        %v5604 = vadd.f32 %v5603, %v5484
        %v5605 = vadd.f32 %v5604, %v5488
        %v5606 = vadd.f32 %v5605, %v5492
        %v5607 = vadd.f32 %v5606, %v5496
        %v5608 = vadd.f32 %v5607, %v5500
        %v5609 = vadd.f32 %v5608, %v5504
        %v5610 = vadd.f32 %v5609, %v5508
        %v5611 = vadd.f32 %v5610, %v5512
        %v5612 = vadd.f32 %v5611, %v5516
        %v5613 = vadd.f32 %v5612, %v5520
        %v5614 = vadd.f32 %v5613, %v5524
        %v5615 = vadd.f32 %v5614, %v5528
        %v5616 = vadd.f32 %v5615, %v5532
        %v5617 = vadd.f32 %v5616, %v5536
        %v5618 = vadd.f32 %v5617, %v5540
        %v5619 = vadd.f32 %v5618, %v5544
        %v5620 = vadd.f32 %v5619, %v5548
        %v5621 = vadd.f32 %v5620, %v5552
        %v5622 = vadd.f32 %v5621, %v5556
        %v5623 = vadd.f32 %v5622, %v5560
        %v5624 = vadd.f32 %v5623, %v5564
        %v5625 = vsel %vm1270, %v5568, 0.0
        %v5626 = vadd.f32 %v5624, %v5625
        %v5627 = vrot.slane %v5626, 4
        %v5628 = vadd.f32 %v5626, %v5627
        %v5629 = vrot.slane %v5628, 2
        %v5630 = vadd.f32 %v5628, %v5629
        %v5631 = vrot.slane %v5630, 1
        %v5632 = vadd.f32 %v5630, %v5631
        %v5633 = vadd.f32 %v5473, %v5477
        %v5634 = vadd.f32 %v5633, %v5481
        %v5635 = vadd.f32 %v5634, %v5485
        %v5636 = vadd.f32 %v5635, %v5489
        %v5637 = vadd.f32 %v5636, %v5493
        %v5638 = vadd.f32 %v5637, %v5497
        %v5639 = vadd.f32 %v5638, %v5501
        %v5640 = vadd.f32 %v5639, %v5505
        %v5641 = vadd.f32 %v5640, %v5509
        %v5642 = vadd.f32 %v5641, %v5513
        %v5643 = vadd.f32 %v5642, %v5517
        %v5644 = vadd.f32 %v5643, %v5521
        %v5645 = vadd.f32 %v5644, %v5525
        %v5646 = vadd.f32 %v5645, %v5529
        %v5647 = vadd.f32 %v5646, %v5533
        %v5648 = vadd.f32 %v5647, %v5537
        %v5649 = vadd.f32 %v5648, %v5541
        %v5650 = vadd.f32 %v5649, %v5545
        %v5651 = vadd.f32 %v5650, %v5549
        %v5652 = vadd.f32 %v5651, %v5553
        %v5653 = vadd.f32 %v5652, %v5557
        %v5654 = vadd.f32 %v5653, %v5561
        %v5655 = vadd.f32 %v5654, %v5565
        %v5656 = vsel %vm1270, %v5569, 0.0
        %v5657 = vadd.f32 %v5655, %v5656
        %v5658 = vrot.slane %v5657, 4
        %v5659 = vadd.f32 %v5657, %v5658
        %v5660 = vrot.slane %v5659, 2
        %v5661 = vadd.f32 %v5659, %v5660
        %v5662 = vrot.slane %v5661, 1
        %v5663 = vadd.f32 %v5661, %v5662
        %v5664 = vadd.f32 %v5474, %v5478
        %v5665 = vadd.f32 %v5664, %v5482
        %v5666 = vadd.f32 %v5665, %v5486
        %v5667 = vadd.f32 %v5666, %v5490
        %v5668 = vadd.f32 %v5667, %v5494
        %v5669 = vadd.f32 %v5668, %v5498
        %v5670 = vadd.f32 %v5669, %v5502
        %v5671 = vadd.f32 %v5670, %v5506
        %v5672 = vadd.f32 %v5671, %v5510
        %v5673 = vadd.f32 %v5672, %v5514
        %v5674 = vadd.f32 %v5673, %v5518
        %v5675 = vadd.f32 %v5674, %v5522
        %v5676 = vadd.f32 %v5675, %v5526
        %v5677 = vadd.f32 %v5676, %v5530
        %v5678 = vadd.f32 %v5677, %v5534
        %v5679 = vadd.f32 %v5678, %v5538
        %v5680 = vadd.f32 %v5679, %v5542
        %v5681 = vadd.f32 %v5680, %v5546
        %v5682 = vadd.f32 %v5681, %v5550
        %v5683 = vadd.f32 %v5682, %v5554
        %v5684 = vadd.f32 %v5683, %v5558
        %v5685 = vadd.f32 %v5684, %v5562
        %v5686 = vadd.f32 %v5685, %v5566
        %v5687 = vsel %vm1270, %v5570, 0.0
        %v5688 = vadd.f32 %v5686, %v5687
        %v5689 = vrot.slane %v5688, 4
        %v5690 = vadd.f32 %v5688, %v5689
        %v5691 = vrot.slane %v5690, 2
        %v5692 = vadd.f32 %v5690, %v5691
        %v5693 = vrot.slane %v5692, 1
        %v5694 = vadd.f32 %v5692, %v5693
        %v5699 = vcombine.low %v5601, %v5632
        %v5700 = vcombine.low %v5663, %v5694
        %v5702 = vunpack.c.l.s4 1966171168
        %v5703 = vunpack.c.0.s8 %v5702
        %v5704 = vlaneseq
        %v5705 = vshrl.u32 %v5704, 7
        %v5706 = vsub.s32 %v5703, %v5705
        %v5707 = vrot.slane %v5699, %v5706
        %v5709 = vunpack.c.l.s4 1966171168
        %v5710 = vunpack.c.0.s8 %v5709
        %v5711 = vlaneseq
        %v5712 = vshrl.u32 %v5711, 7
        %v5713 = vsub.s32 %v5710, %v5712
        %v5714 = vrot.slane %v5700, %v5713
        %v5715 = vcombine.low %v5707, %v5714
        %v5717 = vunpack.c.l.s4 1966171168
        %v5718 = vunpack.c.0.s8 %v5717
        %v5719 = vlaneseq
        %v5720 = vshrl.u32 %v5719, 7
        %v5721 = vsub.s32 %v5718, %v5720
        %v5722 = vrot.slane %v5715, %v5721
        %s5724 = scalar_lea.vmem [#allocation2], 4
        %5725 = vst.msk [vmem:[%s5724] ss:$8 sm:$0xf] %vm1404, %v5722
        %5726 = vst.msk [vmem:[%s5724] ss:$8 sm:$0x0] %vm1404, %v5722
        %s5727 = scalar_lea.vmem %s256, 4000
        %v5728 = vld [vmem:[%s5727] sm:$0xff]
        %v5729 = vld [vmem:[%s5727 + $0x8] sm:$0xff]
        %v5730 = vld [vmem:[%s5727 + $0x10] sm:$0xff]
        %v5731 = vld [vmem:[%s5727 + $0x18] sm:$0xff]
        %v5732 = vld [vmem:[%s5727 + $0x20] sm:$0xff]
        %v5733 = vld [vmem:[%s5727 + $0x28] sm:$0xff]
        %v5734 = vld [vmem:[%s5727 + $0x30] sm:$0xff]
        %v5735 = vld [vmem:[%s5727 + $0x38] sm:$0xff]
        %v5736 = vld [vmem:[%s5727 + $0x40] sm:$0xff]
        %v5737 = vld [vmem:[%s5727 + $0x48] sm:$0xff]
        %v5738 = vld [vmem:[%s5727 + $0x50] sm:$0xff]
        %v5739 = vld [vmem:[%s5727 + $0x58] sm:$0xff]
        %v5740 = vld [vmem:[%s5727 + $0x60] sm:$0xff]
        %v5741 = vld [vmem:[%s5727 + $0x68] sm:$0xff]
        %v5742 = vld [vmem:[%s5727 + $0x70] sm:$0xff]
        %v5743 = vld [vmem:[%s5727 + $0x78] sm:$0xff]
        %v5744 = vld [vmem:[%s5727 + $0x80] sm:$0xff]
        %v5745 = vld [vmem:[%s5727 + $0x88] sm:$0xff]
        %v5746 = vld [vmem:[%s5727 + $0x90] sm:$0xff]
        %v5747 = vld [vmem:[%s5727 + $0x98] sm:$0xff]
        %v5748 = vld [vmem:[%s5727 + $0xa0] sm:$0xff]
        %v5749 = vld [vmem:[%s5727 + $0xa8] sm:$0xff]
        %v5750 = vld [vmem:[%s5727 + $0xb0] sm:$0xff]
        %v5751 = vld [vmem:[%s5727 + $0xb8] sm:$0xff]
        %v5752 = vld [vmem:[%s5727 + $0xc0] sm:$0xff]
        %v5753 = vld [vmem:[%s5727 + $0xc8] sm:$0xff]
        %v5754 = vld [vmem:[%s5727 + $0xd0] sm:$0xff]
        %v5755 = vld [vmem:[%s5727 + $0xd8] sm:$0xff]
        %v5756 = vld [vmem:[%s5727 + $0xe0] sm:$0xff]
        %v5757 = vld [vmem:[%s5727 + $0xe8] sm:$0xff]
        %v5758 = vld [vmem:[%s5727 + $0xf0] sm:$0xff]
        %v5759 = vld [vmem:[%s5727 + $0xf8] sm:$0xff]
        %v5760 = vld [vmem:[%s5727 + $0x100] sm:$0xff]
        %v5761 = vld [vmem:[%s5727 + $0x108] sm:$0xff]
        %v5762 = vld [vmem:[%s5727 + $0x110] sm:$0xff]
        %v5763 = vld [vmem:[%s5727 + $0x118] sm:$0xff]
        %v5764 = vld [vmem:[%s5727 + $0x120] sm:$0xff]
        %v5765 = vld [vmem:[%s5727 + $0x128] sm:$0xff]
        %v5766 = vld [vmem:[%s5727 + $0x130] sm:$0xff]
        %v5767 = vld [vmem:[%s5727 + $0x138] sm:$0xff]
        %v5768 = vld [vmem:[%s5727 + $0x140] sm:$0xff]
        %v5769 = vld [vmem:[%s5727 + $0x148] sm:$0xff]
        %v5770 = vld [vmem:[%s5727 + $0x150] sm:$0xff]
        %v5771 = vld [vmem:[%s5727 + $0x158] sm:$0xff]
        %v5772 = vld [vmem:[%s5727 + $0x160] sm:$0xff]
        %v5773 = vld [vmem:[%s5727 + $0x168] sm:$0xff]
        %v5774 = vld [vmem:[%s5727 + $0x170] sm:$0xff]
        %v5775 = vld [vmem:[%s5727 + $0x178] sm:$0xff]
        %v5776 = vld [vmem:[%s5727 + $0x180] sm:$0xff]
        %v5777 = vld [vmem:[%s5727 + $0x188] sm:$0xff]
        %v5778 = vld [vmem:[%s5727 + $0x190] sm:$0xff]
        %v5779 = vld [vmem:[%s5727 + $0x198] sm:$0xff]
        %v5780 = vld [vmem:[%s5727 + $0x1a0] sm:$0xff]
        %v5781 = vld [vmem:[%s5727 + $0x1a8] sm:$0xff]
        %v5782 = vld [vmem:[%s5727 + $0x1b0] sm:$0xff]
        %v5783 = vld [vmem:[%s5727 + $0x1b8] sm:$0xff]
        %v5784 = vld [vmem:[%s5727 + $0x1c0] sm:$0xff]
        %v5785 = vld [vmem:[%s5727 + $0x1c8] sm:$0xff]
        %v5786 = vld [vmem:[%s5727 + $0x1d0] sm:$0xff]
        %v5787 = vld [vmem:[%s5727 + $0x1d8] sm:$0xff]
        %v5788 = vld [vmem:[%s5727 + $0x1e0] sm:$0xff]
        %v5789 = vld [vmem:[%s5727 + $0x1e8] sm:$0xff]
        %v5790 = vld [vmem:[%s5727 + $0x1f0] sm:$0xff]
        %v5791 = vld [vmem:[%s5727 + $0x1f8] sm:$0xff]
        %v5792 = vld [vmem:[%s5727 + $0x200] sm:$0xff]
        %v5793 = vld [vmem:[%s5727 + $0x208] sm:$0xff]
        %v5794 = vld [vmem:[%s5727 + $0x210] sm:$0xff]
        %v5795 = vld [vmem:[%s5727 + $0x218] sm:$0xff]
        %v5796 = vld [vmem:[%s5727 + $0x220] sm:$0xff]
        %v5797 = vld [vmem:[%s5727 + $0x228] sm:$0xff]
        %v5798 = vld [vmem:[%s5727 + $0x230] sm:$0xff]
        %v5799 = vld [vmem:[%s5727 + $0x238] sm:$0xff]
        %v5800 = vld [vmem:[%s5727 + $0x240] sm:$0xff]
        %v5801 = vld [vmem:[%s5727 + $0x248] sm:$0xff]
        %v5802 = vld [vmem:[%s5727 + $0x250] sm:$0xff]
        %v5803 = vld [vmem:[%s5727 + $0x258] sm:$0xff]
        %v5804 = vld [vmem:[%s5727 + $0x260] sm:$0xff]
        %v5805 = vld [vmem:[%s5727 + $0x268] sm:$0xff]
        %v5806 = vld [vmem:[%s5727 + $0x270] sm:$0xff]
        %v5807 = vld [vmem:[%s5727 + $0x278] sm:$0xff]
        %v5808 = vld [vmem:[%s5727 + $0x280] sm:$0xff]
        %v5809 = vld [vmem:[%s5727 + $0x288] sm:$0xff]
        %v5810 = vld [vmem:[%s5727 + $0x290] sm:$0xff]
        %v5811 = vld [vmem:[%s5727 + $0x298] sm:$0xff]
        %v5812 = vld [vmem:[%s5727 + $0x2a0] sm:$0xff]
        %v5813 = vld [vmem:[%s5727 + $0x2a8] sm:$0xff]
        %v5814 = vld [vmem:[%s5727 + $0x2b0] sm:$0xff]
        %v5815 = vld [vmem:[%s5727 + $0x2b8] sm:$0xff]
        %v5816 = vld [vmem:[%s5727 + $0x2c0] sm:$0xff]
        %v5817 = vld [vmem:[%s5727 + $0x2c8] sm:$0xff]
        %v5818 = vld [vmem:[%s5727 + $0x2d0] sm:$0xff]
        %v5819 = vld [vmem:[%s5727 + $0x2d8] sm:$0xff]
        %v5820 = vld [vmem:[%s5727 + $0x2e0] sm:$0xff]
        %v5821 = vld [vmem:[%s5727 + $0x2e8] sm:$0xff]
        %v5822 = vld [vmem:[%s5727 + $0x2f0] sm:$0xff]
        %v5823 = vld [vmem:[%s5727 + $0x2f8] sm:$0xff]
        %v5824 = vld [vmem:[%s5727 + $0x300] sm:$0xf]
        %v5825 = vld [vmem:[%s5727 + $0x308] sm:$0xf]
        %v5826 = vld [vmem:[%s5727 + $0x310] sm:$0xf]
        %v5827 = vld [vmem:[%s5727 + $0x318] sm:$0xf]
        %v5828 = vld [vmem:[#allocation3] sm:$0x1]
        %v5830 = vlaneseq
        %v5831 = vshrl.u32 %v5830, 7
        %v5832 = vsub.s32 0, %v5831
        %v5833 = vrot.slane %v5828, %v5832
        %5835 = vmatprep.subr.mxu0 0.0
        %5836 = vmatpush1.msra.mxu0 %v273
        %5837 = vmatprep.subr.mxu0 0.0
        %5838 = vmatpush1.msra.mxu0 %v272
        %5839 = vmatprep.subr.mxu0 0.0
        %5840 = vmatpush1.msra.mxu0 %v271
        %5841 = vmatprep.subr.mxu0 0.0
        %5842 = vmatpush1.msra.mxu0 %v270
        %5843 = vmatprep.subr.mxu0 0.0
        %5844 = vmatpush1.msra.mxu0 %v269
        %5845 = vmatprep.subr.mxu0 0.0
        %5846 = vmatpush1.msra.mxu0 %v268
        %5847 = vmatprep.subr.mxu0 0.0
        %5848 = vmatpush1.msra.mxu0 %v267
        %5849 = vmatprep.subr.mxu0 0.0
        %5850 = vmatpush1.msra.mxu0 %v266
        %5851 = vmatprep.subr.mxu0 0.0
        %5852 = vmatpush1.msra.mxu0 %v265
        %5853 = vmatprep.subr.mxu0 0.0
        %5854 = vmatpush1.msra.mxu0 %v264
        %5855 = vmatprep.subr.mxu0 0.0
        %5856 = vmatpush1.msra.mxu0 %v263
        %5857 = vmatprep.subr.mxu0 0.0
        %5858 = vmatpush1.msra.mxu0 %v262
        %5859 = vmatprep.subr.mxu0 0.0
        %5860 = vmatpush1.msra.mxu0 %v261
        %5861 = vmatprep.subr.mxu0 0.0
        %5862 = vmatpush1.msra.mxu0 %v260
        %5863 = vmatprep.subr.mxu0 0.0
        %5864 = vmatpush1.msra.mxu0 %v259
        %5865 = vmatprep.subr.mxu0 0.0
        %5866 = vmatpush1.msra.mxu0 %v258
        %5867 = vmatprep.subr.mxu0 0.0
        %5868 = vmatpush2.msra.mxu0 %v289
        %5869 = vmatprep.subr.mxu0 0.0
        %5870 = vmatpush2.msra.mxu0 %v288
        %5871 = vmatprep.subr.mxu0 0.0
        %5872 = vmatpush2.msra.mxu0 %v287
        %5873 = vmatprep.subr.mxu0 0.0
        %5874 = vmatpush2.msra.mxu0 %v286
        %5875 = vmatprep.subr.mxu0 0.0
        %5876 = vmatpush2.msra.mxu0 %v285
        %5877 = vmatprep.subr.mxu0 0.0
        %5878 = vmatpush2.msra.mxu0 %v284
        %5879 = vmatprep.subr.mxu0 0.0
        %5880 = vmatpush2.msra.mxu0 %v283
        %5881 = vmatprep.subr.mxu0 0.0
        %5882 = vmatpush2.msra.mxu0 %v282
        %5883 = vmatprep.subr.mxu0 0.0
        %5884 = vmatpush2.msra.mxu0 %v281
        %5885 = vmatprep.subr.mxu0 0.0
        %5886 = vmatpush2.msra.mxu0 %v280
        %5887 = vmatprep.subr.mxu0 0.0
        %5888 = vmatpush2.msra.mxu0 %v279
        %5889 = vmatprep.subr.mxu0 0.0
        %5890 = vmatpush2.msra.mxu0 %v278
        %5891 = vmatprep.subr.mxu0 0.0
        %5892 = vmatpush2.msra.mxu0 %v277
        %5893 = vmatprep.subr.mxu0 0.0
        %5894 = vmatpush2.msra.mxu0 %v276
        %5895 = vmatprep.subr.mxu0 0.0
        %5896 = vmatpush2.msra.mxu0 %v275
        %5897 = vmatprep.subr.mxu0 0.0
        %5898 = vmatpush2.msra.mxu0 %v274
        %5899 = vmatprep.mubr.f32.mxu0 %v5729
        %5900 = vmatmul.mubr.f32.gmra.mxu0 %v5728
        %v5901 = vpop.f32.mrf.mxu0
        %v5902 = vadd.f32 %v5833, %v5901
        %v5903 = vpop.f32.mrf.mxu0
        %5904 = vmatprep.mubr.f32.mxu0 %v5733
        %5905 = vmatmul.mubr.f32.gmra.mxu0 %v5732
        %v5906 = vpop.f32.mrf.mxu0
        %v5907 = vadd.f32 %v5833, %v5906
        %v5908 = vpop.f32.mrf.mxu0
        %5909 = vmatprep.mubr.f32.mxu0 %v5737
        %5910 = vmatmul.mubr.f32.gmra.mxu0 %v5736
        %v5911 = vpop.f32.mrf.mxu0
        %v5912 = vadd.f32 %v5833, %v5911
        %v5913 = vpop.f32.mrf.mxu0
        %5914 = vmatprep.mubr.f32.mxu0 %v5741
        %5915 = vmatmul.mubr.f32.gmra.mxu0 %v5740
        %v5916 = vpop.f32.mrf.mxu0
        %v5917 = vadd.f32 %v5833, %v5916
        %v5918 = vpop.f32.mrf.mxu0
        %5919 = vmatprep.mubr.f32.mxu0 %v5745
        %5920 = vmatmul.mubr.f32.gmra.mxu0 %v5744
        %v5921 = vpop.f32.mrf.mxu0
        %v5922 = vadd.f32 %v5833, %v5921
        %v5923 = vpop.f32.mrf.mxu0
        %5924 = vmatprep.mubr.f32.mxu0 %v5749
        %5925 = vmatmul.mubr.f32.gmra.mxu0 %v5748
        %v5926 = vpop.f32.mrf.mxu0
        %v5927 = vadd.f32 %v5833, %v5926
        %v5928 = vpop.f32.mrf.mxu0
        %5929 = vmatprep.mubr.f32.mxu0 %v5753
        %5930 = vmatmul.mubr.f32.gmra.mxu0 %v5752
        %v5931 = vpop.f32.mrf.mxu0
        %v5932 = vadd.f32 %v5833, %v5931
        %v5933 = vpop.f32.mrf.mxu0
        %5934 = vmatprep.mubr.f32.mxu0 %v5757
        %5935 = vmatmul.mubr.f32.gmra.mxu0 %v5756
        %v5936 = vpop.f32.mrf.mxu0
        %v5937 = vadd.f32 %v5833, %v5936
        %v5938 = vpop.f32.mrf.mxu0
        %5939 = vmatprep.mubr.f32.mxu0 %v5761
        %5940 = vmatmul.mubr.f32.gmra.mxu0 %v5760
        %v5941 = vpop.f32.mrf.mxu0
        %v5942 = vadd.f32 %v5833, %v5941
        %v5943 = vpop.f32.mrf.mxu0
        %5944 = vmatprep.mubr.f32.mxu0 %v5765
        %5945 = vmatmul.mubr.f32.gmra.mxu0 %v5764
        %v5946 = vpop.f32.mrf.mxu0
        %v5947 = vadd.f32 %v5833, %v5946
        %v5948 = vpop.f32.mrf.mxu0
        %5949 = vmatprep.mubr.f32.mxu0 %v5769
        %5950 = vmatmul.mubr.f32.gmra.mxu0 %v5768
        %v5951 = vpop.f32.mrf.mxu0
        %v5952 = vadd.f32 %v5833, %v5951
        %v5953 = vpop.f32.mrf.mxu0
        %5954 = vmatprep.mubr.f32.mxu0 %v5773
        %5955 = vmatmul.mubr.f32.gmra.mxu0 %v5772
        %v5956 = vpop.f32.mrf.mxu0
        %v5957 = vadd.f32 %v5833, %v5956
        %v5958 = vpop.f32.mrf.mxu0
        %5959 = vmatprep.mubr.f32.mxu0 %v5777
        %5960 = vmatmul.mubr.f32.gmra.mxu0 %v5776
        %v5961 = vpop.f32.mrf.mxu0
        %v5962 = vadd.f32 %v5833, %v5961
        %v5963 = vpop.f32.mrf.mxu0
        %5964 = vmatprep.mubr.f32.mxu0 %v5781
        %5965 = vmatmul.mubr.f32.gmra.mxu0 %v5780
        %v5966 = vpop.f32.mrf.mxu0
        %v5967 = vadd.f32 %v5833, %v5966
        %v5968 = vpop.f32.mrf.mxu0
        %5969 = vmatprep.mubr.f32.mxu0 %v5785
        %5970 = vmatmul.mubr.f32.gmra.mxu0 %v5784
        %v5971 = vpop.f32.mrf.mxu0
        %v5972 = vadd.f32 %v5833, %v5971
        %v5973 = vpop.f32.mrf.mxu0
        %5974 = vmatprep.mubr.f32.mxu0 %v5789
        %5975 = vmatmul.mubr.f32.gmra.mxu0 %v5788
        %v5976 = vpop.f32.mrf.mxu0
        %v5977 = vadd.f32 %v5833, %v5976
        %v5978 = vpop.f32.mrf.mxu0
        %5979 = vmatprep.mubr.f32.mxu0 %v5793
        %5980 = vmatmul.mubr.f32.gmra.mxu0 %v5792
        %v5981 = vpop.f32.mrf.mxu0
        %v5982 = vadd.f32 %v5833, %v5981
        %v5983 = vpop.f32.mrf.mxu0
        %5984 = vmatprep.mubr.f32.mxu0 %v5797
        %5985 = vmatmul.mubr.f32.gmra.mxu0 %v5796
        %v5986 = vpop.f32.mrf.mxu0
        %v5987 = vadd.f32 %v5833, %v5986
        %v5988 = vpop.f32.mrf.mxu0
        %5989 = vmatprep.mubr.f32.mxu0 %v5801
        %5990 = vmatmul.mubr.f32.gmra.mxu0 %v5800
        %v5991 = vpop.f32.mrf.mxu0
        %v5992 = vadd.f32 %v5833, %v5991
        %v5993 = vpop.f32.mrf.mxu0
        %5994 = vmatprep.mubr.f32.mxu0 %v5805
        %5995 = vmatmul.mubr.f32.gmra.mxu0 %v5804
        %v5996 = vpop.f32.mrf.mxu0
        %v5997 = vadd.f32 %v5833, %v5996
        %v5998 = vpop.f32.mrf.mxu0
        %5999 = vmatprep.mubr.f32.mxu0 %v5809
        %6000 = vmatmul.mubr.f32.gmra.mxu0 %v5808
        %v6001 = vpop.f32.mrf.mxu0
        %v6002 = vadd.f32 %v5833, %v6001
        %v6003 = vpop.f32.mrf.mxu0
        %6004 = vmatprep.mubr.f32.mxu0 %v5813
        %6005 = vmatmul.mubr.f32.gmra.mxu0 %v5812
        %v6006 = vpop.f32.mrf.mxu0
        %v6007 = vadd.f32 %v5833, %v6006
        %v6008 = vpop.f32.mrf.mxu0
        %6009 = vmatprep.mubr.f32.mxu0 %v5817
        %6010 = vmatmul.mubr.f32.gmra.mxu0 %v5816
        %v6011 = vpop.f32.mrf.mxu0
        %v6012 = vadd.f32 %v5833, %v6011
        %v6013 = vpop.f32.mrf.mxu0
        %6014 = vmatprep.mubr.f32.mxu0 %v5821
        %6015 = vmatmul.mubr.f32.gmra.mxu0 %v5820
        %v6016 = vpop.f32.mrf.mxu0
        %v6017 = vadd.f32 %v5833, %v6016
        %v6018 = vpop.f32.mrf.mxu0
        %6019 = vmatprep.mubr.f32.mxu0 %v5825
        %6020 = vmatmul.mubr.f32.gmra.mxu0 %v5824
        %v6021 = vpop.f32.mrf.mxu0
        %v6022 = vadd.f32 %v5833, %v6021
        %v6023 = vpop.f32.mrf.mxu0
        %6024 = vdwg.mxu0
        %6025 = vmatprep.subr.mxu0 0.0
        %6026 = vmatpush1.msra.mxu0 %v305
        %6027 = vmatprep.subr.mxu0 0.0
        %6028 = vmatpush1.msra.mxu0 %v304
        %6029 = vmatprep.subr.mxu0 0.0
        %6030 = vmatpush1.msra.mxu0 %v303
        %6031 = vmatprep.subr.mxu0 0.0
        %6032 = vmatpush1.msra.mxu0 %v302
        %6033 = vmatprep.subr.mxu0 0.0
        %6034 = vmatpush1.msra.mxu0 %v301
        %6035 = vmatprep.subr.mxu0 0.0
        %6036 = vmatpush1.msra.mxu0 %v300
        %6037 = vmatprep.subr.mxu0 0.0
        %6038 = vmatpush1.msra.mxu0 %v299
        %6039 = vmatprep.subr.mxu0 0.0
        %6040 = vmatpush1.msra.mxu0 %v298
        %6041 = vmatprep.subr.mxu0 0.0
        %6042 = vmatpush1.msra.mxu0 %v297
        %6043 = vmatprep.subr.mxu0 0.0
        %6044 = vmatpush1.msra.mxu0 %v296
        %6045 = vmatprep.subr.mxu0 0.0
        %6046 = vmatpush1.msra.mxu0 %v295
        %6047 = vmatprep.subr.mxu0 0.0
        %6048 = vmatpush1.msra.mxu0 %v294
        %6049 = vmatprep.subr.mxu0 0.0
        %6050 = vmatpush1.msra.mxu0 %v293
        %6051 = vmatprep.subr.mxu0 0.0
        %6052 = vmatpush1.msra.mxu0 %v292
        %6053 = vmatprep.subr.mxu0 0.0
        %6054 = vmatpush1.msra.mxu0 %v291
        %6055 = vmatprep.subr.mxu0 0.0
        %6056 = vmatpush1.msra.mxu0 %v290
        %6057 = vmatprep.subr.mxu0 0.0
        %6058 = vmatpush2.msra.mxu0 %v321
        %6059 = vmatprep.subr.mxu0 0.0
        %6060 = vmatpush2.msra.mxu0 %v320
        %6061 = vmatprep.subr.mxu0 0.0
        %6062 = vmatpush2.msra.mxu0 %v319
        %6063 = vmatprep.subr.mxu0 0.0
        %6064 = vmatpush2.msra.mxu0 %v318
        %6065 = vmatprep.subr.mxu0 0.0
        %6066 = vmatpush2.msra.mxu0 %v317
        %6067 = vmatprep.subr.mxu0 0.0
        %6068 = vmatpush2.msra.mxu0 %v316
        %6069 = vmatprep.subr.mxu0 0.0
        %6070 = vmatpush2.msra.mxu0 %v315
        %6071 = vmatprep.subr.mxu0 0.0
        %6072 = vmatpush2.msra.mxu0 %v314
        %6073 = vmatprep.subr.mxu0 0.0
        %6074 = vmatpush2.msra.mxu0 %v313
        %6075 = vmatprep.subr.mxu0 0.0
        %6076 = vmatpush2.msra.mxu0 %v312
        %6077 = vmatprep.subr.mxu0 0.0
        %6078 = vmatpush2.msra.mxu0 %v311
        %6079 = vmatprep.subr.mxu0 0.0
        %6080 = vmatpush2.msra.mxu0 %v310
        %6081 = vmatprep.subr.mxu0 0.0
        %6082 = vmatpush2.msra.mxu0 %v309
        %6083 = vmatprep.subr.mxu0 0.0
        %6084 = vmatpush2.msra.mxu0 %v308
        %6085 = vmatprep.subr.mxu0 0.0
        %6086 = vmatpush2.msra.mxu0 %v307
        %6087 = vmatprep.subr.mxu0 0.0
        %6088 = vmatpush2.msra.mxu0 %v306
        %6089 = vmatprep.mubr.f32.mxu0 %v5731
        %6090 = vmatmul.mubr.f32.gmra.mxu0 %v5730
        %v6091 = vpop.f32.mrf.mxu0
        %v6092 = vadd.f32 %v5902, %v6091
        %v6093 = vpop.f32.mrf.mxu0
        %6094 = vmatprep.mubr.f32.mxu0 %v5735
        %6095 = vmatmul.mubr.f32.gmra.mxu0 %v5734
        %v6096 = vpop.f32.mrf.mxu0
        %v6097 = vadd.f32 %v5907, %v6096
        %v6098 = vpop.f32.mrf.mxu0
        %6099 = vmatprep.mubr.f32.mxu0 %v5739
        %6100 = vmatmul.mubr.f32.gmra.mxu0 %v5738
        %v6101 = vpop.f32.mrf.mxu0
        %v6102 = vadd.f32 %v5912, %v6101
        %v6103 = vpop.f32.mrf.mxu0
        %6104 = vmatprep.mubr.f32.mxu0 %v5743
        %6105 = vmatmul.mubr.f32.gmra.mxu0 %v5742
        %v6106 = vpop.f32.mrf.mxu0
        %v6107 = vadd.f32 %v5917, %v6106
        %v6108 = vpop.f32.mrf.mxu0
        %6109 = vmatprep.mubr.f32.mxu0 %v5747
        %6110 = vmatmul.mubr.f32.gmra.mxu0 %v5746
        %v6111 = vpop.f32.mrf.mxu0
        %v6112 = vadd.f32 %v5922, %v6111
        %v6113 = vpop.f32.mrf.mxu0
        %6114 = vmatprep.mubr.f32.mxu0 %v5751
        %6115 = vmatmul.mubr.f32.gmra.mxu0 %v5750
        %v6116 = vpop.f32.mrf.mxu0
        %v6117 = vadd.f32 %v5927, %v6116
        %v6118 = vpop.f32.mrf.mxu0
        %6119 = vmatprep.mubr.f32.mxu0 %v5755
        %6120 = vmatmul.mubr.f32.gmra.mxu0 %v5754
        %v6121 = vpop.f32.mrf.mxu0
        %v6122 = vadd.f32 %v5932, %v6121
        %v6123 = vpop.f32.mrf.mxu0
        %6124 = vmatprep.mubr.f32.mxu0 %v5759
        %6125 = vmatmul.mubr.f32.gmra.mxu0 %v5758
        %v6126 = vpop.f32.mrf.mxu0
        %v6127 = vadd.f32 %v5937, %v6126
        %v6128 = vpop.f32.mrf.mxu0
        %6129 = vmatprep.mubr.f32.mxu0 %v5763
        %6130 = vmatmul.mubr.f32.gmra.mxu0 %v5762
        %v6131 = vpop.f32.mrf.mxu0
        %v6132 = vadd.f32 %v5942, %v6131
        %v6133 = vpop.f32.mrf.mxu0
        %6134 = vmatprep.mubr.f32.mxu0 %v5767
        %6135 = vmatmul.mubr.f32.gmra.mxu0 %v5766
        %v6136 = vpop.f32.mrf.mxu0
        %v6137 = vadd.f32 %v5947, %v6136
        %v6138 = vpop.f32.mrf.mxu0
        %6139 = vmatprep.mubr.f32.mxu0 %v5771
        %6140 = vmatmul.mubr.f32.gmra.mxu0 %v5770
        %v6141 = vpop.f32.mrf.mxu0
        %v6142 = vadd.f32 %v5952, %v6141
        %v6143 = vpop.f32.mrf.mxu0
        %6144 = vmatprep.mubr.f32.mxu0 %v5775
        %6145 = vmatmul.mubr.f32.gmra.mxu0 %v5774
        %v6146 = vpop.f32.mrf.mxu0
        %v6147 = vadd.f32 %v5957, %v6146
        %v6148 = vpop.f32.mrf.mxu0
        %6149 = vmatprep.mubr.f32.mxu0 %v5779
        %6150 = vmatmul.mubr.f32.gmra.mxu0 %v5778
        %v6151 = vpop.f32.mrf.mxu0
        %v6152 = vadd.f32 %v5962, %v6151
        %v6153 = vpop.f32.mrf.mxu0
        %6154 = vmatprep.mubr.f32.mxu0 %v5783
        %6155 = vmatmul.mubr.f32.gmra.mxu0 %v5782
        %v6156 = vpop.f32.mrf.mxu0
        %v6157 = vadd.f32 %v5967, %v6156
        %v6158 = vpop.f32.mrf.mxu0
        %6159 = vmatprep.mubr.f32.mxu0 %v5787
        %6160 = vmatmul.mubr.f32.gmra.mxu0 %v5786
        %v6161 = vpop.f32.mrf.mxu0
        %v6162 = vadd.f32 %v5972, %v6161
        %v6163 = vpop.f32.mrf.mxu0
        %6164 = vmatprep.mubr.f32.mxu0 %v5791
        %6165 = vmatmul.mubr.f32.gmra.mxu0 %v5790
        %v6166 = vpop.f32.mrf.mxu0
        %v6167 = vadd.f32 %v5977, %v6166
        %v6168 = vpop.f32.mrf.mxu0
        %6169 = vmatprep.mubr.f32.mxu0 %v5795
        %6170 = vmatmul.mubr.f32.gmra.mxu0 %v5794
        %v6171 = vpop.f32.mrf.mxu0
        %v6172 = vadd.f32 %v5982, %v6171
        %v6173 = vpop.f32.mrf.mxu0
        %6174 = vmatprep.mubr.f32.mxu0 %v5799
        %6175 = vmatmul.mubr.f32.gmra.mxu0 %v5798
        %v6176 = vpop.f32.mrf.mxu0
        %v6177 = vadd.f32 %v5987, %v6176
        %v6178 = vpop.f32.mrf.mxu0
        %6179 = vmatprep.mubr.f32.mxu0 %v5803
        %6180 = vmatmul.mubr.f32.gmra.mxu0 %v5802
        %v6181 = vpop.f32.mrf.mxu0
        %v6182 = vadd.f32 %v5992, %v6181
        %v6183 = vpop.f32.mrf.mxu0
        %6184 = vmatprep.mubr.f32.mxu0 %v5807
        %6185 = vmatmul.mubr.f32.gmra.mxu0 %v5806
        %v6186 = vpop.f32.mrf.mxu0
        %v6187 = vadd.f32 %v5997, %v6186
        %v6188 = vpop.f32.mrf.mxu0
        %6189 = vmatprep.mubr.f32.mxu0 %v5811
        %6190 = vmatmul.mubr.f32.gmra.mxu0 %v5810
        %v6191 = vpop.f32.mrf.mxu0
        %v6192 = vadd.f32 %v6002, %v6191
        %v6193 = vpop.f32.mrf.mxu0
        %6194 = vmatprep.mubr.f32.mxu0 %v5815
        %6195 = vmatmul.mubr.f32.gmra.mxu0 %v5814
        %v6196 = vpop.f32.mrf.mxu0
        %v6197 = vadd.f32 %v6007, %v6196
        %v6198 = vpop.f32.mrf.mxu0
        %6199 = vmatprep.mubr.f32.mxu0 %v5819
        %6200 = vmatmul.mubr.f32.gmra.mxu0 %v5818
        %v6201 = vpop.f32.mrf.mxu0
        %v6202 = vadd.f32 %v6012, %v6201
        %v6203 = vpop.f32.mrf.mxu0
        %6204 = vmatprep.mubr.f32.mxu0 %v5823
        %6205 = vmatmul.mubr.f32.gmra.mxu0 %v5822
        %v6206 = vpop.f32.mrf.mxu0
        %v6207 = vadd.f32 %v6017, %v6206
        %v6208 = vpop.f32.mrf.mxu0
        %6209 = vmatprep.mubr.f32.mxu0 %v5827
        %6210 = vmatmul.mubr.f32.gmra.mxu0 %v5826
        %v6211 = vpop.f32.mrf.mxu0
        %v6212 = vadd.f32 %v6022, %v6211
        %v6213 = vpop.f32.mrf.mxu0
        %6214 = vdwg.mxu0
        %v6215 = vsel %vm809, %v6092, -inf
        %v6216 = vsel %vm809, %v6097, -inf
        %v6217 = vsel %vm809, %v6102, -inf
        %v6218 = vsel %vm809, %v6107, -inf
        %v6219 = vsel %vm809, %v6112, -inf
        %v6220 = vmax.f32 %v6215, %v6219
        %v6221 = vsel %vm809, %v6117, -inf
        %v6222 = vmax.f32 %v6216, %v6221
        %v6223 = vsel %vm809, %v6122, -inf
        %v6224 = vmax.f32 %v6217, %v6223
        %v6225 = vsel %vm809, %v6127, -inf
        %v6226 = vmax.f32 %v6218, %v6225
        %v6227 = vsel %vm809, %v6132, -inf
        %v6228 = vmax.f32 %v6220, %v6227
        %v6229 = vsel %vm809, %v6137, -inf
        %v6230 = vmax.f32 %v6222, %v6229
        %v6231 = vsel %vm809, %v6142, -inf
        %v6232 = vmax.f32 %v6224, %v6231
        %v6233 = vsel %vm809, %v6147, -inf
        %v6234 = vmax.f32 %v6226, %v6233
        %v6235 = vsel %vm809, %v6152, -inf
        %v6236 = vmax.f32 %v6228, %v6235
        %v6237 = vsel %vm809, %v6157, -inf
        %v6238 = vmax.f32 %v6230, %v6237
        %v6239 = vsel %vm809, %v6162, -inf
        %v6240 = vmax.f32 %v6232, %v6239
        %v6241 = vsel %vm809, %v6167, -inf
        %v6242 = vmax.f32 %v6234, %v6241
        %v6243 = vsel %vm809, %v6172, -inf
        %v6244 = vmax.f32 %v6236, %v6243
        %v6245 = vsel %vm809, %v6177, -inf
        %v6246 = vmax.f32 %v6238, %v6245
        %v6247 = vsel %vm809, %v6182, -inf
        %v6248 = vmax.f32 %v6240, %v6247
        %v6249 = vsel %vm809, %v6187, -inf
        %v6250 = vmax.f32 %v6242, %v6249
        %v6251 = vsel %vm809, %v6192, -inf
        %v6252 = vmax.f32 %v6244, %v6251
        %v6253 = vsel %vm809, %v6197, -inf
        %v6254 = vmax.f32 %v6246, %v6253
        %v6255 = vsel %vm809, %v6202, -inf
        %v6256 = vmax.f32 %v6248, %v6255
        %v6257 = vsel %vm809, %v6207, -inf
        %v6258 = vmax.f32 %v6250, %v6257
        %v6259 = vsel %vm854, %v6212, -inf
        %v6260 = vmax.f32 %v6252, %v6259
        %v6261 = vmax.f32 %v6260, %v6254
        %v6262 = vmax.f32 %v6256, %v6258
        %v6263 = vmax.f32 %v6261, %v6262
        %v6264 = vrot.slane %v6263, 4
        %v6265 = vmax.f32 %v6263, %v6264
        %v6266 = vrot.slane %v6265, 2
        %v6267 = vmax.f32 %v6265, %v6266
        %v6268 = vrot.slane %v6267, 1
        %v6269 = vmax.f32 %v6267, %v6268
        %v6270 = vsub.f32 %v6092, %v6269
        %v6271 = vsub.f32 %v6097, %v6269
        %v6272 = vsub.f32 %v6102, %v6269
        %v6273 = vsub.f32 %v6107, %v6269
        %v6274 = vsub.f32 %v6112, %v6269
        %v6275 = vsub.f32 %v6117, %v6269
        %v6276 = vsub.f32 %v6122, %v6269
        %v6277 = vsub.f32 %v6127, %v6269
        %v6278 = vsub.f32 %v6132, %v6269
        %v6279 = vsub.f32 %v6137, %v6269
        %v6280 = vsub.f32 %v6142, %v6269
        %v6281 = vsub.f32 %v6147, %v6269
        %v6282 = vsub.f32 %v6152, %v6269
        %v6283 = vsub.f32 %v6157, %v6269
        %v6284 = vsub.f32 %v6162, %v6269
        %v6285 = vsub.f32 %v6167, %v6269
        %v6286 = vsub.f32 %v6172, %v6269
        %v6287 = vsub.f32 %v6177, %v6269
        %v6288 = vsub.f32 %v6182, %v6269
        %v6289 = vsub.f32 %v6187, %v6269
        %v6290 = vsub.f32 %v6192, %v6269
        %v6291 = vsub.f32 %v6197, %v6269
        %v6292 = vsub.f32 %v6202, %v6269
        %v6293 = vsub.f32 %v6207, %v6269
        %v6294 = vsub.f32 %v6212, %v6269
        %v6295 = vmul.f32 %v6270, 1.442695
        %v6296 = vpow.pop %v6295
        %v6297 = vmul.f32 %v6271, 1.442695
        %v6298 = vpow.pop %v6297
        %v6299 = vmul.f32 %v6272, 1.442695
        %v6300 = vpow.pop %v6299
        %v6301 = vmul.f32 %v6273, 1.442695
        %v6302 = vpow.pop %v6301
        %v6303 = vmul.f32 %v6274, 1.442695
        %v6304 = vpow.pop %v6303
        %v6305 = vmul.f32 %v6275, 1.442695
        %v6306 = vpow.pop %v6305
        %v6307 = vmul.f32 %v6276, 1.442695
        %v6308 = vpow.pop %v6307
        %v6309 = vmul.f32 %v6277, 1.442695
        %v6310 = vpow.pop %v6309
        %v6311 = vmul.f32 %v6278, 1.442695
        %v6312 = vpow.pop %v6311
        %v6313 = vmul.f32 %v6279, 1.442695
        %v6314 = vpow.pop %v6313
        %v6315 = vmul.f32 %v6280, 1.442695
        %v6316 = vpow.pop %v6315
        %v6317 = vmul.f32 %v6281, 1.442695
        %v6318 = vpow.pop %v6317
        %v6319 = vmul.f32 %v6282, 1.442695
        %v6320 = vpow.pop %v6319
        %v6321 = vmul.f32 %v6283, 1.442695
        %v6322 = vpow.pop %v6321
        %v6323 = vmul.f32 %v6284, 1.442695
        %v6324 = vpow.pop %v6323
        %v6325 = vmul.f32 %v6285, 1.442695
        %v6326 = vpow.pop %v6325
        %v6327 = vmul.f32 %v6286, 1.442695
        %v6328 = vpow.pop %v6327
        %v6329 = vmul.f32 %v6287, 1.442695
        %v6330 = vpow.pop %v6329
        %v6331 = vmul.f32 %v6288, 1.442695
        %v6332 = vpow.pop %v6331
        %v6333 = vmul.f32 %v6289, 1.442695
        %v6334 = vpow.pop %v6333
        %v6335 = vmul.f32 %v6290, 1.442695
        %v6336 = vpow.pop %v6335
        %v6337 = vmul.f32 %v6291, 1.442695
        %v6338 = vpow.pop %v6337
        %v6339 = vmul.f32 %v6292, 1.442695
        %v6340 = vpow.pop %v6339
        %v6341 = vmul.f32 %v6293, 1.442695
        %v6342 = vpow.pop %v6341
        %v6343 = vmul.f32 %v6294, 1.442695
        %v6344 = vpow.pop %v6343
        %v6345 = vsel %vm809, %v6296, 0.0
        %v6346 = vsel %vm809, %v6298, 0.0
        %v6347 = vadd.f32 %v6345, %v6346
        %v6348 = vsel %vm809, %v6300, 0.0
        %v6349 = vadd.f32 %v6347, %v6348
        %v6350 = vsel %vm809, %v6302, 0.0
        %v6351 = vadd.f32 %v6349, %v6350
        %v6352 = vsel %vm809, %v6304, 0.0
        %v6353 = vadd.f32 %v6351, %v6352
        %v6354 = vsel %vm809, %v6306, 0.0
        %v6355 = vadd.f32 %v6353, %v6354
        %v6356 = vsel %vm809, %v6308, 0.0
        %v6357 = vadd.f32 %v6355, %v6356
        %v6358 = vsel %vm809, %v6310, 0.0
        %v6359 = vadd.f32 %v6357, %v6358
        %v6360 = vsel %vm809, %v6312, 0.0
        %v6361 = vadd.f32 %v6359, %v6360
        %v6362 = vsel %vm809, %v6314, 0.0
        %v6363 = vadd.f32 %v6361, %v6362
        %v6364 = vsel %vm809, %v6316, 0.0
        %v6365 = vadd.f32 %v6363, %v6364
        %v6366 = vsel %vm809, %v6318, 0.0
        %v6367 = vadd.f32 %v6365, %v6366
        %v6368 = vsel %vm809, %v6320, 0.0
        %v6369 = vadd.f32 %v6367, %v6368
        %v6370 = vsel %vm809, %v6322, 0.0
        %v6371 = vadd.f32 %v6369, %v6370
        %v6372 = vsel %vm809, %v6324, 0.0
        %v6373 = vadd.f32 %v6371, %v6372
        %v6374 = vsel %vm809, %v6326, 0.0
        %v6375 = vadd.f32 %v6373, %v6374
        %v6376 = vsel %vm809, %v6328, 0.0
        %v6377 = vadd.f32 %v6375, %v6376
        %v6378 = vsel %vm809, %v6330, 0.0
        %v6379 = vadd.f32 %v6377, %v6378
        %v6380 = vsel %vm809, %v6332, 0.0
        %v6381 = vadd.f32 %v6379, %v6380
        %v6382 = vsel %vm809, %v6334, 0.0
        %v6383 = vadd.f32 %v6381, %v6382
        %v6384 = vsel %vm809, %v6336, 0.0
        %v6385 = vadd.f32 %v6383, %v6384
        %v6386 = vsel %vm809, %v6338, 0.0
        %v6387 = vadd.f32 %v6385, %v6386
        %v6388 = vsel %vm809, %v6340, 0.0
        %v6389 = vadd.f32 %v6387, %v6388
        %v6390 = vsel %vm809, %v6342, 0.0
        %v6391 = vadd.f32 %v6389, %v6390
        %v6392 = vsel %vm854, %v6344, 0.0
        %v6393 = vadd.f32 %v6391, %v6392
        %v6394 = vrot.slane %v6393, 4
        %v6395 = vadd.f32 %v6393, %v6394
        %v6396 = vrot.slane %v6395, 2
        %v6397 = vadd.f32 %v6395, %v6396
        %v6398 = vrot.slane %v6397, 1
        %v6399 = vadd.f32 %v6397, %v6398
        %v6400 = vrcp.pop %v6399
        %v6401 = vmul.f32 %v6296, %v6400
        %v6402 = vmul.f32 %v6298, %v6400
        %v6403 = vmul.f32 %v6300, %v6400
        %v6404 = vmul.f32 %v6302, %v6400
        %v6405 = vmul.f32 %v6304, %v6400
        %v6406 = vmul.f32 %v6306, %v6400
        %v6407 = vmul.f32 %v6308, %v6400
        %v6408 = vmul.f32 %v6310, %v6400
        %v6409 = vmul.f32 %v6312, %v6400
        %v6410 = vmul.f32 %v6314, %v6400
        %v6411 = vmul.f32 %v6316, %v6400
        %v6412 = vmul.f32 %v6318, %v6400
        %v6413 = vmul.f32 %v6320, %v6400
        %v6414 = vmul.f32 %v6322, %v6400
        %v6415 = vmul.f32 %v6324, %v6400
        %v6416 = vmul.f32 %v6326, %v6400
        %v6417 = vmul.f32 %v6328, %v6400
        %v6418 = vmul.f32 %v6330, %v6400
        %v6419 = vmul.f32 %v6332, %v6400
        %v6420 = vmul.f32 %v6334, %v6400
        %v6421 = vmul.f32 %v6336, %v6400
        %v6422 = vmul.f32 %v6338, %v6400
        %v6423 = vmul.f32 %v6340, %v6400
        %v6424 = vmul.f32 %v6342, %v6400
        %v6425 = vmul.f32 %v6344, %v6400
        %6427 = vset.pattern.permute.xlu0 0
        %6428 = vperm.xlu0 %6427, %v6401
        %v6429 = vpop.permute.xlu0 %6428
        %6432 = vset.pattern.permute.xlu0 0
        %6433 = vperm.xlu0 %6432, %v6402
        %v6434 = vpop.permute.xlu0 %6433
        %6437 = vset.pattern.permute.xlu0 0
        %6438 = vperm.xlu0 %6437, %v6403
        %v6439 = vpop.permute.xlu0 %6438
        %6442 = vset.pattern.permute.xlu0 0
        %6443 = vperm.xlu0 %6442, %v6404
        %v6444 = vpop.permute.xlu0 %6443
        %6447 = vset.pattern.permute.xlu0 0
        %6448 = vperm.xlu0 %6447, %v6405
        %v6449 = vpop.permute.xlu0 %6448
        %6452 = vset.pattern.permute.xlu0 0
        %6453 = vperm.xlu0 %6452, %v6406
        %v6454 = vpop.permute.xlu0 %6453
        %6457 = vset.pattern.permute.xlu0 0
        %6458 = vperm.xlu0 %6457, %v6407
        %v6459 = vpop.permute.xlu0 %6458
        %6462 = vset.pattern.permute.xlu0 0
        %6463 = vperm.xlu0 %6462, %v6408
        %v6464 = vpop.permute.xlu0 %6463
        %6467 = vset.pattern.permute.xlu0 0
        %6468 = vperm.xlu0 %6467, %v6409
        %v6469 = vpop.permute.xlu0 %6468
        %6472 = vset.pattern.permute.xlu0 0
        %6473 = vperm.xlu0 %6472, %v6410
        %v6474 = vpop.permute.xlu0 %6473
        %6477 = vset.pattern.permute.xlu0 0
        %6478 = vperm.xlu0 %6477, %v6411
        %v6479 = vpop.permute.xlu0 %6478
        %6482 = vset.pattern.permute.xlu0 0
        %6483 = vperm.xlu0 %6482, %v6412
        %v6484 = vpop.permute.xlu0 %6483
        %6487 = vset.pattern.permute.xlu0 0
        %6488 = vperm.xlu0 %6487, %v6413
        %v6489 = vpop.permute.xlu0 %6488
        %6492 = vset.pattern.permute.xlu0 0
        %6493 = vperm.xlu0 %6492, %v6414
        %v6494 = vpop.permute.xlu0 %6493
        %6497 = vset.pattern.permute.xlu0 0
        %6498 = vperm.xlu0 %6497, %v6415
        %v6499 = vpop.permute.xlu0 %6498
        %6502 = vset.pattern.permute.xlu0 0
        %6503 = vperm.xlu0 %6502, %v6416
        %v6504 = vpop.permute.xlu0 %6503
        %6507 = vset.pattern.permute.xlu0 0
        %6508 = vperm.xlu0 %6507, %v6417
        %v6509 = vpop.permute.xlu0 %6508
        %6512 = vset.pattern.permute.xlu0 0
        %6513 = vperm.xlu0 %6512, %v6418
        %v6514 = vpop.permute.xlu0 %6513
        %6517 = vset.pattern.permute.xlu0 0
        %6518 = vperm.xlu0 %6517, %v6419
        %v6519 = vpop.permute.xlu0 %6518
        %6522 = vset.pattern.permute.xlu0 0
        %6523 = vperm.xlu0 %6522, %v6420
        %v6524 = vpop.permute.xlu0 %6523
        %6527 = vset.pattern.permute.xlu0 0
        %6528 = vperm.xlu0 %6527, %v6421
        %v6529 = vpop.permute.xlu0 %6528
        %6532 = vset.pattern.permute.xlu0 0
        %6533 = vperm.xlu0 %6532, %v6422
        %v6534 = vpop.permute.xlu0 %6533
        %6537 = vset.pattern.permute.xlu0 0
        %6538 = vperm.xlu0 %6537, %v6423
        %v6539 = vpop.permute.xlu0 %6538
        %6542 = vset.pattern.permute.xlu0 0
        %6543 = vperm.xlu0 %6542, %v6424
        %v6544 = vpop.permute.xlu0 %6543
        %6547 = vset.pattern.permute.xlu0 0
        %6548 = vperm.xlu0 %6547, %v6425
        %v6549 = vpop.permute.xlu0 %6548
        %v6551 = vmul.f32 %v5728, %v6429
        %v6552 = vmul.f32 %v5729, %v6429
        %v6553 = vmul.f32 %v5730, %v6429
        %v6554 = vmul.f32 %v5731, %v6429
        %v6555 = vmul.f32 %v5732, %v6434
        %v6556 = vmul.f32 %v5733, %v6434
        %v6557 = vmul.f32 %v5734, %v6434
        %v6558 = vmul.f32 %v5735, %v6434
        %v6559 = vmul.f32 %v5736, %v6439
        %v6560 = vmul.f32 %v5737, %v6439
        %v6561 = vmul.f32 %v5738, %v6439
        %v6562 = vmul.f32 %v5739, %v6439
        %v6563 = vmul.f32 %v5740, %v6444
        %v6564 = vmul.f32 %v5741, %v6444
        %v6565 = vmul.f32 %v5742, %v6444
        %v6566 = vmul.f32 %v5743, %v6444
        %v6567 = vmul.f32 %v5744, %v6449
        %v6568 = vmul.f32 %v5745, %v6449
        %v6569 = vmul.f32 %v5746, %v6449
        %v6570 = vmul.f32 %v5747, %v6449
        %v6571 = vmul.f32 %v5748, %v6454
        %v6572 = vmul.f32 %v5749, %v6454
        %v6573 = vmul.f32 %v5750, %v6454
        %v6574 = vmul.f32 %v5751, %v6454
        %v6575 = vmul.f32 %v5752, %v6459
        %v6576 = vmul.f32 %v5753, %v6459
        %v6577 = vmul.f32 %v5754, %v6459
        %v6578 = vmul.f32 %v5755, %v6459
        %v6579 = vmul.f32 %v5756, %v6464
        %v6580 = vmul.f32 %v5757, %v6464
        %v6581 = vmul.f32 %v5758, %v6464
        %v6582 = vmul.f32 %v5759, %v6464
        %v6583 = vmul.f32 %v5760, %v6469
        %v6584 = vmul.f32 %v5761, %v6469
        %v6585 = vmul.f32 %v5762, %v6469
        %v6586 = vmul.f32 %v5763, %v6469
        %v6587 = vmul.f32 %v5764, %v6474
        %v6588 = vmul.f32 %v5765, %v6474
        %v6589 = vmul.f32 %v5766, %v6474
        %v6590 = vmul.f32 %v5767, %v6474
        %v6591 = vmul.f32 %v5768, %v6479
        %v6592 = vmul.f32 %v5769, %v6479
        %v6593 = vmul.f32 %v5770, %v6479
        %v6594 = vmul.f32 %v5771, %v6479
        %v6595 = vmul.f32 %v5772, %v6484
        %v6596 = vmul.f32 %v5773, %v6484
        %v6597 = vmul.f32 %v5774, %v6484
        %v6598 = vmul.f32 %v5775, %v6484
        %v6599 = vmul.f32 %v5776, %v6489
        %v6600 = vmul.f32 %v5777, %v6489
        %v6601 = vmul.f32 %v5778, %v6489
        %v6602 = vmul.f32 %v5779, %v6489
        %v6603 = vmul.f32 %v5780, %v6494
        %v6604 = vmul.f32 %v5781, %v6494
        %v6605 = vmul.f32 %v5782, %v6494
        %v6606 = vmul.f32 %v5783, %v6494
        %v6607 = vmul.f32 %v5784, %v6499
        %v6608 = vmul.f32 %v5785, %v6499
        %v6609 = vmul.f32 %v5786, %v6499
        %v6610 = vmul.f32 %v5787, %v6499
        %v6611 = vmul.f32 %v5788, %v6504
        %v6612 = vmul.f32 %v5789, %v6504
        %v6613 = vmul.f32 %v5790, %v6504
        %v6614 = vmul.f32 %v5791, %v6504
        %v6615 = vmul.f32 %v5792, %v6509
        %v6616 = vmul.f32 %v5793, %v6509
        %v6617 = vmul.f32 %v5794, %v6509
        %v6618 = vmul.f32 %v5795, %v6509
        %v6619 = vmul.f32 %v5796, %v6514
        %v6620 = vmul.f32 %v5797, %v6514
        %v6621 = vmul.f32 %v5798, %v6514
        %v6622 = vmul.f32 %v5799, %v6514
        %v6623 = vmul.f32 %v5800, %v6519
        %v6624 = vmul.f32 %v5801, %v6519
        %v6625 = vmul.f32 %v5802, %v6519
        %v6626 = vmul.f32 %v5803, %v6519
        %v6627 = vmul.f32 %v5804, %v6524
        %v6628 = vmul.f32 %v5805, %v6524
        %v6629 = vmul.f32 %v5806, %v6524
        %v6630 = vmul.f32 %v5807, %v6524
        %v6631 = vmul.f32 %v5808, %v6529
        %v6632 = vmul.f32 %v5809, %v6529
        %v6633 = vmul.f32 %v5810, %v6529
        %v6634 = vmul.f32 %v5811, %v6529
        %v6635 = vmul.f32 %v5812, %v6534
        %v6636 = vmul.f32 %v5813, %v6534
        %v6637 = vmul.f32 %v5814, %v6534
        %v6638 = vmul.f32 %v5815, %v6534
        %v6639 = vmul.f32 %v5816, %v6539
        %v6640 = vmul.f32 %v5817, %v6539
        %v6641 = vmul.f32 %v5818, %v6539
        %v6642 = vmul.f32 %v5819, %v6539
        %v6643 = vmul.f32 %v5820, %v6544
        %v6644 = vmul.f32 %v5821, %v6544
        %v6645 = vmul.f32 %v5822, %v6544
        %v6646 = vmul.f32 %v5823, %v6544
        %v6647 = vmul.f32 %v5824, %v6549
        %v6648 = vmul.f32 %v5825, %v6549
        %v6649 = vmul.f32 %v5826, %v6549
        %v6650 = vmul.f32 %v5827, %v6549
        %v6651 = vadd.f32 %v6551, %v6555
        %v6652 = vadd.f32 %v6651, %v6559
        %v6653 = vadd.f32 %v6652, %v6563
        %v6654 = vadd.f32 %v6653, %v6567
        %v6655 = vadd.f32 %v6654, %v6571
        %v6656 = vadd.f32 %v6655, %v6575
        %v6657 = vadd.f32 %v6656, %v6579
        %v6658 = vadd.f32 %v6657, %v6583
        %v6659 = vadd.f32 %v6658, %v6587
        %v6660 = vadd.f32 %v6659, %v6591
        %v6661 = vadd.f32 %v6660, %v6595
        %v6662 = vadd.f32 %v6661, %v6599
        %v6663 = vadd.f32 %v6662, %v6603
        %v6664 = vadd.f32 %v6663, %v6607
        %v6665 = vadd.f32 %v6664, %v6611
        %v6666 = vadd.f32 %v6665, %v6615
        %v6667 = vadd.f32 %v6666, %v6619
        %v6668 = vadd.f32 %v6667, %v6623
        %v6669 = vadd.f32 %v6668, %v6627
        %v6670 = vadd.f32 %v6669, %v6631
        %v6671 = vadd.f32 %v6670, %v6635
        %v6672 = vadd.f32 %v6671, %v6639
        %v6673 = vadd.f32 %v6672, %v6643
        %v6674 = vsel %vm1270, %v6647, 0.0
        %v6675 = vadd.f32 %v6673, %v6674
        %v6676 = vrot.slane %v6675, 4
        %v6677 = vadd.f32 %v6675, %v6676
        %v6678 = vrot.slane %v6677, 2
        %v6679 = vadd.f32 %v6677, %v6678
        %v6680 = vrot.slane %v6679, 1
        %v6681 = vadd.f32 %v6679, %v6680
        %v6682 = vadd.f32 %v6552, %v6556
        %v6683 = vadd.f32 %v6682, %v6560
        %v6684 = vadd.f32 %v6683, %v6564
        %v6685 = vadd.f32 %v6684, %v6568
        %v6686 = vadd.f32 %v6685, %v6572
        %v6687 = vadd.f32 %v6686, %v6576
        %v6688 = vadd.f32 %v6687, %v6580
        %v6689 = vadd.f32 %v6688, %v6584
        %v6690 = vadd.f32 %v6689, %v6588
        %v6691 = vadd.f32 %v6690, %v6592
        %v6692 = vadd.f32 %v6691, %v6596
        %v6693 = vadd.f32 %v6692, %v6600
        %v6694 = vadd.f32 %v6693, %v6604
        %v6695 = vadd.f32 %v6694, %v6608
        %v6696 = vadd.f32 %v6695, %v6612
        %v6697 = vadd.f32 %v6696, %v6616
        %v6698 = vadd.f32 %v6697, %v6620
        %v6699 = vadd.f32 %v6698, %v6624
        %v6700 = vadd.f32 %v6699, %v6628
        %v6701 = vadd.f32 %v6700, %v6632
        %v6702 = vadd.f32 %v6701, %v6636
        %v6703 = vadd.f32 %v6702, %v6640
        %v6704 = vadd.f32 %v6703, %v6644
        %v6705 = vsel %vm1270, %v6648, 0.0
        %v6706 = vadd.f32 %v6704, %v6705
        %v6707 = vrot.slane %v6706, 4
        %v6708 = vadd.f32 %v6706, %v6707
        %v6709 = vrot.slane %v6708, 2
        %v6710 = vadd.f32 %v6708, %v6709
        %v6711 = vrot.slane %v6710, 1
        %v6712 = vadd.f32 %v6710, %v6711
        %v6713 = vadd.f32 %v6553, %v6557
        %v6714 = vadd.f32 %v6713, %v6561
        %v6715 = vadd.f32 %v6714, %v6565
        %v6716 = vadd.f32 %v6715, %v6569
        %v6717 = vadd.f32 %v6716, %v6573
        %v6718 = vadd.f32 %v6717, %v6577
        %v6719 = vadd.f32 %v6718, %v6581
        %v6720 = vadd.f32 %v6719, %v6585
        %v6721 = vadd.f32 %v6720, %v6589
        %v6722 = vadd.f32 %v6721, %v6593
        %v6723 = vadd.f32 %v6722, %v6597
        %v6724 = vadd.f32 %v6723, %v6601
        %v6725 = vadd.f32 %v6724, %v6605
        %v6726 = vadd.f32 %v6725, %v6609
        %v6727 = vadd.f32 %v6726, %v6613
        %v6728 = vadd.f32 %v6727, %v6617
        %v6729 = vadd.f32 %v6728, %v6621
        %v6730 = vadd.f32 %v6729, %v6625
        %v6731 = vadd.f32 %v6730, %v6629
        %v6732 = vadd.f32 %v6731, %v6633
        %v6733 = vadd.f32 %v6732, %v6637
        %v6734 = vadd.f32 %v6733, %v6641
        %v6735 = vadd.f32 %v6734, %v6645
        %v6736 = vsel %vm1270, %v6649, 0.0
        %v6737 = vadd.f32 %v6735, %v6736
        %v6738 = vrot.slane %v6737, 4
        %v6739 = vadd.f32 %v6737, %v6738
        %v6740 = vrot.slane %v6739, 2
        %v6741 = vadd.f32 %v6739, %v6740
        %v6742 = vrot.slane %v6741, 1
        %v6743 = vadd.f32 %v6741, %v6742
        %v6744 = vadd.f32 %v6554, %v6558
        %v6745 = vadd.f32 %v6744, %v6562
        %v6746 = vadd.f32 %v6745, %v6566
        %v6747 = vadd.f32 %v6746, %v6570
        %v6748 = vadd.f32 %v6747, %v6574
        %v6749 = vadd.f32 %v6748, %v6578
        %v6750 = vadd.f32 %v6749, %v6582
        %v6751 = vadd.f32 %v6750, %v6586
        %v6752 = vadd.f32 %v6751, %v6590
        %v6753 = vadd.f32 %v6752, %v6594
        %v6754 = vadd.f32 %v6753, %v6598
        %v6755 = vadd.f32 %v6754, %v6602
        %v6756 = vadd.f32 %v6755, %v6606
        %v6757 = vadd.f32 %v6756, %v6610
        %v6758 = vadd.f32 %v6757, %v6614
        %v6759 = vadd.f32 %v6758, %v6618
        %v6760 = vadd.f32 %v6759, %v6622
        %v6761 = vadd.f32 %v6760, %v6626
        %v6762 = vadd.f32 %v6761, %v6630
        %v6763 = vadd.f32 %v6762, %v6634
        %v6764 = vadd.f32 %v6763, %v6638
        %v6765 = vadd.f32 %v6764, %v6642
        %v6766 = vadd.f32 %v6765, %v6646
        %v6767 = vsel %vm1270, %v6650, 0.0
        %v6768 = vadd.f32 %v6766, %v6767
        %v6769 = vrot.slane %v6768, 4
        %v6770 = vadd.f32 %v6768, %v6769
        %v6771 = vrot.slane %v6770, 2
        %v6772 = vadd.f32 %v6770, %v6771
        %v6773 = vrot.slane %v6772, 1
        %v6774 = vadd.f32 %v6772, %v6773
        %v6779 = vcombine.low %v6681, %v6712
        %v6780 = vcombine.low %v6743, %v6774
        %v6782 = vunpack.c.l.s4 1966171168
        %v6783 = vunpack.c.0.s8 %v6782
        %v6784 = vlaneseq
        %v6785 = vshrl.u32 %v6784, 7
        %v6786 = vsub.s32 %v6783, %v6785
        %v6787 = vrot.slane %v6779, %v6786
        %v6789 = vunpack.c.l.s4 1966171168
        %v6790 = vunpack.c.0.s8 %v6789
        %v6791 = vlaneseq
        %v6792 = vshrl.u32 %v6791, 7
        %v6793 = vsub.s32 %v6790, %v6792
        %v6794 = vrot.slane %v6780, %v6793
        %v6795 = vcombine.low %v6787, %v6794
        %v6797 = vunpack.c.l.s4 1966171168
        %v6798 = vunpack.c.0.s8 %v6797
        %v6799 = vlaneseq
        %v6800 = vshrl.u32 %v6799, 7
        %v6801 = vsub.s32 %v6798, %v6800
        %v6802 = vrot.slane %v6795, %v6801
        %s6804 = scalar_lea.vmem [#allocation2], 5
        %6805 = vst.msk [vmem:[%s6804] ss:$8 sm:$0xf] %vm1404, %v6802
        %6806 = vst.msk [vmem:[%s6804] ss:$8 sm:$0x0] %vm1404, %v6802
        %s6807 = scalar_lea.vmem %s256, 4800
        %v6808 = vld [vmem:[%s6807] sm:$0xff]
        %v6809 = vld [vmem:[%s6807 + $0x8] sm:$0xff]
        %v6810 = vld [vmem:[%s6807 + $0x10] sm:$0xff]
        %v6811 = vld [vmem:[%s6807 + $0x18] sm:$0xff]
        %v6812 = vld [vmem:[%s6807 + $0x20] sm:$0xff]
        %v6813 = vld [vmem:[%s6807 + $0x28] sm:$0xff]
        %v6814 = vld [vmem:[%s6807 + $0x30] sm:$0xff]
        %v6815 = vld [vmem:[%s6807 + $0x38] sm:$0xff]
        %v6816 = vld [vmem:[%s6807 + $0x40] sm:$0xff]
        %v6817 = vld [vmem:[%s6807 + $0x48] sm:$0xff]
        %v6818 = vld [vmem:[%s6807 + $0x50] sm:$0xff]
        %v6819 = vld [vmem:[%s6807 + $0x58] sm:$0xff]
        %v6820 = vld [vmem:[%s6807 + $0x60] sm:$0xff]
        %v6821 = vld [vmem:[%s6807 + $0x68] sm:$0xff]
        %v6822 = vld [vmem:[%s6807 + $0x70] sm:$0xff]
        %v6823 = vld [vmem:[%s6807 + $0x78] sm:$0xff]
        %v6824 = vld [vmem:[%s6807 + $0x80] sm:$0xff]
        %v6825 = vld [vmem:[%s6807 + $0x88] sm:$0xff]
        %v6826 = vld [vmem:[%s6807 + $0x90] sm:$0xff]
        %v6827 = vld [vmem:[%s6807 + $0x98] sm:$0xff]
        %v6828 = vld [vmem:[%s6807 + $0xa0] sm:$0xff]
        %v6829 = vld [vmem:[%s6807 + $0xa8] sm:$0xff]
        %v6830 = vld [vmem:[%s6807 + $0xb0] sm:$0xff]
        %v6831 = vld [vmem:[%s6807 + $0xb8] sm:$0xff]
        %v6832 = vld [vmem:[%s6807 + $0xc0] sm:$0xff]
        %v6833 = vld [vmem:[%s6807 + $0xc8] sm:$0xff]
        %v6834 = vld [vmem:[%s6807 + $0xd0] sm:$0xff]
        %v6835 = vld [vmem:[%s6807 + $0xd8] sm:$0xff]
        %v6836 = vld [vmem:[%s6807 + $0xe0] sm:$0xff]
        %v6837 = vld [vmem:[%s6807 + $0xe8] sm:$0xff]
        %v6838 = vld [vmem:[%s6807 + $0xf0] sm:$0xff]
        %v6839 = vld [vmem:[%s6807 + $0xf8] sm:$0xff]
        %v6840 = vld [vmem:[%s6807 + $0x100] sm:$0xff]
        %v6841 = vld [vmem:[%s6807 + $0x108] sm:$0xff]
        %v6842 = vld [vmem:[%s6807 + $0x110] sm:$0xff]
        %v6843 = vld [vmem:[%s6807 + $0x118] sm:$0xff]
        %v6844 = vld [vmem:[%s6807 + $0x120] sm:$0xff]
        %v6845 = vld [vmem:[%s6807 + $0x128] sm:$0xff]
        %v6846 = vld [vmem:[%s6807 + $0x130] sm:$0xff]
        %v6847 = vld [vmem:[%s6807 + $0x138] sm:$0xff]
        %v6848 = vld [vmem:[%s6807 + $0x140] sm:$0xff]
        %v6849 = vld [vmem:[%s6807 + $0x148] sm:$0xff]
        %v6850 = vld [vmem:[%s6807 + $0x150] sm:$0xff]
        %v6851 = vld [vmem:[%s6807 + $0x158] sm:$0xff]
        %v6852 = vld [vmem:[%s6807 + $0x160] sm:$0xff]
        %v6853 = vld [vmem:[%s6807 + $0x168] sm:$0xff]
        %v6854 = vld [vmem:[%s6807 + $0x170] sm:$0xff]
        %v6855 = vld [vmem:[%s6807 + $0x178] sm:$0xff]
        %v6856 = vld [vmem:[%s6807 + $0x180] sm:$0xff]
        %v6857 = vld [vmem:[%s6807 + $0x188] sm:$0xff]
        %v6858 = vld [vmem:[%s6807 + $0x190] sm:$0xff]
        %v6859 = vld [vmem:[%s6807 + $0x198] sm:$0xff]
        %v6860 = vld [vmem:[%s6807 + $0x1a0] sm:$0xff]
        %v6861 = vld [vmem:[%s6807 + $0x1a8] sm:$0xff]
        %v6862 = vld [vmem:[%s6807 + $0x1b0] sm:$0xff]
        %v6863 = vld [vmem:[%s6807 + $0x1b8] sm:$0xff]
        %v6864 = vld [vmem:[%s6807 + $0x1c0] sm:$0xff]
        %v6865 = vld [vmem:[%s6807 + $0x1c8] sm:$0xff]
        %v6866 = vld [vmem:[%s6807 + $0x1d0] sm:$0xff]
        %v6867 = vld [vmem:[%s6807 + $0x1d8] sm:$0xff]
        %v6868 = vld [vmem:[%s6807 + $0x1e0] sm:$0xff]
        %v6869 = vld [vmem:[%s6807 + $0x1e8] sm:$0xff]
        %v6870 = vld [vmem:[%s6807 + $0x1f0] sm:$0xff]
        %v6871 = vld [vmem:[%s6807 + $0x1f8] sm:$0xff]
        %v6872 = vld [vmem:[%s6807 + $0x200] sm:$0xff]
        %v6873 = vld [vmem:[%s6807 + $0x208] sm:$0xff]
        %v6874 = vld [vmem:[%s6807 + $0x210] sm:$0xff]
        %v6875 = vld [vmem:[%s6807 + $0x218] sm:$0xff]
        %v6876 = vld [vmem:[%s6807 + $0x220] sm:$0xff]
        %v6877 = vld [vmem:[%s6807 + $0x228] sm:$0xff]
        %v6878 = vld [vmem:[%s6807 + $0x230] sm:$0xff]
        %v6879 = vld [vmem:[%s6807 + $0x238] sm:$0xff]
        %v6880 = vld [vmem:[%s6807 + $0x240] sm:$0xff]
        %v6881 = vld [vmem:[%s6807 + $0x248] sm:$0xff]
        %v6882 = vld [vmem:[%s6807 + $0x250] sm:$0xff]
        %v6883 = vld [vmem:[%s6807 + $0x258] sm:$0xff]
        %v6884 = vld [vmem:[%s6807 + $0x260] sm:$0xff]
        %v6885 = vld [vmem:[%s6807 + $0x268] sm:$0xff]
        %v6886 = vld [vmem:[%s6807 + $0x270] sm:$0xff]
        %v6887 = vld [vmem:[%s6807 + $0x278] sm:$0xff]
        %v6888 = vld [vmem:[%s6807 + $0x280] sm:$0xff]
        %v6889 = vld [vmem:[%s6807 + $0x288] sm:$0xff]
        %v6890 = vld [vmem:[%s6807 + $0x290] sm:$0xff]
        %v6891 = vld [vmem:[%s6807 + $0x298] sm:$0xff]
        %v6892 = vld [vmem:[%s6807 + $0x2a0] sm:$0xff]
        %v6893 = vld [vmem:[%s6807 + $0x2a8] sm:$0xff]
        %v6894 = vld [vmem:[%s6807 + $0x2b0] sm:$0xff]
        %v6895 = vld [vmem:[%s6807 + $0x2b8] sm:$0xff]
        %v6896 = vld [vmem:[%s6807 + $0x2c0] sm:$0xff]
        %v6897 = vld [vmem:[%s6807 + $0x2c8] sm:$0xff]
        %v6898 = vld [vmem:[%s6807 + $0x2d0] sm:$0xff]
        %v6899 = vld [vmem:[%s6807 + $0x2d8] sm:$0xff]
        %v6900 = vld [vmem:[%s6807 + $0x2e0] sm:$0xff]
        %v6901 = vld [vmem:[%s6807 + $0x2e8] sm:$0xff]
        %v6902 = vld [vmem:[%s6807 + $0x2f0] sm:$0xff]
        %v6903 = vld [vmem:[%s6807 + $0x2f8] sm:$0xff]
        %v6904 = vld [vmem:[%s6807 + $0x300] sm:$0xf]
        %v6905 = vld [vmem:[%s6807 + $0x308] sm:$0xf]
        %v6906 = vld [vmem:[%s6807 + $0x310] sm:$0xf]
        %v6907 = vld [vmem:[%s6807 + $0x318] sm:$0xf]
        %v6908 = vld [vmem:[#allocation3] sm:$0x1]
        %v6910 = vlaneseq
        %v6911 = vshrl.u32 %v6910, 7
        %v6912 = vsub.s32 0, %v6911
        %v6913 = vrot.slane %v6908, %v6912
        %6915 = vmatprep.subr.mxu0 0.0
        %6916 = vmatpush1.msra.mxu0 %v273
        %6917 = vmatprep.subr.mxu0 0.0
        %6918 = vmatpush1.msra.mxu0 %v272
        %6919 = vmatprep.subr.mxu0 0.0
        %6920 = vmatpush1.msra.mxu0 %v271
        %6921 = vmatprep.subr.mxu0 0.0
        %6922 = vmatpush1.msra.mxu0 %v270
        %6923 = vmatprep.subr.mxu0 0.0
        %6924 = vmatpush1.msra.mxu0 %v269
        %6925 = vmatprep.subr.mxu0 0.0
        %6926 = vmatpush1.msra.mxu0 %v268
        %6927 = vmatprep.subr.mxu0 0.0
        %6928 = vmatpush1.msra.mxu0 %v267
        %6929 = vmatprep.subr.mxu0 0.0
        %6930 = vmatpush1.msra.mxu0 %v266
        %6931 = vmatprep.subr.mxu0 0.0
        %6932 = vmatpush1.msra.mxu0 %v265
        %6933 = vmatprep.subr.mxu0 0.0
        %6934 = vmatpush1.msra.mxu0 %v264
        %6935 = vmatprep.subr.mxu0 0.0
        %6936 = vmatpush1.msra.mxu0 %v263
        %6937 = vmatprep.subr.mxu0 0.0
        %6938 = vmatpush1.msra.mxu0 %v262
        %6939 = vmatprep.subr.mxu0 0.0
        %6940 = vmatpush1.msra.mxu0 %v261
        %6941 = vmatprep.subr.mxu0 0.0
        %6942 = vmatpush1.msra.mxu0 %v260
        %6943 = vmatprep.subr.mxu0 0.0
        %6944 = vmatpush1.msra.mxu0 %v259
        %6945 = vmatprep.subr.mxu0 0.0
        %6946 = vmatpush1.msra.mxu0 %v258
        %6947 = vmatprep.subr.mxu0 0.0
        %6948 = vmatpush2.msra.mxu0 %v289
        %6949 = vmatprep.subr.mxu0 0.0
        %6950 = vmatpush2.msra.mxu0 %v288
        %6951 = vmatprep.subr.mxu0 0.0
        %6952 = vmatpush2.msra.mxu0 %v287
        %6953 = vmatprep.subr.mxu0 0.0
        %6954 = vmatpush2.msra.mxu0 %v286
        %6955 = vmatprep.subr.mxu0 0.0
        %6956 = vmatpush2.msra.mxu0 %v285
        %6957 = vmatprep.subr.mxu0 0.0
        %6958 = vmatpush2.msra.mxu0 %v284
        %6959 = vmatprep.subr.mxu0 0.0
        %6960 = vmatpush2.msra.mxu0 %v283
        %6961 = vmatprep.subr.mxu0 0.0
        %6962 = vmatpush2.msra.mxu0 %v282
        %6963 = vmatprep.subr.mxu0 0.0
        %6964 = vmatpush2.msra.mxu0 %v281
        %6965 = vmatprep.subr.mxu0 0.0
        %6966 = vmatpush2.msra.mxu0 %v280
        %6967 = vmatprep.subr.mxu0 0.0
        %6968 = vmatpush2.msra.mxu0 %v279
        %6969 = vmatprep.subr.mxu0 0.0
        %6970 = vmatpush2.msra.mxu0 %v278
        %6971 = vmatprep.subr.mxu0 0.0
        %6972 = vmatpush2.msra.mxu0 %v277
        %6973 = vmatprep.subr.mxu0 0.0
        %6974 = vmatpush2.msra.mxu0 %v276
        %6975 = vmatprep.subr.mxu0 0.0
        %6976 = vmatpush2.msra.mxu0 %v275
        %6977 = vmatprep.subr.mxu0 0.0
        %6978 = vmatpush2.msra.mxu0 %v274
        %6979 = vmatprep.mubr.f32.mxu0 %v6809
        %6980 = vmatmul.mubr.f32.gmra.mxu0 %v6808
        %v6981 = vpop.f32.mrf.mxu0
        %v6982 = vadd.f32 %v6913, %v6981
        %v6983 = vpop.f32.mrf.mxu0
        %6984 = vmatprep.mubr.f32.mxu0 %v6813
        %6985 = vmatmul.mubr.f32.gmra.mxu0 %v6812
        %v6986 = vpop.f32.mrf.mxu0
        %v6987 = vadd.f32 %v6913, %v6986
        %v6988 = vpop.f32.mrf.mxu0
        %6989 = vmatprep.mubr.f32.mxu0 %v6817
        %6990 = vmatmul.mubr.f32.gmra.mxu0 %v6816
        %v6991 = vpop.f32.mrf.mxu0
        %v6992 = vadd.f32 %v6913, %v6991
        %v6993 = vpop.f32.mrf.mxu0
        %6994 = vmatprep.mubr.f32.mxu0 %v6821
        %6995 = vmatmul.mubr.f32.gmra.mxu0 %v6820
        %v6996 = vpop.f32.mrf.mxu0
        %v6997 = vadd.f32 %v6913, %v6996
        %v6998 = vpop.f32.mrf.mxu0
        %6999 = vmatprep.mubr.f32.mxu0 %v6825
        %7000 = vmatmul.mubr.f32.gmra.mxu0 %v6824
        %v7001 = vpop.f32.mrf.mxu0
        %v7002 = vadd.f32 %v6913, %v7001
        %v7003 = vpop.f32.mrf.mxu0
        %7004 = vmatprep.mubr.f32.mxu0 %v6829
        %7005 = vmatmul.mubr.f32.gmra.mxu0 %v6828
        %v7006 = vpop.f32.mrf.mxu0
        %v7007 = vadd.f32 %v6913, %v7006
        %v7008 = vpop.f32.mrf.mxu0
        %7009 = vmatprep.mubr.f32.mxu0 %v6833
        %7010 = vmatmul.mubr.f32.gmra.mxu0 %v6832
        %v7011 = vpop.f32.mrf.mxu0
        %v7012 = vadd.f32 %v6913, %v7011
        %v7013 = vpop.f32.mrf.mxu0
        %7014 = vmatprep.mubr.f32.mxu0 %v6837
        %7015 = vmatmul.mubr.f32.gmra.mxu0 %v6836
        %v7016 = vpop.f32.mrf.mxu0
        %v7017 = vadd.f32 %v6913, %v7016
        %v7018 = vpop.f32.mrf.mxu0
        %7019 = vmatprep.mubr.f32.mxu0 %v6841
        %7020 = vmatmul.mubr.f32.gmra.mxu0 %v6840
        %v7021 = vpop.f32.mrf.mxu0
        %v7022 = vadd.f32 %v6913, %v7021
        %v7023 = vpop.f32.mrf.mxu0
        %7024 = vmatprep.mubr.f32.mxu0 %v6845
        %7025 = vmatmul.mubr.f32.gmra.mxu0 %v6844
        %v7026 = vpop.f32.mrf.mxu0
        %v7027 = vadd.f32 %v6913, %v7026
        %v7028 = vpop.f32.mrf.mxu0
        %7029 = vmatprep.mubr.f32.mxu0 %v6849
        %7030 = vmatmul.mubr.f32.gmra.mxu0 %v6848
        %v7031 = vpop.f32.mrf.mxu0
        %v7032 = vadd.f32 %v6913, %v7031
        %v7033 = vpop.f32.mrf.mxu0
        %7034 = vmatprep.mubr.f32.mxu0 %v6853
        %7035 = vmatmul.mubr.f32.gmra.mxu0 %v6852
        %v7036 = vpop.f32.mrf.mxu0
        %v7037 = vadd.f32 %v6913, %v7036
        %v7038 = vpop.f32.mrf.mxu0
        %7039 = vmatprep.mubr.f32.mxu0 %v6857
        %7040 = vmatmul.mubr.f32.gmra.mxu0 %v6856
        %v7041 = vpop.f32.mrf.mxu0
        %v7042 = vadd.f32 %v6913, %v7041
        %v7043 = vpop.f32.mrf.mxu0
        %7044 = vmatprep.mubr.f32.mxu0 %v6861
        %7045 = vmatmul.mubr.f32.gmra.mxu0 %v6860
        %v7046 = vpop.f32.mrf.mxu0
        %v7047 = vadd.f32 %v6913, %v7046
        %v7048 = vpop.f32.mrf.mxu0
        %7049 = vmatprep.mubr.f32.mxu0 %v6865
        %7050 = vmatmul.mubr.f32.gmra.mxu0 %v6864
        %v7051 = vpop.f32.mrf.mxu0
        %v7052 = vadd.f32 %v6913, %v7051
        %v7053 = vpop.f32.mrf.mxu0
        %7054 = vmatprep.mubr.f32.mxu0 %v6869
        %7055 = vmatmul.mubr.f32.gmra.mxu0 %v6868
        %v7056 = vpop.f32.mrf.mxu0
        %v7057 = vadd.f32 %v6913, %v7056
        %v7058 = vpop.f32.mrf.mxu0
        %7059 = vmatprep.mubr.f32.mxu0 %v6873
        %7060 = vmatmul.mubr.f32.gmra.mxu0 %v6872
        %v7061 = vpop.f32.mrf.mxu0
        %v7062 = vadd.f32 %v6913, %v7061
        %v7063 = vpop.f32.mrf.mxu0
        %7064 = vmatprep.mubr.f32.mxu0 %v6877
        %7065 = vmatmul.mubr.f32.gmra.mxu0 %v6876
        %v7066 = vpop.f32.mrf.mxu0
        %v7067 = vadd.f32 %v6913, %v7066
        %v7068 = vpop.f32.mrf.mxu0
        %7069 = vmatprep.mubr.f32.mxu0 %v6881
        %7070 = vmatmul.mubr.f32.gmra.mxu0 %v6880
        %v7071 = vpop.f32.mrf.mxu0
        %v7072 = vadd.f32 %v6913, %v7071
        %v7073 = vpop.f32.mrf.mxu0
        %7074 = vmatprep.mubr.f32.mxu0 %v6885
        %7075 = vmatmul.mubr.f32.gmra.mxu0 %v6884
        %v7076 = vpop.f32.mrf.mxu0
        %v7077 = vadd.f32 %v6913, %v7076
        %v7078 = vpop.f32.mrf.mxu0
        %7079 = vmatprep.mubr.f32.mxu0 %v6889
        %7080 = vmatmul.mubr.f32.gmra.mxu0 %v6888
        %v7081 = vpop.f32.mrf.mxu0
        %v7082 = vadd.f32 %v6913, %v7081
        %v7083 = vpop.f32.mrf.mxu0
        %7084 = vmatprep.mubr.f32.mxu0 %v6893
        %7085 = vmatmul.mubr.f32.gmra.mxu0 %v6892
        %v7086 = vpop.f32.mrf.mxu0
        %v7087 = vadd.f32 %v6913, %v7086
        %v7088 = vpop.f32.mrf.mxu0
        %7089 = vmatprep.mubr.f32.mxu0 %v6897
        %7090 = vmatmul.mubr.f32.gmra.mxu0 %v6896
        %v7091 = vpop.f32.mrf.mxu0
        %v7092 = vadd.f32 %v6913, %v7091
        %v7093 = vpop.f32.mrf.mxu0
        %7094 = vmatprep.mubr.f32.mxu0 %v6901
        %7095 = vmatmul.mubr.f32.gmra.mxu0 %v6900
        %v7096 = vpop.f32.mrf.mxu0
        %v7097 = vadd.f32 %v6913, %v7096
        %v7098 = vpop.f32.mrf.mxu0
        %7099 = vmatprep.mubr.f32.mxu0 %v6905
        %7100 = vmatmul.mubr.f32.gmra.mxu0 %v6904
        %v7101 = vpop.f32.mrf.mxu0
        %v7102 = vadd.f32 %v6913, %v7101
        %v7103 = vpop.f32.mrf.mxu0
        %7104 = vdwg.mxu0
        %7105 = vmatprep.subr.mxu0 0.0
        %7106 = vmatpush1.msra.mxu0 %v305
        %7107 = vmatprep.subr.mxu0 0.0
        %7108 = vmatpush1.msra.mxu0 %v304
        %7109 = vmatprep.subr.mxu0 0.0
        %7110 = vmatpush1.msra.mxu0 %v303
        %7111 = vmatprep.subr.mxu0 0.0
        %7112 = vmatpush1.msra.mxu0 %v302
        %7113 = vmatprep.subr.mxu0 0.0
        %7114 = vmatpush1.msra.mxu0 %v301
        %7115 = vmatprep.subr.mxu0 0.0
        %7116 = vmatpush1.msra.mxu0 %v300
        %7117 = vmatprep.subr.mxu0 0.0
        %7118 = vmatpush1.msra.mxu0 %v299
        %7119 = vmatprep.subr.mxu0 0.0
        %7120 = vmatpush1.msra.mxu0 %v298
        %7121 = vmatprep.subr.mxu0 0.0
        %7122 = vmatpush1.msra.mxu0 %v297
        %7123 = vmatprep.subr.mxu0 0.0
        %7124 = vmatpush1.msra.mxu0 %v296
        %7125 = vmatprep.subr.mxu0 0.0
        %7126 = vmatpush1.msra.mxu0 %v295
        %7127 = vmatprep.subr.mxu0 0.0
        %7128 = vmatpush1.msra.mxu0 %v294
        %7129 = vmatprep.subr.mxu0 0.0
        %7130 = vmatpush1.msra.mxu0 %v293
        %7131 = vmatprep.subr.mxu0 0.0
        %7132 = vmatpush1.msra.mxu0 %v292
        %7133 = vmatprep.subr.mxu0 0.0
        %7134 = vmatpush1.msra.mxu0 %v291
        %7135 = vmatprep.subr.mxu0 0.0
        %7136 = vmatpush1.msra.mxu0 %v290
        %7137 = vmatprep.subr.mxu0 0.0
        %7138 = vmatpush2.msra.mxu0 %v321
        %7139 = vmatprep.subr.mxu0 0.0
        %7140 = vmatpush2.msra.mxu0 %v320
        %7141 = vmatprep.subr.mxu0 0.0
        %7142 = vmatpush2.msra.mxu0 %v319
        %7143 = vmatprep.subr.mxu0 0.0
        %7144 = vmatpush2.msra.mxu0 %v318
        %7145 = vmatprep.subr.mxu0 0.0
        %7146 = vmatpush2.msra.mxu0 %v317
        %7147 = vmatprep.subr.mxu0 0.0
        %7148 = vmatpush2.msra.mxu0 %v316
        %7149 = vmatprep.subr.mxu0 0.0
        %7150 = vmatpush2.msra.mxu0 %v315
        %7151 = vmatprep.subr.mxu0 0.0
        %7152 = vmatpush2.msra.mxu0 %v314
        %7153 = vmatprep.subr.mxu0 0.0
        %7154 = vmatpush2.msra.mxu0 %v313
        %7155 = vmatprep.subr.mxu0 0.0
        %7156 = vmatpush2.msra.mxu0 %v312
        %7157 = vmatprep.subr.mxu0 0.0
        %7158 = vmatpush2.msra.mxu0 %v311
        %7159 = vmatprep.subr.mxu0 0.0
        %7160 = vmatpush2.msra.mxu0 %v310
        %7161 = vmatprep.subr.mxu0 0.0
        %7162 = vmatpush2.msra.mxu0 %v309
        %7163 = vmatprep.subr.mxu0 0.0
        %7164 = vmatpush2.msra.mxu0 %v308
        %7165 = vmatprep.subr.mxu0 0.0
        %7166 = vmatpush2.msra.mxu0 %v307
        %7167 = vmatprep.subr.mxu0 0.0
        %7168 = vmatpush2.msra.mxu0 %v306
        %7169 = vmatprep.mubr.f32.mxu0 %v6811
        %7170 = vmatmul.mubr.f32.gmra.mxu0 %v6810
        %v7171 = vpop.f32.mrf.mxu0
        %v7172 = vadd.f32 %v6982, %v7171
        %v7173 = vpop.f32.mrf.mxu0
        %7174 = vmatprep.mubr.f32.mxu0 %v6815
        %7175 = vmatmul.mubr.f32.gmra.mxu0 %v6814
        %v7176 = vpop.f32.mrf.mxu0
        %v7177 = vadd.f32 %v6987, %v7176
        %v7178 = vpop.f32.mrf.mxu0
        %7179 = vmatprep.mubr.f32.mxu0 %v6819
        %7180 = vmatmul.mubr.f32.gmra.mxu0 %v6818
        %v7181 = vpop.f32.mrf.mxu0
        %v7182 = vadd.f32 %v6992, %v7181
        %v7183 = vpop.f32.mrf.mxu0
        %7184 = vmatprep.mubr.f32.mxu0 %v6823
        %7185 = vmatmul.mubr.f32.gmra.mxu0 %v6822
        %v7186 = vpop.f32.mrf.mxu0
        %v7187 = vadd.f32 %v6997, %v7186
        %v7188 = vpop.f32.mrf.mxu0
        %7189 = vmatprep.mubr.f32.mxu0 %v6827
        %7190 = vmatmul.mubr.f32.gmra.mxu0 %v6826
        %v7191 = vpop.f32.mrf.mxu0
        %v7192 = vadd.f32 %v7002, %v7191
        %v7193 = vpop.f32.mrf.mxu0
        %7194 = vmatprep.mubr.f32.mxu0 %v6831
        %7195 = vmatmul.mubr.f32.gmra.mxu0 %v6830
        %v7196 = vpop.f32.mrf.mxu0
        %v7197 = vadd.f32 %v7007, %v7196
        %v7198 = vpop.f32.mrf.mxu0
        %7199 = vmatprep.mubr.f32.mxu0 %v6835
        %7200 = vmatmul.mubr.f32.gmra.mxu0 %v6834
        %v7201 = vpop.f32.mrf.mxu0
        %v7202 = vadd.f32 %v7012, %v7201
        %v7203 = vpop.f32.mrf.mxu0
        %7204 = vmatprep.mubr.f32.mxu0 %v6839
        %7205 = vmatmul.mubr.f32.gmra.mxu0 %v6838
        %v7206 = vpop.f32.mrf.mxu0
        %v7207 = vadd.f32 %v7017, %v7206
        %v7208 = vpop.f32.mrf.mxu0
        %7209 = vmatprep.mubr.f32.mxu0 %v6843
        %7210 = vmatmul.mubr.f32.gmra.mxu0 %v6842
        %v7211 = vpop.f32.mrf.mxu0
        %v7212 = vadd.f32 %v7022, %v7211
        %v7213 = vpop.f32.mrf.mxu0
        %7214 = vmatprep.mubr.f32.mxu0 %v6847
        %7215 = vmatmul.mubr.f32.gmra.mxu0 %v6846
        %v7216 = vpop.f32.mrf.mxu0
        %v7217 = vadd.f32 %v7027, %v7216
        %v7218 = vpop.f32.mrf.mxu0
        %7219 = vmatprep.mubr.f32.mxu0 %v6851
        %7220 = vmatmul.mubr.f32.gmra.mxu0 %v6850
        %v7221 = vpop.f32.mrf.mxu0
        %v7222 = vadd.f32 %v7032, %v7221
        %v7223 = vpop.f32.mrf.mxu0
        %7224 = vmatprep.mubr.f32.mxu0 %v6855
        %7225 = vmatmul.mubr.f32.gmra.mxu0 %v6854
        %v7226 = vpop.f32.mrf.mxu0
        %v7227 = vadd.f32 %v7037, %v7226
        %v7228 = vpop.f32.mrf.mxu0
        %7229 = vmatprep.mubr.f32.mxu0 %v6859
        %7230 = vmatmul.mubr.f32.gmra.mxu0 %v6858
        %v7231 = vpop.f32.mrf.mxu0
        %v7232 = vadd.f32 %v7042, %v7231
        %v7233 = vpop.f32.mrf.mxu0
        %7234 = vmatprep.mubr.f32.mxu0 %v6863
        %7235 = vmatmul.mubr.f32.gmra.mxu0 %v6862
        %v7236 = vpop.f32.mrf.mxu0
        %v7237 = vadd.f32 %v7047, %v7236
        %v7238 = vpop.f32.mrf.mxu0
        %7239 = vmatprep.mubr.f32.mxu0 %v6867
        %7240 = vmatmul.mubr.f32.gmra.mxu0 %v6866
        %v7241 = vpop.f32.mrf.mxu0
        %v7242 = vadd.f32 %v7052, %v7241
        %v7243 = vpop.f32.mrf.mxu0
        %7244 = vmatprep.mubr.f32.mxu0 %v6871
        %7245 = vmatmul.mubr.f32.gmra.mxu0 %v6870
        %v7246 = vpop.f32.mrf.mxu0
        %v7247 = vadd.f32 %v7057, %v7246
        %v7248 = vpop.f32.mrf.mxu0
        %7249 = vmatprep.mubr.f32.mxu0 %v6875
        %7250 = vmatmul.mubr.f32.gmra.mxu0 %v6874
        %v7251 = vpop.f32.mrf.mxu0
        %v7252 = vadd.f32 %v7062, %v7251
        %v7253 = vpop.f32.mrf.mxu0
        %7254 = vmatprep.mubr.f32.mxu0 %v6879
        %7255 = vmatmul.mubr.f32.gmra.mxu0 %v6878
        %v7256 = vpop.f32.mrf.mxu0
        %v7257 = vadd.f32 %v7067, %v7256
        %v7258 = vpop.f32.mrf.mxu0
        %7259 = vmatprep.mubr.f32.mxu0 %v6883
        %7260 = vmatmul.mubr.f32.gmra.mxu0 %v6882
        %v7261 = vpop.f32.mrf.mxu0
        %v7262 = vadd.f32 %v7072, %v7261
        %v7263 = vpop.f32.mrf.mxu0
        %7264 = vmatprep.mubr.f32.mxu0 %v6887
        %7265 = vmatmul.mubr.f32.gmra.mxu0 %v6886
        %v7266 = vpop.f32.mrf.mxu0
        %v7267 = vadd.f32 %v7077, %v7266
        %v7268 = vpop.f32.mrf.mxu0
        %7269 = vmatprep.mubr.f32.mxu0 %v6891
        %7270 = vmatmul.mubr.f32.gmra.mxu0 %v6890
        %v7271 = vpop.f32.mrf.mxu0
        %v7272 = vadd.f32 %v7082, %v7271
        %v7273 = vpop.f32.mrf.mxu0
        %7274 = vmatprep.mubr.f32.mxu0 %v6895
        %7275 = vmatmul.mubr.f32.gmra.mxu0 %v6894
        %v7276 = vpop.f32.mrf.mxu0
        %v7277 = vadd.f32 %v7087, %v7276
        %v7278 = vpop.f32.mrf.mxu0
        %7279 = vmatprep.mubr.f32.mxu0 %v6899
        %7280 = vmatmul.mubr.f32.gmra.mxu0 %v6898
        %v7281 = vpop.f32.mrf.mxu0
        %v7282 = vadd.f32 %v7092, %v7281
        %v7283 = vpop.f32.mrf.mxu0
        %7284 = vmatprep.mubr.f32.mxu0 %v6903
        %7285 = vmatmul.mubr.f32.gmra.mxu0 %v6902
        %v7286 = vpop.f32.mrf.mxu0
        %v7287 = vadd.f32 %v7097, %v7286
        %v7288 = vpop.f32.mrf.mxu0
        %7289 = vmatprep.mubr.f32.mxu0 %v6907
        %7290 = vmatmul.mubr.f32.gmra.mxu0 %v6906
        %v7291 = vpop.f32.mrf.mxu0
        %v7292 = vadd.f32 %v7102, %v7291
        %v7293 = vpop.f32.mrf.mxu0
        %7294 = vdwg.mxu0
        %v7295 = vsel %vm809, %v7172, -inf
        %v7296 = vsel %vm809, %v7177, -inf
        %v7297 = vsel %vm809, %v7182, -inf
        %v7298 = vsel %vm809, %v7187, -inf
        %v7299 = vsel %vm809, %v7192, -inf
        %v7300 = vmax.f32 %v7295, %v7299
        %v7301 = vsel %vm809, %v7197, -inf
        %v7302 = vmax.f32 %v7296, %v7301
        %v7303 = vsel %vm809, %v7202, -inf
        %v7304 = vmax.f32 %v7297, %v7303
        %v7305 = vsel %vm809, %v7207, -inf
        %v7306 = vmax.f32 %v7298, %v7305
        %v7307 = vsel %vm809, %v7212, -inf
        %v7308 = vmax.f32 %v7300, %v7307
        %v7309 = vsel %vm809, %v7217, -inf
        %v7310 = vmax.f32 %v7302, %v7309
        %v7311 = vsel %vm809, %v7222, -inf
        %v7312 = vmax.f32 %v7304, %v7311
        %v7313 = vsel %vm809, %v7227, -inf
        %v7314 = vmax.f32 %v7306, %v7313
        %v7315 = vsel %vm809, %v7232, -inf
        %v7316 = vmax.f32 %v7308, %v7315
        %v7317 = vsel %vm809, %v7237, -inf
        %v7318 = vmax.f32 %v7310, %v7317
        %v7319 = vsel %vm809, %v7242, -inf
        %v7320 = vmax.f32 %v7312, %v7319
        %v7321 = vsel %vm809, %v7247, -inf
        %v7322 = vmax.f32 %v7314, %v7321
        %v7323 = vsel %vm809, %v7252, -inf
        %v7324 = vmax.f32 %v7316, %v7323
        %v7325 = vsel %vm809, %v7257, -inf
        %v7326 = vmax.f32 %v7318, %v7325
        %v7327 = vsel %vm809, %v7262, -inf
        %v7328 = vmax.f32 %v7320, %v7327
        %v7329 = vsel %vm809, %v7267, -inf
        %v7330 = vmax.f32 %v7322, %v7329
        %v7331 = vsel %vm809, %v7272, -inf
        %v7332 = vmax.f32 %v7324, %v7331
        %v7333 = vsel %vm809, %v7277, -inf
        %v7334 = vmax.f32 %v7326, %v7333
        %v7335 = vsel %vm809, %v7282, -inf
        %v7336 = vmax.f32 %v7328, %v7335
        %v7337 = vsel %vm809, %v7287, -inf
        %v7338 = vmax.f32 %v7330, %v7337
        %v7339 = vsel %vm854, %v7292, -inf
        %v7340 = vmax.f32 %v7332, %v7339
        %v7341 = vmax.f32 %v7340, %v7334
        %v7342 = vmax.f32 %v7336, %v7338
        %v7343 = vmax.f32 %v7341, %v7342
        %v7344 = vrot.slane %v7343, 4
        %v7345 = vmax.f32 %v7343, %v7344
        %v7346 = vrot.slane %v7345, 2
        %v7347 = vmax.f32 %v7345, %v7346
        %v7348 = vrot.slane %v7347, 1
        %v7349 = vmax.f32 %v7347, %v7348
        %v7350 = vsub.f32 %v7172, %v7349
        %v7351 = vsub.f32 %v7177, %v7349
        %v7352 = vsub.f32 %v7182, %v7349
        %v7353 = vsub.f32 %v7187, %v7349
        %v7354 = vsub.f32 %v7192, %v7349
        %v7355 = vsub.f32 %v7197, %v7349
        %v7356 = vsub.f32 %v7202, %v7349
        %v7357 = vsub.f32 %v7207, %v7349
        %v7358 = vsub.f32 %v7212, %v7349
        %v7359 = vsub.f32 %v7217, %v7349
        %v7360 = vsub.f32 %v7222, %v7349
        %v7361 = vsub.f32 %v7227, %v7349
        %v7362 = vsub.f32 %v7232, %v7349
        %v7363 = vsub.f32 %v7237, %v7349
        %v7364 = vsub.f32 %v7242, %v7349
        %v7365 = vsub.f32 %v7247, %v7349
        %v7366 = vsub.f32 %v7252, %v7349
        %v7367 = vsub.f32 %v7257, %v7349
        %v7368 = vsub.f32 %v7262, %v7349
        %v7369 = vsub.f32 %v7267, %v7349
        %v7370 = vsub.f32 %v7272, %v7349
        %v7371 = vsub.f32 %v7277, %v7349
        %v7372 = vsub.f32 %v7282, %v7349
        %v7373 = vsub.f32 %v7287, %v7349
        %v7374 = vsub.f32 %v7292, %v7349
        %v7375 = vmul.f32 %v7350, 1.442695
        %v7376 = vpow.pop %v7375
        %v7377 = vmul.f32 %v7351, 1.442695
        %v7378 = vpow.pop %v7377
        %v7379 = vmul.f32 %v7352, 1.442695
        %v7380 = vpow.pop %v7379
        %v7381 = vmul.f32 %v7353, 1.442695
        %v7382 = vpow.pop %v7381
        %v7383 = vmul.f32 %v7354, 1.442695
        %v7384 = vpow.pop %v7383
        %v7385 = vmul.f32 %v7355, 1.442695
        %v7386 = vpow.pop %v7385
        %v7387 = vmul.f32 %v7356, 1.442695
        %v7388 = vpow.pop %v7387
        %v7389 = vmul.f32 %v7357, 1.442695
        %v7390 = vpow.pop %v7389
        %v7391 = vmul.f32 %v7358, 1.442695
        %v7392 = vpow.pop %v7391
        %v7393 = vmul.f32 %v7359, 1.442695
        %v7394 = vpow.pop %v7393
        %v7395 = vmul.f32 %v7360, 1.442695
        %v7396 = vpow.pop %v7395
        %v7397 = vmul.f32 %v7361, 1.442695
        %v7398 = vpow.pop %v7397
        %v7399 = vmul.f32 %v7362, 1.442695
        %v7400 = vpow.pop %v7399
        %v7401 = vmul.f32 %v7363, 1.442695
        %v7402 = vpow.pop %v7401
        %v7403 = vmul.f32 %v7364, 1.442695
        %v7404 = vpow.pop %v7403
        %v7405 = vmul.f32 %v7365, 1.442695
        %v7406 = vpow.pop %v7405
        %v7407 = vmul.f32 %v7366, 1.442695
        %v7408 = vpow.pop %v7407
        %v7409 = vmul.f32 %v7367, 1.442695
        %v7410 = vpow.pop %v7409
        %v7411 = vmul.f32 %v7368, 1.442695
        %v7412 = vpow.pop %v7411
        %v7413 = vmul.f32 %v7369, 1.442695
        %v7414 = vpow.pop %v7413
        %v7415 = vmul.f32 %v7370, 1.442695
        %v7416 = vpow.pop %v7415
        %v7417 = vmul.f32 %v7371, 1.442695
        %v7418 = vpow.pop %v7417
        %v7419 = vmul.f32 %v7372, 1.442695
        %v7420 = vpow.pop %v7419
        %v7421 = vmul.f32 %v7373, 1.442695
        %v7422 = vpow.pop %v7421
        %v7423 = vmul.f32 %v7374, 1.442695
        %v7424 = vpow.pop %v7423
        %v7425 = vsel %vm809, %v7376, 0.0
        %v7426 = vsel %vm809, %v7378, 0.0
        %v7427 = vadd.f32 %v7425, %v7426
        %v7428 = vsel %vm809, %v7380, 0.0
        %v7429 = vadd.f32 %v7427, %v7428
        %v7430 = vsel %vm809, %v7382, 0.0
        %v7431 = vadd.f32 %v7429, %v7430
        %v7432 = vsel %vm809, %v7384, 0.0
        %v7433 = vadd.f32 %v7431, %v7432
        %v7434 = vsel %vm809, %v7386, 0.0
        %v7435 = vadd.f32 %v7433, %v7434
        %v7436 = vsel %vm809, %v7388, 0.0
        %v7437 = vadd.f32 %v7435, %v7436
        %v7438 = vsel %vm809, %v7390, 0.0
        %v7439 = vadd.f32 %v7437, %v7438
        %v7440 = vsel %vm809, %v7392, 0.0
        %v7441 = vadd.f32 %v7439, %v7440
        %v7442 = vsel %vm809, %v7394, 0.0
        %v7443 = vadd.f32 %v7441, %v7442
        %v7444 = vsel %vm809, %v7396, 0.0
        %v7445 = vadd.f32 %v7443, %v7444
        %v7446 = vsel %vm809, %v7398, 0.0
        %v7447 = vadd.f32 %v7445, %v7446
        %v7448 = vsel %vm809, %v7400, 0.0
        %v7449 = vadd.f32 %v7447, %v7448
        %v7450 = vsel %vm809, %v7402, 0.0
        %v7451 = vadd.f32 %v7449, %v7450
        %v7452 = vsel %vm809, %v7404, 0.0
        %v7453 = vadd.f32 %v7451, %v7452
        %v7454 = vsel %vm809, %v7406, 0.0
        %v7455 = vadd.f32 %v7453, %v7454
        %v7456 = vsel %vm809, %v7408, 0.0
        %v7457 = vadd.f32 %v7455, %v7456
        %v7458 = vsel %vm809, %v7410, 0.0
        %v7459 = vadd.f32 %v7457, %v7458
        %v7460 = vsel %vm809, %v7412, 0.0
        %v7461 = vadd.f32 %v7459, %v7460
        %v7462 = vsel %vm809, %v7414, 0.0
        %v7463 = vadd.f32 %v7461, %v7462
        %v7464 = vsel %vm809, %v7416, 0.0
        %v7465 = vadd.f32 %v7463, %v7464
        %v7466 = vsel %vm809, %v7418, 0.0
        %v7467 = vadd.f32 %v7465, %v7466
        %v7468 = vsel %vm809, %v7420, 0.0
        %v7469 = vadd.f32 %v7467, %v7468
        %v7470 = vsel %vm809, %v7422, 0.0
        %v7471 = vadd.f32 %v7469, %v7470
        %v7472 = vsel %vm854, %v7424, 0.0
        %v7473 = vadd.f32 %v7471, %v7472
        %v7474 = vrot.slane %v7473, 4
        %v7475 = vadd.f32 %v7473, %v7474
        %v7476 = vrot.slane %v7475, 2
        %v7477 = vadd.f32 %v7475, %v7476
        %v7478 = vrot.slane %v7477, 1
        %v7479 = vadd.f32 %v7477, %v7478
        %v7480 = vrcp.pop %v7479
        %v7481 = vmul.f32 %v7376, %v7480
        %v7482 = vmul.f32 %v7378, %v7480
        %v7483 = vmul.f32 %v7380, %v7480
        %v7484 = vmul.f32 %v7382, %v7480
        %v7485 = vmul.f32 %v7384, %v7480
        %v7486 = vmul.f32 %v7386, %v7480
        %v7487 = vmul.f32 %v7388, %v7480
        %v7488 = vmul.f32 %v7390, %v7480
        %v7489 = vmul.f32 %v7392, %v7480
        %v7490 = vmul.f32 %v7394, %v7480
        %v7491 = vmul.f32 %v7396, %v7480
        %v7492 = vmul.f32 %v7398, %v7480
        %v7493 = vmul.f32 %v7400, %v7480
        %v7494 = vmul.f32 %v7402, %v7480
        %v7495 = vmul.f32 %v7404, %v7480
        %v7496 = vmul.f32 %v7406, %v7480
        %v7497 = vmul.f32 %v7408, %v7480
        %v7498 = vmul.f32 %v7410, %v7480
        %v7499 = vmul.f32 %v7412, %v7480
        %v7500 = vmul.f32 %v7414, %v7480
        %v7501 = vmul.f32 %v7416, %v7480
        %v7502 = vmul.f32 %v7418, %v7480
        %v7503 = vmul.f32 %v7420, %v7480
        %v7504 = vmul.f32 %v7422, %v7480
        %v7505 = vmul.f32 %v7424, %v7480
        %7507 = vset.pattern.permute.xlu0 0
        %7508 = vperm.xlu0 %7507, %v7481
        %v7509 = vpop.permute.xlu0 %7508
        %7512 = vset.pattern.permute.xlu0 0
        %7513 = vperm.xlu0 %7512, %v7482
        %v7514 = vpop.permute.xlu0 %7513
        %7517 = vset.pattern.permute.xlu0 0
        %7518 = vperm.xlu0 %7517, %v7483
        %v7519 = vpop.permute.xlu0 %7518
        %7522 = vset.pattern.permute.xlu0 0
        %7523 = vperm.xlu0 %7522, %v7484
        %v7524 = vpop.permute.xlu0 %7523
        %7527 = vset.pattern.permute.xlu0 0
        %7528 = vperm.xlu0 %7527, %v7485
        %v7529 = vpop.permute.xlu0 %7528
        %7532 = vset.pattern.permute.xlu0 0
        %7533 = vperm.xlu0 %7532, %v7486
        %v7534 = vpop.permute.xlu0 %7533
        %7537 = vset.pattern.permute.xlu0 0
        %7538 = vperm.xlu0 %7537, %v7487
        %v7539 = vpop.permute.xlu0 %7538
        %7542 = vset.pattern.permute.xlu0 0
        %7543 = vperm.xlu0 %7542, %v7488
        %v7544 = vpop.permute.xlu0 %7543
        %7547 = vset.pattern.permute.xlu0 0
        %7548 = vperm.xlu0 %7547, %v7489
        %v7549 = vpop.permute.xlu0 %7548
        %7552 = vset.pattern.permute.xlu0 0
        %7553 = vperm.xlu0 %7552, %v7490
        %v7554 = vpop.permute.xlu0 %7553
        %7557 = vset.pattern.permute.xlu0 0
        %7558 = vperm.xlu0 %7557, %v7491
        %v7559 = vpop.permute.xlu0 %7558
        %7562 = vset.pattern.permute.xlu0 0
        %7563 = vperm.xlu0 %7562, %v7492
        %v7564 = vpop.permute.xlu0 %7563
        %7567 = vset.pattern.permute.xlu0 0
        %7568 = vperm.xlu0 %7567, %v7493
        %v7569 = vpop.permute.xlu0 %7568
        %7572 = vset.pattern.permute.xlu0 0
        %7573 = vperm.xlu0 %7572, %v7494
        %v7574 = vpop.permute.xlu0 %7573
        %7577 = vset.pattern.permute.xlu0 0
        %7578 = vperm.xlu0 %7577, %v7495
        %v7579 = vpop.permute.xlu0 %7578
        %7582 = vset.pattern.permute.xlu0 0
        %7583 = vperm.xlu0 %7582, %v7496
        %v7584 = vpop.permute.xlu0 %7583
        %7587 = vset.pattern.permute.xlu0 0
        %7588 = vperm.xlu0 %7587, %v7497
        %v7589 = vpop.permute.xlu0 %7588
        %7592 = vset.pattern.permute.xlu0 0
        %7593 = vperm.xlu0 %7592, %v7498
        %v7594 = vpop.permute.xlu0 %7593
        %7597 = vset.pattern.permute.xlu0 0
        %7598 = vperm.xlu0 %7597, %v7499
        %v7599 = vpop.permute.xlu0 %7598
        %7602 = vset.pattern.permute.xlu0 0
        %7603 = vperm.xlu0 %7602, %v7500
        %v7604 = vpop.permute.xlu0 %7603
        %7607 = vset.pattern.permute.xlu0 0
        %7608 = vperm.xlu0 %7607, %v7501
        %v7609 = vpop.permute.xlu0 %7608
        %7612 = vset.pattern.permute.xlu0 0
        %7613 = vperm.xlu0 %7612, %v7502
        %v7614 = vpop.permute.xlu0 %7613
        %7617 = vset.pattern.permute.xlu0 0
        %7618 = vperm.xlu0 %7617, %v7503
        %v7619 = vpop.permute.xlu0 %7618
        %7622 = vset.pattern.permute.xlu0 0
        %7623 = vperm.xlu0 %7622, %v7504
        %v7624 = vpop.permute.xlu0 %7623
        %7627 = vset.pattern.permute.xlu0 0
        %7628 = vperm.xlu0 %7627, %v7505
        %v7629 = vpop.permute.xlu0 %7628
        %v7631 = vmul.f32 %v6808, %v7509
        %v7632 = vmul.f32 %v6809, %v7509
        %v7633 = vmul.f32 %v6810, %v7509
        %v7634 = vmul.f32 %v6811, %v7509
        %v7635 = vmul.f32 %v6812, %v7514
        %v7636 = vmul.f32 %v6813, %v7514
        %v7637 = vmul.f32 %v6814, %v7514
        %v7638 = vmul.f32 %v6815, %v7514
        %v7639 = vmul.f32 %v6816, %v7519
        %v7640 = vmul.f32 %v6817, %v7519
        %v7641 = vmul.f32 %v6818, %v7519
        %v7642 = vmul.f32 %v6819, %v7519
        %v7643 = vmul.f32 %v6820, %v7524
        %v7644 = vmul.f32 %v6821, %v7524
        %v7645 = vmul.f32 %v6822, %v7524
        %v7646 = vmul.f32 %v6823, %v7524
        %v7647 = vmul.f32 %v6824, %v7529
        %v7648 = vmul.f32 %v6825, %v7529
        %v7649 = vmul.f32 %v6826, %v7529
        %v7650 = vmul.f32 %v6827, %v7529
        %v7651 = vmul.f32 %v6828, %v7534
        %v7652 = vmul.f32 %v6829, %v7534
        %v7653 = vmul.f32 %v6830, %v7534
        %v7654 = vmul.f32 %v6831, %v7534
        %v7655 = vmul.f32 %v6832, %v7539
        %v7656 = vmul.f32 %v6833, %v7539
        %v7657 = vmul.f32 %v6834, %v7539
        %v7658 = vmul.f32 %v6835, %v7539
        %v7659 = vmul.f32 %v6836, %v7544
        %v7660 = vmul.f32 %v6837, %v7544
        %v7661 = vmul.f32 %v6838, %v7544
        %v7662 = vmul.f32 %v6839, %v7544
        %v7663 = vmul.f32 %v6840, %v7549
        %v7664 = vmul.f32 %v6841, %v7549
        %v7665 = vmul.f32 %v6842, %v7549
        %v7666 = vmul.f32 %v6843, %v7549
        %v7667 = vmul.f32 %v6844, %v7554
        %v7668 = vmul.f32 %v6845, %v7554
        %v7669 = vmul.f32 %v6846, %v7554
        %v7670 = vmul.f32 %v6847, %v7554
        %v7671 = vmul.f32 %v6848, %v7559
        %v7672 = vmul.f32 %v6849, %v7559
        %v7673 = vmul.f32 %v6850, %v7559
        %v7674 = vmul.f32 %v6851, %v7559
        %v7675 = vmul.f32 %v6852, %v7564
        %v7676 = vmul.f32 %v6853, %v7564
        %v7677 = vmul.f32 %v6854, %v7564
        %v7678 = vmul.f32 %v6855, %v7564
        %v7679 = vmul.f32 %v6856, %v7569
        %v7680 = vmul.f32 %v6857, %v7569
        %v7681 = vmul.f32 %v6858, %v7569
        %v7682 = vmul.f32 %v6859, %v7569
        %v7683 = vmul.f32 %v6860, %v7574
        %v7684 = vmul.f32 %v6861, %v7574
        %v7685 = vmul.f32 %v6862, %v7574
        %v7686 = vmul.f32 %v6863, %v7574
        %v7687 = vmul.f32 %v6864, %v7579
        %v7688 = vmul.f32 %v6865, %v7579
        %v7689 = vmul.f32 %v6866, %v7579
        %v7690 = vmul.f32 %v6867, %v7579
        %v7691 = vmul.f32 %v6868, %v7584
        %v7692 = vmul.f32 %v6869, %v7584
        %v7693 = vmul.f32 %v6870, %v7584
        %v7694 = vmul.f32 %v6871, %v7584
        %v7695 = vmul.f32 %v6872, %v7589
        %v7696 = vmul.f32 %v6873, %v7589
        %v7697 = vmul.f32 %v6874, %v7589
        %v7698 = vmul.f32 %v6875, %v7589
        %v7699 = vmul.f32 %v6876, %v7594
        %v7700 = vmul.f32 %v6877, %v7594
        %v7701 = vmul.f32 %v6878, %v7594
        %v7702 = vmul.f32 %v6879, %v7594
        %v7703 = vmul.f32 %v6880, %v7599
        %v7704 = vmul.f32 %v6881, %v7599
        %v7705 = vmul.f32 %v6882, %v7599
        %v7706 = vmul.f32 %v6883, %v7599
        %v7707 = vmul.f32 %v6884, %v7604
        %v7708 = vmul.f32 %v6885, %v7604
        %v7709 = vmul.f32 %v6886, %v7604
        %v7710 = vmul.f32 %v6887, %v7604
        %v7711 = vmul.f32 %v6888, %v7609
        %v7712 = vmul.f32 %v6889, %v7609
        %v7713 = vmul.f32 %v6890, %v7609
        %v7714 = vmul.f32 %v6891, %v7609
        %v7715 = vmul.f32 %v6892, %v7614
        %v7716 = vmul.f32 %v6893, %v7614
        %v7717 = vmul.f32 %v6894, %v7614
        %v7718 = vmul.f32 %v6895, %v7614
        %v7719 = vmul.f32 %v6896, %v7619
        %v7720 = vmul.f32 %v6897, %v7619
        %v7721 = vmul.f32 %v6898, %v7619
        %v7722 = vmul.f32 %v6899, %v7619
        %v7723 = vmul.f32 %v6900, %v7624
        %v7724 = vmul.f32 %v6901, %v7624
        %v7725 = vmul.f32 %v6902, %v7624
        %v7726 = vmul.f32 %v6903, %v7624
        %v7727 = vmul.f32 %v6904, %v7629
        %v7728 = vmul.f32 %v6905, %v7629
        %v7729 = vmul.f32 %v6906, %v7629
        %v7730 = vmul.f32 %v6907, %v7629
        %v7731 = vadd.f32 %v7631, %v7635
        %v7732 = vadd.f32 %v7731, %v7639
        %v7733 = vadd.f32 %v7732, %v7643
        %v7734 = vadd.f32 %v7733, %v7647
        %v7735 = vadd.f32 %v7734, %v7651
        %v7736 = vadd.f32 %v7735, %v7655
        %v7737 = vadd.f32 %v7736, %v7659
        %v7738 = vadd.f32 %v7737, %v7663
        %v7739 = vadd.f32 %v7738, %v7667
        %v7740 = vadd.f32 %v7739, %v7671
        %v7741 = vadd.f32 %v7740, %v7675
        %v7742 = vadd.f32 %v7741, %v7679
        %v7743 = vadd.f32 %v7742, %v7683
        %v7744 = vadd.f32 %v7743, %v7687
        %v7745 = vadd.f32 %v7744, %v7691
        %v7746 = vadd.f32 %v7745, %v7695
        %v7747 = vadd.f32 %v7746, %v7699
        %v7748 = vadd.f32 %v7747, %v7703
        %v7749 = vadd.f32 %v7748, %v7707
        %v7750 = vadd.f32 %v7749, %v7711
        %v7751 = vadd.f32 %v7750, %v7715
        %v7752 = vadd.f32 %v7751, %v7719
        %v7753 = vadd.f32 %v7752, %v7723
        %v7754 = vsel %vm1270, %v7727, 0.0
        %v7755 = vadd.f32 %v7753, %v7754
        %v7756 = vrot.slane %v7755, 4
        %v7757 = vadd.f32 %v7755, %v7756
        %v7758 = vrot.slane %v7757, 2
        %v7759 = vadd.f32 %v7757, %v7758
        %v7760 = vrot.slane %v7759, 1
        %v7761 = vadd.f32 %v7759, %v7760
        %v7762 = vadd.f32 %v7632, %v7636
        %v7763 = vadd.f32 %v7762, %v7640
        %v7764 = vadd.f32 %v7763, %v7644
        %v7765 = vadd.f32 %v7764, %v7648
        %v7766 = vadd.f32 %v7765, %v7652
        %v7767 = vadd.f32 %v7766, %v7656
        %v7768 = vadd.f32 %v7767, %v7660
        %v7769 = vadd.f32 %v7768, %v7664
        %v7770 = vadd.f32 %v7769, %v7668
        %v7771 = vadd.f32 %v7770, %v7672
        %v7772 = vadd.f32 %v7771, %v7676
        %v7773 = vadd.f32 %v7772, %v7680
        %v7774 = vadd.f32 %v7773, %v7684
        %v7775 = vadd.f32 %v7774, %v7688
        %v7776 = vadd.f32 %v7775, %v7692
        %v7777 = vadd.f32 %v7776, %v7696
        %v7778 = vadd.f32 %v7777, %v7700
        %v7779 = vadd.f32 %v7778, %v7704
        %v7780 = vadd.f32 %v7779, %v7708
        %v7781 = vadd.f32 %v7780, %v7712
        %v7782 = vadd.f32 %v7781, %v7716
        %v7783 = vadd.f32 %v7782, %v7720
        %v7784 = vadd.f32 %v7783, %v7724
        %v7785 = vsel %vm1270, %v7728, 0.0
        %v7786 = vadd.f32 %v7784, %v7785
        %v7787 = vrot.slane %v7786, 4
        %v7788 = vadd.f32 %v7786, %v7787
        %v7789 = vrot.slane %v7788, 2
        %v7790 = vadd.f32 %v7788, %v7789
        %v7791 = vrot.slane %v7790, 1
        %v7792 = vadd.f32 %v7790, %v7791
        %v7793 = vadd.f32 %v7633, %v7637
        %v7794 = vadd.f32 %v7793, %v7641
        %v7795 = vadd.f32 %v7794, %v7645
        %v7796 = vadd.f32 %v7795, %v7649
        %v7797 = vadd.f32 %v7796, %v7653
        %v7798 = vadd.f32 %v7797, %v7657
        %v7799 = vadd.f32 %v7798, %v7661
        %v7800 = vadd.f32 %v7799, %v7665
        %v7801 = vadd.f32 %v7800, %v7669
        %v7802 = vadd.f32 %v7801, %v7673
        %v7803 = vadd.f32 %v7802, %v7677
        %v7804 = vadd.f32 %v7803, %v7681
        %v7805 = vadd.f32 %v7804, %v7685
        %v7806 = vadd.f32 %v7805, %v7689
        %v7807 = vadd.f32 %v7806, %v7693
        %v7808 = vadd.f32 %v7807, %v7697
        %v7809 = vadd.f32 %v7808, %v7701
        %v7810 = vadd.f32 %v7809, %v7705
        %v7811 = vadd.f32 %v7810, %v7709
        %v7812 = vadd.f32 %v7811, %v7713
        %v7813 = vadd.f32 %v7812, %v7717
        %v7814 = vadd.f32 %v7813, %v7721
        %v7815 = vadd.f32 %v7814, %v7725
        %v7816 = vsel %vm1270, %v7729, 0.0
        %v7817 = vadd.f32 %v7815, %v7816
        %v7818 = vrot.slane %v7817, 4
        %v7819 = vadd.f32 %v7817, %v7818
        %v7820 = vrot.slane %v7819, 2
        %v7821 = vadd.f32 %v7819, %v7820
        %v7822 = vrot.slane %v7821, 1
        %v7823 = vadd.f32 %v7821, %v7822
        %v7824 = vadd.f32 %v7634, %v7638
        %v7825 = vadd.f32 %v7824, %v7642
        %v7826 = vadd.f32 %v7825, %v7646
        %v7827 = vadd.f32 %v7826, %v7650
        %v7828 = vadd.f32 %v7827, %v7654
        %v7829 = vadd.f32 %v7828, %v7658
        %v7830 = vadd.f32 %v7829, %v7662
        %v7831 = vadd.f32 %v7830, %v7666
        %v7832 = vadd.f32 %v7831, %v7670
        %v7833 = vadd.f32 %v7832, %v7674
        %v7834 = vadd.f32 %v7833, %v7678
        %v7835 = vadd.f32 %v7834, %v7682
        %v7836 = vadd.f32 %v7835, %v7686
        %v7837 = vadd.f32 %v7836, %v7690
        %v7838 = vadd.f32 %v7837, %v7694
        %v7839 = vadd.f32 %v7838, %v7698
        %v7840 = vadd.f32 %v7839, %v7702
        %v7841 = vadd.f32 %v7840, %v7706
        %v7842 = vadd.f32 %v7841, %v7710
        %v7843 = vadd.f32 %v7842, %v7714
        %v7844 = vadd.f32 %v7843, %v7718
        %v7845 = vadd.f32 %v7844, %v7722
        %v7846 = vadd.f32 %v7845, %v7726
        %v7847 = vsel %vm1270, %v7730, 0.0
        %v7848 = vadd.f32 %v7846, %v7847
        %v7849 = vrot.slane %v7848, 4
        %v7850 = vadd.f32 %v7848, %v7849
        %v7851 = vrot.slane %v7850, 2
        %v7852 = vadd.f32 %v7850, %v7851
        %v7853 = vrot.slane %v7852, 1
        %v7854 = vadd.f32 %v7852, %v7853
        %v7859 = vcombine.low %v7761, %v7792
        %v7860 = vcombine.low %v7823, %v7854
        %v7862 = vunpack.c.l.s4 1966171168
        %v7863 = vunpack.c.0.s8 %v7862
        %v7864 = vlaneseq
        %v7865 = vshrl.u32 %v7864, 7
        %v7866 = vsub.s32 %v7863, %v7865
        %v7867 = vrot.slane %v7859, %v7866
        %v7869 = vunpack.c.l.s4 1966171168
        %v7870 = vunpack.c.0.s8 %v7869
        %v7871 = vlaneseq
        %v7872 = vshrl.u32 %v7871, 7
        %v7873 = vsub.s32 %v7870, %v7872
        %v7874 = vrot.slane %v7860, %v7873
        %v7875 = vcombine.low %v7867, %v7874
        %v7877 = vunpack.c.l.s4 1966171168
        %v7878 = vunpack.c.0.s8 %v7877
        %v7879 = vlaneseq
        %v7880 = vshrl.u32 %v7879, 7
        %v7881 = vsub.s32 %v7878, %v7880
        %v7882 = vrot.slane %v7875, %v7881
        %s7884 = scalar_lea.vmem [#allocation2], 6
        %7885 = vst.msk [vmem:[%s7884] ss:$8 sm:$0xf] %vm1404, %v7882
        %7886 = vst.msk [vmem:[%s7884] ss:$8 sm:$0x0] %vm1404, %v7882
        %s7887 = scalar_lea.vmem %s256, 5600
        %v7888 = vld [vmem:[%s7887] sm:$0xff]
        %v7889 = vld [vmem:[%s7887 + $0x8] sm:$0xff]
        %v7890 = vld [vmem:[%s7887 + $0x10] sm:$0xff]
        %v7891 = vld [vmem:[%s7887 + $0x18] sm:$0xff]
        %v7892 = vld [vmem:[%s7887 + $0x20] sm:$0xff]
        %v7893 = vld [vmem:[%s7887 + $0x28] sm:$0xff]
        %v7894 = vld [vmem:[%s7887 + $0x30] sm:$0xff]
        %v7895 = vld [vmem:[%s7887 + $0x38] sm:$0xff]
        %v7896 = vld [vmem:[%s7887 + $0x40] sm:$0xff]
        %v7897 = vld [vmem:[%s7887 + $0x48] sm:$0xff]
        %v7898 = vld [vmem:[%s7887 + $0x50] sm:$0xff]
        %v7899 = vld [vmem:[%s7887 + $0x58] sm:$0xff]
        %v7900 = vld [vmem:[%s7887 + $0x60] sm:$0xff]
        %v7901 = vld [vmem:[%s7887 + $0x68] sm:$0xff]
        %v7902 = vld [vmem:[%s7887 + $0x70] sm:$0xff]
        %v7903 = vld [vmem:[%s7887 + $0x78] sm:$0xff]
        %v7904 = vld [vmem:[%s7887 + $0x80] sm:$0xff]
        %v7905 = vld [vmem:[%s7887 + $0x88] sm:$0xff]
        %v7906 = vld [vmem:[%s7887 + $0x90] sm:$0xff]
        %v7907 = vld [vmem:[%s7887 + $0x98] sm:$0xff]
        %v7908 = vld [vmem:[%s7887 + $0xa0] sm:$0xff]
        %v7909 = vld [vmem:[%s7887 + $0xa8] sm:$0xff]
        %v7910 = vld [vmem:[%s7887 + $0xb0] sm:$0xff]
        %v7911 = vld [vmem:[%s7887 + $0xb8] sm:$0xff]
        %v7912 = vld [vmem:[%s7887 + $0xc0] sm:$0xff]
        %v7913 = vld [vmem:[%s7887 + $0xc8] sm:$0xff]
        %v7914 = vld [vmem:[%s7887 + $0xd0] sm:$0xff]
        %v7915 = vld [vmem:[%s7887 + $0xd8] sm:$0xff]
        %v7916 = vld [vmem:[%s7887 + $0xe0] sm:$0xff]
        %v7917 = vld [vmem:[%s7887 + $0xe8] sm:$0xff]
        %v7918 = vld [vmem:[%s7887 + $0xf0] sm:$0xff]
        %v7919 = vld [vmem:[%s7887 + $0xf8] sm:$0xff]
        %v7920 = vld [vmem:[%s7887 + $0x100] sm:$0xff]
        %v7921 = vld [vmem:[%s7887 + $0x108] sm:$0xff]
        %v7922 = vld [vmem:[%s7887 + $0x110] sm:$0xff]
        %v7923 = vld [vmem:[%s7887 + $0x118] sm:$0xff]
        %v7924 = vld [vmem:[%s7887 + $0x120] sm:$0xff]
        %v7925 = vld [vmem:[%s7887 + $0x128] sm:$0xff]
        %v7926 = vld [vmem:[%s7887 + $0x130] sm:$0xff]
        %v7927 = vld [vmem:[%s7887 + $0x138] sm:$0xff]
        %v7928 = vld [vmem:[%s7887 + $0x140] sm:$0xff]
        %v7929 = vld [vmem:[%s7887 + $0x148] sm:$0xff]
        %v7930 = vld [vmem:[%s7887 + $0x150] sm:$0xff]
        %v7931 = vld [vmem:[%s7887 + $0x158] sm:$0xff]
        %v7932 = vld [vmem:[%s7887 + $0x160] sm:$0xff]
        %v7933 = vld [vmem:[%s7887 + $0x168] sm:$0xff]
        %v7934 = vld [vmem:[%s7887 + $0x170] sm:$0xff]
        %v7935 = vld [vmem:[%s7887 + $0x178] sm:$0xff]
        %v7936 = vld [vmem:[%s7887 + $0x180] sm:$0xff]
        %v7937 = vld [vmem:[%s7887 + $0x188] sm:$0xff]
        %v7938 = vld [vmem:[%s7887 + $0x190] sm:$0xff]
        %v7939 = vld [vmem:[%s7887 + $0x198] sm:$0xff]
        %v7940 = vld [vmem:[%s7887 + $0x1a0] sm:$0xff]
        %v7941 = vld [vmem:[%s7887 + $0x1a8] sm:$0xff]
        %v7942 = vld [vmem:[%s7887 + $0x1b0] sm:$0xff]
        %v7943 = vld [vmem:[%s7887 + $0x1b8] sm:$0xff]
        %v7944 = vld [vmem:[%s7887 + $0x1c0] sm:$0xff]
        %v7945 = vld [vmem:[%s7887 + $0x1c8] sm:$0xff]
        %v7946 = vld [vmem:[%s7887 + $0x1d0] sm:$0xff]
        %v7947 = vld [vmem:[%s7887 + $0x1d8] sm:$0xff]
        %v7948 = vld [vmem:[%s7887 + $0x1e0] sm:$0xff]
        %v7949 = vld [vmem:[%s7887 + $0x1e8] sm:$0xff]
        %v7950 = vld [vmem:[%s7887 + $0x1f0] sm:$0xff]
        %v7951 = vld [vmem:[%s7887 + $0x1f8] sm:$0xff]
        %v7952 = vld [vmem:[%s7887 + $0x200] sm:$0xff]
        %v7953 = vld [vmem:[%s7887 + $0x208] sm:$0xff]
        %v7954 = vld [vmem:[%s7887 + $0x210] sm:$0xff]
        %v7955 = vld [vmem:[%s7887 + $0x218] sm:$0xff]
        %v7956 = vld [vmem:[%s7887 + $0x220] sm:$0xff]
        %v7957 = vld [vmem:[%s7887 + $0x228] sm:$0xff]
        %v7958 = vld [vmem:[%s7887 + $0x230] sm:$0xff]
        %v7959 = vld [vmem:[%s7887 + $0x238] sm:$0xff]
        %v7960 = vld [vmem:[%s7887 + $0x240] sm:$0xff]
        %v7961 = vld [vmem:[%s7887 + $0x248] sm:$0xff]
        %v7962 = vld [vmem:[%s7887 + $0x250] sm:$0xff]
        %v7963 = vld [vmem:[%s7887 + $0x258] sm:$0xff]
        %v7964 = vld [vmem:[%s7887 + $0x260] sm:$0xff]
        %v7965 = vld [vmem:[%s7887 + $0x268] sm:$0xff]
        %v7966 = vld [vmem:[%s7887 + $0x270] sm:$0xff]
        %v7967 = vld [vmem:[%s7887 + $0x278] sm:$0xff]
        %v7968 = vld [vmem:[%s7887 + $0x280] sm:$0xff]
        %v7969 = vld [vmem:[%s7887 + $0x288] sm:$0xff]
        %v7970 = vld [vmem:[%s7887 + $0x290] sm:$0xff]
        %v7971 = vld [vmem:[%s7887 + $0x298] sm:$0xff]
        %v7972 = vld [vmem:[%s7887 + $0x2a0] sm:$0xff]
        %v7973 = vld [vmem:[%s7887 + $0x2a8] sm:$0xff]
        %v7974 = vld [vmem:[%s7887 + $0x2b0] sm:$0xff]
        %v7975 = vld [vmem:[%s7887 + $0x2b8] sm:$0xff]
        %v7976 = vld [vmem:[%s7887 + $0x2c0] sm:$0xff]
        %v7977 = vld [vmem:[%s7887 + $0x2c8] sm:$0xff]
        %v7978 = vld [vmem:[%s7887 + $0x2d0] sm:$0xff]
        %v7979 = vld [vmem:[%s7887 + $0x2d8] sm:$0xff]
        %v7980 = vld [vmem:[%s7887 + $0x2e0] sm:$0xff]
        %v7981 = vld [vmem:[%s7887 + $0x2e8] sm:$0xff]
        %v7982 = vld [vmem:[%s7887 + $0x2f0] sm:$0xff]
        %v7983 = vld [vmem:[%s7887 + $0x2f8] sm:$0xff]
        %v7984 = vld [vmem:[%s7887 + $0x300] sm:$0xf]
        %v7985 = vld [vmem:[%s7887 + $0x308] sm:$0xf]
        %v7986 = vld [vmem:[%s7887 + $0x310] sm:$0xf]
        %v7987 = vld [vmem:[%s7887 + $0x318] sm:$0xf]
        %v7988 = vld [vmem:[#allocation3] sm:$0x1]
        %v7990 = vlaneseq
        %v7991 = vshrl.u32 %v7990, 7
        %v7992 = vsub.s32 0, %v7991
        %v7993 = vrot.slane %v7988, %v7992
        %7995 = vmatprep.subr.mxu0 0.0
        %7996 = vmatpush1.msra.mxu0 %v273
        %7997 = vmatprep.subr.mxu0 0.0
        %7998 = vmatpush1.msra.mxu0 %v272
        %7999 = vmatprep.subr.mxu0 0.0
        %8000 = vmatpush1.msra.mxu0 %v271
        %8001 = vmatprep.subr.mxu0 0.0
        %8002 = vmatpush1.msra.mxu0 %v270
        %8003 = vmatprep.subr.mxu0 0.0
        %8004 = vmatpush1.msra.mxu0 %v269
        %8005 = vmatprep.subr.mxu0 0.0
        %8006 = vmatpush1.msra.mxu0 %v268
        %8007 = vmatprep.subr.mxu0 0.0
        %8008 = vmatpush1.msra.mxu0 %v267
        %8009 = vmatprep.subr.mxu0 0.0
        %8010 = vmatpush1.msra.mxu0 %v266
        %8011 = vmatprep.subr.mxu0 0.0
        %8012 = vmatpush1.msra.mxu0 %v265
        %8013 = vmatprep.subr.mxu0 0.0
        %8014 = vmatpush1.msra.mxu0 %v264
        %8015 = vmatprep.subr.mxu0 0.0
        %8016 = vmatpush1.msra.mxu0 %v263
        %8017 = vmatprep.subr.mxu0 0.0
        %8018 = vmatpush1.msra.mxu0 %v262
        %8019 = vmatprep.subr.mxu0 0.0
        %8020 = vmatpush1.msra.mxu0 %v261
        %8021 = vmatprep.subr.mxu0 0.0
        %8022 = vmatpush1.msra.mxu0 %v260
        %8023 = vmatprep.subr.mxu0 0.0
        %8024 = vmatpush1.msra.mxu0 %v259
        %8025 = vmatprep.subr.mxu0 0.0
        %8026 = vmatpush1.msra.mxu0 %v258
        %8027 = vmatprep.subr.mxu0 0.0
        %8028 = vmatpush2.msra.mxu0 %v289
        %8029 = vmatprep.subr.mxu0 0.0
        %8030 = vmatpush2.msra.mxu0 %v288
        %8031 = vmatprep.subr.mxu0 0.0
        %8032 = vmatpush2.msra.mxu0 %v287
        %8033 = vmatprep.subr.mxu0 0.0
        %8034 = vmatpush2.msra.mxu0 %v286
        %8035 = vmatprep.subr.mxu0 0.0
        %8036 = vmatpush2.msra.mxu0 %v285
        %8037 = vmatprep.subr.mxu0 0.0
        %8038 = vmatpush2.msra.mxu0 %v284
        %8039 = vmatprep.subr.mxu0 0.0
        %8040 = vmatpush2.msra.mxu0 %v283
        %8041 = vmatprep.subr.mxu0 0.0
        %8042 = vmatpush2.msra.mxu0 %v282
        %8043 = vmatprep.subr.mxu0 0.0
        %8044 = vmatpush2.msra.mxu0 %v281
        %8045 = vmatprep.subr.mxu0 0.0
        %8046 = vmatpush2.msra.mxu0 %v280
        %8047 = vmatprep.subr.mxu0 0.0
        %8048 = vmatpush2.msra.mxu0 %v279
        %8049 = vmatprep.subr.mxu0 0.0
        %8050 = vmatpush2.msra.mxu0 %v278
        %8051 = vmatprep.subr.mxu0 0.0
        %8052 = vmatpush2.msra.mxu0 %v277
        %8053 = vmatprep.subr.mxu0 0.0
        %8054 = vmatpush2.msra.mxu0 %v276
        %8055 = vmatprep.subr.mxu0 0.0
        %8056 = vmatpush2.msra.mxu0 %v275
        %8057 = vmatprep.subr.mxu0 0.0
        %8058 = vmatpush2.msra.mxu0 %v274
        %8059 = vmatprep.mubr.f32.mxu0 %v7889
        %8060 = vmatmul.mubr.f32.gmra.mxu0 %v7888
        %v8061 = vpop.f32.mrf.mxu0
        %v8062 = vadd.f32 %v7993, %v8061
        %v8063 = vpop.f32.mrf.mxu0
        %8064 = vmatprep.mubr.f32.mxu0 %v7893
        %8065 = vmatmul.mubr.f32.gmra.mxu0 %v7892
        %v8066 = vpop.f32.mrf.mxu0
        %v8067 = vadd.f32 %v7993, %v8066
        %v8068 = vpop.f32.mrf.mxu0
        %8069 = vmatprep.mubr.f32.mxu0 %v7897
        %8070 = vmatmul.mubr.f32.gmra.mxu0 %v7896
        %v8071 = vpop.f32.mrf.mxu0
        %v8072 = vadd.f32 %v7993, %v8071
        %v8073 = vpop.f32.mrf.mxu0
        %8074 = vmatprep.mubr.f32.mxu0 %v7901
        %8075 = vmatmul.mubr.f32.gmra.mxu0 %v7900
        %v8076 = vpop.f32.mrf.mxu0
        %v8077 = vadd.f32 %v7993, %v8076
        %v8078 = vpop.f32.mrf.mxu0
        %8079 = vmatprep.mubr.f32.mxu0 %v7905
        %8080 = vmatmul.mubr.f32.gmra.mxu0 %v7904
        %v8081 = vpop.f32.mrf.mxu0
        %v8082 = vadd.f32 %v7993, %v8081
        %v8083 = vpop.f32.mrf.mxu0
        %8084 = vmatprep.mubr.f32.mxu0 %v7909
        %8085 = vmatmul.mubr.f32.gmra.mxu0 %v7908
        %v8086 = vpop.f32.mrf.mxu0
        %v8087 = vadd.f32 %v7993, %v8086
        %v8088 = vpop.f32.mrf.mxu0
        %8089 = vmatprep.mubr.f32.mxu0 %v7913
        %8090 = vmatmul.mubr.f32.gmra.mxu0 %v7912
        %v8091 = vpop.f32.mrf.mxu0
        %v8092 = vadd.f32 %v7993, %v8091
        %v8093 = vpop.f32.mrf.mxu0
        %8094 = vmatprep.mubr.f32.mxu0 %v7917
        %8095 = vmatmul.mubr.f32.gmra.mxu0 %v7916
        %v8096 = vpop.f32.mrf.mxu0
        %v8097 = vadd.f32 %v7993, %v8096
        %v8098 = vpop.f32.mrf.mxu0
        %8099 = vmatprep.mubr.f32.mxu0 %v7921
        %8100 = vmatmul.mubr.f32.gmra.mxu0 %v7920
        %v8101 = vpop.f32.mrf.mxu0
        %v8102 = vadd.f32 %v7993, %v8101
        %v8103 = vpop.f32.mrf.mxu0
        %8104 = vmatprep.mubr.f32.mxu0 %v7925
        %8105 = vmatmul.mubr.f32.gmra.mxu0 %v7924
        %v8106 = vpop.f32.mrf.mxu0
        %v8107 = vadd.f32 %v7993, %v8106
        %v8108 = vpop.f32.mrf.mxu0
        %8109 = vmatprep.mubr.f32.mxu0 %v7929
        %8110 = vmatmul.mubr.f32.gmra.mxu0 %v7928
        %v8111 = vpop.f32.mrf.mxu0
        %v8112 = vadd.f32 %v7993, %v8111
        %v8113 = vpop.f32.mrf.mxu0
        %8114 = vmatprep.mubr.f32.mxu0 %v7933
        %8115 = vmatmul.mubr.f32.gmra.mxu0 %v7932
        %v8116 = vpop.f32.mrf.mxu0
        %v8117 = vadd.f32 %v7993, %v8116
        %v8118 = vpop.f32.mrf.mxu0
        %8119 = vmatprep.mubr.f32.mxu0 %v7937
        %8120 = vmatmul.mubr.f32.gmra.mxu0 %v7936
        %v8121 = vpop.f32.mrf.mxu0
        %v8122 = vadd.f32 %v7993, %v8121
        %v8123 = vpop.f32.mrf.mxu0
        %8124 = vmatprep.mubr.f32.mxu0 %v7941
        %8125 = vmatmul.mubr.f32.gmra.mxu0 %v7940
        %v8126 = vpop.f32.mrf.mxu0
        %v8127 = vadd.f32 %v7993, %v8126
        %v8128 = vpop.f32.mrf.mxu0
        %8129 = vmatprep.mubr.f32.mxu0 %v7945
        %8130 = vmatmul.mubr.f32.gmra.mxu0 %v7944
        %v8131 = vpop.f32.mrf.mxu0
        %v8132 = vadd.f32 %v7993, %v8131
        %v8133 = vpop.f32.mrf.mxu0
        %8134 = vmatprep.mubr.f32.mxu0 %v7949
        %8135 = vmatmul.mubr.f32.gmra.mxu0 %v7948
        %v8136 = vpop.f32.mrf.mxu0
        %v8137 = vadd.f32 %v7993, %v8136
        %v8138 = vpop.f32.mrf.mxu0
        %8139 = vmatprep.mubr.f32.mxu0 %v7953
        %8140 = vmatmul.mubr.f32.gmra.mxu0 %v7952
        %v8141 = vpop.f32.mrf.mxu0
        %v8142 = vadd.f32 %v7993, %v8141
        %v8143 = vpop.f32.mrf.mxu0
        %8144 = vmatprep.mubr.f32.mxu0 %v7957
        %8145 = vmatmul.mubr.f32.gmra.mxu0 %v7956
        %v8146 = vpop.f32.mrf.mxu0
        %v8147 = vadd.f32 %v7993, %v8146
        %v8148 = vpop.f32.mrf.mxu0
        %8149 = vmatprep.mubr.f32.mxu0 %v7961
        %8150 = vmatmul.mubr.f32.gmra.mxu0 %v7960
        %v8151 = vpop.f32.mrf.mxu0
        %v8152 = vadd.f32 %v7993, %v8151
        %v8153 = vpop.f32.mrf.mxu0
        %8154 = vmatprep.mubr.f32.mxu0 %v7965
        %8155 = vmatmul.mubr.f32.gmra.mxu0 %v7964
        %v8156 = vpop.f32.mrf.mxu0
        %v8157 = vadd.f32 %v7993, %v8156
        %v8158 = vpop.f32.mrf.mxu0
        %8159 = vmatprep.mubr.f32.mxu0 %v7969
        %8160 = vmatmul.mubr.f32.gmra.mxu0 %v7968
        %v8161 = vpop.f32.mrf.mxu0
        %v8162 = vadd.f32 %v7993, %v8161
        %v8163 = vpop.f32.mrf.mxu0
        %8164 = vmatprep.mubr.f32.mxu0 %v7973
        %8165 = vmatmul.mubr.f32.gmra.mxu0 %v7972
        %v8166 = vpop.f32.mrf.mxu0
        %v8167 = vadd.f32 %v7993, %v8166
        %v8168 = vpop.f32.mrf.mxu0
        %8169 = vmatprep.mubr.f32.mxu0 %v7977
        %8170 = vmatmul.mubr.f32.gmra.mxu0 %v7976
        %v8171 = vpop.f32.mrf.mxu0
        %v8172 = vadd.f32 %v7993, %v8171
        %v8173 = vpop.f32.mrf.mxu0
        %8174 = vmatprep.mubr.f32.mxu0 %v7981
        %8175 = vmatmul.mubr.f32.gmra.mxu0 %v7980
        %v8176 = vpop.f32.mrf.mxu0
        %v8177 = vadd.f32 %v7993, %v8176
        %v8178 = vpop.f32.mrf.mxu0
        %8179 = vmatprep.mubr.f32.mxu0 %v7985
        %8180 = vmatmul.mubr.f32.gmra.mxu0 %v7984
        %v8181 = vpop.f32.mrf.mxu0
        %v8182 = vadd.f32 %v7993, %v8181
        %v8183 = vpop.f32.mrf.mxu0
        %8184 = vdwg.mxu0
        %8185 = vmatprep.subr.mxu0 0.0
        %8186 = vmatpush1.msra.mxu0 %v305
        %8187 = vmatprep.subr.mxu0 0.0
        %8188 = vmatpush1.msra.mxu0 %v304
        %8189 = vmatprep.subr.mxu0 0.0
        %8190 = vmatpush1.msra.mxu0 %v303
        %8191 = vmatprep.subr.mxu0 0.0
        %8192 = vmatpush1.msra.mxu0 %v302
        %8193 = vmatprep.subr.mxu0 0.0
        %8194 = vmatpush1.msra.mxu0 %v301
        %8195 = vmatprep.subr.mxu0 0.0
        %8196 = vmatpush1.msra.mxu0 %v300
        %8197 = vmatprep.subr.mxu0 0.0
        %8198 = vmatpush1.msra.mxu0 %v299
        %8199 = vmatprep.subr.mxu0 0.0
        %8200 = vmatpush1.msra.mxu0 %v298
        %8201 = vmatprep.subr.mxu0 0.0
        %8202 = vmatpush1.msra.mxu0 %v297
        %8203 = vmatprep.subr.mxu0 0.0
        %8204 = vmatpush1.msra.mxu0 %v296
        %8205 = vmatprep.subr.mxu0 0.0
        %8206 = vmatpush1.msra.mxu0 %v295
        %8207 = vmatprep.subr.mxu0 0.0
        %8208 = vmatpush1.msra.mxu0 %v294
        %8209 = vmatprep.subr.mxu0 0.0
        %8210 = vmatpush1.msra.mxu0 %v293
        %8211 = vmatprep.subr.mxu0 0.0
        %8212 = vmatpush1.msra.mxu0 %v292
        %8213 = vmatprep.subr.mxu0 0.0
        %8214 = vmatpush1.msra.mxu0 %v291
        %8215 = vmatprep.subr.mxu0 0.0
        %8216 = vmatpush1.msra.mxu0 %v290
        %8217 = vmatprep.subr.mxu0 0.0
        %8218 = vmatpush2.msra.mxu0 %v321
        %8219 = vmatprep.subr.mxu0 0.0
        %8220 = vmatpush2.msra.mxu0 %v320
        %8221 = vmatprep.subr.mxu0 0.0
        %8222 = vmatpush2.msra.mxu0 %v319
        %8223 = vmatprep.subr.mxu0 0.0
        %8224 = vmatpush2.msra.mxu0 %v318
        %8225 = vmatprep.subr.mxu0 0.0
        %8226 = vmatpush2.msra.mxu0 %v317
        %8227 = vmatprep.subr.mxu0 0.0
        %8228 = vmatpush2.msra.mxu0 %v316
        %8229 = vmatprep.subr.mxu0 0.0
        %8230 = vmatpush2.msra.mxu0 %v315
        %8231 = vmatprep.subr.mxu0 0.0
        %8232 = vmatpush2.msra.mxu0 %v314
        %8233 = vmatprep.subr.mxu0 0.0
        %8234 = vmatpush2.msra.mxu0 %v313
        %8235 = vmatprep.subr.mxu0 0.0
        %8236 = vmatpush2.msra.mxu0 %v312
        %8237 = vmatprep.subr.mxu0 0.0
        %8238 = vmatpush2.msra.mxu0 %v311
        %8239 = vmatprep.subr.mxu0 0.0
        %8240 = vmatpush2.msra.mxu0 %v310
        %8241 = vmatprep.subr.mxu0 0.0
        %8242 = vmatpush2.msra.mxu0 %v309
        %8243 = vmatprep.subr.mxu0 0.0
        %8244 = vmatpush2.msra.mxu0 %v308
        %8245 = vmatprep.subr.mxu0 0.0
        %8246 = vmatpush2.msra.mxu0 %v307
        %8247 = vmatprep.subr.mxu0 0.0
        %8248 = vmatpush2.msra.mxu0 %v306
        %8249 = vmatprep.mubr.f32.mxu0 %v7891
        %8250 = vmatmul.mubr.f32.gmra.mxu0 %v7890
        %v8251 = vpop.f32.mrf.mxu0
        %v8252 = vadd.f32 %v8062, %v8251
        %v8253 = vpop.f32.mrf.mxu0
        %8254 = vmatprep.mubr.f32.mxu0 %v7895
        %8255 = vmatmul.mubr.f32.gmra.mxu0 %v7894
        %v8256 = vpop.f32.mrf.mxu0
        %v8257 = vadd.f32 %v8067, %v8256
        %v8258 = vpop.f32.mrf.mxu0
        %8259 = vmatprep.mubr.f32.mxu0 %v7899
        %8260 = vmatmul.mubr.f32.gmra.mxu0 %v7898
        %v8261 = vpop.f32.mrf.mxu0
        %v8262 = vadd.f32 %v8072, %v8261
        %v8263 = vpop.f32.mrf.mxu0
        %8264 = vmatprep.mubr.f32.mxu0 %v7903
        %8265 = vmatmul.mubr.f32.gmra.mxu0 %v7902
        %v8266 = vpop.f32.mrf.mxu0
        %v8267 = vadd.f32 %v8077, %v8266
        %v8268 = vpop.f32.mrf.mxu0
        %8269 = vmatprep.mubr.f32.mxu0 %v7907
        %8270 = vmatmul.mubr.f32.gmra.mxu0 %v7906
        %v8271 = vpop.f32.mrf.mxu0
        %v8272 = vadd.f32 %v8082, %v8271
        %v8273 = vpop.f32.mrf.mxu0
        %8274 = vmatprep.mubr.f32.mxu0 %v7911
        %8275 = vmatmul.mubr.f32.gmra.mxu0 %v7910
        %v8276 = vpop.f32.mrf.mxu0
        %v8277 = vadd.f32 %v8087, %v8276
        %v8278 = vpop.f32.mrf.mxu0
        %8279 = vmatprep.mubr.f32.mxu0 %v7915
        %8280 = vmatmul.mubr.f32.gmra.mxu0 %v7914
        %v8281 = vpop.f32.mrf.mxu0
        %v8282 = vadd.f32 %v8092, %v8281
        %v8283 = vpop.f32.mrf.mxu0
        %8284 = vmatprep.mubr.f32.mxu0 %v7919
        %8285 = vmatmul.mubr.f32.gmra.mxu0 %v7918
        %v8286 = vpop.f32.mrf.mxu0
        %v8287 = vadd.f32 %v8097, %v8286
        %v8288 = vpop.f32.mrf.mxu0
        %8289 = vmatprep.mubr.f32.mxu0 %v7923
        %8290 = vmatmul.mubr.f32.gmra.mxu0 %v7922
        %v8291 = vpop.f32.mrf.mxu0
        %v8292 = vadd.f32 %v8102, %v8291
        %v8293 = vpop.f32.mrf.mxu0
        %8294 = vmatprep.mubr.f32.mxu0 %v7927
        %8295 = vmatmul.mubr.f32.gmra.mxu0 %v7926
        %v8296 = vpop.f32.mrf.mxu0
        %v8297 = vadd.f32 %v8107, %v8296
        %v8298 = vpop.f32.mrf.mxu0
        %8299 = vmatprep.mubr.f32.mxu0 %v7931
        %8300 = vmatmul.mubr.f32.gmra.mxu0 %v7930
        %v8301 = vpop.f32.mrf.mxu0
        %v8302 = vadd.f32 %v8112, %v8301
        %v8303 = vpop.f32.mrf.mxu0
        %8304 = vmatprep.mubr.f32.mxu0 %v7935
        %8305 = vmatmul.mubr.f32.gmra.mxu0 %v7934
        %v8306 = vpop.f32.mrf.mxu0
        %v8307 = vadd.f32 %v8117, %v8306
        %v8308 = vpop.f32.mrf.mxu0
        %8309 = vmatprep.mubr.f32.mxu0 %v7939
        %8310 = vmatmul.mubr.f32.gmra.mxu0 %v7938
        %v8311 = vpop.f32.mrf.mxu0
        %v8312 = vadd.f32 %v8122, %v8311
        %v8313 = vpop.f32.mrf.mxu0
        %8314 = vmatprep.mubr.f32.mxu0 %v7943
        %8315 = vmatmul.mubr.f32.gmra.mxu0 %v7942
        %v8316 = vpop.f32.mrf.mxu0
        %v8317 = vadd.f32 %v8127, %v8316
        %v8318 = vpop.f32.mrf.mxu0
        %8319 = vmatprep.mubr.f32.mxu0 %v7947
        %8320 = vmatmul.mubr.f32.gmra.mxu0 %v7946
        %v8321 = vpop.f32.mrf.mxu0
        %v8322 = vadd.f32 %v8132, %v8321
        %v8323 = vpop.f32.mrf.mxu0
        %8324 = vmatprep.mubr.f32.mxu0 %v7951
        %8325 = vmatmul.mubr.f32.gmra.mxu0 %v7950
        %v8326 = vpop.f32.mrf.mxu0
        %v8327 = vadd.f32 %v8137, %v8326
        %v8328 = vpop.f32.mrf.mxu0
        %8329 = vmatprep.mubr.f32.mxu0 %v7955
        %8330 = vmatmul.mubr.f32.gmra.mxu0 %v7954
        %v8331 = vpop.f32.mrf.mxu0
        %v8332 = vadd.f32 %v8142, %v8331
        %v8333 = vpop.f32.mrf.mxu0
        %8334 = vmatprep.mubr.f32.mxu0 %v7959
        %8335 = vmatmul.mubr.f32.gmra.mxu0 %v7958
        %v8336 = vpop.f32.mrf.mxu0
        %v8337 = vadd.f32 %v8147, %v8336
        %v8338 = vpop.f32.mrf.mxu0
        %8339 = vmatprep.mubr.f32.mxu0 %v7963
        %8340 = vmatmul.mubr.f32.gmra.mxu0 %v7962
        %v8341 = vpop.f32.mrf.mxu0
        %v8342 = vadd.f32 %v8152, %v8341
        %v8343 = vpop.f32.mrf.mxu0
        %8344 = vmatprep.mubr.f32.mxu0 %v7967
        %8345 = vmatmul.mubr.f32.gmra.mxu0 %v7966
        %v8346 = vpop.f32.mrf.mxu0
        %v8347 = vadd.f32 %v8157, %v8346
        %v8348 = vpop.f32.mrf.mxu0
        %8349 = vmatprep.mubr.f32.mxu0 %v7971
        %8350 = vmatmul.mubr.f32.gmra.mxu0 %v7970
        %v8351 = vpop.f32.mrf.mxu0
        %v8352 = vadd.f32 %v8162, %v8351
        %v8353 = vpop.f32.mrf.mxu0
        %8354 = vmatprep.mubr.f32.mxu0 %v7975
        %8355 = vmatmul.mubr.f32.gmra.mxu0 %v7974
        %v8356 = vpop.f32.mrf.mxu0
        %v8357 = vadd.f32 %v8167, %v8356
        %v8358 = vpop.f32.mrf.mxu0
        %8359 = vmatprep.mubr.f32.mxu0 %v7979
        %8360 = vmatmul.mubr.f32.gmra.mxu0 %v7978
        %v8361 = vpop.f32.mrf.mxu0
        %v8362 = vadd.f32 %v8172, %v8361
        %v8363 = vpop.f32.mrf.mxu0
        %8364 = vmatprep.mubr.f32.mxu0 %v7983
        %8365 = vmatmul.mubr.f32.gmra.mxu0 %v7982
        %v8366 = vpop.f32.mrf.mxu0
        %v8367 = vadd.f32 %v8177, %v8366
        %v8368 = vpop.f32.mrf.mxu0
        %8369 = vmatprep.mubr.f32.mxu0 %v7987
        %8370 = vmatmul.mubr.f32.gmra.mxu0 %v7986
        %v8371 = vpop.f32.mrf.mxu0
        %v8372 = vadd.f32 %v8182, %v8371
        %v8373 = vpop.f32.mrf.mxu0
        %8374 = vdwg.mxu0
        %v8375 = vsel %vm809, %v8252, -inf
        %v8376 = vsel %vm809, %v8257, -inf
        %v8377 = vsel %vm809, %v8262, -inf
        %v8378 = vsel %vm809, %v8267, -inf
        %v8379 = vsel %vm809, %v8272, -inf
        %v8380 = vmax.f32 %v8375, %v8379
        %v8381 = vsel %vm809, %v8277, -inf
        %v8382 = vmax.f32 %v8376, %v8381
        %v8383 = vsel %vm809, %v8282, -inf
        %v8384 = vmax.f32 %v8377, %v8383
        %v8385 = vsel %vm809, %v8287, -inf
        %v8386 = vmax.f32 %v8378, %v8385
        %v8387 = vsel %vm809, %v8292, -inf
        %v8388 = vmax.f32 %v8380, %v8387
        %v8389 = vsel %vm809, %v8297, -inf
        %v8390 = vmax.f32 %v8382, %v8389
        %v8391 = vsel %vm809, %v8302, -inf
        %v8392 = vmax.f32 %v8384, %v8391
        %v8393 = vsel %vm809, %v8307, -inf
        %v8394 = vmax.f32 %v8386, %v8393
        %v8395 = vsel %vm809, %v8312, -inf
        %v8396 = vmax.f32 %v8388, %v8395
        %v8397 = vsel %vm809, %v8317, -inf
        %v8398 = vmax.f32 %v8390, %v8397
        %v8399 = vsel %vm809, %v8322, -inf
        %v8400 = vmax.f32 %v8392, %v8399
        %v8401 = vsel %vm809, %v8327, -inf
        %v8402 = vmax.f32 %v8394, %v8401
        %v8403 = vsel %vm809, %v8332, -inf
        %v8404 = vmax.f32 %v8396, %v8403
        %v8405 = vsel %vm809, %v8337, -inf
        %v8406 = vmax.f32 %v8398, %v8405
        %v8407 = vsel %vm809, %v8342, -inf
        %v8408 = vmax.f32 %v8400, %v8407
        %v8409 = vsel %vm809, %v8347, -inf
        %v8410 = vmax.f32 %v8402, %v8409
        %v8411 = vsel %vm809, %v8352, -inf
        %v8412 = vmax.f32 %v8404, %v8411
        %v8413 = vsel %vm809, %v8357, -inf
        %v8414 = vmax.f32 %v8406, %v8413
        %v8415 = vsel %vm809, %v8362, -inf
        %v8416 = vmax.f32 %v8408, %v8415
        %v8417 = vsel %vm809, %v8367, -inf
        %v8418 = vmax.f32 %v8410, %v8417
        %v8419 = vsel %vm854, %v8372, -inf
        %v8420 = vmax.f32 %v8412, %v8419
        %v8421 = vmax.f32 %v8420, %v8414
        %v8422 = vmax.f32 %v8416, %v8418
        %v8423 = vmax.f32 %v8421, %v8422
        %v8424 = vrot.slane %v8423, 4
        %v8425 = vmax.f32 %v8423, %v8424
        %v8426 = vrot.slane %v8425, 2
        %v8427 = vmax.f32 %v8425, %v8426
        %v8428 = vrot.slane %v8427, 1
        %v8429 = vmax.f32 %v8427, %v8428
        %v8430 = vsub.f32 %v8252, %v8429
        %v8431 = vsub.f32 %v8257, %v8429
        %v8432 = vsub.f32 %v8262, %v8429
        %v8433 = vsub.f32 %v8267, %v8429
        %v8434 = vsub.f32 %v8272, %v8429
        %v8435 = vsub.f32 %v8277, %v8429
        %v8436 = vsub.f32 %v8282, %v8429
        %v8437 = vsub.f32 %v8287, %v8429
        %v8438 = vsub.f32 %v8292, %v8429
        %v8439 = vsub.f32 %v8297, %v8429
        %v8440 = vsub.f32 %v8302, %v8429
        %v8441 = vsub.f32 %v8307, %v8429
        %v8442 = vsub.f32 %v8312, %v8429
        %v8443 = vsub.f32 %v8317, %v8429
        %v8444 = vsub.f32 %v8322, %v8429
        %v8445 = vsub.f32 %v8327, %v8429
        %v8446 = vsub.f32 %v8332, %v8429
        %v8447 = vsub.f32 %v8337, %v8429
        %v8448 = vsub.f32 %v8342, %v8429
        %v8449 = vsub.f32 %v8347, %v8429
        %v8450 = vsub.f32 %v8352, %v8429
        %v8451 = vsub.f32 %v8357, %v8429
        %v8452 = vsub.f32 %v8362, %v8429
        %v8453 = vsub.f32 %v8367, %v8429
        %v8454 = vsub.f32 %v8372, %v8429
        %v8455 = vmul.f32 %v8430, 1.442695
        %v8456 = vpow.pop %v8455
        %v8457 = vmul.f32 %v8431, 1.442695
        %v8458 = vpow.pop %v8457
        %v8459 = vmul.f32 %v8432, 1.442695
        %v8460 = vpow.pop %v8459
        %v8461 = vmul.f32 %v8433, 1.442695
        %v8462 = vpow.pop %v8461
        %v8463 = vmul.f32 %v8434, 1.442695
        %v8464 = vpow.pop %v8463
        %v8465 = vmul.f32 %v8435, 1.442695
        %v8466 = vpow.pop %v8465
        %v8467 = vmul.f32 %v8436, 1.442695
        %v8468 = vpow.pop %v8467
        %v8469 = vmul.f32 %v8437, 1.442695
        %v8470 = vpow.pop %v8469
        %v8471 = vmul.f32 %v8438, 1.442695
        %v8472 = vpow.pop %v8471
        %v8473 = vmul.f32 %v8439, 1.442695
        %v8474 = vpow.pop %v8473
        %v8475 = vmul.f32 %v8440, 1.442695
        %v8476 = vpow.pop %v8475
        %v8477 = vmul.f32 %v8441, 1.442695
        %v8478 = vpow.pop %v8477
        %v8479 = vmul.f32 %v8442, 1.442695
        %v8480 = vpow.pop %v8479
        %v8481 = vmul.f32 %v8443, 1.442695
        %v8482 = vpow.pop %v8481
        %v8483 = vmul.f32 %v8444, 1.442695
        %v8484 = vpow.pop %v8483
        %v8485 = vmul.f32 %v8445, 1.442695
        %v8486 = vpow.pop %v8485
        %v8487 = vmul.f32 %v8446, 1.442695
        %v8488 = vpow.pop %v8487
        %v8489 = vmul.f32 %v8447, 1.442695
        %v8490 = vpow.pop %v8489
        %v8491 = vmul.f32 %v8448, 1.442695
        %v8492 = vpow.pop %v8491
        %v8493 = vmul.f32 %v8449, 1.442695
        %v8494 = vpow.pop %v8493
        %v8495 = vmul.f32 %v8450, 1.442695
        %v8496 = vpow.pop %v8495
        %v8497 = vmul.f32 %v8451, 1.442695
        %v8498 = vpow.pop %v8497
        %v8499 = vmul.f32 %v8452, 1.442695
        %v8500 = vpow.pop %v8499
        %v8501 = vmul.f32 %v8453, 1.442695
        %v8502 = vpow.pop %v8501
        %v8503 = vmul.f32 %v8454, 1.442695
        %v8504 = vpow.pop %v8503
        %v8505 = vsel %vm809, %v8456, 0.0
        %v8506 = vsel %vm809, %v8458, 0.0
        %v8507 = vadd.f32 %v8505, %v8506
        %v8508 = vsel %vm809, %v8460, 0.0
        %v8509 = vadd.f32 %v8507, %v8508
        %v8510 = vsel %vm809, %v8462, 0.0
        %v8511 = vadd.f32 %v8509, %v8510
        %v8512 = vsel %vm809, %v8464, 0.0
        %v8513 = vadd.f32 %v8511, %v8512
        %v8514 = vsel %vm809, %v8466, 0.0
        %v8515 = vadd.f32 %v8513, %v8514
        %v8516 = vsel %vm809, %v8468, 0.0
        %v8517 = vadd.f32 %v8515, %v8516
        %v8518 = vsel %vm809, %v8470, 0.0
        %v8519 = vadd.f32 %v8517, %v8518
        %v8520 = vsel %vm809, %v8472, 0.0
        %v8521 = vadd.f32 %v8519, %v8520
        %v8522 = vsel %vm809, %v8474, 0.0
        %v8523 = vadd.f32 %v8521, %v8522
        %v8524 = vsel %vm809, %v8476, 0.0
        %v8525 = vadd.f32 %v8523, %v8524
        %v8526 = vsel %vm809, %v8478, 0.0
        %v8527 = vadd.f32 %v8525, %v8526
        %v8528 = vsel %vm809, %v8480, 0.0
        %v8529 = vadd.f32 %v8527, %v8528
        %v8530 = vsel %vm809, %v8482, 0.0
        %v8531 = vadd.f32 %v8529, %v8530
        %v8532 = vsel %vm809, %v8484, 0.0
        %v8533 = vadd.f32 %v8531, %v8532
        %v8534 = vsel %vm809, %v8486, 0.0
        %v8535 = vadd.f32 %v8533, %v8534
        %v8536 = vsel %vm809, %v8488, 0.0
        %v8537 = vadd.f32 %v8535, %v8536
        %v8538 = vsel %vm809, %v8490, 0.0
        %v8539 = vadd.f32 %v8537, %v8538
        %v8540 = vsel %vm809, %v8492, 0.0
        %v8541 = vadd.f32 %v8539, %v8540
        %v8542 = vsel %vm809, %v8494, 0.0
        %v8543 = vadd.f32 %v8541, %v8542
        %v8544 = vsel %vm809, %v8496, 0.0
        %v8545 = vadd.f32 %v8543, %v8544
        %v8546 = vsel %vm809, %v8498, 0.0
        %v8547 = vadd.f32 %v8545, %v8546
        %v8548 = vsel %vm809, %v8500, 0.0
        %v8549 = vadd.f32 %v8547, %v8548
        %v8550 = vsel %vm809, %v8502, 0.0
        %v8551 = vadd.f32 %v8549, %v8550
        %v8552 = vsel %vm854, %v8504, 0.0
        %v8553 = vadd.f32 %v8551, %v8552
        %v8554 = vrot.slane %v8553, 4
        %v8555 = vadd.f32 %v8553, %v8554
        %v8556 = vrot.slane %v8555, 2
        %v8557 = vadd.f32 %v8555, %v8556
        %v8558 = vrot.slane %v8557, 1
        %v8559 = vadd.f32 %v8557, %v8558
        %v8560 = vrcp.pop %v8559
        %v8561 = vmul.f32 %v8456, %v8560
        %v8562 = vmul.f32 %v8458, %v8560
        %v8563 = vmul.f32 %v8460, %v8560
        %v8564 = vmul.f32 %v8462, %v8560
        %v8565 = vmul.f32 %v8464, %v8560
        %v8566 = vmul.f32 %v8466, %v8560
        %v8567 = vmul.f32 %v8468, %v8560
        %v8568 = vmul.f32 %v8470, %v8560
        %v8569 = vmul.f32 %v8472, %v8560
        %v8570 = vmul.f32 %v8474, %v8560
        %v8571 = vmul.f32 %v8476, %v8560
        %v8572 = vmul.f32 %v8478, %v8560
        %v8573 = vmul.f32 %v8480, %v8560
        %v8574 = vmul.f32 %v8482, %v8560
        %v8575 = vmul.f32 %v8484, %v8560
        %v8576 = vmul.f32 %v8486, %v8560
        %v8577 = vmul.f32 %v8488, %v8560
        %v8578 = vmul.f32 %v8490, %v8560
        %v8579 = vmul.f32 %v8492, %v8560
        %v8580 = vmul.f32 %v8494, %v8560
        %v8581 = vmul.f32 %v8496, %v8560
        %v8582 = vmul.f32 %v8498, %v8560
        %v8583 = vmul.f32 %v8500, %v8560
        %v8584 = vmul.f32 %v8502, %v8560
        %v8585 = vmul.f32 %v8504, %v8560
        %8587 = vset.pattern.permute.xlu0 0
        %8588 = vperm.xlu0 %8587, %v8561
        %v8589 = vpop.permute.xlu0 %8588
        %8592 = vset.pattern.permute.xlu0 0
        %8593 = vperm.xlu0 %8592, %v8562
        %v8594 = vpop.permute.xlu0 %8593
        %8597 = vset.pattern.permute.xlu0 0
        %8598 = vperm.xlu0 %8597, %v8563
        %v8599 = vpop.permute.xlu0 %8598
        %8602 = vset.pattern.permute.xlu0 0
        %8603 = vperm.xlu0 %8602, %v8564
        %v8604 = vpop.permute.xlu0 %8603
        %8607 = vset.pattern.permute.xlu0 0
        %8608 = vperm.xlu0 %8607, %v8565
        %v8609 = vpop.permute.xlu0 %8608
        %8612 = vset.pattern.permute.xlu0 0
        %8613 = vperm.xlu0 %8612, %v8566
        %v8614 = vpop.permute.xlu0 %8613
        %8617 = vset.pattern.permute.xlu0 0
        %8618 = vperm.xlu0 %8617, %v8567
        %v8619 = vpop.permute.xlu0 %8618
        %8622 = vset.pattern.permute.xlu0 0
        %8623 = vperm.xlu0 %8622, %v8568
        %v8624 = vpop.permute.xlu0 %8623
        %8627 = vset.pattern.permute.xlu0 0
        %8628 = vperm.xlu0 %8627, %v8569
        %v8629 = vpop.permute.xlu0 %8628
        %8632 = vset.pattern.permute.xlu0 0
        %8633 = vperm.xlu0 %8632, %v8570
        %v8634 = vpop.permute.xlu0 %8633
        %8637 = vset.pattern.permute.xlu0 0
        %8638 = vperm.xlu0 %8637, %v8571
        %v8639 = vpop.permute.xlu0 %8638
        %8642 = vset.pattern.permute.xlu0 0
        %8643 = vperm.xlu0 %8642, %v8572
        %v8644 = vpop.permute.xlu0 %8643
        %8647 = vset.pattern.permute.xlu0 0
        %8648 = vperm.xlu0 %8647, %v8573
        %v8649 = vpop.permute.xlu0 %8648
        %8652 = vset.pattern.permute.xlu0 0
        %8653 = vperm.xlu0 %8652, %v8574
        %v8654 = vpop.permute.xlu0 %8653
        %8657 = vset.pattern.permute.xlu0 0
        %8658 = vperm.xlu0 %8657, %v8575
        %v8659 = vpop.permute.xlu0 %8658
        %8662 = vset.pattern.permute.xlu0 0
        %8663 = vperm.xlu0 %8662, %v8576
        %v8664 = vpop.permute.xlu0 %8663
        %8667 = vset.pattern.permute.xlu0 0
        %8668 = vperm.xlu0 %8667, %v8577
        %v8669 = vpop.permute.xlu0 %8668
        %8672 = vset.pattern.permute.xlu0 0
        %8673 = vperm.xlu0 %8672, %v8578
        %v8674 = vpop.permute.xlu0 %8673
        %8677 = vset.pattern.permute.xlu0 0
        %8678 = vperm.xlu0 %8677, %v8579
        %v8679 = vpop.permute.xlu0 %8678
        %8682 = vset.pattern.permute.xlu0 0
        %8683 = vperm.xlu0 %8682, %v8580
        %v8684 = vpop.permute.xlu0 %8683
        %8687 = vset.pattern.permute.xlu0 0
        %8688 = vperm.xlu0 %8687, %v8581
        %v8689 = vpop.permute.xlu0 %8688
        %8692 = vset.pattern.permute.xlu0 0
        %8693 = vperm.xlu0 %8692, %v8582
        %v8694 = vpop.permute.xlu0 %8693
        %8697 = vset.pattern.permute.xlu0 0
        %8698 = vperm.xlu0 %8697, %v8583
        %v8699 = vpop.permute.xlu0 %8698
        %8702 = vset.pattern.permute.xlu0 0
        %8703 = vperm.xlu0 %8702, %v8584
        %v8704 = vpop.permute.xlu0 %8703
        %8707 = vset.pattern.permute.xlu0 0
        %8708 = vperm.xlu0 %8707, %v8585
        %v8709 = vpop.permute.xlu0 %8708
        %v8711 = vmul.f32 %v7888, %v8589
        %v8712 = vmul.f32 %v7889, %v8589
        %v8713 = vmul.f32 %v7890, %v8589
        %v8714 = vmul.f32 %v7891, %v8589
        %v8715 = vmul.f32 %v7892, %v8594
        %v8716 = vmul.f32 %v7893, %v8594
        %v8717 = vmul.f32 %v7894, %v8594
        %v8718 = vmul.f32 %v7895, %v8594
        %v8719 = vmul.f32 %v7896, %v8599
        %v8720 = vmul.f32 %v7897, %v8599
        %v8721 = vmul.f32 %v7898, %v8599
        %v8722 = vmul.f32 %v7899, %v8599
        %v8723 = vmul.f32 %v7900, %v8604
        %v8724 = vmul.f32 %v7901, %v8604
        %v8725 = vmul.f32 %v7902, %v8604
        %v8726 = vmul.f32 %v7903, %v8604
        %v8727 = vmul.f32 %v7904, %v8609
        %v8728 = vmul.f32 %v7905, %v8609
        %v8729 = vmul.f32 %v7906, %v8609
        %v8730 = vmul.f32 %v7907, %v8609
        %v8731 = vmul.f32 %v7908, %v8614
        %v8732 = vmul.f32 %v7909, %v8614
        %v8733 = vmul.f32 %v7910, %v8614
        %v8734 = vmul.f32 %v7911, %v8614
        %v8735 = vmul.f32 %v7912, %v8619
        %v8736 = vmul.f32 %v7913, %v8619
        %v8737 = vmul.f32 %v7914, %v8619
        %v8738 = vmul.f32 %v7915, %v8619
        %v8739 = vmul.f32 %v7916, %v8624
        %v8740 = vmul.f32 %v7917, %v8624
        %v8741 = vmul.f32 %v7918, %v8624
        %v8742 = vmul.f32 %v7919, %v8624
        %v8743 = vmul.f32 %v7920, %v8629
        %v8744 = vmul.f32 %v7921, %v8629
        %v8745 = vmul.f32 %v7922, %v8629
        %v8746 = vmul.f32 %v7923, %v8629
        %v8747 = vmul.f32 %v7924, %v8634
        %v8748 = vmul.f32 %v7925, %v8634
        %v8749 = vmul.f32 %v7926, %v8634
        %v8750 = vmul.f32 %v7927, %v8634
        %v8751 = vmul.f32 %v7928, %v8639
        %v8752 = vmul.f32 %v7929, %v8639
        %v8753 = vmul.f32 %v7930, %v8639
        %v8754 = vmul.f32 %v7931, %v8639
        %v8755 = vmul.f32 %v7932, %v8644
        %v8756 = vmul.f32 %v7933, %v8644
        %v8757 = vmul.f32 %v7934, %v8644
        %v8758 = vmul.f32 %v7935, %v8644
        %v8759 = vmul.f32 %v7936, %v8649
        %v8760 = vmul.f32 %v7937, %v8649
        %v8761 = vmul.f32 %v7938, %v8649
        %v8762 = vmul.f32 %v7939, %v8649
        %v8763 = vmul.f32 %v7940, %v8654
        %v8764 = vmul.f32 %v7941, %v8654
        %v8765 = vmul.f32 %v7942, %v8654
        %v8766 = vmul.f32 %v7943, %v8654
        %v8767 = vmul.f32 %v7944, %v8659
        %v8768 = vmul.f32 %v7945, %v8659
        %v8769 = vmul.f32 %v7946, %v8659
        %v8770 = vmul.f32 %v7947, %v8659
        %v8771 = vmul.f32 %v7948, %v8664
        %v8772 = vmul.f32 %v7949, %v8664
        %v8773 = vmul.f32 %v7950, %v8664
        %v8774 = vmul.f32 %v7951, %v8664
        %v8775 = vmul.f32 %v7952, %v8669
        %v8776 = vmul.f32 %v7953, %v8669
        %v8777 = vmul.f32 %v7954, %v8669
        %v8778 = vmul.f32 %v7955, %v8669
        %v8779 = vmul.f32 %v7956, %v8674
        %v8780 = vmul.f32 %v7957, %v8674
        %v8781 = vmul.f32 %v7958, %v8674
        %v8782 = vmul.f32 %v7959, %v8674
        %v8783 = vmul.f32 %v7960, %v8679
        %v8784 = vmul.f32 %v7961, %v8679
        %v8785 = vmul.f32 %v7962, %v8679
        %v8786 = vmul.f32 %v7963, %v8679
        %v8787 = vmul.f32 %v7964, %v8684
        %v8788 = vmul.f32 %v7965, %v8684
        %v8789 = vmul.f32 %v7966, %v8684
        %v8790 = vmul.f32 %v7967, %v8684
        %v8791 = vmul.f32 %v7968, %v8689
        %v8792 = vmul.f32 %v7969, %v8689
        %v8793 = vmul.f32 %v7970, %v8689
        %v8794 = vmul.f32 %v7971, %v8689
        %v8795 = vmul.f32 %v7972, %v8694
        %v8796 = vmul.f32 %v7973, %v8694
        %v8797 = vmul.f32 %v7974, %v8694
        %v8798 = vmul.f32 %v7975, %v8694
        %v8799 = vmul.f32 %v7976, %v8699
        %v8800 = vmul.f32 %v7977, %v8699
        %v8801 = vmul.f32 %v7978, %v8699
        %v8802 = vmul.f32 %v7979, %v8699
        %v8803 = vmul.f32 %v7980, %v8704
        %v8804 = vmul.f32 %v7981, %v8704
        %v8805 = vmul.f32 %v7982, %v8704
        %v8806 = vmul.f32 %v7983, %v8704
        %v8807 = vmul.f32 %v7984, %v8709
        %v8808 = vmul.f32 %v7985, %v8709
        %v8809 = vmul.f32 %v7986, %v8709
        %v8810 = vmul.f32 %v7987, %v8709
        %v8811 = vadd.f32 %v8711, %v8715
        %v8812 = vadd.f32 %v8811, %v8719
        %v8813 = vadd.f32 %v8812, %v8723
        %v8814 = vadd.f32 %v8813, %v8727
        %v8815 = vadd.f32 %v8814, %v8731
        %v8816 = vadd.f32 %v8815, %v8735
        %v8817 = vadd.f32 %v8816, %v8739
        %v8818 = vadd.f32 %v8817, %v8743
        %v8819 = vadd.f32 %v8818, %v8747
        %v8820 = vadd.f32 %v8819, %v8751
        %v8821 = vadd.f32 %v8820, %v8755
        %v8822 = vadd.f32 %v8821, %v8759
        %v8823 = vadd.f32 %v8822, %v8763
        %v8824 = vadd.f32 %v8823, %v8767
        %v8825 = vadd.f32 %v8824, %v8771
        %v8826 = vadd.f32 %v8825, %v8775
        %v8827 = vadd.f32 %v8826, %v8779
        %v8828 = vadd.f32 %v8827, %v8783
        %v8829 = vadd.f32 %v8828, %v8787
        %v8830 = vadd.f32 %v8829, %v8791
        %v8831 = vadd.f32 %v8830, %v8795
        %v8832 = vadd.f32 %v8831, %v8799
        %v8833 = vadd.f32 %v8832, %v8803
        %v8834 = vsel %vm1270, %v8807, 0.0
        %v8835 = vadd.f32 %v8833, %v8834
        %v8836 = vrot.slane %v8835, 4
        %v8837 = vadd.f32 %v8835, %v8836
        %v8838 = vrot.slane %v8837, 2
        %v8839 = vadd.f32 %v8837, %v8838
        %v8840 = vrot.slane %v8839, 1
        %v8841 = vadd.f32 %v8839, %v8840
        %v8842 = vadd.f32 %v8712, %v8716
        %v8843 = vadd.f32 %v8842, %v8720
        %v8844 = vadd.f32 %v8843, %v8724
        %v8845 = vadd.f32 %v8844, %v8728
        %v8846 = vadd.f32 %v8845, %v8732
        %v8847 = vadd.f32 %v8846, %v8736
        %v8848 = vadd.f32 %v8847, %v8740
        %v8849 = vadd.f32 %v8848, %v8744
        %v8850 = vadd.f32 %v8849, %v8748
        %v8851 = vadd.f32 %v8850, %v8752
        %v8852 = vadd.f32 %v8851, %v8756
        %v8853 = vadd.f32 %v8852, %v8760
        %v8854 = vadd.f32 %v8853, %v8764
        %v8855 = vadd.f32 %v8854, %v8768
        %v8856 = vadd.f32 %v8855, %v8772
        %v8857 = vadd.f32 %v8856, %v8776
        %v8858 = vadd.f32 %v8857, %v8780
        %v8859 = vadd.f32 %v8858, %v8784
        %v8860 = vadd.f32 %v8859, %v8788
        %v8861 = vadd.f32 %v8860, %v8792
        %v8862 = vadd.f32 %v8861, %v8796
        %v8863 = vadd.f32 %v8862, %v8800
        %v8864 = vadd.f32 %v8863, %v8804
        %v8865 = vsel %vm1270, %v8808, 0.0
        %v8866 = vadd.f32 %v8864, %v8865
        %v8867 = vrot.slane %v8866, 4
        %v8868 = vadd.f32 %v8866, %v8867
        %v8869 = vrot.slane %v8868, 2
        %v8870 = vadd.f32 %v8868, %v8869
        %v8871 = vrot.slane %v8870, 1
        %v8872 = vadd.f32 %v8870, %v8871
        %v8873 = vadd.f32 %v8713, %v8717
        %v8874 = vadd.f32 %v8873, %v8721
        %v8875 = vadd.f32 %v8874, %v8725
        %v8876 = vadd.f32 %v8875, %v8729
        %v8877 = vadd.f32 %v8876, %v8733
        %v8878 = vadd.f32 %v8877, %v8737
        %v8879 = vadd.f32 %v8878, %v8741
        %v8880 = vadd.f32 %v8879, %v8745
        %v8881 = vadd.f32 %v8880, %v8749
        %v8882 = vadd.f32 %v8881, %v8753
        %v8883 = vadd.f32 %v8882, %v8757
        %v8884 = vadd.f32 %v8883, %v8761
        %v8885 = vadd.f32 %v8884, %v8765
        %v8886 = vadd.f32 %v8885, %v8769
        %v8887 = vadd.f32 %v8886, %v8773
        %v8888 = vadd.f32 %v8887, %v8777
        %v8889 = vadd.f32 %v8888, %v8781
        %v8890 = vadd.f32 %v8889, %v8785
        %v8891 = vadd.f32 %v8890, %v8789
        %v8892 = vadd.f32 %v8891, %v8793
        %v8893 = vadd.f32 %v8892, %v8797
        %v8894 = vadd.f32 %v8893, %v8801
        %v8895 = vadd.f32 %v8894, %v8805
        %v8896 = vsel %vm1270, %v8809, 0.0
        %v8897 = vadd.f32 %v8895, %v8896
        %v8898 = vrot.slane %v8897, 4
        %v8899 = vadd.f32 %v8897, %v8898
        %v8900 = vrot.slane %v8899, 2
        %v8901 = vadd.f32 %v8899, %v8900
        %v8902 = vrot.slane %v8901, 1
        %v8903 = vadd.f32 %v8901, %v8902
        %v8904 = vadd.f32 %v8714, %v8718
        %v8905 = vadd.f32 %v8904, %v8722
        %v8906 = vadd.f32 %v8905, %v8726
        %v8907 = vadd.f32 %v8906, %v8730
        %v8908 = vadd.f32 %v8907, %v8734
        %v8909 = vadd.f32 %v8908, %v8738
        %v8910 = vadd.f32 %v8909, %v8742
        %v8911 = vadd.f32 %v8910, %v8746
        %v8912 = vadd.f32 %v8911, %v8750
        %v8913 = vadd.f32 %v8912, %v8754
        %v8914 = vadd.f32 %v8913, %v8758
        %v8915 = vadd.f32 %v8914, %v8762
        %v8916 = vadd.f32 %v8915, %v8766
        %v8917 = vadd.f32 %v8916, %v8770
        %v8918 = vadd.f32 %v8917, %v8774
        %v8919 = vadd.f32 %v8918, %v8778
        %v8920 = vadd.f32 %v8919, %v8782
        %v8921 = vadd.f32 %v8920, %v8786
        %v8922 = vadd.f32 %v8921, %v8790
        %v8923 = vadd.f32 %v8922, %v8794
        %v8924 = vadd.f32 %v8923, %v8798
        %v8925 = vadd.f32 %v8924, %v8802
        %v8926 = vadd.f32 %v8925, %v8806
        %v8927 = vsel %vm1270, %v8810, 0.0
        %v8928 = vadd.f32 %v8926, %v8927
        %v8929 = vrot.slane %v8928, 4
        %v8930 = vadd.f32 %v8928, %v8929
        %v8931 = vrot.slane %v8930, 2
        %v8932 = vadd.f32 %v8930, %v8931
        %v8933 = vrot.slane %v8932, 1
        %v8934 = vadd.f32 %v8932, %v8933
        %v8939 = vcombine.low %v8841, %v8872
        %v8940 = vcombine.low %v8903, %v8934
        %v8942 = vunpack.c.l.s4 1966171168
        %v8943 = vunpack.c.0.s8 %v8942
        %v8944 = vlaneseq
        %v8945 = vshrl.u32 %v8944, 7
        %v8946 = vsub.s32 %v8943, %v8945
        %v8947 = vrot.slane %v8939, %v8946
        %v8949 = vunpack.c.l.s4 1966171168
        %v8950 = vunpack.c.0.s8 %v8949
        %v8951 = vlaneseq
        %v8952 = vshrl.u32 %v8951, 7
        %v8953 = vsub.s32 %v8950, %v8952
        %v8954 = vrot.slane %v8940, %v8953
        %v8955 = vcombine.low %v8947, %v8954
        %v8957 = vunpack.c.l.s4 1966171168
        %v8958 = vunpack.c.0.s8 %v8957
        %v8959 = vlaneseq
        %v8960 = vshrl.u32 %v8959, 7
        %v8961 = vsub.s32 %v8958, %v8960
        %v8962 = vrot.slane %v8955, %v8961
        %s8964 = scalar_lea.vmem [#allocation2], 7
        %8965 = vst.msk [vmem:[%s8964] ss:$8 sm:$0xf] %vm1404, %v8962
        %8966 = vst.msk [vmem:[%s8964] ss:$8 sm:$0x0] %vm1404, %v8962
        %v8967 = vld [vmem:[#allocation2] sm:$0xff]
        %v8968 = vld [vmem:[#allocation2 + $0x8] sm:$0xff]
        %v8969 = vld [vmem:[#allocation2 + $0x10] sm:$0xff]
        %v8970 = vld [vmem:[#allocation2 + $0x18] sm:$0xff]
        %v8971 = vld [vmem:[%s3] sm:$0xff]
        %v8972 = vld [vmem:[%s3 + $0x8] sm:$0xff]
        %v8973 = vld [vmem:[%s3 + $0x10] sm:$0xff]
        %v8974 = vld [vmem:[%s3 + $0x18] sm:$0xff]
        %v8975 = vld [vmem:[%s3 + $0x20] sm:$0xff]
        %v8976 = vld [vmem:[%s3 + $0x28] sm:$0xff]
        %v8977 = vld [vmem:[%s3 + $0x30] sm:$0xff]
        %v8978 = vld [vmem:[%s3 + $0x38] sm:$0xff]
        %v8979 = vld [vmem:[%s3 + $0x40] sm:$0xff]
        %v8980 = vld [vmem:[%s3 + $0x48] sm:$0xff]
        %v8981 = vld [vmem:[%s3 + $0x50] sm:$0xff]
        %v8982 = vld [vmem:[%s3 + $0x58] sm:$0xff]
        %v8983 = vld [vmem:[%s3 + $0x60] sm:$0xff]
        %v8984 = vld [vmem:[%s3 + $0x68] sm:$0xff]
        %v8985 = vld [vmem:[%s3 + $0x70] sm:$0xff]
        %v8986 = vld [vmem:[%s3 + $0x78] sm:$0xff]
        %v8987 = vld [vmem:[%s3 + $0x80] sm:$0xff]
        %v8988 = vld [vmem:[%s3 + $0x88] sm:$0xff]
        %v8989 = vld [vmem:[%s3 + $0x90] sm:$0xff]
        %v8990 = vld [vmem:[%s3 + $0x98] sm:$0xff]
        %v8991 = vld [vmem:[%s3 + $0xa0] sm:$0xff]
        %v8992 = vld [vmem:[%s3 + $0xa8] sm:$0xff]
        %v8993 = vld [vmem:[%s3 + $0xb0] sm:$0xff]
        %v8994 = vld [vmem:[%s3 + $0xb8] sm:$0xff]
        %v8995 = vld [vmem:[%s3 + $0xc0] sm:$0xff]
        %v8996 = vld [vmem:[%s3 + $0xc8] sm:$0xff]
        %v8997 = vld [vmem:[%s3 + $0xd0] sm:$0xff]
        %v8998 = vld [vmem:[%s3 + $0xd8] sm:$0xff]
        %v8999 = vld [vmem:[%s3 + $0xe0] sm:$0xff]
        %v9000 = vld [vmem:[%s3 + $0xe8] sm:$0xff]
        %v9001 = vld [vmem:[%s3 + $0xf0] sm:$0xff]
        %v9002 = vld [vmem:[%s3 + $0xf8] sm:$0xff]
        %v9003 = vld [vmem:[%s3 + $0x100] sm:$0xff]
        %v9004 = vld [vmem:[%s3 + $0x108] sm:$0xff]
        %v9005 = vld [vmem:[%s3 + $0x110] sm:$0xff]
        %v9006 = vld [vmem:[%s3 + $0x118] sm:$0xff]
        %v9007 = vld [vmem:[%s3 + $0x120] sm:$0xff]
        %v9008 = vld [vmem:[%s3 + $0x128] sm:$0xff]
        %v9009 = vld [vmem:[%s3 + $0x130] sm:$0xff]
        %v9010 = vld [vmem:[%s3 + $0x138] sm:$0xff]
        %v9011 = vld [vmem:[%s3 + $0x140] sm:$0xff]
        %v9012 = vld [vmem:[%s3 + $0x148] sm:$0xff]
        %v9013 = vld [vmem:[%s3 + $0x150] sm:$0xff]
        %v9014 = vld [vmem:[%s3 + $0x158] sm:$0xff]
        %v9015 = vld [vmem:[%s3 + $0x160] sm:$0xff]
        %v9016 = vld [vmem:[%s3 + $0x168] sm:$0xff]
        %v9017 = vld [vmem:[%s3 + $0x170] sm:$0xff]
        %v9018 = vld [vmem:[%s3 + $0x178] sm:$0xff]
        %v9019 = vld [vmem:[%s3 + $0x180] sm:$0xff]
        %v9020 = vld [vmem:[%s3 + $0x188] sm:$0xff]
        %v9021 = vld [vmem:[%s3 + $0x190] sm:$0xff]
        %v9022 = vld [vmem:[%s3 + $0x198] sm:$0xff]
        %v9023 = vld [vmem:[%s3 + $0x1a0] sm:$0xff]
        %v9024 = vld [vmem:[%s3 + $0x1a8] sm:$0xff]
        %v9025 = vld [vmem:[%s3 + $0x1b0] sm:$0xff]
        %v9026 = vld [vmem:[%s3 + $0x1b8] sm:$0xff]
        %v9027 = vld [vmem:[%s3 + $0x1c0] sm:$0xff]
        %v9028 = vld [vmem:[%s3 + $0x1c8] sm:$0xff]
        %v9029 = vld [vmem:[%s3 + $0x1d0] sm:$0xff]
        %v9030 = vld [vmem:[%s3 + $0x1d8] sm:$0xff]
        %v9031 = vld [vmem:[%s3 + $0x1e0] sm:$0xff]
        %v9032 = vld [vmem:[%s3 + $0x1e8] sm:$0xff]
        %v9033 = vld [vmem:[%s3 + $0x1f0] sm:$0xff]
        %v9034 = vld [vmem:[%s3 + $0x1f8] sm:$0xff]
        %v9035 = vld [vmem:[%s3 + $0x200] sm:$0xff]
        %v9036 = vld [vmem:[%s3 + $0x208] sm:$0xff]
        %v9037 = vld [vmem:[%s3 + $0x210] sm:$0xff]
        %v9038 = vld [vmem:[%s3 + $0x218] sm:$0xff]
        %v9039 = vld [vmem:[%s3 + $0x220] sm:$0xff]
        %v9040 = vld [vmem:[%s3 + $0x228] sm:$0xff]
        %v9041 = vld [vmem:[%s3 + $0x230] sm:$0xff]
        %v9042 = vld [vmem:[%s3 + $0x238] sm:$0xff]
        %v9043 = vld [vmem:[%s3 + $0x240] sm:$0xff]
        %v9044 = vld [vmem:[%s3 + $0x248] sm:$0xff]
        %v9045 = vld [vmem:[%s3 + $0x250] sm:$0xff]
        %v9046 = vld [vmem:[%s3 + $0x258] sm:$0xff]
        %v9047 = vld [vmem:[%s3 + $0x260] sm:$0xff]
        %v9048 = vld [vmem:[%s3 + $0x268] sm:$0xff]
        %v9049 = vld [vmem:[%s3 + $0x270] sm:$0xff]
        %v9050 = vld [vmem:[%s3 + $0x278] sm:$0xff]
        %v9051 = vld [vmem:[%s3 + $0x280] sm:$0xff]
        %v9052 = vld [vmem:[%s3 + $0x288] sm:$0xff]
        %v9053 = vld [vmem:[%s3 + $0x290] sm:$0xff]
        %v9054 = vld [vmem:[%s3 + $0x298] sm:$0xff]
        %v9055 = vld [vmem:[%s3 + $0x2a0] sm:$0xff]
        %v9056 = vld [vmem:[%s3 + $0x2a8] sm:$0xff]
        %v9057 = vld [vmem:[%s3 + $0x2b0] sm:$0xff]
        %v9058 = vld [vmem:[%s3 + $0x2b8] sm:$0xff]
        %v9059 = vld [vmem:[%s3 + $0x2c0] sm:$0xff]
        %v9060 = vld [vmem:[%s3 + $0x2c8] sm:$0xff]
        %v9061 = vld [vmem:[%s3 + $0x2d0] sm:$0xff]
        %v9062 = vld [vmem:[%s3 + $0x2d8] sm:$0xff]
        %v9063 = vld [vmem:[%s3 + $0x2e0] sm:$0xff]
        %v9064 = vld [vmem:[%s3 + $0x2e8] sm:$0xff]
        %v9065 = vld [vmem:[%s3 + $0x2f0] sm:$0xff]
        %v9066 = vld [vmem:[%s3 + $0x2f8] sm:$0xff]
        %v9067 = vld [vmem:[%s3 + $0x300] sm:$0xff]
        %v9068 = vld [vmem:[%s3 + $0x308] sm:$0xff]
        %v9069 = vld [vmem:[%s3 + $0x310] sm:$0xff]
        %v9070 = vld [vmem:[%s3 + $0x318] sm:$0xff]
        %v9071 = vld [vmem:[%s3 + $0x320] sm:$0xff]
        %v9072 = vld [vmem:[%s3 + $0x328] sm:$0xff]
        %v9073 = vld [vmem:[%s3 + $0x330] sm:$0xff]
        %v9074 = vld [vmem:[%s3 + $0x338] sm:$0xff]
        %v9075 = vld [vmem:[%s3 + $0x340] sm:$0xff]
        %v9076 = vld [vmem:[%s3 + $0x348] sm:$0xff]
        %v9077 = vld [vmem:[%s3 + $0x350] sm:$0xff]
        %v9078 = vld [vmem:[%s3 + $0x358] sm:$0xff]
        %v9079 = vld [vmem:[%s3 + $0x360] sm:$0xff]
        %v9080 = vld [vmem:[%s3 + $0x368] sm:$0xff]
        %v9081 = vld [vmem:[%s3 + $0x370] sm:$0xff]
        %v9082 = vld [vmem:[%s3 + $0x378] sm:$0xff]
        %v9083 = vld [vmem:[%s3 + $0x380] sm:$0xff]
        %v9084 = vld [vmem:[%s3 + $0x388] sm:$0xff]
        %v9085 = vld [vmem:[%s3 + $0x390] sm:$0xff]
        %v9086 = vld [vmem:[%s3 + $0x398] sm:$0xff]
        %v9087 = vld [vmem:[%s3 + $0x3a0] sm:$0xff]
        %v9088 = vld [vmem:[%s3 + $0x3a8] sm:$0xff]
        %v9089 = vld [vmem:[%s3 + $0x3b0] sm:$0xff]
        %v9090 = vld [vmem:[%s3 + $0x3b8] sm:$0xff]
        %v9091 = vld [vmem:[%s3 + $0x3c0] sm:$0xff]
        %v9092 = vld [vmem:[%s3 + $0x3c8] sm:$0xff]
        %v9093 = vld [vmem:[%s3 + $0x3d0] sm:$0xff]
        %v9094 = vld [vmem:[%s3 + $0x3d8] sm:$0xff]
        %v9095 = vld [vmem:[%s3 + $0x3e0] sm:$0xff]
        %v9096 = vld [vmem:[%s3 + $0x3e8] sm:$0xff]
        %v9097 = vld [vmem:[%s3 + $0x3f0] sm:$0xff]
        %v9098 = vld [vmem:[%s3 + $0x3f8] sm:$0xff]
        %v9099 = vld [vmem:[%s3 + $0x400] sm:$0xff]
        %v9100 = vld [vmem:[%s3 + $0x408] sm:$0xff]
        %v9101 = vld [vmem:[%s3 + $0x410] sm:$0xff]
        %v9102 = vld [vmem:[%s3 + $0x418] sm:$0xff]
        %v9103 = vld [vmem:[%s3 + $0x420] sm:$0xff]
        %v9104 = vld [vmem:[%s3 + $0x428] sm:$0xff]
        %v9105 = vld [vmem:[%s3 + $0x430] sm:$0xff]
        %v9106 = vld [vmem:[%s3 + $0x438] sm:$0xff]
        %v9107 = vld [vmem:[%s3 + $0x440] sm:$0xff]
        %v9108 = vld [vmem:[%s3 + $0x448] sm:$0xff]
        %v9109 = vld [vmem:[%s3 + $0x450] sm:$0xff]
        %v9110 = vld [vmem:[%s3 + $0x458] sm:$0xff]
        %v9111 = vld [vmem:[%s3 + $0x460] sm:$0xff]
        %v9112 = vld [vmem:[%s3 + $0x468] sm:$0xff]
        %v9113 = vld [vmem:[%s3 + $0x470] sm:$0xff]
        %v9114 = vld [vmem:[%s3 + $0x478] sm:$0xff]
        %v9115 = vld [vmem:[%s3 + $0x480] sm:$0xff]
        %v9116 = vld [vmem:[%s3 + $0x488] sm:$0xff]
        %v9117 = vld [vmem:[%s3 + $0x490] sm:$0xff]
        %v9118 = vld [vmem:[%s3 + $0x498] sm:$0xff]
        %v9119 = vld [vmem:[%s3 + $0x4a0] sm:$0xff]
        %v9120 = vld [vmem:[%s3 + $0x4a8] sm:$0xff]
        %v9121 = vld [vmem:[%s3 + $0x4b0] sm:$0xff]
        %v9122 = vld [vmem:[%s3 + $0x4b8] sm:$0xff]
        %v9123 = vld [vmem:[%s3 + $0x4c0] sm:$0xff]
        %v9124 = vld [vmem:[%s3 + $0x4c8] sm:$0xff]
        %v9125 = vld [vmem:[%s3 + $0x4d0] sm:$0xff]
        %v9126 = vld [vmem:[%s3 + $0x4d8] sm:$0xff]
        %v9127 = vld [vmem:[%s3 + $0x4e0] sm:$0xff]
        %v9128 = vld [vmem:[%s3 + $0x4e8] sm:$0xff]
        %v9129 = vld [vmem:[%s3 + $0x4f0] sm:$0xff]
        %v9130 = vld [vmem:[%s3 + $0x4f8] sm:$0xff]
        %v9131 = vld [vmem:[%s3 + $0x500] sm:$0xff]
        %v9132 = vld [vmem:[%s3 + $0x508] sm:$0xff]
        %v9133 = vld [vmem:[%s3 + $0x510] sm:$0xff]
        %v9134 = vld [vmem:[%s3 + $0x518] sm:$0xff]
        %v9135 = vld [vmem:[%s3 + $0x520] sm:$0xff]
        %v9136 = vld [vmem:[%s3 + $0x528] sm:$0xff]
        %v9137 = vld [vmem:[%s3 + $0x530] sm:$0xff]
        %v9138 = vld [vmem:[%s3 + $0x538] sm:$0xff]
        %v9139 = vld [vmem:[%s3 + $0x540] sm:$0xff]
        %v9140 = vld [vmem:[%s3 + $0x548] sm:$0xff]
        %v9141 = vld [vmem:[%s3 + $0x550] sm:$0xff]
        %v9142 = vld [vmem:[%s3 + $0x558] sm:$0xff]
        %v9143 = vld [vmem:[%s3 + $0x560] sm:$0xff]
        %v9144 = vld [vmem:[%s3 + $0x568] sm:$0xff]
        %v9145 = vld [vmem:[%s3 + $0x570] sm:$0xff]
        %v9146 = vld [vmem:[%s3 + $0x578] sm:$0xff]
        %v9147 = vld [vmem:[%s3 + $0x580] sm:$0xff]
        %v9148 = vld [vmem:[%s3 + $0x588] sm:$0xff]
        %v9149 = vld [vmem:[%s3 + $0x590] sm:$0xff]
        %v9150 = vld [vmem:[%s3 + $0x598] sm:$0xff]
        %v9151 = vld [vmem:[%s3 + $0x5a0] sm:$0xff]
        %v9152 = vld [vmem:[%s3 + $0x5a8] sm:$0xff]
        %v9153 = vld [vmem:[%s3 + $0x5b0] sm:$0xff]
        %v9154 = vld [vmem:[%s3 + $0x5b8] sm:$0xff]
        %v9155 = vld [vmem:[%s3 + $0x5c0] sm:$0xff]
        %v9156 = vld [vmem:[%s3 + $0x5c8] sm:$0xff]
        %v9157 = vld [vmem:[%s3 + $0x5d0] sm:$0xff]
        %v9158 = vld [vmem:[%s3 + $0x5d8] sm:$0xff]
        %v9159 = vld [vmem:[%s3 + $0x5e0] sm:$0xff]
        %v9160 = vld [vmem:[%s3 + $0x5e8] sm:$0xff]
        %v9161 = vld [vmem:[%s3 + $0x5f0] sm:$0xff]
        %v9162 = vld [vmem:[%s3 + $0x5f8] sm:$0xff]
        %v9163 = vld [vmem:[%s3 + $0x600] sm:$0xff]
        %v9164 = vld [vmem:[%s3 + $0x608] sm:$0xff]
        %v9165 = vld [vmem:[%s3 + $0x610] sm:$0xff]
        %v9166 = vld [vmem:[%s3 + $0x618] sm:$0xff]
        %v9167 = vld [vmem:[%s3 + $0x620] sm:$0xff]
        %v9168 = vld [vmem:[%s3 + $0x628] sm:$0xff]
        %v9169 = vld [vmem:[%s3 + $0x630] sm:$0xff]
        %v9170 = vld [vmem:[%s3 + $0x638] sm:$0xff]
        %v9171 = vld [vmem:[%s3 + $0x640] sm:$0xff]
        %v9172 = vld [vmem:[%s3 + $0x648] sm:$0xff]
        %v9173 = vld [vmem:[%s3 + $0x650] sm:$0xff]
        %v9174 = vld [vmem:[%s3 + $0x658] sm:$0xff]
        %v9175 = vld [vmem:[%s3 + $0x660] sm:$0xff]
        %v9176 = vld [vmem:[%s3 + $0x668] sm:$0xff]
        %v9177 = vld [vmem:[%s3 + $0x670] sm:$0xff]
        %v9178 = vld [vmem:[%s3 + $0x678] sm:$0xff]
        %v9179 = vld [vmem:[%s3 + $0x680] sm:$0xff]
        %v9180 = vld [vmem:[%s3 + $0x688] sm:$0xff]
        %v9181 = vld [vmem:[%s3 + $0x690] sm:$0xff]
        %v9182 = vld [vmem:[%s3 + $0x698] sm:$0xff]
        %v9183 = vld [vmem:[%s3 + $0x6a0] sm:$0xff]
        %v9184 = vld [vmem:[%s3 + $0x6a8] sm:$0xff]
        %v9185 = vld [vmem:[%s3 + $0x6b0] sm:$0xff]
        %v9186 = vld [vmem:[%s3 + $0x6b8] sm:$0xff]
        %v9187 = vld [vmem:[%s3 + $0x6c0] sm:$0xff]
        %v9188 = vld [vmem:[%s3 + $0x6c8] sm:$0xff]
        %v9189 = vld [vmem:[%s3 + $0x6d0] sm:$0xff]
        %v9190 = vld [vmem:[%s3 + $0x6d8] sm:$0xff]
        %v9191 = vld [vmem:[%s3 + $0x6e0] sm:$0xff]
        %v9192 = vld [vmem:[%s3 + $0x6e8] sm:$0xff]
        %v9193 = vld [vmem:[%s3 + $0x6f0] sm:$0xff]
        %v9194 = vld [vmem:[%s3 + $0x6f8] sm:$0xff]
        %v9195 = vld [vmem:[%s3 + $0x700] sm:$0xff]
        %v9196 = vld [vmem:[%s3 + $0x708] sm:$0xff]
        %v9197 = vld [vmem:[%s3 + $0x710] sm:$0xff]
        %v9198 = vld [vmem:[%s3 + $0x718] sm:$0xff]
        %v9199 = vld [vmem:[%s3 + $0x720] sm:$0xff]
        %v9200 = vld [vmem:[%s3 + $0x728] sm:$0xff]
        %v9201 = vld [vmem:[%s3 + $0x730] sm:$0xff]
        %v9202 = vld [vmem:[%s3 + $0x738] sm:$0xff]
        %v9203 = vld [vmem:[%s3 + $0x740] sm:$0xff]
        %v9204 = vld [vmem:[%s3 + $0x748] sm:$0xff]
        %v9205 = vld [vmem:[%s3 + $0x750] sm:$0xff]
        %v9206 = vld [vmem:[%s3 + $0x758] sm:$0xff]
        %v9207 = vld [vmem:[%s3 + $0x760] sm:$0xff]
        %v9208 = vld [vmem:[%s3 + $0x768] sm:$0xff]
        %v9209 = vld [vmem:[%s3 + $0x770] sm:$0xff]
        %v9210 = vld [vmem:[%s3 + $0x778] sm:$0xff]
        %v9211 = vld [vmem:[%s3 + $0x780] sm:$0xff]
        %v9212 = vld [vmem:[%s3 + $0x788] sm:$0xff]
        %v9213 = vld [vmem:[%s3 + $0x790] sm:$0xff]
        %v9214 = vld [vmem:[%s3 + $0x798] sm:$0xff]
        %v9215 = vld [vmem:[%s3 + $0x7a0] sm:$0xff]
        %v9216 = vld [vmem:[%s3 + $0x7a8] sm:$0xff]
        %v9217 = vld [vmem:[%s3 + $0x7b0] sm:$0xff]
        %v9218 = vld [vmem:[%s3 + $0x7b8] sm:$0xff]
        %v9219 = vld [vmem:[%s3 + $0x7c0] sm:$0xff]
        %v9220 = vld [vmem:[%s3 + $0x7c8] sm:$0xff]
        %v9221 = vld [vmem:[%s3 + $0x7d0] sm:$0xff]
        %v9222 = vld [vmem:[%s3 + $0x7d8] sm:$0xff]
        %v9223 = vld [vmem:[%s3 + $0x7e0] sm:$0xff]
        %v9224 = vld [vmem:[%s3 + $0x7e8] sm:$0xff]
        %v9225 = vld [vmem:[%s3 + $0x7f0] sm:$0xff]
        %v9226 = vld [vmem:[%s3 + $0x7f8] sm:$0xff]
        %v9227 = vld [vmem:[%s4] sm:$0xf]
        %v9229 = vlaneseq
        %v9230 = vshrl.u32 %v9229, 7
        %v9231 = vsub.s32 0, %v9230
        %v9232 = vrot.slane %v9227, %v9231
        %v9233 = vlaneseq
        %v9234 = vshrl.u32 %v9233, 7
        %v9235 = vsub.s32 1, %v9234
        %v9236 = vrot.slane %v9227, %v9235
        %v9237 = vlaneseq
        %v9238 = vshrl.u32 %v9237, 7
        %v9239 = vsub.s32 2, %v9238
        %v9240 = vrot.slane %v9227, %v9239
        %v9241 = vlaneseq
        %v9242 = vshrl.u32 %v9241, 7
        %v9243 = vsub.s32 3, %v9242
        %v9244 = vrot.slane %v9227, %v9243
        %9249 = vmatprep.subr.mxu0 %v9032
        %9250 = vmatpush1.msra.mxu0 %v9031
        %9251 = vmatprep.subr.mxu0 %v9028
        %9252 = vmatpush1.msra.mxu0 %v9027
        %9253 = vmatprep.subr.mxu0 %v9024
        %9254 = vmatpush1.msra.mxu0 %v9023
        %9255 = vmatprep.subr.mxu0 %v9020
        %9256 = vmatpush1.msra.mxu0 %v9019
        %9257 = vmatprep.subr.mxu0 %v9016
        %9258 = vmatpush1.msra.mxu0 %v9015
        %9259 = vmatprep.subr.mxu0 %v9012
        %9260 = vmatpush1.msra.mxu0 %v9011
        %9261 = vmatprep.subr.mxu0 %v9008
        %9262 = vmatpush1.msra.mxu0 %v9007
        %9263 = vmatprep.subr.mxu0 %v9004
        %9264 = vmatpush1.msra.mxu0 %v9003
        %9265 = vmatprep.subr.mxu0 %v9000
        %9266 = vmatpush1.msra.mxu0 %v8999
        %9267 = vmatprep.subr.mxu0 %v8996
        %9268 = vmatpush1.msra.mxu0 %v8995
        %9269 = vmatprep.subr.mxu0 %v8992
        %9270 = vmatpush1.msra.mxu0 %v8991
        %9271 = vmatprep.subr.mxu0 %v8988
        %9272 = vmatpush1.msra.mxu0 %v8987
        %9273 = vmatprep.subr.mxu0 %v8984
        %9274 = vmatpush1.msra.mxu0 %v8983
        %9275 = vmatprep.subr.mxu0 %v8980
        %9276 = vmatpush1.msra.mxu0 %v8979
        %9277 = vmatprep.subr.mxu0 %v8976
        %9278 = vmatpush1.msra.mxu0 %v8975
        %9279 = vmatprep.subr.mxu0 %v8972
        %9280 = vmatpush1.msra.mxu0 %v8971
        %9281 = vmatprep.subr.mxu0 %v9096
        %9282 = vmatpush2.msra.mxu0 %v9095
        %9283 = vmatprep.subr.mxu0 %v9092
        %9284 = vmatpush2.msra.mxu0 %v9091
        %9285 = vmatprep.subr.mxu0 %v9088
        %9286 = vmatpush2.msra.mxu0 %v9087
        %9287 = vmatprep.subr.mxu0 %v9084
        %9288 = vmatpush2.msra.mxu0 %v9083
        %9289 = vmatprep.subr.mxu0 %v9080
        %9290 = vmatpush2.msra.mxu0 %v9079
        %9291 = vmatprep.subr.mxu0 %v9076
        %9292 = vmatpush2.msra.mxu0 %v9075
        %9293 = vmatprep.subr.mxu0 %v9072
        %9294 = vmatpush2.msra.mxu0 %v9071
        %9295 = vmatprep.subr.mxu0 %v9068
        %9296 = vmatpush2.msra.mxu0 %v9067
        %9297 = vmatprep.subr.mxu0 %v9064
        %9298 = vmatpush2.msra.mxu0 %v9063
        %9299 = vmatprep.subr.mxu0 %v9060
        %9300 = vmatpush2.msra.mxu0 %v9059
        %9301 = vmatprep.subr.mxu0 %v9056
        %9302 = vmatpush2.msra.mxu0 %v9055
        %9303 = vmatprep.subr.mxu0 %v9052
        %9304 = vmatpush2.msra.mxu0 %v9051
        %9305 = vmatprep.subr.mxu0 %v9048
        %9306 = vmatpush2.msra.mxu0 %v9047
        %9307 = vmatprep.subr.mxu0 %v9044
        %9308 = vmatpush2.msra.mxu0 %v9043
        %9309 = vmatprep.subr.mxu0 %v9040
        %9310 = vmatpush2.msra.mxu0 %v9039
        %9311 = vmatprep.subr.mxu0 %v9036
        %9312 = vmatpush2.msra.mxu0 %v9035
        %9313 = vmatprep.mubr.f32.mxu0 %v8968
        %9314 = vmatmul.mubr.f32.gmra.mxu0 %v8967
        %v9315 = vpop.f32.mrf.mxu0
        %v9316 = vadd.f32 %v9232, %v9315
        %v9317 = vpop.f32.mrf.mxu0
        %v9318 = vadd.f32 %v9236, %v9317
        %9319 = vdwg.mxu0
        %9320 = vmatprep.subr.mxu0 %v9160
        %9321 = vmatpush1.msra.mxu0 %v9159
        %9322 = vmatprep.subr.mxu0 %v9156
        %9323 = vmatpush1.msra.mxu0 %v9155
        %9324 = vmatprep.subr.mxu0 %v9152
        %9325 = vmatpush1.msra.mxu0 %v9151
        %9326 = vmatprep.subr.mxu0 %v9148
        %9327 = vmatpush1.msra.mxu0 %v9147
        %9328 = vmatprep.subr.mxu0 %v9144
        %9329 = vmatpush1.msra.mxu0 %v9143
        %9330 = vmatprep.subr.mxu0 %v9140
        %9331 = vmatpush1.msra.mxu0 %v9139
        %9332 = vmatprep.subr.mxu0 %v9136
        %9333 = vmatpush1.msra.mxu0 %v9135
        %9334 = vmatprep.subr.mxu0 %v9132
        %9335 = vmatpush1.msra.mxu0 %v9131
        %9336 = vmatprep.subr.mxu0 %v9128
        %9337 = vmatpush1.msra.mxu0 %v9127
        %9338 = vmatprep.subr.mxu0 %v9124
        %9339 = vmatpush1.msra.mxu0 %v9123
        %9340 = vmatprep.subr.mxu0 %v9120
        %9341 = vmatpush1.msra.mxu0 %v9119
        %9342 = vmatprep.subr.mxu0 %v9116
        %9343 = vmatpush1.msra.mxu0 %v9115
        %9344 = vmatprep.subr.mxu0 %v9112
        %9345 = vmatpush1.msra.mxu0 %v9111
        %9346 = vmatprep.subr.mxu0 %v9108
        %9347 = vmatpush1.msra.mxu0 %v9107
        %9348 = vmatprep.subr.mxu0 %v9104
        %9349 = vmatpush1.msra.mxu0 %v9103
        %9350 = vmatprep.subr.mxu0 %v9100
        %9351 = vmatpush1.msra.mxu0 %v9099
        %9352 = vmatprep.subr.mxu0 %v9224
        %9353 = vmatpush2.msra.mxu0 %v9223
        %9354 = vmatprep.subr.mxu0 %v9220
        %9355 = vmatpush2.msra.mxu0 %v9219
        %9356 = vmatprep.subr.mxu0 %v9216
        %9357 = vmatpush2.msra.mxu0 %v9215
        %9358 = vmatprep.subr.mxu0 %v9212
        %9359 = vmatpush2.msra.mxu0 %v9211
        %9360 = vmatprep.subr.mxu0 %v9208
        %9361 = vmatpush2.msra.mxu0 %v9207
        %9362 = vmatprep.subr.mxu0 %v9204
        %9363 = vmatpush2.msra.mxu0 %v9203
        %9364 = vmatprep.subr.mxu0 %v9200
        %9365 = vmatpush2.msra.mxu0 %v9199
        %9366 = vmatprep.subr.mxu0 %v9196
        %9367 = vmatpush2.msra.mxu0 %v9195
        %9368 = vmatprep.subr.mxu0 %v9192
        %9369 = vmatpush2.msra.mxu0 %v9191
        %9370 = vmatprep.subr.mxu0 %v9188
        %9371 = vmatpush2.msra.mxu0 %v9187
        %9372 = vmatprep.subr.mxu0 %v9184
        %9373 = vmatpush2.msra.mxu0 %v9183
        %9374 = vmatprep.subr.mxu0 %v9180
        %9375 = vmatpush2.msra.mxu0 %v9179
        %9376 = vmatprep.subr.mxu0 %v9176
        %9377 = vmatpush2.msra.mxu0 %v9175
        %9378 = vmatprep.subr.mxu0 %v9172
        %9379 = vmatpush2.msra.mxu0 %v9171
        %9380 = vmatprep.subr.mxu0 %v9168
        %9381 = vmatpush2.msra.mxu0 %v9167
        %9382 = vmatprep.subr.mxu0 %v9164
        %9383 = vmatpush2.msra.mxu0 %v9163
        %9384 = vmatprep.mubr.f32.mxu0 %v8970
        %9385 = vmatmul.mubr.f32.gmra.mxu0 %v8969
        %v9386 = vpop.f32.mrf.mxu0
        %v9387 = vadd.f32 %v9316, %v9386
        %v9388 = vpop.f32.mrf.mxu0
        %v9389 = vadd.f32 %v9318, %v9388
        %9390 = vdwg.mxu0
        %9391 = vmatprep.subr.mxu0 %v9034
        %9392 = vmatpush1.msra.mxu0 %v9033
        %9393 = vmatprep.subr.mxu0 %v9030
        %9394 = vmatpush1.msra.mxu0 %v9029
        %9395 = vmatprep.subr.mxu0 %v9026
        %9396 = vmatpush1.msra.mxu0 %v9025
        %9397 = vmatprep.subr.mxu0 %v9022
        %9398 = vmatpush1.msra.mxu0 %v9021
        %9399 = vmatprep.subr.mxu0 %v9018
        %9400 = vmatpush1.msra.mxu0 %v9017
        %9401 = vmatprep.subr.mxu0 %v9014
        %9402 = vmatpush1.msra.mxu0 %v9013
        %9403 = vmatprep.subr.mxu0 %v9010
        %9404 = vmatpush1.msra.mxu0 %v9009
        %9405 = vmatprep.subr.mxu0 %v9006
        %9406 = vmatpush1.msra.mxu0 %v9005
        %9407 = vmatprep.subr.mxu0 %v9002
        %9408 = vmatpush1.msra.mxu0 %v9001
        %9409 = vmatprep.subr.mxu0 %v8998
        %9410 = vmatpush1.msra.mxu0 %v8997
        %9411 = vmatprep.subr.mxu0 %v8994
        %9412 = vmatpush1.msra.mxu0 %v8993
        %9413 = vmatprep.subr.mxu0 %v8990
        %9414 = vmatpush1.msra.mxu0 %v8989
        %9415 = vmatprep.subr.mxu0 %v8986
        %9416 = vmatpush1.msra.mxu0 %v8985
        %9417 = vmatprep.subr.mxu0 %v8982
        %9418 = vmatpush1.msra.mxu0 %v8981
        %9419 = vmatprep.subr.mxu0 %v8978
        %9420 = vmatpush1.msra.mxu0 %v8977
        %9421 = vmatprep.subr.mxu0 %v8974
        %9422 = vmatpush1.msra.mxu0 %v8973
        %9423 = vmatprep.subr.mxu0 %v9098
        %9424 = vmatpush2.msra.mxu0 %v9097
        %9425 = vmatprep.subr.mxu0 %v9094
        %9426 = vmatpush2.msra.mxu0 %v9093
        %9427 = vmatprep.subr.mxu0 %v9090
        %9428 = vmatpush2.msra.mxu0 %v9089
        %9429 = vmatprep.subr.mxu0 %v9086
        %9430 = vmatpush2.msra.mxu0 %v9085
        %9431 = vmatprep.subr.mxu0 %v9082
        %9432 = vmatpush2.msra.mxu0 %v9081
        %9433 = vmatprep.subr.mxu0 %v9078
        %9434 = vmatpush2.msra.mxu0 %v9077
        %9435 = vmatprep.subr.mxu0 %v9074
        %9436 = vmatpush2.msra.mxu0 %v9073
        %9437 = vmatprep.subr.mxu0 %v9070
        %9438 = vmatpush2.msra.mxu0 %v9069
        %9439 = vmatprep.subr.mxu0 %v9066
        %9440 = vmatpush2.msra.mxu0 %v9065
        %9441 = vmatprep.subr.mxu0 %v9062
        %9442 = vmatpush2.msra.mxu0 %v9061
        %9443 = vmatprep.subr.mxu0 %v9058
        %9444 = vmatpush2.msra.mxu0 %v9057
        %9445 = vmatprep.subr.mxu0 %v9054
        %9446 = vmatpush2.msra.mxu0 %v9053
        %9447 = vmatprep.subr.mxu0 %v9050
        %9448 = vmatpush2.msra.mxu0 %v9049
        %9449 = vmatprep.subr.mxu0 %v9046
        %9450 = vmatpush2.msra.mxu0 %v9045
        %9451 = vmatprep.subr.mxu0 %v9042
        %9452 = vmatpush2.msra.mxu0 %v9041
        %9453 = vmatprep.subr.mxu0 %v9038
        %9454 = vmatpush2.msra.mxu0 %v9037
        %9455 = vmatprep.mubr.f32.mxu0 %v8968
        %9456 = vmatmul.mubr.f32.gmra.mxu0 %v8967
        %v9457 = vpop.f32.mrf.mxu0
        %v9458 = vadd.f32 %v9240, %v9457
        %v9459 = vpop.f32.mrf.mxu0
        %v9460 = vadd.f32 %v9244, %v9459
        %9461 = vdwg.mxu0
        %9462 = vmatprep.subr.mxu0 %v9162
        %9463 = vmatpush1.msra.mxu0 %v9161
        %9464 = vmatprep.subr.mxu0 %v9158
        %9465 = vmatpush1.msra.mxu0 %v9157
        %9466 = vmatprep.subr.mxu0 %v9154
        %9467 = vmatpush1.msra.mxu0 %v9153
        %9468 = vmatprep.subr.mxu0 %v9150
        %9469 = vmatpush1.msra.mxu0 %v9149
        %9470 = vmatprep.subr.mxu0 %v9146
        %9471 = vmatpush1.msra.mxu0 %v9145
        %9472 = vmatprep.subr.mxu0 %v9142
        %9473 = vmatpush1.msra.mxu0 %v9141
        %9474 = vmatprep.subr.mxu0 %v9138
        %9475 = vmatpush1.msra.mxu0 %v9137
        %9476 = vmatprep.subr.mxu0 %v9134
        %9477 = vmatpush1.msra.mxu0 %v9133
        %9478 = vmatprep.subr.mxu0 %v9130
        %9479 = vmatpush1.msra.mxu0 %v9129
        %9480 = vmatprep.subr.mxu0 %v9126
        %9481 = vmatpush1.msra.mxu0 %v9125
        %9482 = vmatprep.subr.mxu0 %v9122
        %9483 = vmatpush1.msra.mxu0 %v9121
        %9484 = vmatprep.subr.mxu0 %v9118
        %9485 = vmatpush1.msra.mxu0 %v9117
        %9486 = vmatprep.subr.mxu0 %v9114
        %9487 = vmatpush1.msra.mxu0 %v9113
        %9488 = vmatprep.subr.mxu0 %v9110
        %9489 = vmatpush1.msra.mxu0 %v9109
        %9490 = vmatprep.subr.mxu0 %v9106
        %9491 = vmatpush1.msra.mxu0 %v9105
        %9492 = vmatprep.subr.mxu0 %v9102
        %9493 = vmatpush1.msra.mxu0 %v9101
        %9494 = vmatprep.subr.mxu0 %v9226
        %9495 = vmatpush2.msra.mxu0 %v9225
        %9496 = vmatprep.subr.mxu0 %v9222
        %9497 = vmatpush2.msra.mxu0 %v9221
        %9498 = vmatprep.subr.mxu0 %v9218
        %9499 = vmatpush2.msra.mxu0 %v9217
        %9500 = vmatprep.subr.mxu0 %v9214
        %9501 = vmatpush2.msra.mxu0 %v9213
        %9502 = vmatprep.subr.mxu0 %v9210
        %9503 = vmatpush2.msra.mxu0 %v9209
        %9504 = vmatprep.subr.mxu0 %v9206
        %9505 = vmatpush2.msra.mxu0 %v9205
        %9506 = vmatprep.subr.mxu0 %v9202
        %9507 = vmatpush2.msra.mxu0 %v9201
        %9508 = vmatprep.subr.mxu0 %v9198
        %9509 = vmatpush2.msra.mxu0 %v9197
        %9510 = vmatprep.subr.mxu0 %v9194
        %9511 = vmatpush2.msra.mxu0 %v9193
        %9512 = vmatprep.subr.mxu0 %v9190
        %9513 = vmatpush2.msra.mxu0 %v9189
        %9514 = vmatprep.subr.mxu0 %v9186
        %9515 = vmatpush2.msra.mxu0 %v9185
        %9516 = vmatprep.subr.mxu0 %v9182
        %9517 = vmatpush2.msra.mxu0 %v9181
        %9518 = vmatprep.subr.mxu0 %v9178
        %9519 = vmatpush2.msra.mxu0 %v9177
        %9520 = vmatprep.subr.mxu0 %v9174
        %9521 = vmatpush2.msra.mxu0 %v9173
        %9522 = vmatprep.subr.mxu0 %v9170
        %9523 = vmatpush2.msra.mxu0 %v9169
        %9524 = vmatprep.subr.mxu0 %v9166
        %9525 = vmatpush2.msra.mxu0 %v9165
        %9526 = vmatprep.mubr.f32.mxu0 %v8970
        %9527 = vmatmul.mubr.f32.gmra.mxu0 %v8969
        %v9528 = vpop.f32.mrf.mxu0
        %v9529 = vadd.f32 %v9458, %v9528
        %v9530 = vpop.f32.mrf.mxu0
        %v9531 = vadd.f32 %v9460, %v9530
        %9532 = vdwg.mxu0
        %9533 = vst [vmem:[%s246] sm:$0xff] %v9387
        %9534 = vst [vmem:[%s246 + $0x8] sm:$0xff] %v9389
        %9535 = vst [vmem:[%s246 + $0x10] sm:$0xff] %v9529
        %9536 = vst [vmem:[%s246 + $0x18] sm:$0xff] %v9531
        %s9537 = sand.u32 %s155, 1
        %s9538 = scalar_lea.sflag [#allocation5], %s9537
        %s9539 = sand.u32 %s155, 1
        %s9540 = smul.addr %s9539, 32
        %s9541 = scalar_lea.vmem [#allocation4], %s9540
        // Predicated region
        $region41: #{tpu_custom_call.1} parent=39 // pred_check
          %p9542 = pneg %p165
        $region42: #{tpu_custom_call.1} parent=39 // pred_check_branch
          %9544 = sbr.rel (%p9542) target = $region44
        $region43: #{tpu_custom_call.1} parent=39 // pred_region
          %s9546 = ssub.s32 512, 512
          %9547 = vsyncadd %s9538, %s9546
          %s9548 = smul.addr %s26, 4
          %s9549 = smul.addr %s25, 4
          %s9550 = sadd.s32 %s9548, %s9549
          %s9551 = smul.addr %s9550, 128
          %s9552 = scalar_lea.hbm %s5, %s9551
          %s9554 = sshll.u32 %s9541, 4
          %s9555 = int_to_ptr.vmem [resolvable:$true] %s9554
          %9557 = dma.vmem_to_hbm [thread:$0]  %s9555, 512, %s9552, %s9538
        $region44: #{tpu_custom_call.1} parent=39 // pred_fallthru
          _
      $region40: #{tpu_custom_call.1} parent=5 // pred_fallthru
        _
      %p9558 = scmp.le.s32.totalorder 2, %s16
      // Predicated region
      $region45: #{tpu_custom_call.1} parent=5 // pred_check
        %p9559 = pneg %p9558
      $region46: #{tpu_custom_call.1} parent=5 // pred_check_branch
        %9561 = sbr.rel (%p9559) target = $region48
      $region47: #{tpu_custom_call.1} parent=5 // pred_region
        %s9562 = ssub.s32 %s16, 2
        // Predicated region
        $region49: #{tpu_custom_call.1} parent=47 // pred_check
          %p9563 = pneg %p171
        $region50: #{tpu_custom_call.1} parent=47 // pred_check_branch
          %9565 = sbr.rel (%p9563) target = $region52
        $region51: #{tpu_custom_call.1} parent=47 // pred_region
          %s9566 = sand.u32 %s156, 1
          %s9567 = scalar_lea.sflag [#allocation5], %s9566
          %s9568 = sand.u32 %s156, 1
          %s9569 = smul.addr %s9568, 32
          %s9570 = scalar_lea.vmem [#allocation4], %s9569
          %9571 = dma.done %s9567, 512
        $region52: #{tpu_custom_call.1} parent=47 // pred_fallthru
          _
      $region48: #{tpu_custom_call.1} parent=5 // pred_fallthru
        _
    $region6: #{tpu_custom_call.1} parent=1 // loop_footer
      %s20 = sadd.s32 1, %s16
    $region7: #{tpu_custom_call.1} parent=1 // loop_footer_branch
      %15 = sbr.rel target = $region3
    $region8: #{tpu_custom_call.1} parent=1 // loop_exit
      _
    %9572 = vsyncpa [#allocation5], 1
    %s9573 = scalar_lea.sflag [#allocation5], 1
    %9574 = vsyncpa %s9573, 1

</llo_original>
